<compile_context>
chip_gen: v7x
topology: tpu7x:2x2x1
jax: 0.10.0
libtpu: 0.0.40
codegen_flags: <defaults>
</compile_context>

<pallas_src>
import functools

import jax
import jax.numpy as jnp
from jax import lax
from jax.experimental import pallas as pl
from jax.experimental.pallas import tpu as pltpu

KERNEL_SIZES = (1, 3, 5, 7, 9, 11, 13, 15)   # synthesized candidate conv sizes
KMAX = 15
PAD = KMAX // 2                              # 7 (halo for the largest kernel)
C_MID = 32                                   # Cell interior channel width
OPERATION_NUMBER = 3                         # Cell(operation_number=3) -> 6 edges
N_EDGES = 6
N_TAM_OPS = 6                                # Cell(C, 3, 6, 'TAM')
N_CAM_OPS = 8                                # Cell(1, 3, 8, 'CAM')
BIAS_ROWS = 8                                # trailing im2col block; row 0 = ones
_EDGE_ACTS = ("relu", "relu", "relu", "sigmoid", "sigmoid", "sigmoid")
_EDGE_COUT = (C_MID, C_MID, C_MID, 1, 1, 1)
# Edges grouped by which unfold buffer feeds them (u0, u1, u2); each group is
# packed into ONE weight matrix -> one MXU matmul per group.
EDGE_GROUPS = ((0, 1, 3), (2, 4), (5,))


def _round_up(v, m):
    return ((v + m - 1) // m) * m


def _c_pad_for(c):
    # uniform padded channel count of the im2col layout (shared by all edges)
    return max(C_MID, _round_up(c, 8))


# ----------------------------------------------------------------------------
# In-kernel helpers
# ----------------------------------------------------------------------------
def _init_bias_rows(u_ref, c_pad):
    """Write the trailing 8-row bias block (row 0 = ones) once; unfold refills
    never touch these rows, so this survives all subsequent _fill_unfold calls."""
    l_max = u_ref.shape[1]
    rows = lax.broadcasted_iota(jnp.int32, (BIAS_ROWS, l_max), 0)
    u_ref[KMAX * c_pad:KMAX * c_pad + BIAS_ROWS, :] = (
        jnp.where(rows == 0, 1.0, 0.0).astype(jnp.float32))


def _fill_unfold(x2d, l_out, c_pad, xp_ref, u_ref):
    """Write the im2col ("unfold") of x2d into u_ref[:KMAX*c_pad, :l_out].

    u row (k*c_pad + ci), col j  =  x2d[ci, j + k - PAD]  (zero outside).
    Only masked stores / static slices are used (no concat/pad inside kernel).
    """
    c_rows = x2d.shape[0]
    xp_ref[...] = jnp.zeros(xp_ref.shape, jnp.float32)          # clear halo + stale
    xp_ref[0:c_rows, PAD:PAD + l_out] = x2d
    for k in range(KMAX):                                       # static unroll
        u_ref[k * c_pad:(k + 1) * c_pad, 0:l_out] = xp_ref[:, k:k + l_out]


def _mixed_group(u_ref, l_out, w_ref, alpha_ref, edges, n_ops):
    """Several MixedOp edges sharing one unfold buffer, as ONE matmul.

    Returns one (c_out, l_out) array per edge:
        sum_o alpha[edge, o] * act_edge(conv_o(x) + b_o)
    """
    u = u_ref[:, 0:l_out]                                       # (NU, l_out)
    y = jnp.dot(w_ref[...], u, preferred_element_type=jnp.float32)
    outs, row = [], 0
    for edge in edges:
        c_out = _EDGE_COUT[edge]
        blk = y[row:row + n_ops * c_out, :]
        blk = (jnp.maximum(blk, 0.0) if _EDGE_ACTS[edge] == "relu"
               else jax.nn.sigmoid(blk))
        acc = alpha_ref[edge, 0] * blk[0:c_out, :]               # alpha from SMEM
        for o in range(1, n_ops):
            acc = acc + alpha_ref[edge, o] * blk[o * c_out:(o + 1) * c_out, :]
        outs.append(acc)
        row += n_ops * c_out
    return outs


def _cell_fwd(x2d, l_out, c_pad, w_groups, alpha_ref, n_ops, xp_ref, uA_ref, uB_ref):
    """NAS Cell (operation_number=3): DAG of 6 mixed edges -> (1, l_out).

    Edge DAG (total_index order):
      a1 = e0(x);  a2 = e1(x) + e2(a1);  a3 = e3(x) + e4(a1) + e5(a2);  out = a3/3
    Edges are grouped by input: {0,1,3} on unfold(x), {2,4} on unfold(a1),
    {5} on unfold(a2) -> 3 matmuls total.
    """
    _fill_unfold(x2d, l_out, c_pad, xp_ref, uA_ref)             # u0 = unfold(x)
    a1, e1, e3 = _mixed_group(uA_ref, l_out, w_groups[0], alpha_ref,
                              EDGE_GROUPS[0], n_ops)
    _fill_unfold(a1, l_out, c_pad, xp_ref, uB_ref)              # u1 = unfold(a1)
    e2, e4 = _mixed_group(uB_ref, l_out, w_groups[1], alpha_ref,
                          EDGE_GROUPS[1], n_ops)
    _fill_unfold(e1 + e2, l_out, c_pad, xp_ref, uA_ref)         # u2 (u0 dead; reuse uA)
    (e5,) = _mixed_group(uA_ref, l_out, w_groups[2], alpha_ref,
                         EDGE_GROUPS[2], n_ops)
    return (e3 + e4 + e5) * (1.0 / OPERATION_NUMBER)            # (1, l_out)


# ----------------------------------------------------------------------------
# Fused TCAM_S kernel: TAM cell + temporal gating + CAM cell + channel gating
# ----------------------------------------------------------------------------
def _tcam_s_kernel(x_ref,
                   tg0, tg1, tg2,
                   cg0, cg1, cg2,
                   ta_ref, ca_ref,
                   o_ref,
                   xp_ref, uA_ref, uB_ref,
                   *, C, L, c_pad):
    # bias/ones rows written once; unfold refills never overwrite them
    _init_bias_rows(uA_ref, c_pad)
    _init_bias_rows(uB_ref, c_pad)

    x = x_ref[0]                                                # (C, L)

    # ---- TAM: temporal attention over the length axis -> (1, L) ----
    tam_attn = _cell_fwd(x, L, c_pad, (tg0, tg1, tg2),
                         ta_ref, N_TAM_OPS, xp_ref, uA_ref, uB_ref)
    tam_out = x * tam_attn                                      # broadcast over channels

    # ---- CAM input: per-channel mean over length, laid out as (1, C) ----
    ones_row = jnp.ones((1, L), jnp.float32)
    cm = lax.dot_general(ones_row, tam_out,                     # (1,L) @ (C,L)^T -> (1,C)
                         dimension_numbers=(((1,), (1,)), ((), ())),
                         preferred_element_type=jnp.float32) * (1.0 / L)

    # ---- CAM: channel attention over the channel axis -> (1, C) ----
    cam_attn = _cell_fwd(cm, C, c_pad, (cg0, cg1, cg2),
                         ca_ref, N_CAM_OPS, xp_ref, uA_ref, uB_ref)

    # (1, C) -> (C, 1) via identity matmul on the MXU (avoids a relayout)
    ri = lax.broadcasted_iota(jnp.int32, (C, C), 0)
    ci = lax.broadcasted_iota(jnp.int32, (C, C), 1)
    eye_c = jnp.where(ri == ci, 1.0, 0.0).astype(jnp.float32)
    cam_col = lax.dot_general(eye_c, cam_attn,
                              dimension_numbers=(((1,), (1,)), ((), ())),
                              preferred_element_type=jnp.float32)   # (C, 1)

    o_ref[0] = tam_out * cam_col


def tcam_s_forward(x, tam_w_groups, cam_w_groups, tam_alpha, cam_alpha):
    """x: (B, C, L) f32.  tam/cam_w_groups: 3 packed edge-group matrices each.
    tam_alpha: (6, 6), cam_alpha: (6, 8) architecture weights."""
    B, C, L = x.shape
    c_pad = _c_pad_for(C)
    nu = c_pad * KMAX + BIAS_ROWS
    l_max = max(L, C)
    w_all = list(tam_w_groups) + list(cam_w_groups)
    kernel = functools.partial(_tcam_s_kernel, C=C, L=L, c_pad=c_pad)
    return pl.pallas_call(
        kernel,
        out_shape=jax.ShapeDtypeStruct((B, C, L), jnp.float32),
        grid=(B,),
        in_specs=(
            [pl.BlockSpec((1, C, L), lambda b: (b, 0, 0))]
            + [pl.BlockSpec(w.shape, lambda b: (0, 0)) for w in w_all]   # invariant weights
            + [pl.BlockSpec(memory_space=pltpu.MemorySpace.SMEM)] * 2    # alphas -> SMEM
        ),
        out_specs=pl.BlockSpec((1, C, L), lambda b: (b, 0, 0)),
        scratch_shapes=[
            pltpu.VMEM((c_pad, l_max + 2 * PAD), jnp.float32),   # padded-input holder
            pltpu.VMEM((nu, l_max), jnp.float32),                # u0 / u2 (im2col slab)
            pltpu.VMEM((nu, l_max), jnp.float32),                # u1
        ],
        compiler_params=pltpu.CompilerParams(
            dimension_semantics=("parallel",),                   # batch rows across TCs
        ),
    )(x, *w_all, tam_alpha, cam_alpha)


# ----------------------------------------------------------------------------
# Parameter construction (deterministic, synthetic) + weight packing
# ----------------------------------------------------------------------------
def init_mixed_edge_raw(key, c_in, c_out, n_ops):
    keys = jax.random.split(key, 2 * n_ops)
    ws, bs = [], []
    for o in range(n_ops):
        ks = KERNEL_SIZES[o]
        w = jax.random.normal(keys[2 * o], (c_out, c_in, ks), jnp.float32) / jnp.sqrt(c_in * ks)
        b = 0.1 * jax.random.normal(keys[2 * o + 1], (c_out,), jnp.float32)
        ws.append(w)
        bs.append(b)
    return ws, bs


def pack_mixed_edge(raw_ws, raw_bs, c_pad):
    """Pack candidate convs into one (n_ops*c_out, c_pad*KMAX + 8) matrix:
    column (k*c_pad + ci) = tap k / channel ci (centred == padding=k//2),
    column c_pad*KMAX = bias (multiplied by the im2col ones row)."""
    rows = []
    for w, b in zip(raw_ws, raw_bs):
        c_out, c_in, ks = w.shape
        off = (KMAX - ks) // 2
        wt = jnp.zeros((c_out, KMAX, c_pad), jnp.float32)
        wt = wt.at[:, off:off + ks, :c_in].set(jnp.transpose(w, (0, 2, 1)))
        rows.append(jnp.concatenate(
            [wt.reshape(c_out, KMAX * c_pad), b[:, None],
             jnp.zeros((c_out, BIAS_ROWS - 1), jnp.float32)], axis=1))
    return jnp.concatenate(rows, axis=0)


def _pad_rows(mat, mult=8):
    m = mat.shape[0]
    m_pad = _round_up(m, mult)
    if m_pad == m:
        return mat
    return jnp.concatenate(
        [mat, jnp.zeros((m_pad - m, mat.shape[1]), mat.dtype)], axis=0)


def _edge_channels(c_first):
    # MixedOp (c_in, c_out) per edge, in Cell total_index order
    return [(c_first, C_MID), (c_first, C_MID), (C_MID, C_MID),
            (c_first, 1), (C_MID, 1), (C_MID, 1)]


def build_cell_params(key, c_first, n_ops):
    raw = []
    for (ci, co) in _edge_channels(c_first):
        key, sub = jax.random.split(key)
        raw.append(init_mixed_edge_raw(sub, ci, co, n_ops))
    return raw


def pack_cell_params(raw_edges, c_pad):
    """Pack per-edge matrices, then concatenate edges sharing an unfold input
    (EDGE_GROUPS) into one matrix each; pad rows to a multiple of 8."""
    per_edge = [pack_mixed_edge(ws, bs, c_pad) for (ws, bs) in raw_edges]
    groups = []
    for grp in EDGE_GROUPS:
        mat = (per_edge[grp[0]] if len(grp) == 1
               else jnp.concatenate([per_edge[e] for e in grp], axis=0))
        groups.append(_pad_rows(mat))
    return groups


# ----------------------------------------------------------------------------
# Pure-JAX reference (lax.conv) for a numerical self-check
# ----------------------------------------------------------------------------
def _ref_mixed_edge(x, raw_ws, raw_bs, alpha, act, n_ops):
    out = 0.0
    for o in range(n_ops):
        w, b = raw_ws[o], raw_bs[o]
        ks = w.shape[-1]
        y = lax.conv_general_dilated(
            x, w, window_strides=(1,), padding=[(ks // 2, ks // 2)],
            dimension_numbers=("NCH", "OIH", "NCH"),
            precision=lax.Precision.HIGHEST) + b[None, :, None]
        y = jnp.maximum(y, 0.0) if act == "relu" else jax.nn.sigmoid(y)
        out = out + alpha[o] * y
    return out


def _ref_cell(x, raw_edges, alpha, n_ops):
    total, add_x, ti = [], x, 0
    for i in range(OPERATION_NUMBER):
        total.append(add_x)
        now = 0.0
        for j in range(i + 1):
            ws, bs = raw_edges[ti]
            now = _ref_mixed_edge(total[j], ws, bs, alpha[ti], _EDGE_ACTS[ti], n_ops) + now
            ti += 1
        add_x = now
    return add_x / OPERATION_NUMBER


def _ref_tcam_s(x, tam_raw, cam_raw, ta, ca):
    B, C, L = x.shape
    t = x * _ref_cell(x, tam_raw, ta, N_TAM_OPS)                       # TAM
    cm = jnp.mean(t, axis=2)[:, None, :]                               # (B, 1, C)
    return t * jnp.reshape(_ref_cell(cm, cam_raw, ca, N_CAM_OPS), (B, C, 1))   # CAM


# ----------------------------------------------------------------------------
if __name__ == "__main__":
    key = jax.random.PRNGKey(0)
    B, C, L = 2, 4, 16
    k_x, k_t, k_c, k_tw, k_cw = jax.random.split(key, 5)

    x = jax.random.normal(k_x, (B, C, L), jnp.float32)

    tam_raw = build_cell_params(k_t, C, N_TAM_OPS)     # TAM = Cell(C, 3, 6)
    cam_raw = build_cell_params(k_c, 1, N_CAM_OPS)     # CAM = Cell(1, 3, 8)
    c_pad = _c_pad_for(C)
    tam_packed = pack_cell_params(tam_raw, c_pad)
    cam_packed = pack_cell_params(cam_raw, c_pad)

    # architecture weights: one row per mixed edge, softmax over candidate ops
    tam_alpha = jax.nn.softmax(
        jax.random.normal(k_tw, (N_EDGES, N_TAM_OPS), jnp.float32), axis=-1)
    cam_alpha = jax.nn.softmax(
        jax.random.normal(k_cw, (N_EDGES, N_CAM_OPS), jnp.float32), axis=-1)

    out = tcam_s_forward(x, tam_packed, cam_packed, tam_alpha, cam_alpha)
    out = jax.block_until_ready(out)

    assert out.shape == (B, C, L), out.shape
    assert bool(jnp.all(jnp.isfinite(out)))

    ref = _ref_tcam_s(x, tam_raw, cam_raw, tam_alpha, cam_alpha)
    max_err = float(jnp.max(jnp.abs(out - ref)))
    assert bool(jnp.allclose(out, ref, rtol=2e-3, atol=2e-3)), max_err

    print("KERNEL_OK")
</pallas_src>

<mosaic_0001>
module attributes {stable_mosaic.version = 11 : i64} {
  func.func @_tcam_s_kernel(%arg0: i32, %arg1: memref<1x4x16xf32, #tpu.memory_space<vmem>>, %arg2: memref<392x488xf32, #tpu.memory_space<vmem>>, %arg3: memref<200x488xf32, #tpu.memory_space<vmem>>, %arg4: memref<8x488xf32, #tpu.memory_space<vmem>>, %arg5: memref<520x488xf32, #tpu.memory_space<vmem>>, %arg6: memref<264x488xf32, #tpu.memory_space<vmem>>, %arg7: memref<8x488xf32, #tpu.memory_space<vmem>>, %arg8: memref<6x6xf32, #tpu.memory_space<smem>>, %arg9: memref<6x8xf32, #tpu.memory_space<smem>>, %arg10: memref<1x4x16xf32, #tpu.memory_space<vmem>>, %arg11: memref<32x30xf32, #tpu.memory_space<vmem>>, %arg12: memref<488x16xf32, #tpu.memory_space<vmem>>, %arg13: memref<488x16xf32, #tpu.memory_space<vmem>>) attributes {dimension_semantics = [#tpu.dimension_semantics<parallel>], iteration_bounds = array<i64: 2>, scalar_prefetch = 0 : i64, scratch_operands = 3 : i64, tpu.core_type = #tpu.core_type<tc>, window_params = [{transform_indices = @transform_0, window_bounds = array<i64: 1, 4, 16>}, {pipeline_mode = #tpu.pipeline_mode<synchronous>, transform_indices = @transform_1, window_bounds = array<i64: 392, 488>}, {pipeline_mode = #tpu.pipeline_mode<synchronous>, transform_indices = @transform_2, window_bounds = array<i64: 200, 488>}, {pipeline_mode = #tpu.pipeline_mode<synchronous>, transform_indices = @transform_3, window_bounds = array<i64: 8, 488>}, {pipeline_mode = #tpu.pipeline_mode<synchronous>, transform_indices = @transform_4, window_bounds = array<i64: 520, 488>}, {pipeline_mode = #tpu.pipeline_mode<synchronous>, transform_indices = @transform_5, window_bounds = array<i64: 264, 488>}, {pipeline_mode = #tpu.pipeline_mode<synchronous>, transform_indices = @transform_6, window_bounds = array<i64: 8, 488>}, {transform_indices = @transform_7, window_bounds = array<i64: 6, 6>}, {transform_indices = @transform_8, window_bounds = array<i64: 6, 8>}, {transform_indices = @transform_9, window_bounds = array<i64: 1, 4, 16>}]} {
    %0 = tpu.iota {dimensions = array<i32: 0>} : vector<8x16xi32>
    %c0_i32 = arith.constant 0 : i32
    %1 = vector.broadcast %c0_i32 : i32 to vector<8x16xi32>
    %2 = arith.cmpi eq, %0, %1 : vector<8x16xi32>
    %cst = arith.constant 1.000000e+00 : f32
    %cst_0 = arith.constant 0.000000e+00 : f32
    %3 = vector.broadcast %cst : f32 to vector<8x16xf32>
    %4 = vector.broadcast %cst_0 : f32 to vector<8x16xf32>
    %5 = arith.select %2, %3, %4 : vector<8x16xi1>, vector<8x16xf32>
    %c480 = arith.constant 480 : index
    %c0 = arith.constant 0 : index
    %6 = vector.load %arg12[%c480, %c0] : memref<488x16xf32, #tpu.memory_space<vmem>>, vector<8x16xf32>
    tpu.vector_store %arg12[%c480, %c0], %5 {strides = array<i32>} : memref<488x16xf32, #tpu.memory_space<vmem>>, vector<8x16xf32>,
    %7 = tpu.iota {dimensions = array<i32: 0>} : vector<8x16xi32>
    %c0_i32_1 = arith.constant 0 : i32
    %8 = vector.broadcast %c0_i32_1 : i32 to vector<8x16xi32>
    %9 = arith.cmpi eq, %7, %8 : vector<8x16xi32>
    %cst_2 = arith.constant 1.000000e+00 : f32
    %cst_3 = arith.constant 0.000000e+00 : f32
    %10 = vector.broadcast %cst_2 : f32 to vector<8x16xf32>
    %11 = vector.broadcast %cst_3 : f32 to vector<8x16xf32>
    %12 = arith.select %9, %10, %11 : vector<8x16xi1>, vector<8x16xf32>
    %c480_4 = arith.constant 480 : index
    %c0_5 = arith.constant 0 : index
    %13 = vector.load %arg13[%c480_4, %c0_5] : memref<488x16xf32, #tpu.memory_space<vmem>>, vector<8x16xf32>
    tpu.vector_store %arg13[%c480_4, %c0_5], %12 {strides = array<i32>} : memref<488x16xf32, #tpu.memory_space<vmem>>, vector<8x16xf32>,
    %c0_6 = arith.constant 0 : index
    %c0_7 = arith.constant 0 : index
    %c0_8 = arith.constant 0 : index
    %14 = vector.load %arg1[%c0_6, %c0_7, %c0_8] : memref<1x4x16xf32, #tpu.memory_space<vmem>>, vector<1x4x16xf32>
    %15 = vector.shape_cast %14 : vector<1x4x16xf32> to vector<4x16xf32>
    %cst_9 = arith.constant 0.000000e+00 : f32
    %16 = vector.broadcast %cst_9 : f32 to vector<32x30xf32>
    %c0_10 = arith.constant 0 : index
    %c0_11 = arith.constant 0 : index
    %17 = vector.load %arg11[%c0_10, %c0_11] : memref<32x30xf32, #tpu.memory_space<vmem>>, vector<32x30xf32>
    tpu.vector_store %arg11[%c0_10, %c0_11], %16 {strides = array<i32>} : memref<32x30xf32, #tpu.memory_space<vmem>>, vector<32x30xf32>,
    %c0_12 = arith.constant 0 : index
    %c7 = arith.constant 7 : index
    %18 = vector.load %arg11[%c0_12, %c7] : memref<32x30xf32, #tpu.memory_space<vmem>>, vector<4x16xf32>
    tpu.vector_store %arg11[%c0_12, %c7], %15 {strides = array<i32>} : memref<32x30xf32, #tpu.memory_space<vmem>>, vector<4x16xf32>,
    %c0_13 = arith.constant 0 : index
    %c0_14 = arith.constant 0 : index
    %19 = vector.load %arg11[%c0_13, %c0_14] : memref<32x30xf32, #tpu.memory_space<vmem>>, vector<32x16xf32>
    %c0_15 = arith.constant 0 : index
    %c0_16 = arith.constant 0 : index
    %20 = vector.load %arg12[%c0_15, %c0_16] : memref<488x16xf32, #tpu.memory_space<vmem>>, vector<32x16xf32>
    tpu.vector_store %arg12[%c0_15, %c0_16], %19 {strides = array<i32>} : memref<488x16xf32, #tpu.memory_space<vmem>>, vector<32x16xf32>,
    %c0_17 = arith.constant 0 : index
    %c1 = arith.constant 1 : index
    %21 = vector.load %arg11[%c0_17, %c1] : memref<32x30xf32, #tpu.memory_space<vmem>>, vector<32x16xf32>
    %c32 = arith.constant 32 : index
    %c0_18 = arith.constant 0 : index
    %22 = vector.load %arg12[%c32, %c0_18] : memref<488x16xf32, #tpu.memory_space<vmem>>, vector<32x16xf32>
    tpu.vector_store %arg12[%c32, %c0_18], %21 {strides = array<i32>} : memref<488x16xf32, #tpu.memory_space<vmem>>, vector<32x16xf32>,
    %c0_19 = arith.constant 0 : index
    %c2 = arith.constant 2 : index
    %23 = vector.load %arg11[%c0_19, %c2] : memref<32x30xf32, #tpu.memory_space<vmem>>, vector<32x16xf32>
    %c64 = arith.constant 64 : index
    %c0_20 = arith.constant 0 : index
    %24 = vector.load %arg12[%c64, %c0_20] : memref<488x16xf32, #tpu.memory_space<vmem>>, vector<32x16xf32>
    tpu.vector_store %arg12[%c64, %c0_20], %23 {strides = array<i32>} : memref<488x16xf32, #tpu.memory_space<vmem>>, vector<32x16xf32>,
    %c0_21 = arith.constant 0 : index
    %c3 = arith.constant 3 : index
    %25 = vector.load %arg11[%c0_21, %c3] : memref<32x30xf32, #tpu.memory_space<vmem>>, vector<32x16xf32>
    %c96 = arith.constant 96 : index
    %c0_22 = arith.constant 0 : index
    %26 = vector.load %arg12[%c96, %c0_22] : memref<488x16xf32, #tpu.memory_space<vmem>>, vector<32x16xf32>
    tpu.vector_store %arg12[%c96, %c0_22], %25 {strides = array<i32>} : memref<488x16xf32, #tpu.memory_space<vmem>>, vector<32x16xf32>,
    %c0_23 = arith.constant 0 : index
    %c4 = arith.constant 4 : index
    %27 = vector.load %arg11[%c0_23, %c4] : memref<32x30xf32, #tpu.memory_space<vmem>>, vector<32x16xf32>
    %c128 = arith.constant 128 : index
    %c0_24 = arith.constant 0 : index
    %28 = vector.load %arg12[%c128, %c0_24] : memref<488x16xf32, #tpu.memory_space<vmem>>, vector<32x16xf32>
    tpu.vector_store %arg12[%c128, %c0_24], %27 {strides = array<i32>} : memref<488x16xf32, #tpu.memory_space<vmem>>, vector<32x16xf32>,
    %c0_25 = arith.constant 0 : index
    %c5 = arith.constant 5 : index
    %29 = vector.load %arg11[%c0_25, %c5] : memref<32x30xf32, #tpu.memory_space<vmem>>, vector<32x16xf32>
    %c160 = arith.constant 160 : index
    %c0_26 = arith.constant 0 : index
    %30 = vector.load %arg12[%c160, %c0_26] : memref<488x16xf32, #tpu.memory_space<vmem>>, vector<32x16xf32>
    tpu.vector_store %arg12[%c160, %c0_26], %29 {strides = array<i32>} : memref<488x16xf32, #tpu.memory_space<vmem>>, vector<32x16xf32>,
    %c0_27 = arith.constant 0 : index
    %c6 = arith.constant 6 : index
    %31 = vector.load %arg11[%c0_27, %c6] : memref<32x30xf32, #tpu.memory_space<vmem>>, vector<32x16xf32>
    %c192 = arith.constant 192 : index
    %c0_28 = arith.constant 0 : index
    %32 = vector.load %arg12[%c192, %c0_28] : memref<488x16xf32, #tpu.memory_space<vmem>>, vector<32x16xf32>
    tpu.vector_store %arg12[%c192, %c0_28], %31 {strides = array<i32>} : memref<488x16xf32, #tpu.memory_space<vmem>>, vector<32x16xf32>,
    %c0_29 = arith.constant 0 : index
    %c7_30 = arith.constant 7 : index
    %33 = vector.load %arg11[%c0_29, %c7_30] : memref<32x30xf32, #tpu.memory_space<vmem>>, vector<32x16xf32>
    %c224 = arith.constant 224 : index
    %c0_31 = arith.constant 0 : index
    %34 = vector.load %arg12[%c224, %c0_31] : memref<488x16xf32, #tpu.memory_space<vmem>>, vector<32x16xf32>
    tpu.vector_store %arg12[%c224, %c0_31], %33 {strides = array<i32>} : memref<488x16xf32, #tpu.memory_space<vmem>>, vector<32x16xf32>,
    %c0_32 = arith.constant 0 : index
    %c8 = arith.constant 8 : index
    %35 = vector.load %arg11[%c0_32, %c8] : memref<32x30xf32, #tpu.memory_space<vmem>>, vector<32x16xf32>
    %c256 = arith.constant 256 : index
    %c0_33 = arith.constant 0 : index
    %36 = vector.load %arg12[%c256, %c0_33] : memref<488x16xf32, #tpu.memory_space<vmem>>, vector<32x16xf32>
    tpu.vector_store %arg12[%c256, %c0_33], %35 {strides = array<i32>} : memref<488x16xf32, #tpu.memory_space<vmem>>, vector<32x16xf32>,
    %c0_34 = arith.constant 0 : index
    %c9 = arith.constant 9 : index
    %37 = vector.load %arg11[%c0_34, %c9] : memref<32x30xf32, #tpu.memory_space<vmem>>, vector<32x16xf32>
    %c288 = arith.constant 288 : index
    %c0_35 = arith.constant 0 : index
    %38 = vector.load %arg12[%c288, %c0_35] : memref<488x16xf32, #tpu.memory_space<vmem>>, vector<32x16xf32>
    tpu.vector_store %arg12[%c288, %c0_35], %37 {strides = array<i32>} : memref<488x16xf32, #tpu.memory_space<vmem>>, vector<32x16xf32>,
    %c0_36 = arith.constant 0 : index
    %c10 = arith.constant 10 : index
    %39 = vector.load %arg11[%c0_36, %c10] : memref<32x30xf32, #tpu.memory_space<vmem>>, vector<32x16xf32>
    %c320 = arith.constant 320 : index
    %c0_37 = arith.constant 0 : index
    %40 = vector.load %arg12[%c320, %c0_37] : memref<488x16xf32, #tpu.memory_space<vmem>>, vector<32x16xf32>
    tpu.vector_store %arg12[%c320, %c0_37], %39 {strides = array<i32>} : memref<488x16xf32, #tpu.memory_space<vmem>>, vector<32x16xf32>,
    %c0_38 = arith.constant 0 : index
    %c11 = arith.constant 11 : index
    %41 = vector.load %arg11[%c0_38, %c11] : memref<32x30xf32, #tpu.memory_space<vmem>>, vector<32x16xf32>
    %c352 = arith.constant 352 : index
    %c0_39 = arith.constant 0 : index
    %42 = vector.load %arg12[%c352, %c0_39] : memref<488x16xf32, #tpu.memory_space<vmem>>, vector<32x16xf32>
    tpu.vector_store %arg12[%c352, %c0_39], %41 {strides = array<i32>} : memref<488x16xf32, #tpu.memory_space<vmem>>, vector<32x16xf32>,
    %c0_40 = arith.constant 0 : index
    %c12 = arith.constant 12 : index
    %43 = vector.load %arg11[%c0_40, %c12] : memref<32x30xf32, #tpu.memory_space<vmem>>, vector<32x16xf32>
    %c384 = arith.constant 384 : index
    %c0_41 = arith.constant 0 : index
    %44 = vector.load %arg12[%c384, %c0_41] : memref<488x16xf32, #tpu.memory_space<vmem>>, vector<32x16xf32>
    tpu.vector_store %arg12[%c384, %c0_41], %43 {strides = array<i32>} : memref<488x16xf32, #tpu.memory_space<vmem>>, vector<32x16xf32>,
    %c0_42 = arith.constant 0 : index
    %c13 = arith.constant 13 : index
    %45 = vector.load %arg11[%c0_42, %c13] : memref<32x30xf32, #tpu.memory_space<vmem>>, vector<32x16xf32>
    %c416 = arith.constant 416 : index
    %c0_43 = arith.constant 0 : index
    %46 = vector.load %arg12[%c416, %c0_43] : memref<488x16xf32, #tpu.memory_space<vmem>>, vector<32x16xf32>
    tpu.vector_store %arg12[%c416, %c0_43], %45 {strides = array<i32>} : memref<488x16xf32, #tpu.memory_space<vmem>>, vector<32x16xf32>,
    %c0_44 = arith.constant 0 : index
    %c14 = arith.constant 14 : index
    %47 = vector.load %arg11[%c0_44, %c14] : memref<32x30xf32, #tpu.memory_space<vmem>>, vector<32x16xf32>
    %c448 = arith.constant 448 : index
    %c0_45 = arith.constant 0 : index
    %48 = vector.load %arg12[%c448, %c0_45] : memref<488x16xf32, #tpu.memory_space<vmem>>, vector<32x16xf32>
    tpu.vector_store %arg12[%c448, %c0_45], %47 {strides = array<i32>} : memref<488x16xf32, #tpu.memory_space<vmem>>, vector<32x16xf32>,
    %c0_46 = arith.constant 0 : index
    %c0_47 = arith.constant 0 : index
    %49 = vector.load %arg12[%c0_46, %c0_47] : memref<488x16xf32, #tpu.memory_space<vmem>>, vector<488x16xf32>
    %c0_48 = arith.constant 0 : index
    %c0_49 = arith.constant 0 : index
    %50 = vector.load %arg2[%c0_48, %c0_49] : memref<392x488xf32, #tpu.memory_space<vmem>>, vector<392x488xf32>
    %cst_50 = arith.constant dense<0.000000e+00> : vector<392x16xf32>
    %51 = tpu.matmul %50, %49, %cst_50 {dimension_numbers = #tpu.dot_dimension_numbers<[1], [0], [0], [1], [0, 0, 1, 1], [], []>} : vector<392x488xf32>, vector<488x16xf32>, vector<392x16xf32> -> vector<392x16xf32>
    %52 = vector.extract_strided_slice %51 {offsets = [0, 0], sizes = [192, 16], strides = [1, 1]} : vector<392x16xf32> to vector<192x16xf32>
    %cst_51 = arith.constant 0.000000e+00 : f32
    %53 = vector.broadcast %cst_51 : f32 to vector<192x16xf32>
    %54 = arith.maximumf %52, %53 : vector<192x16xf32>
    %c0_52 = arith.constant 0 : index
    %c0_53 = arith.constant 0 : index
    %55 = memref.load %arg8[%c0_52, %c0_53] : memref<6x6xf32, #tpu.memory_space<smem>>
    %56 = vector.extract_strided_slice %54 {offsets = [0, 0], sizes = [32, 16], strides = [1, 1]} : vector<192x16xf32> to vector<32x16xf32>
    %57 = vector.broadcast %55 : f32 to vector<32x16xf32>
    %58 = arith.mulf %57, %56 : vector<32x16xf32>
    %c0_54 = arith.constant 0 : index
    %c1_55 = arith.constant 1 : index
    %59 = memref.load %arg8[%c0_54, %c1_55] : memref<6x6xf32, #tpu.memory_space<smem>>
    %60 = vector.extract_strided_slice %54 {offsets = [32, 0], sizes = [32, 16], strides = [1, 1]} : vector<192x16xf32> to vector<32x16xf32>
    %61 = vector.broadcast %59 : f32 to vector<32x16xf32>
    %62 = arith.mulf %61, %60 : vector<32x16xf32>
    %63 = arith.addf %58, %62 : vector<32x16xf32>
    %c0_56 = arith.constant 0 : index
    %c2_57 = arith.constant 2 : index
    %64 = memref.load %arg8[%c0_56, %c2_57] : memref<6x6xf32, #tpu.memory_space<smem>>
    %65 = vector.extract_strided_slice %54 {offsets = [64, 0], sizes = [32, 16], strides = [1, 1]} : vector<192x16xf32> to vector<32x16xf32>
    %66 = vector.broadcast %64 : f32 to vector<32x16xf32>
    %67 = arith.mulf %66, %65 : vector<32x16xf32>
    %68 = arith.addf %63, %67 : vector<32x16xf32>
    %c0_58 = arith.constant 0 : index
    %c3_59 = arith.constant 3 : index
    %69 = memref.load %arg8[%c0_58, %c3_59] : memref<6x6xf32, #tpu.memory_space<smem>>
    %70 = vector.extract_strided_slice %54 {offsets = [96, 0], sizes = [32, 16], strides = [1, 1]} : vector<192x16xf32> to vector<32x16xf32>
    %71 = vector.broadcast %69 : f32 to vector<32x16xf32>
    %72 = arith.mulf %71, %70 : vector<32x16xf32>
    %73 = arith.addf %68, %72 : vector<32x16xf32>
    %c0_60 = arith.constant 0 : index
    %c4_61 = arith.constant 4 : index
    %74 = memref.load %arg8[%c0_60, %c4_61] : memref<6x6xf32, #tpu.memory_space<smem>>
    %75 = vector.extract_strided_slice %54 {offsets = [128, 0], sizes = [32, 16], strides = [1, 1]} : vector<192x16xf32> to vector<32x16xf32>
    %76 = vector.broadcast %74 : f32 to vector<32x16xf32>
    %77 = arith.mulf %76, %75 : vector<32x16xf32>
    %78 = arith.addf %73, %77 : vector<32x16xf32>
    %c0_62 = arith.constant 0 : index
    %c5_63 = arith.constant 5 : index
    %79 = memref.load %arg8[%c0_62, %c5_63] : memref<6x6xf32, #tpu.memory_space<smem>>
    %80 = vector.extract_strided_slice %54 {offsets = [160, 0], sizes = [32, 16], strides = [1, 1]} : vector<192x16xf32> to vector<32x16xf32>
    %81 = vector.broadcast %79 : f32 to vector<32x16xf32>
    %82 = arith.mulf %81, %80 : vector<32x16xf32>
    %83 = arith.addf %78, %82 : vector<32x16xf32>
    %84 = vector.extract_strided_slice %51 {offsets = [192, 0], sizes = [192, 16], strides = [1, 1]} : vector<392x16xf32> to vector<192x16xf32>
    %cst_64 = arith.constant 0.000000e+00 : f32
    %85 = vector.broadcast %cst_64 : f32 to vector<192x16xf32>
    %86 = arith.maximumf %84, %85 : vector<192x16xf32>
    %c1_65 = arith.constant 1 : index
    %c0_66 = arith.constant 0 : index
    %87 = memref.load %arg8[%c1_65, %c0_66] : memref<6x6xf32, #tpu.memory_space<smem>>
    %88 = vector.extract_strided_slice %86 {offsets = [0, 0], sizes = [32, 16], strides = [1, 1]} : vector<192x16xf32> to vector<32x16xf32>
    %89 = vector.broadcast %87 : f32 to vector<32x16xf32>
    %90 = arith.mulf %89, %88 : vector<32x16xf32>
    %c1_67 = arith.constant 1 : index
    %c1_68 = arith.constant 1 : index
    %91 = memref.load %arg8[%c1_67, %c1_68] : memref<6x6xf32, #tpu.memory_space<smem>>
    %92 = vector.extract_strided_slice %86 {offsets = [32, 0], sizes = [32, 16], strides = [1, 1]} : vector<192x16xf32> to vector<32x16xf32>
    %93 = vector.broadcast %91 : f32 to vector<32x16xf32>
    %94 = arith.mulf %93, %92 : vector<32x16xf32>
    %95 = arith.addf %90, %94 : vector<32x16xf32>
    %c1_69 = arith.constant 1 : index
    %c2_70 = arith.constant 2 : index
    %96 = memref.load %arg8[%c1_69, %c2_70] : memref<6x6xf32, #tpu.memory_space<smem>>
    %97 = vector.extract_strided_slice %86 {offsets = [64, 0], sizes = [32, 16], strides = [1, 1]} : vector<192x16xf32> to vector<32x16xf32>
    %98 = vector.broadcast %96 : f32 to vector<32x16xf32>
    %99 = arith.mulf %98, %97 : vector<32x16xf32>
    %100 = arith.addf %95, %99 : vector<32x16xf32>
    %c1_71 = arith.constant 1 : index
    %c3_72 = arith.constant 3 : index
    %101 = memref.load %arg8[%c1_71, %c3_72] : memref<6x6xf32, #tpu.memory_space<smem>>
    %102 = vector.extract_strided_slice %86 {offsets = [96, 0], sizes = [32, 16], strides = [1, 1]} : vector<192x16xf32> to vector<32x16xf32>
    %103 = vector.broadcast %101 : f32 to vector<32x16xf32>
    %104 = arith.mulf %103, %102 : vector<32x16xf32>
    %105 = arith.addf %100, %104 : vector<32x16xf32>
    %c1_73 = arith.constant 1 : index
    %c4_74 = arith.constant 4 : index
    %106 = memref.load %arg8[%c1_73, %c4_74] : memref<6x6xf32, #tpu.memory_space<smem>>
    %107 = vector.extract_strided_slice %86 {offsets = [128, 0], sizes = [32, 16], strides = [1, 1]} : vector<192x16xf32> to vector<32x16xf32>
    %108 = vector.broadcast %106 : f32 to vector<32x16xf32>
    %109 = arith.mulf %108, %107 : vector<32x16xf32>
    %110 = arith.addf %105, %109 : vector<32x16xf32>
    %c1_75 = arith.constant 1 : index
    %c5_76 = arith.constant 5 : index
    %111 = memref.load %arg8[%c1_75, %c5_76] : memref<6x6xf32, #tpu.memory_space<smem>>
    %112 = vector.extract_strided_slice %86 {offsets = [160, 0], sizes = [32, 16], strides = [1, 1]} : vector<192x16xf32> to vector<32x16xf32>
    %113 = vector.broadcast %111 : f32 to vector<32x16xf32>
    %114 = arith.mulf %113, %112 : vector<32x16xf32>
    %115 = arith.addf %110, %114 : vector<32x16xf32>
    %116 = vector.extract_strided_slice %51 {offsets = [384, 0], sizes = [6, 16], strides = [1, 1]} : vector<392x16xf32> to vector<6x16xf32>
    %117 = arith.negf %116 : vector<6x16xf32>
    %118 = math.exp %117 : vector<6x16xf32>
    %cst_77 = arith.constant 1.000000e+00 : f32
    %119 = vector.broadcast %cst_77 : f32 to vector<6x16xf32>
    %120 = arith.addf %119, %118 : vector<6x16xf32>
    %121 = arith.divf %119, %120 : vector<6x16xf32>
    %c3_78 = arith.constant 3 : index
    %c0_79 = arith.constant 0 : index
    %122 = memref.load %arg8[%c3_78, %c0_79] : memref<6x6xf32, #tpu.memory_space<smem>>
    %123 = vector.extract_strided_slice %121 {offsets = [0, 0], sizes = [1, 16], strides = [1, 1]} : vector<6x16xf32> to vector<1x16xf32>
    %124 = vector.broadcast %122 : f32 to vector<1x16xf32>
    %125 = arith.mulf %124, %123 : vector<1x16xf32>
    %c3_80 = arith.constant 3 : index
    %c1_81 = arith.constant 1 : index
    %126 = memref.load %arg8[%c3_80, %c1_81] : memref<6x6xf32, #tpu.memory_space<smem>>
    %127 = vector.extract_strided_slice %121 {offsets = [1, 0], sizes = [1, 16], strides = [1, 1]} : vector<6x16xf32> to vector<1x16xf32>
    %128 = vector.broadcast %126 : f32 to vector<1x16xf32>
    %129 = arith.mulf %128, %127 : vector<1x16xf32>
    %130 = arith.addf %125, %129 : vector<1x16xf32>
    %c3_82 = arith.constant 3 : index
    %c2_83 = arith.constant 2 : index
    %131 = memref.load %arg8[%c3_82, %c2_83] : memref<6x6xf32, #tpu.memory_space<smem>>
    %132 = vector.extract_strided_slice %121 {offsets = [2, 0], sizes = [1, 16], strides = [1, 1]} : vector<6x16xf32> to vector<1x16xf32>
    %133 = vector.broadcast %131 : f32 to vector<1x16xf32>
    %134 = arith.mulf %133, %132 : vector<1x16xf32>
    %135 = arith.addf %130, %134 : vector<1x16xf32>
    %c3_84 = arith.constant 3 : index
    %c3_85 = arith.constant 3 : index
    %136 = memref.load %arg8[%c3_84, %c3_85] : memref<6x6xf32, #tpu.memory_space<smem>>
    %137 = vector.extract_strided_slice %121 {offsets = [3, 0], sizes = [1, 16], strides = [1, 1]} : vector<6x16xf32> to vector<1x16xf32>
    %138 = vector.broadcast %136 : f32 to vector<1x16xf32>
    %139 = arith.mulf %138, %137 : vector<1x16xf32>
    %140 = arith.addf %135, %139 : vector<1x16xf32>
    %c3_86 = arith.constant 3 : index
    %c4_87 = arith.constant 4 : index
    %141 = memref.load %arg8[%c3_86, %c4_87] : memref<6x6xf32, #tpu.memory_space<smem>>
    %142 = vector.extract_strided_slice %121 {offsets = [4, 0], sizes = [1, 16], strides = [1, 1]} : vector<6x16xf32> to vector<1x16xf32>
    %143 = vector.broadcast %141 : f32 to vector<1x16xf32>
    %144 = arith.mulf %143, %142 : vector<1x16xf32>
    %145 = arith.addf %140, %144 : vector<1x16xf32>
    %c3_88 = arith.constant 3 : index
    %c5_89 = arith.constant 5 : index
    %146 = memref.load %arg8[%c3_88, %c5_89] : memref<6x6xf32, #tpu.memory_space<smem>>
    %147 = vector.extract_strided_slice %121 {offsets = [5, 0], sizes = [1, 16], strides = [1, 1]} : vector<6x16xf32> to vector<1x16xf32>
    %148 = vector.broadcast %146 : f32 to vector<1x16xf32>
    %149 = arith.mulf %148, %147 : vector<1x16xf32>
    %150 = arith.addf %145, %149 : vector<1x16xf32>
    %cst_90 = arith.constant 0.000000e+00 : f32
    %151 = vector.broadcast %cst_90 : f32 to vector<32x30xf32>
    %c0_91 = arith.constant 0 : index
    %c0_92 = arith.constant 0 : index
    %152 = vector.load %arg11[%c0_91, %c0_92] : memref<32x30xf32, #tpu.memory_space<vmem>>, vector<32x30xf32>
    tpu.vector_store %arg11[%c0_91, %c0_92], %151 {strides = array<i32>} : memref<32x30xf32, #tpu.memory_space<vmem>>, vector<32x30xf32>,
    %c0_93 = arith.constant 0 : index
    %c7_94 = arith.constant 7 : index
    %153 = vector.load %arg11[%c0_93, %c7_94] : memref<32x30xf32, #tpu.memory_space<vmem>>, vector<32x16xf32>
    tpu.vector_store %arg11[%c0_93, %c7_94], %83 {strides = array<i32>} : memref<32x30xf32, #tpu.memory_space<vmem>>, vector<32x16xf32>,
    %c0_95 = arith.constant 0 : index
    %c0_96 = arith.constant 0 : index
    %154 = vector.load %arg11[%c0_95, %c0_96] : memref<32x30xf32, #tpu.memory_space<vmem>>, vector<32x16xf32>
    %c0_97 = arith.constant 0 : index
    %c0_98 = arith.constant 0 : index
    %155 = vector.load %arg13[%c0_97, %c0_98] : memref<488x16xf32, #tpu.memory_space<vmem>>, vector<32x16xf32>
    tpu.vector_store %arg13[%c0_97, %c0_98], %154 {strides = array<i32>} : memref<488x16xf32, #tpu.memory_space<vmem>>, vector<32x16xf32>,
    %c0_99 = arith.constant 0 : index
    %c1_100 = arith.constant 1 : index
    %156 = vector.load %arg11[%c0_99, %c1_100] : memref<32x30xf32, #tpu.memory_space<vmem>>, vector<32x16xf32>
    %c32_101 = arith.constant 32 : index
    %c0_102 = arith.constant 0 : index
    %157 = vector.load %arg13[%c32_101, %c0_102] : memref<488x16xf32, #tpu.memory_space<vmem>>, vector<32x16xf32>
    tpu.vector_store %arg13[%c32_101, %c0_102], %156 {strides = array<i32>} : memref<488x16xf32, #tpu.memory_space<vmem>>, vector<32x16xf32>,
    %c0_103 = arith.constant 0 : index
    %c2_104 = arith.constant 2 : index
    %158 = vector.load %arg11[%c0_103, %c2_104] : memref<32x30xf32, #tpu.memory_space<vmem>>, vector<32x16xf32>
    %c64_105 = arith.constant 64 : index
    %c0_106 = arith.constant 0 : index
    %159 = vector.load %arg13[%c64_105, %c0_106] : memref<488x16xf32, #tpu.memory_space<vmem>>, vector<32x16xf32>
    tpu.vector_store %arg13[%c64_105, %c0_106], %158 {strides = array<i32>} : memref<488x16xf32, #tpu.memory_space<vmem>>, vector<32x16xf32>,
    %c0_107 = arith.constant 0 : index
    %c3_108 = arith.constant 3 : index
    %160 = vector.load %arg11[%c0_107, %c3_108] : memref<32x30xf32, #tpu.memory_space<vmem>>, vector<32x16xf32>
    %c96_109 = arith.constant 96 : index
    %c0_110 = arith.constant 0 : index
    %161 = vector.load %arg13[%c96_109, %c0_110] : memref<488x16xf32, #tpu.memory_space<vmem>>, vector<32x16xf32>
    tpu.vector_store %arg13[%c96_109, %c0_110], %160 {strides = array<i32>} : memref<488x16xf32, #tpu.memory_space<vmem>>, vector<32x16xf32>,
    %c0_111 = arith.constant 0 : index
    %c4_112 = arith.constant 4 : index
    %162 = vector.load %arg11[%c0_111, %c4_112] : memref<32x30xf32, #tpu.memory_space<vmem>>, vector<32x16xf32>
    %c128_113 = arith.constant 128 : index
    %c0_114 = arith.constant 0 : index
    %163 = vector.load %arg13[%c128_113, %c0_114] : memref<488x16xf32, #tpu.memory_space<vmem>>, vector<32x16xf32>
    tpu.vector_store %arg13[%c128_113, %c0_114], %162 {strides = array<i32>} : memref<488x16xf32, #tpu.memory_space<vmem>>, vector<32x16xf32>,
    %c0_115 = arith.constant 0 : index
    %c5_116 = arith.constant 5 : index
    %164 = vector.load %arg11[%c0_115, %c5_116] : memref<32x30xf32, #tpu.memory_space<vmem>>, vector<32x16xf32>
    %c160_117 = arith.constant 160 : index
    %c0_118 = arith.constant 0 : index
    %165 = vector.load %arg13[%c160_117, %c0_118] : memref<488x16xf32, #tpu.memory_space<vmem>>, vector<32x16xf32>
    tpu.vector_store %arg13[%c160_117, %c0_118], %164 {strides = array<i32>} : memref<488x16xf32, #tpu.memory_space<vmem>>, vector<32x16xf32>,
    %c0_119 = arith.constant 0 : index
    %c6_120 = arith.constant 6 : index
    %166 = vector.load %arg11[%c0_119, %c6_120] : memref<32x30xf32, #tpu.memory_space<vmem>>, vector<32x16xf32>
    %c192_121 = arith.constant 192 : index
    %c0_122 = arith.constant 0 : index
    %167 = vector.load %arg13[%c192_121, %c0_122] : memref<488x16xf32, #tpu.memory_space<vmem>>, vector<32x16xf32>
    tpu.vector_store %arg13[%c192_121, %c0_122], %166 {strides = array<i32>} : memref<488x16xf32, #tpu.memory_space<vmem>>, vector<32x16xf32>,
    %c0_123 = arith.constant 0 : index
    %c7_124 = arith.constant 7 : index
    %168 = vector.load %arg11[%c0_123, %c7_124] : memref<32x30xf32, #tpu.memory_space<vmem>>, vector<32x16xf32>
    %c224_125 = arith.constant 224 : index
    %c0_126 = arith.constant 0 : index
    %169 = vector.load %arg13[%c224_125, %c0_126] : memref<488x16xf32, #tpu.memory_space<vmem>>, vector<32x16xf32>
    tpu.vector_store %arg13[%c224_125, %c0_126], %168 {strides = array<i32>} : memref<488x16xf32, #tpu.memory_space<vmem>>, vector<32x16xf32>,
    %c0_127 = arith.constant 0 : index
    %c8_128 = arith.constant 8 : index
    %170 = vector.load %arg11[%c0_127, %c8_128] : memref<32x30xf32, #tpu.memory_space<vmem>>, vector<32x16xf32>
    %c256_129 = arith.constant 256 : index
    %c0_130 = arith.constant 0 : index
    %171 = vector.load %arg13[%c256_129, %c0_130] : memref<488x16xf32, #tpu.memory_space<vmem>>, vector<32x16xf32>
    tpu.vector_store %arg13[%c256_129, %c0_130], %170 {strides = array<i32>} : memref<488x16xf32, #tpu.memory_space<vmem>>, vector<32x16xf32>,
    %c0_131 = arith.constant 0 : index
    %c9_132 = arith.constant 9 : index
    %172 = vector.load %arg11[%c0_131, %c9_132] : memref<32x30xf32, #tpu.memory_space<vmem>>, vector<32x16xf32>
    %c288_133 = arith.constant 288 : index
    %c0_134 = arith.constant 0 : index
    %173 = vector.load %arg13[%c288_133, %c0_134] : memref<488x16xf32, #tpu.memory_space<vmem>>, vector<32x16xf32>
    tpu.vector_store %arg13[%c288_133, %c0_134], %172 {strides = array<i32>} : memref<488x16xf32, #tpu.memory_space<vmem>>, vector<32x16xf32>,
    %c0_135 = arith.constant 0 : index
    %c10_136 = arith.constant 10 : index
    %174 = vector.load %arg11[%c0_135, %c10_136] : memref<32x30xf32, #tpu.memory_space<vmem>>, vector<32x16xf32>
    %c320_137 = arith.constant 320 : index
    %c0_138 = arith.constant 0 : index
    %175 = vector.load %arg13[%c320_137, %c0_138] : memref<488x16xf32, #tpu.memory_space<vmem>>, vector<32x16xf32>
    tpu.vector_store %arg13[%c320_137, %c0_138], %174 {strides = array<i32>} : memref<488x16xf32, #tpu.memory_space<vmem>>, vector<32x16xf32>,
    %c0_139 = arith.constant 0 : index
    %c11_140 = arith.constant 11 : index
    %176 = vector.load %arg11[%c0_139, %c11_140] : memref<32x30xf32, #tpu.memory_space<vmem>>, vector<32x16xf32>
    %c352_141 = arith.constant 352 : index
    %c0_142 = arith.constant 0 : index
    %177 = vector.load %arg13[%c352_141, %c0_142] : memref<488x16xf32, #tpu.memory_space<vmem>>, vector<32x16xf32>
    tpu.vector_store %arg13[%c352_141, %c0_142], %176 {strides = array<i32>} : memref<488x16xf32, #tpu.memory_space<vmem>>, vector<32x16xf32>,
    %c0_143 = arith.constant 0 : index
    %c12_144 = arith.constant 12 : index
    %178 = vector.load %arg11[%c0_143, %c12_144] : memref<32x30xf32, #tpu.memory_space<vmem>>, vector<32x16xf32>
    %c384_145 = arith.constant 384 : index
    %c0_146 = arith.constant 0 : index
    %179 = vector.load %arg13[%c384_145, %c0_146] : memref<488x16xf32, #tpu.memory_space<vmem>>, vector<32x16xf32>
    tpu.vector_store %arg13[%c384_145, %c0_146], %178 {strides = array<i32>} : memref<488x16xf32, #tpu.memory_space<vmem>>, vector<32x16xf32>,
    %c0_147 = arith.constant 0 : index
    %c13_148 = arith.constant 13 : index
    %180 = vector.load %arg11[%c0_147, %c13_148] : memref<32x30xf32, #tpu.memory_space<vmem>>, vector<32x16xf32>
    %c416_149 = arith.constant 416 : index
    %c0_150 = arith.constant 0 : index
    %181 = vector.load %arg13[%c416_149, %c0_150] : memref<488x16xf32, #tpu.memory_space<vmem>>, vector<32x16xf32>
    tpu.vector_store %arg13[%c416_149, %c0_150], %180 {strides = array<i32>} : memref<488x16xf32, #tpu.memory_space<vmem>>, vector<32x16xf32>,
    %c0_151 = arith.constant 0 : index
    %c14_152 = arith.constant 14 : index
    %182 = vector.load %arg11[%c0_151, %c14_152] : memref<32x30xf32, #tpu.memory_space<vmem>>, vector<32x16xf32>
    %c448_153 = arith.constant 448 : index
    %c0_154 = arith.constant 0 : index
    %183 = vector.load %arg13[%c448_153, %c0_154] : memref<488x16xf32, #tpu.memory_space<vmem>>, vector<32x16xf32>
    tpu.vector_store %arg13[%c448_153, %c0_154], %182 {strides = array<i32>} : memref<488x16xf32, #tpu.memory_space<vmem>>, vector<32x16xf32>,
    %c0_155 = arith.constant 0 : index
    %c0_156 = arith.constant 0 : index
    %184 = vector.load %arg13[%c0_155, %c0_156] : memref<488x16xf32, #tpu.memory_space<vmem>>, vector<488x16xf32>
    %c0_157 = arith.constant 0 : index
    %c0_158 = arith.constant 0 : index
    %185 = vector.load %arg3[%c0_157, %c0_158] : memref<200x488xf32, #tpu.memory_space<vmem>>, vector<200x488xf32>
    %cst_159 = arith.constant dense<0.000000e+00> : vector<200x16xf32>
    %186 = tpu.matmul %185, %184, %cst_159 {dimension_numbers = #tpu.dot_dimension_numbers<[1], [0], [0], [1], [0, 0, 1, 1], [], []>} : vector<200x488xf32>, vector<488x16xf32>, vector<200x16xf32> -> vector<200x16xf32>
    %187 = vector.extract_strided_slice %186 {offsets = [0, 0], sizes = [192, 16], strides = [1, 1]} : vector<200x16xf32> to vector<192x16xf32>
    %cst_160 = arith.constant 0.000000e+00 : f32
    %188 = vector.broadcast %cst_160 : f32 to vector<192x16xf32>
    %189 = arith.maximumf %187, %188 : vector<192x16xf32>
    %c2_161 = arith.constant 2 : index
    %c0_162 = arith.constant 0 : index
    %190 = memref.load %arg8[%c2_161, %c0_162] : memref<6x6xf32, #tpu.memory_space<smem>>
    %191 = vector.extract_strided_slice %189 {offsets = [0, 0], sizes = [32, 16], strides = [1, 1]} : vector<192x16xf32> to vector<32x16xf32>
    %192 = vector.broadcast %190 : f32 to vector<32x16xf32>
    %193 = arith.mulf %192, %191 : vector<32x16xf32>
    %c2_163 = arith.constant 2 : index
    %c1_164 = arith.constant 1 : index
    %194 = memref.load %arg8[%c2_163, %c1_164] : memref<6x6xf32, #tpu.memory_space<smem>>
    %195 = vector.extract_strided_slice %189 {offsets = [32, 0], sizes = [32, 16], strides = [1, 1]} : vector<192x16xf32> to vector<32x16xf32>
    %196 = vector.broadcast %194 : f32 to vector<32x16xf32>
    %197 = arith.mulf %196, %195 : vector<32x16xf32>
    %198 = arith.addf %193, %197 : vector<32x16xf32>
    %c2_165 = arith.constant 2 : index
    %c2_166 = arith.constant 2 : index
    %199 = memref.load %arg8[%c2_165, %c2_166] : memref<6x6xf32, #tpu.memory_space<smem>>
    %200 = vector.extract_strided_slice %189 {offsets = [64, 0], sizes = [32, 16], strides = [1, 1]} : vector<192x16xf32> to vector<32x16xf32>
    %201 = vector.broadcast %199 : f32 to vector<32x16xf32>
    %202 = arith.mulf %201, %200 : vector<32x16xf32>
    %203 = arith.addf %198, %202 : vector<32x16xf32>
    %c2_167 = arith.constant 2 : index
    %c3_168 = arith.constant 3 : index
    %204 = memref.load %arg8[%c2_167, %c3_168] : memref<6x6xf32, #tpu.memory_space<smem>>
    %205 = vector.extract_strided_slice %189 {offsets = [96, 0], sizes = [32, 16], strides = [1, 1]} : vector<192x16xf32> to vector<32x16xf32>
    %206 = vector.broadcast %204 : f32 to vector<32x16xf32>
    %207 = arith.mulf %206, %205 : vector<32x16xf32>
    %208 = arith.addf %203, %207 : vector<32x16xf32>
    %c2_169 = arith.constant 2 : index
    %c4_170 = arith.constant 4 : index
    %209 = memref.load %arg8[%c2_169, %c4_170] : memref<6x6xf32, #tpu.memory_space<smem>>
    %210 = vector.extract_strided_slice %189 {offsets = [128, 0], sizes = [32, 16], strides = [1, 1]} : vector<192x16xf32> to vector<32x16xf32>
    %211 = vector.broadcast %209 : f32 to vector<32x16xf32>
    %212 = arith.mulf %211, %210 : vector<32x16xf32>
    %213 = arith.addf %208, %212 : vector<32x16xf32>
    %c2_171 = arith.constant 2 : index
    %c5_172 = arith.constant 5 : index
    %214 = memref.load %arg8[%c2_171, %c5_172] : memref<6x6xf32, #tpu.memory_space<smem>>
    %215 = vector.extract_strided_slice %189 {offsets = [160, 0], sizes = [32, 16], strides = [1, 1]} : vector<192x16xf32> to vector<32x16xf32>
    %216 = vector.broadcast %214 : f32 to vector<32x16xf32>
    %217 = arith.mulf %216, %215 : vector<32x16xf32>
    %218 = arith.addf %213, %217 : vector<32x16xf32>
    %219 = vector.extract_strided_slice %186 {offsets = [192, 0], sizes = [6, 16], strides = [1, 1]} : vector<200x16xf32> to vector<6x16xf32>
    %220 = arith.negf %219 : vector<6x16xf32>
    %221 = math.exp %220 : vector<6x16xf32>
    %cst_173 = arith.constant 1.000000e+00 : f32
    %222 = vector.broadcast %cst_173 : f32 to vector<6x16xf32>
    %223 = arith.addf %222, %221 : vector<6x16xf32>
    %224 = arith.divf %222, %223 : vector<6x16xf32>
    %c4_174 = arith.constant 4 : index
    %c0_175 = arith.constant 0 : index
    %225 = memref.load %arg8[%c4_174, %c0_175] : memref<6x6xf32, #tpu.memory_space<smem>>
    %226 = vector.extract_strided_slice %224 {offsets = [0, 0], sizes = [1, 16], strides = [1, 1]} : vector<6x16xf32> to vector<1x16xf32>
    %227 = vector.broadcast %225 : f32 to vector<1x16xf32>
    %228 = arith.mulf %227, %226 : vector<1x16xf32>
    %c4_176 = arith.constant 4 : index
    %c1_177 = arith.constant 1 : index
    %229 = memref.load %arg8[%c4_176, %c1_177] : memref<6x6xf32, #tpu.memory_space<smem>>
    %230 = vector.extract_strided_slice %224 {offsets = [1, 0], sizes = [1, 16], strides = [1, 1]} : vector<6x16xf32> to vector<1x16xf32>
    %231 = vector.broadcast %229 : f32 to vector<1x16xf32>
    %232 = arith.mulf %231, %230 : vector<1x16xf32>
    %233 = arith.addf %228, %232 : vector<1x16xf32>
    %c4_178 = arith.constant 4 : index
    %c2_179 = arith.constant 2 : index
    %234 = memref.load %arg8[%c4_178, %c2_179] : memref<6x6xf32, #tpu.memory_space<smem>>
    %235 = vector.extract_strided_slice %224 {offsets = [2, 0], sizes = [1, 16], strides = [1, 1]} : vector<6x16xf32> to vector<1x16xf32>
    %236 = vector.broadcast %234 : f32 to vector<1x16xf32>
    %237 = arith.mulf %236, %235 : vector<1x16xf32>
    %238 = arith.addf %233, %237 : vector<1x16xf32>
    %c4_180 = arith.constant 4 : index
    %c3_181 = arith.constant 3 : index
    %239 = memref.load %arg8[%c4_180, %c3_181] : memref<6x6xf32, #tpu.memory_space<smem>>
    %240 = vector.extract_strided_slice %224 {offsets = [3, 0], sizes = [1, 16], strides = [1, 1]} : vector<6x16xf32> to vector<1x16xf32>
    %241 = vector.broadcast %239 : f32 to vector<1x16xf32>
    %242 = arith.mulf %241, %240 : vector<1x16xf32>
    %243 = arith.addf %238, %242 : vector<1x16xf32>
    %c4_182 = arith.constant 4 : index
    %c4_183 = arith.constant 4 : index
    %244 = memref.load %arg8[%c4_182, %c4_183] : memref<6x6xf32, #tpu.memory_space<smem>>
    %245 = vector.extract_strided_slice %224 {offsets = [4, 0], sizes = [1, 16], strides = [1, 1]} : vector<6x16xf32> to vector<1x16xf32>
    %246 = vector.broadcast %244 : f32 to vector<1x16xf32>
    %247 = arith.mulf %246, %245 : vector<1x16xf32>
    %248 = arith.addf %243, %247 : vector<1x16xf32>
    %c4_184 = arith.constant 4 : index
    %c5_185 = arith.constant 5 : index
    %249 = memref.load %arg8[%c4_184, %c5_185] : memref<6x6xf32, #tpu.memory_space<smem>>
    %250 = vector.extract_strided_slice %224 {offsets = [5, 0], sizes = [1, 16], strides = [1, 1]} : vector<6x16xf32> to vector<1x16xf32>
    %251 = vector.broadcast %249 : f32 to vector<1x16xf32>
    %252 = arith.mulf %251, %250 : vector<1x16xf32>
    %253 = arith.addf %248, %252 : vector<1x16xf32>
    %254 = arith.addf %115, %218 : vector<32x16xf32>
    %cst_186 = arith.constant 0.000000e+00 : f32
    %255 = vector.broadcast %cst_186 : f32 to vector<32x30xf32>
    %c0_187 = arith.constant 0 : index
    %c0_188 = arith.constant 0 : index
    %256 = vector.load %arg11[%c0_187, %c0_188] : memref<32x30xf32, #tpu.memory_space<vmem>>, vector<32x30xf32>
    tpu.vector_store %arg11[%c0_187, %c0_188], %255 {strides = array<i32>} : memref<32x30xf32, #tpu.memory_space<vmem>>, vector<32x30xf32>,
    %c0_189 = arith.constant 0 : index
    %c7_190 = arith.constant 7 : index
    %257 = vector.load %arg11[%c0_189, %c7_190] : memref<32x30xf32, #tpu.memory_space<vmem>>, vector<32x16xf32>
    tpu.vector_store %arg11[%c0_189, %c7_190], %254 {strides = array<i32>} : memref<32x30xf32, #tpu.memory_space<vmem>>, vector<32x16xf32>,
    %c0_191 = arith.constant 0 : index
    %c0_192 = arith.constant 0 : index
    %258 = vector.load %arg11[%c0_191, %c0_192] : memref<32x30xf32, #tpu.memory_space<vmem>>, vector<32x16xf32>
    %c0_193 = arith.constant 0 : index
    %c0_194 = arith.constant 0 : index
    %259 = vector.load %arg12[%c0_193, %c0_194] : memref<488x16xf32, #tpu.memory_space<vmem>>, vector<32x16xf32>
    tpu.vector_store %arg12[%c0_193, %c0_194], %258 {strides = array<i32>} : memref<488x16xf32, #tpu.memory_space<vmem>>, vector<32x16xf32>,
    %c0_195 = arith.constant 0 : index
    %c1_196 = arith.constant 1 : index
    %260 = vector.load %arg11[%c0_195, %c1_196] : memref<32x30xf32, #tpu.memory_space<vmem>>, vector<32x16xf32>
    %c32_197 = arith.constant 32 : index
    %c0_198 = arith.constant 0 : index
    %261 = vector.load %arg12[%c32_197, %c0_198] : memref<488x16xf32, #tpu.memory_space<vmem>>, vector<32x16xf32>
    tpu.vector_store %arg12[%c32_197, %c0_198], %260 {strides = array<i32>} : memref<488x16xf32, #tpu.memory_space<vmem>>, vector<32x16xf32>,
    %c0_199 = arith.constant 0 : index
    %c2_200 = arith.constant 2 : index
    %262 = vector.load %arg11[%c0_199, %c2_200] : memref<32x30xf32, #tpu.memory_space<vmem>>, vector<32x16xf32>
    %c64_201 = arith.constant 64 : index
    %c0_202 = arith.constant 0 : index
    %263 = vector.load %arg12[%c64_201, %c0_202] : memref<488x16xf32, #tpu.memory_space<vmem>>, vector<32x16xf32>
    tpu.vector_store %arg12[%c64_201, %c0_202], %262 {strides = array<i32>} : memref<488x16xf32, #tpu.memory_space<vmem>>, vector<32x16xf32>,
    %c0_203 = arith.constant 0 : index
    %c3_204 = arith.constant 3 : index
    %264 = vector.load %arg11[%c0_203, %c3_204] : memref<32x30xf32, #tpu.memory_space<vmem>>, vector<32x16xf32>
    %c96_205 = arith.constant 96 : index
    %c0_206 = arith.constant 0 : index
    %265 = vector.load %arg12[%c96_205, %c0_206] : memref<488x16xf32, #tpu.memory_space<vmem>>, vector<32x16xf32>
    tpu.vector_store %arg12[%c96_205, %c0_206], %264 {strides = array<i32>} : memref<488x16xf32, #tpu.memory_space<vmem>>, vector<32x16xf32>,
    %c0_207 = arith.constant 0 : index
    %c4_208 = arith.constant 4 : index
    %266 = vector.load %arg11[%c0_207, %c4_208] : memref<32x30xf32, #tpu.memory_space<vmem>>, vector<32x16xf32>
    %c128_209 = arith.constant 128 : index
    %c0_210 = arith.constant 0 : index
    %267 = vector.load %arg12[%c128_209, %c0_210] : memref<488x16xf32, #tpu.memory_space<vmem>>, vector<32x16xf32>
    tpu.vector_store %arg12[%c128_209, %c0_210], %266 {strides = array<i32>} : memref<488x16xf32, #tpu.memory_space<vmem>>, vector<32x16xf32>,
    %c0_211 = arith.constant 0 : index
    %c5_212 = arith.constant 5 : index
    %268 = vector.load %arg11[%c0_211, %c5_212] : memref<32x30xf32, #tpu.memory_space<vmem>>, vector<32x16xf32>
    %c160_213 = arith.constant 160 : index
    %c0_214 = arith.constant 0 : index
    %269 = vector.load %arg12[%c160_213, %c0_214] : memref<488x16xf32, #tpu.memory_space<vmem>>, vector<32x16xf32>
    tpu.vector_store %arg12[%c160_213, %c0_214], %268 {strides = array<i32>} : memref<488x16xf32, #tpu.memory_space<vmem>>, vector<32x16xf32>,
    %c0_215 = arith.constant 0 : index
    %c6_216 = arith.constant 6 : index
    %270 = vector.load %arg11[%c0_215, %c6_216] : memref<32x30xf32, #tpu.memory_space<vmem>>, vector<32x16xf32>
    %c192_217 = arith.constant 192 : index
    %c0_218 = arith.constant 0 : index
    %271 = vector.load %arg12[%c192_217, %c0_218] : memref<488x16xf32, #tpu.memory_space<vmem>>, vector<32x16xf32>
    tpu.vector_store %arg12[%c192_217, %c0_218], %270 {strides = array<i32>} : memref<488x16xf32, #tpu.memory_space<vmem>>, vector<32x16xf32>,
    %c0_219 = arith.constant 0 : index
    %c7_220 = arith.constant 7 : index
    %272 = vector.load %arg11[%c0_219, %c7_220] : memref<32x30xf32, #tpu.memory_space<vmem>>, vector<32x16xf32>
    %c224_221 = arith.constant 224 : index
    %c0_222 = arith.constant 0 : index
    %273 = vector.load %arg12[%c224_221, %c0_222] : memref<488x16xf32, #tpu.memory_space<vmem>>, vector<32x16xf32>
    tpu.vector_store %arg12[%c224_221, %c0_222], %272 {strides = array<i32>} : memref<488x16xf32, #tpu.memory_space<vmem>>, vector<32x16xf32>,
    %c0_223 = arith.constant 0 : index
    %c8_224 = arith.constant 8 : index
    %274 = vector.load %arg11[%c0_223, %c8_224] : memref<32x30xf32, #tpu.memory_space<vmem>>, vector<32x16xf32>
    %c256_225 = arith.constant 256 : index
    %c0_226 = arith.constant 0 : index
    %275 = vector.load %arg12[%c256_225, %c0_226] : memref<488x16xf32, #tpu.memory_space<vmem>>, vector<32x16xf32>
    tpu.vector_store %arg12[%c256_225, %c0_226], %274 {strides = array<i32>} : memref<488x16xf32, #tpu.memory_space<vmem>>, vector<32x16xf32>,
    %c0_227 = arith.constant 0 : index
    %c9_228 = arith.constant 9 : index
    %276 = vector.load %arg11[%c0_227, %c9_228] : memref<32x30xf32, #tpu.memory_space<vmem>>, vector<32x16xf32>
    %c288_229 = arith.constant 288 : index
    %c0_230 = arith.constant 0 : index
    %277 = vector.load %arg12[%c288_229, %c0_230] : memref<488x16xf32, #tpu.memory_space<vmem>>, vector<32x16xf32>
    tpu.vector_store %arg12[%c288_229, %c0_230], %276 {strides = array<i32>} : memref<488x16xf32, #tpu.memory_space<vmem>>, vector<32x16xf32>,
    %c0_231 = arith.constant 0 : index
    %c10_232 = arith.constant 10 : index
    %278 = vector.load %arg11[%c0_231, %c10_232] : memref<32x30xf32, #tpu.memory_space<vmem>>, vector<32x16xf32>
    %c320_233 = arith.constant 320 : index
    %c0_234 = arith.constant 0 : index
    %279 = vector.load %arg12[%c320_233, %c0_234] : memref<488x16xf32, #tpu.memory_space<vmem>>, vector<32x16xf32>
    tpu.vector_store %arg12[%c320_233, %c0_234], %278 {strides = array<i32>} : memref<488x16xf32, #tpu.memory_space<vmem>>, vector<32x16xf32>,
    %c0_235 = arith.constant 0 : index
    %c11_236 = arith.constant 11 : index
    %280 = vector.load %arg11[%c0_235, %c11_236] : memref<32x30xf32, #tpu.memory_space<vmem>>, vector<32x16xf32>
    %c352_237 = arith.constant 352 : index
    %c0_238 = arith.constant 0 : index
    %281 = vector.load %arg12[%c352_237, %c0_238] : memref<488x16xf32, #tpu.memory_space<vmem>>, vector<32x16xf32>
    tpu.vector_store %arg12[%c352_237, %c0_238], %280 {strides = array<i32>} : memref<488x16xf32, #tpu.memory_space<vmem>>, vector<32x16xf32>,
    %c0_239 = arith.constant 0 : index
    %c12_240 = arith.constant 12 : index
    %282 = vector.load %arg11[%c0_239, %c12_240] : memref<32x30xf32, #tpu.memory_space<vmem>>, vector<32x16xf32>
    %c384_241 = arith.constant 384 : index
    %c0_242 = arith.constant 0 : index
    %283 = vector.load %arg12[%c384_241, %c0_242] : memref<488x16xf32, #tpu.memory_space<vmem>>, vector<32x16xf32>
    tpu.vector_store %arg12[%c384_241, %c0_242], %282 {strides = array<i32>} : memref<488x16xf32, #tpu.memory_space<vmem>>, vector<32x16xf32>,
    %c0_243 = arith.constant 0 : index
    %c13_244 = arith.constant 13 : index
    %284 = vector.load %arg11[%c0_243, %c13_244] : memref<32x30xf32, #tpu.memory_space<vmem>>, vector<32x16xf32>
    %c416_245 = arith.constant 416 : index
    %c0_246 = arith.constant 0 : index
    %285 = vector.load %arg12[%c416_245, %c0_246] : memref<488x16xf32, #tpu.memory_space<vmem>>, vector<32x16xf32>
    tpu.vector_store %arg12[%c416_245, %c0_246], %284 {strides = array<i32>} : memref<488x16xf32, #tpu.memory_space<vmem>>, vector<32x16xf32>,
    %c0_247 = arith.constant 0 : index
    %c14_248 = arith.constant 14 : index
    %286 = vector.load %arg11[%c0_247, %c14_248] : memref<32x30xf32, #tpu.memory_space<vmem>>, vector<32x16xf32>
    %c448_249 = arith.constant 448 : index
    %c0_250 = arith.constant 0 : index
    %287 = vector.load %arg12[%c448_249, %c0_250] : memref<488x16xf32, #tpu.memory_space<vmem>>, vector<32x16xf32>
    tpu.vector_store %arg12[%c448_249, %c0_250], %286 {strides = array<i32>} : memref<488x16xf32, #tpu.memory_space<vmem>>, vector<32x16xf32>,
    %c0_251 = arith.constant 0 : index
    %c0_252 = arith.constant 0 : index
    %288 = vector.load %arg12[%c0_251, %c0_252] : memref<488x16xf32, #tpu.memory_space<vmem>>, vector<488x16xf32>
    %c0_253 = arith.constant 0 : index
    %c0_254 = arith.constant 0 : index
    %289 = vector.load %arg4[%c0_253, %c0_254] : memref<8x488xf32, #tpu.memory_space<vmem>>, vector<8x488xf32>
    %cst_255 = arith.constant dense<0.000000e+00> : vector<8x16xf32>
    %290 = tpu.matmul %289, %288, %cst_255 {dimension_numbers = #tpu.dot_dimension_numbers<[1], [0], [0], [1], [0, 0, 1, 1], [], []>} : vector<8x488xf32>, vector<488x16xf32>, vector<8x16xf32> -> vector<8x16xf32>
    %291 = vector.extract_strided_slice %290 {offsets = [0, 0], sizes = [6, 16], strides = [1, 1]} : vector<8x16xf32> to vector<6x16xf32>
    %292 = arith.negf %291 : vector<6x16xf32>
    %293 = math.exp %292 : vector<6x16xf32>
    %cst_256 = arith.constant 1.000000e+00 : f32
    %294 = vector.broadcast %cst_256 : f32 to vector<6x16xf32>
    %295 = arith.addf %294, %293 : vector<6x16xf32>
    %296 = arith.divf %294, %295 : vector<6x16xf32>
    %c5_257 = arith.constant 5 : index
    %c0_258 = arith.constant 0 : index
    %297 = memref.load %arg8[%c5_257, %c0_258] : memref<6x6xf32, #tpu.memory_space<smem>>
    %298 = vector.extract_strided_slice %296 {offsets = [0, 0], sizes = [1, 16], strides = [1, 1]} : vector<6x16xf32> to vector<1x16xf32>
    %299 = vector.broadcast %297 : f32 to vector<1x16xf32>
    %300 = arith.mulf %299, %298 : vector<1x16xf32>
    %c5_259 = arith.constant 5 : index
    %c1_260 = arith.constant 1 : index
    %301 = memref.load %arg8[%c5_259, %c1_260] : memref<6x6xf32, #tpu.memory_space<smem>>
    %302 = vector.extract_strided_slice %296 {offsets = [1, 0], sizes = [1, 16], strides = [1, 1]} : vector<6x16xf32> to vector<1x16xf32>
    %303 = vector.broadcast %301 : f32 to vector<1x16xf32>
    %304 = arith.mulf %303, %302 : vector<1x16xf32>
    %305 = arith.addf %300, %304 : vector<1x16xf32>
    %c5_261 = arith.constant 5 : index
    %c2_262 = arith.constant 2 : index
    %306 = memref.load %arg8[%c5_261, %c2_262] : memref<6x6xf32, #tpu.memory_space<smem>>
    %307 = vector.extract_strided_slice %296 {offsets = [2, 0], sizes = [1, 16], strides = [1, 1]} : vector<6x16xf32> to vector<1x16xf32>
    %308 = vector.broadcast %306 : f32 to vector<1x16xf32>
    %309 = arith.mulf %308, %307 : vector<1x16xf32>
    %310 = arith.addf %305, %309 : vector<1x16xf32>
    %c5_263 = arith.constant 5 : index
    %c3_264 = arith.constant 3 : index
    %311 = memref.load %arg8[%c5_263, %c3_264] : memref<6x6xf32, #tpu.memory_space<smem>>
    %312 = vector.extract_strided_slice %296 {offsets = [3, 0], sizes = [1, 16], strides = [1, 1]} : vector<6x16xf32> to vector<1x16xf32>
    %313 = vector.broadcast %311 : f32 to vector<1x16xf32>
    %314 = arith.mulf %313, %312 : vector<1x16xf32>
    %315 = arith.addf %310, %314 : vector<1x16xf32>
    %c5_265 = arith.constant 5 : index
    %c4_266 = arith.constant 4 : index
    %316 = memref.load %arg8[%c5_265, %c4_266] : memref<6x6xf32, #tpu.memory_space<smem>>
    %317 = vector.extract_strided_slice %296 {offsets = [4, 0], sizes = [1, 16], strides = [1, 1]} : vector<6x16xf32> to vector<1x16xf32>
    %318 = vector.broadcast %316 : f32 to vector<1x16xf32>
    %319 = arith.mulf %318, %317 : vector<1x16xf32>
    %320 = arith.addf %315, %319 : vector<1x16xf32>
    %c5_267 = arith.constant 5 : index
    %c5_268 = arith.constant 5 : index
    %321 = memref.load %arg8[%c5_267, %c5_268] : memref<6x6xf32, #tpu.memory_space<smem>>
    %322 = vector.extract_strided_slice %296 {offsets = [5, 0], sizes = [1, 16], strides = [1, 1]} : vector<6x16xf32> to vector<1x16xf32>
    %323 = vector.broadcast %321 : f32 to vector<1x16xf32>
    %324 = arith.mulf %323, %322 : vector<1x16xf32>
    %325 = arith.addf %320, %324 : vector<1x16xf32>
    %326 = arith.addf %150, %253 : vector<1x16xf32>
    %327 = arith.addf %326, %325 : vector<1x16xf32>
    %cst_269 = arith.constant 0.333333343 : f32
    %328 = vector.broadcast %cst_269 : f32 to vector<1x16xf32>
    %329 = arith.mulf %327, %328 : vector<1x16xf32>
    %330 = vector.broadcast %329 : vector<1x16xf32> to vector<4x16xf32>
    %331 = arith.mulf %15, %330 : vector<4x16xf32>
    %cst_270 = arith.constant 1.000000e+00 : f32
    %332 = vector.broadcast %cst_270 : f32 to vector<1x16xf32>
    %cst_271 = arith.constant dense<0.000000e+00> : vector<1x4xf32>
    %333 = tpu.matmul %332, %331, %cst_271 {dimension_numbers = #tpu.dot_dimension_numbers<[1], [1], [0], [0], [0, 0, 1, 0], [], []>} : vector<1x16xf32>, vector<4x16xf32>, vector<1x4xf32> -> vector<1x4xf32>
    %cst_272 = arith.constant 6.250000e-02 : f32
    %334 = vector.broadcast %cst_272 : f32 to vector<1x4xf32>
    %335 = arith.mulf %333, %334 : vector<1x4xf32>
    %cst_273 = arith.constant 0.000000e+00 : f32
    %336 = vector.broadcast %cst_273 : f32 to vector<32x30xf32>
    %c0_274 = arith.constant 0 : index
    %c0_275 = arith.constant 0 : index
    %337 = vector.load %arg11[%c0_274, %c0_275] : memref<32x30xf32, #tpu.memory_space<vmem>>, vector<32x30xf32>
    tpu.vector_store %arg11[%c0_274, %c0_275], %336 {strides = array<i32>} : memref<32x30xf32, #tpu.memory_space<vmem>>, vector<32x30xf32>,
    %c0_276 = arith.constant 0 : index
    %c7_277 = arith.constant 7 : index
    %338 = vector.load %arg11[%c0_276, %c7_277] : memref<32x30xf32, #tpu.memory_space<vmem>>, vector<1x4xf32>
    tpu.vector_store %arg11[%c0_276, %c7_277], %335 {strides = array<i32>} : memref<32x30xf32, #tpu.memory_space<vmem>>, vector<1x4xf32>,
    %c0_278 = arith.constant 0 : index
    %c0_279 = arith.constant 0 : index
    %339 = vector.load %arg11[%c0_278, %c0_279] : memref<32x30xf32, #tpu.memory_space<vmem>>, vector<32x4xf32>
    %c0_280 = arith.constant 0 : index
    %c0_281 = arith.constant 0 : index
    %340 = vector.load %arg12[%c0_280, %c0_281] : memref<488x16xf32, #tpu.memory_space<vmem>>, vector<32x4xf32>
    tpu.vector_store %arg12[%c0_280, %c0_281], %339 {strides = array<i32>} : memref<488x16xf32, #tpu.memory_space<vmem>>, vector<32x4xf32>,
    %c0_282 = arith.constant 0 : index
    %c1_283 = arith.constant 1 : index
    %341 = vector.load %arg11[%c0_282, %c1_283] : memref<32x30xf32, #tpu.memory_space<vmem>>, vector<32x4xf32>
    %c32_284 = arith.constant 32 : index
    %c0_285 = arith.constant 0 : index
    %342 = vector.load %arg12[%c32_284, %c0_285] : memref<488x16xf32, #tpu.memory_space<vmem>>, vector<32x4xf32>
    tpu.vector_store %arg12[%c32_284, %c0_285], %341 {strides = array<i32>} : memref<488x16xf32, #tpu.memory_space<vmem>>, vector<32x4xf32>,
    %c0_286 = arith.constant 0 : index
    %c2_287 = arith.constant 2 : index
    %343 = vector.load %arg11[%c0_286, %c2_287] : memref<32x30xf32, #tpu.memory_space<vmem>>, vector<32x4xf32>
    %c64_288 = arith.constant 64 : index
    %c0_289 = arith.constant 0 : index
    %344 = vector.load %arg12[%c64_288, %c0_289] : memref<488x16xf32, #tpu.memory_space<vmem>>, vector<32x4xf32>
    tpu.vector_store %arg12[%c64_288, %c0_289], %343 {strides = array<i32>} : memref<488x16xf32, #tpu.memory_space<vmem>>, vector<32x4xf32>,
    %c0_290 = arith.constant 0 : index
    %c3_291 = arith.constant 3 : index
    %345 = vector.load %arg11[%c0_290, %c3_291] : memref<32x30xf32, #tpu.memory_space<vmem>>, vector<32x4xf32>
    %c96_292 = arith.constant 96 : index
    %c0_293 = arith.constant 0 : index
    %346 = vector.load %arg12[%c96_292, %c0_293] : memref<488x16xf32, #tpu.memory_space<vmem>>, vector<32x4xf32>
    tpu.vector_store %arg12[%c96_292, %c0_293], %345 {strides = array<i32>} : memref<488x16xf32, #tpu.memory_space<vmem>>, vector<32x4xf32>,
    %c0_294 = arith.constant 0 : index
    %c4_295 = arith.constant 4 : index
    %347 = vector.load %arg11[%c0_294, %c4_295] : memref<32x30xf32, #tpu.memory_space<vmem>>, vector<32x4xf32>
    %c128_296 = arith.constant 128 : index
    %c0_297 = arith.constant 0 : index
    %348 = vector.load %arg12[%c128_296, %c0_297] : memref<488x16xf32, #tpu.memory_space<vmem>>, vector<32x4xf32>
    tpu.vector_store %arg12[%c128_296, %c0_297], %347 {strides = array<i32>} : memref<488x16xf32, #tpu.memory_space<vmem>>, vector<32x4xf32>,
    %c0_298 = arith.constant 0 : index
    %c5_299 = arith.constant 5 : index
    %349 = vector.load %arg11[%c0_298, %c5_299] : memref<32x30xf32, #tpu.memory_space<vmem>>, vector<32x4xf32>
    %c160_300 = arith.constant 160 : index
    %c0_301 = arith.constant 0 : index
    %350 = vector.load %arg12[%c160_300, %c0_301] : memref<488x16xf32, #tpu.memory_space<vmem>>, vector<32x4xf32>
    tpu.vector_store %arg12[%c160_300, %c0_301], %349 {strides = array<i32>} : memref<488x16xf32, #tpu.memory_space<vmem>>, vector<32x4xf32>,
    %c0_302 = arith.constant 0 : index
    %c6_303 = arith.constant 6 : index
    %351 = vector.load %arg11[%c0_302, %c6_303] : memref<32x30xf32, #tpu.memory_space<vmem>>, vector<32x4xf32>
    %c192_304 = arith.constant 192 : index
    %c0_305 = arith.constant 0 : index
    %352 = vector.load %arg12[%c192_304, %c0_305] : memref<488x16xf32, #tpu.memory_space<vmem>>, vector<32x4xf32>
    tpu.vector_store %arg12[%c192_304, %c0_305], %351 {strides = array<i32>} : memref<488x16xf32, #tpu.memory_space<vmem>>, vector<32x4xf32>,
    %c0_306 = arith.constant 0 : index
    %c7_307 = arith.constant 7 : index
    %353 = vector.load %arg11[%c0_306, %c7_307] : memref<32x30xf32, #tpu.memory_space<vmem>>, vector<32x4xf32>
    %c224_308 = arith.constant 224 : index
    %c0_309 = arith.constant 0 : index
    %354 = vector.load %arg12[%c224_308, %c0_309] : memref<488x16xf32, #tpu.memory_space<vmem>>, vector<32x4xf32>
    tpu.vector_store %arg12[%c224_308, %c0_309], %353 {strides = array<i32>} : memref<488x16xf32, #tpu.memory_space<vmem>>, vector<32x4xf32>,
    %c0_310 = arith.constant 0 : index
    %c8_311 = arith.constant 8 : index
    %355 = vector.load %arg11[%c0_310, %c8_311] : memref<32x30xf32, #tpu.memory_space<vmem>>, vector<32x4xf32>
    %c256_312 = arith.constant 256 : index
    %c0_313 = arith.constant 0 : index
    %356 = vector.load %arg12[%c256_312, %c0_313] : memref<488x16xf32, #tpu.memory_space<vmem>>, vector<32x4xf32>
    tpu.vector_store %arg12[%c256_312, %c0_313], %355 {strides = array<i32>} : memref<488x16xf32, #tpu.memory_space<vmem>>, vector<32x4xf32>,
    %c0_314 = arith.constant 0 : index
    %c9_315 = arith.constant 9 : index
    %357 = vector.load %arg11[%c0_314, %c9_315] : memref<32x30xf32, #tpu.memory_space<vmem>>, vector<32x4xf32>
    %c288_316 = arith.constant 288 : index
    %c0_317 = arith.constant 0 : index
    %358 = vector.load %arg12[%c288_316, %c0_317] : memref<488x16xf32, #tpu.memory_space<vmem>>, vector<32x4xf32>
    tpu.vector_store %arg12[%c288_316, %c0_317], %357 {strides = array<i32>} : memref<488x16xf32, #tpu.memory_space<vmem>>, vector<32x4xf32>,
    %c0_318 = arith.constant 0 : index
    %c10_319 = arith.constant 10 : index
    %359 = vector.load %arg11[%c0_318, %c10_319] : memref<32x30xf32, #tpu.memory_space<vmem>>, vector<32x4xf32>
    %c320_320 = arith.constant 320 : index
    %c0_321 = arith.constant 0 : index
    %360 = vector.load %arg12[%c320_320, %c0_321] : memref<488x16xf32, #tpu.memory_space<vmem>>, vector<32x4xf32>
    tpu.vector_store %arg12[%c320_320, %c0_321], %359 {strides = array<i32>} : memref<488x16xf32, #tpu.memory_space<vmem>>, vector<32x4xf32>,
    %c0_322 = arith.constant 0 : index
    %c11_323 = arith.constant 11 : index
    %361 = vector.load %arg11[%c0_322, %c11_323] : memref<32x30xf32, #tpu.memory_space<vmem>>, vector<32x4xf32>
    %c352_324 = arith.constant 352 : index
    %c0_325 = arith.constant 0 : index
    %362 = vector.load %arg12[%c352_324, %c0_325] : memref<488x16xf32, #tpu.memory_space<vmem>>, vector<32x4xf32>
    tpu.vector_store %arg12[%c352_324, %c0_325], %361 {strides = array<i32>} : memref<488x16xf32, #tpu.memory_space<vmem>>, vector<32x4xf32>,
    %c0_326 = arith.constant 0 : index
    %c12_327 = arith.constant 12 : index
    %363 = vector.load %arg11[%c0_326, %c12_327] : memref<32x30xf32, #tpu.memory_space<vmem>>, vector<32x4xf32>
    %c384_328 = arith.constant 384 : index
    %c0_329 = arith.constant 0 : index
    %364 = vector.load %arg12[%c384_328, %c0_329] : memref<488x16xf32, #tpu.memory_space<vmem>>, vector<32x4xf32>
    tpu.vector_store %arg12[%c384_328, %c0_329], %363 {strides = array<i32>} : memref<488x16xf32, #tpu.memory_space<vmem>>, vector<32x4xf32>,
    %c0_330 = arith.constant 0 : index
    %c13_331 = arith.constant 13 : index
    %365 = vector.load %arg11[%c0_330, %c13_331] : memref<32x30xf32, #tpu.memory_space<vmem>>, vector<32x4xf32>
    %c416_332 = arith.constant 416 : index
    %c0_333 = arith.constant 0 : index
    %366 = vector.load %arg12[%c416_332, %c0_333] : memref<488x16xf32, #tpu.memory_space<vmem>>, vector<32x4xf32>
    tpu.vector_store %arg12[%c416_332, %c0_333], %365 {strides = array<i32>} : memref<488x16xf32, #tpu.memory_space<vmem>>, vector<32x4xf32>,
    %c0_334 = arith.constant 0 : index
    %c14_335 = arith.constant 14 : index
    %367 = vector.load %arg11[%c0_334, %c14_335] : memref<32x30xf32, #tpu.memory_space<vmem>>, vector<32x4xf32>
    %c448_336 = arith.constant 448 : index
    %c0_337 = arith.constant 0 : index
    %368 = vector.load %arg12[%c448_336, %c0_337] : memref<488x16xf32, #tpu.memory_space<vmem>>, vector<32x4xf32>
    tpu.vector_store %arg12[%c448_336, %c0_337], %367 {strides = array<i32>} : memref<488x16xf32, #tpu.memory_space<vmem>>, vector<32x4xf32>,
    %c0_338 = arith.constant 0 : index
    %c0_339 = arith.constant 0 : index
    %369 = vector.load %arg12[%c0_338, %c0_339] : memref<488x16xf32, #tpu.memory_space<vmem>>, vector<488x4xf32>
    %c0_340 = arith.constant 0 : index
    %c0_341 = arith.constant 0 : index
    %370 = vector.load %arg5[%c0_340, %c0_341] : memref<520x488xf32, #tpu.memory_space<vmem>>, vector<520x488xf32>
    %cst_342 = arith.constant dense<0.000000e+00> : vector<520x4xf32>
    %371 = tpu.matmul %370, %369, %cst_342 {dimension_numbers = #tpu.dot_dimension_numbers<[1], [0], [0], [1], [0, 0, 1, 1], [], []>} : vector<520x488xf32>, vector<488x4xf32>, vector<520x4xf32> -> vector<520x4xf32>
    %372 = vector.extract_strided_slice %371 {offsets = [0, 0], sizes = [256, 4], strides = [1, 1]} : vector<520x4xf32> to vector<256x4xf32>
    %cst_343 = arith.constant 0.000000e+00 : f32
    %373 = vector.broadcast %cst_343 : f32 to vector<256x4xf32>
    %374 = arith.maximumf %372, %373 : vector<256x4xf32>
    %c0_344 = arith.constant 0 : index
    %c0_345 = arith.constant 0 : index
    %375 = memref.load %arg9[%c0_344, %c0_345] : memref<6x8xf32, #tpu.memory_space<smem>>
    %376 = vector.extract_strided_slice %374 {offsets = [0, 0], sizes = [32, 4], strides = [1, 1]} : vector<256x4xf32> to vector<32x4xf32>
    %377 = vector.broadcast %375 : f32 to vector<32x4xf32>
    %378 = arith.mulf %377, %376 : vector<32x4xf32>
    %c0_346 = arith.constant 0 : index
    %c1_347 = arith.constant 1 : index
    %379 = memref.load %arg9[%c0_346, %c1_347] : memref<6x8xf32, #tpu.memory_space<smem>>
    %380 = vector.extract_strided_slice %374 {offsets = [32, 0], sizes = [32, 4], strides = [1, 1]} : vector<256x4xf32> to vector<32x4xf32>
    %381 = vector.broadcast %379 : f32 to vector<32x4xf32>
    %382 = arith.mulf %381, %380 : vector<32x4xf32>
    %383 = arith.addf %378, %382 : vector<32x4xf32>
    %c0_348 = arith.constant 0 : index
    %c2_349 = arith.constant 2 : index
    %384 = memref.load %arg9[%c0_348, %c2_349] : memref<6x8xf32, #tpu.memory_space<smem>>
    %385 = vector.extract_strided_slice %374 {offsets = [64, 0], sizes = [32, 4], strides = [1, 1]} : vector<256x4xf32> to vector<32x4xf32>
    %386 = vector.broadcast %384 : f32 to vector<32x4xf32>
    %387 = arith.mulf %386, %385 : vector<32x4xf32>
    %388 = arith.addf %383, %387 : vector<32x4xf32>
    %c0_350 = arith.constant 0 : index
    %c3_351 = arith.constant 3 : index
    %389 = memref.load %arg9[%c0_350, %c3_351] : memref<6x8xf32, #tpu.memory_space<smem>>
    %390 = vector.extract_strided_slice %374 {offsets = [96, 0], sizes = [32, 4], strides = [1, 1]} : vector<256x4xf32> to vector<32x4xf32>
    %391 = vector.broadcast %389 : f32 to vector<32x4xf32>
    %392 = arith.mulf %391, %390 : vector<32x4xf32>
    %393 = arith.addf %388, %392 : vector<32x4xf32>
    %c0_352 = arith.constant 0 : index
    %c4_353 = arith.constant 4 : index
    %394 = memref.load %arg9[%c0_352, %c4_353] : memref<6x8xf32, #tpu.memory_space<smem>>
    %395 = vector.extract_strided_slice %374 {offsets = [128, 0], sizes = [32, 4], strides = [1, 1]} : vector<256x4xf32> to vector<32x4xf32>
    %396 = vector.broadcast %394 : f32 to vector<32x4xf32>
    %397 = arith.mulf %396, %395 : vector<32x4xf32>
    %398 = arith.addf %393, %397 : vector<32x4xf32>
    %c0_354 = arith.constant 0 : index
    %c5_355 = arith.constant 5 : index
    %399 = memref.load %arg9[%c0_354, %c5_355] : memref<6x8xf32, #tpu.memory_space<smem>>
    %400 = vector.extract_strided_slice %374 {offsets = [160, 0], sizes = [32, 4], strides = [1, 1]} : vector<256x4xf32> to vector<32x4xf32>
    %401 = vector.broadcast %399 : f32 to vector<32x4xf32>
    %402 = arith.mulf %401, %400 : vector<32x4xf32>
    %403 = arith.addf %398, %402 : vector<32x4xf32>
    %c0_356 = arith.constant 0 : index
    %c6_357 = arith.constant 6 : index
    %404 = memref.load %arg9[%c0_356, %c6_357] : memref<6x8xf32, #tpu.memory_space<smem>>
    %405 = vector.extract_strided_slice %374 {offsets = [192, 0], sizes = [32, 4], strides = [1, 1]} : vector<256x4xf32> to vector<32x4xf32>
    %406 = vector.broadcast %404 : f32 to vector<32x4xf32>
    %407 = arith.mulf %406, %405 : vector<32x4xf32>
    %408 = arith.addf %403, %407 : vector<32x4xf32>
    %c0_358 = arith.constant 0 : index
    %c7_359 = arith.constant 7 : index
    %409 = memref.load %arg9[%c0_358, %c7_359] : memref<6x8xf32, #tpu.memory_space<smem>>
    %410 = vector.extract_strided_slice %374 {offsets = [224, 0], sizes = [32, 4], strides = [1, 1]} : vector<256x4xf32> to vector<32x4xf32>
    %411 = vector.broadcast %409 : f32 to vector<32x4xf32>
    %412 = arith.mulf %411, %410 : vector<32x4xf32>
    %413 = arith.addf %408, %412 : vector<32x4xf32>
    %414 = vector.extract_strided_slice %371 {offsets = [256, 0], sizes = [256, 4], strides = [1, 1]} : vector<520x4xf32> to vector<256x4xf32>
    %cst_360 = arith.constant 0.000000e+00 : f32
    %415 = vector.broadcast %cst_360 : f32 to vector<256x4xf32>
    %416 = arith.maximumf %414, %415 : vector<256x4xf32>
    %c1_361 = arith.constant 1 : index
    %c0_362 = arith.constant 0 : index
    %417 = memref.load %arg9[%c1_361, %c0_362] : memref<6x8xf32, #tpu.memory_space<smem>>
    %418 = vector.extract_strided_slice %416 {offsets = [0, 0], sizes = [32, 4], strides = [1, 1]} : vector<256x4xf32> to vector<32x4xf32>
    %419 = vector.broadcast %417 : f32 to vector<32x4xf32>
    %420 = arith.mulf %419, %418 : vector<32x4xf32>
    %c1_363 = arith.constant 1 : index
    %c1_364 = arith.constant 1 : index
    %421 = memref.load %arg9[%c1_363, %c1_364] : memref<6x8xf32, #tpu.memory_space<smem>>
    %422 = vector.extract_strided_slice %416 {offsets = [32, 0], sizes = [32, 4], strides = [1, 1]} : vector<256x4xf32> to vector<32x4xf32>
    %423 = vector.broadcast %421 : f32 to vector<32x4xf32>
    %424 = arith.mulf %423, %422 : vector<32x4xf32>
    %425 = arith.addf %420, %424 : vector<32x4xf32>
    %c1_365 = arith.constant 1 : index
    %c2_366 = arith.constant 2 : index
    %426 = memref.load %arg9[%c1_365, %c2_366] : memref<6x8xf32, #tpu.memory_space<smem>>
    %427 = vector.extract_strided_slice %416 {offsets = [64, 0], sizes = [32, 4], strides = [1, 1]} : vector<256x4xf32> to vector<32x4xf32>
    %428 = vector.broadcast %426 : f32 to vector<32x4xf32>
    %429 = arith.mulf %428, %427 : vector<32x4xf32>
    %430 = arith.addf %425, %429 : vector<32x4xf32>
    %c1_367 = arith.constant 1 : index
    %c3_368 = arith.constant 3 : index
    %431 = memref.load %arg9[%c1_367, %c3_368] : memref<6x8xf32, #tpu.memory_space<smem>>
    %432 = vector.extract_strided_slice %416 {offsets = [96, 0], sizes = [32, 4], strides = [1, 1]} : vector<256x4xf32> to vector<32x4xf32>
    %433 = vector.broadcast %431 : f32 to vector<32x4xf32>
    %434 = arith.mulf %433, %432 : vector<32x4xf32>
    %435 = arith.addf %430, %434 : vector<32x4xf32>
    %c1_369 = arith.constant 1 : index
    %c4_370 = arith.constant 4 : index
    %436 = memref.load %arg9[%c1_369, %c4_370] : memref<6x8xf32, #tpu.memory_space<smem>>
    %437 = vector.extract_strided_slice %416 {offsets = [128, 0], sizes = [32, 4], strides = [1, 1]} : vector<256x4xf32> to vector<32x4xf32>
    %438 = vector.broadcast %436 : f32 to vector<32x4xf32>
    %439 = arith.mulf %438, %437 : vector<32x4xf32>
    %440 = arith.addf %435, %439 : vector<32x4xf32>
    %c1_371 = arith.constant 1 : index
    %c5_372 = arith.constant 5 : index
    %441 = memref.load %arg9[%c1_371, %c5_372] : memref<6x8xf32, #tpu.memory_space<smem>>
    %442 = vector.extract_strided_slice %416 {offsets = [160, 0], sizes = [32, 4], strides = [1, 1]} : vector<256x4xf32> to vector<32x4xf32>
    %443 = vector.broadcast %441 : f32 to vector<32x4xf32>
    %444 = arith.mulf %443, %442 : vector<32x4xf32>
    %445 = arith.addf %440, %444 : vector<32x4xf32>
    %c1_373 = arith.constant 1 : index
    %c6_374 = arith.constant 6 : index
    %446 = memref.load %arg9[%c1_373, %c6_374] : memref<6x8xf32, #tpu.memory_space<smem>>
    %447 = vector.extract_strided_slice %416 {offsets = [192, 0], sizes = [32, 4], strides = [1, 1]} : vector<256x4xf32> to vector<32x4xf32>
    %448 = vector.broadcast %446 : f32 to vector<32x4xf32>
    %449 = arith.mulf %448, %447 : vector<32x4xf32>
    %450 = arith.addf %445, %449 : vector<32x4xf32>
    %c1_375 = arith.constant 1 : index
    %c7_376 = arith.constant 7 : index
    %451 = memref.load %arg9[%c1_375, %c7_376] : memref<6x8xf32, #tpu.memory_space<smem>>
    %452 = vector.extract_strided_slice %416 {offsets = [224, 0], sizes = [32, 4], strides = [1, 1]} : vector<256x4xf32> to vector<32x4xf32>
    %453 = vector.broadcast %451 : f32 to vector<32x4xf32>
    %454 = arith.mulf %453, %452 : vector<32x4xf32>
    %455 = arith.addf %450, %454 : vector<32x4xf32>
    %456 = vector.extract_strided_slice %371 {offsets = [512, 0], sizes = [8, 4], strides = [1, 1]} : vector<520x4xf32> to vector<8x4xf32>
    %457 = arith.negf %456 : vector<8x4xf32>
    %458 = math.exp %457 : vector<8x4xf32>
    %cst_377 = arith.constant 1.000000e+00 : f32
    %459 = vector.broadcast %cst_377 : f32 to vector<8x4xf32>
    %460 = arith.addf %459, %458 : vector<8x4xf32>
    %461 = arith.divf %459, %460 : vector<8x4xf32>
    %c3_378 = arith.constant 3 : index
    %c0_379 = arith.constant 0 : index
    %462 = memref.load %arg9[%c3_378, %c0_379] : memref<6x8xf32, #tpu.memory_space<smem>>
    %463 = vector.extract_strided_slice %461 {offsets = [0, 0], sizes = [1, 4], strides = [1, 1]} : vector<8x4xf32> to vector<1x4xf32>
    %464 = vector.broadcast %462 : f32 to vector<1x4xf32>
    %465 = arith.mulf %464, %463 : vector<1x4xf32>
    %c3_380 = arith.constant 3 : index
    %c1_381 = arith.constant 1 : index
    %466 = memref.load %arg9[%c3_380, %c1_381] : memref<6x8xf32, #tpu.memory_space<smem>>
    %467 = vector.extract_strided_slice %461 {offsets = [1, 0], sizes = [1, 4], strides = [1, 1]} : vector<8x4xf32> to vector<1x4xf32>
    %468 = vector.broadcast %466 : f32 to vector<1x4xf32>
    %469 = arith.mulf %468, %467 : vector<1x4xf32>
    %470 = arith.addf %465, %469 : vector<1x4xf32>
    %c3_382 = arith.constant 3 : index
    %c2_383 = arith.constant 2 : index
    %471 = memref.load %arg9[%c3_382, %c2_383] : memref<6x8xf32, #tpu.memory_space<smem>>
    %472 = vector.extract_strided_slice %461 {offsets = [2, 0], sizes = [1, 4], strides = [1, 1]} : vector<8x4xf32> to vector<1x4xf32>
    %473 = vector.broadcast %471 : f32 to vector<1x4xf32>
    %474 = arith.mulf %473, %472 : vector<1x4xf32>
    %475 = arith.addf %470, %474 : vector<1x4xf32>
    %c3_384 = arith.constant 3 : index
    %c3_385 = arith.constant 3 : index
    %476 = memref.load %arg9[%c3_384, %c3_385] : memref<6x8xf32, #tpu.memory_space<smem>>
    %477 = vector.extract_strided_slice %461 {offsets = [3, 0], sizes = [1, 4], strides = [1, 1]} : vector<8x4xf32> to vector<1x4xf32>
    %478 = vector.broadcast %476 : f32 to vector<1x4xf32>
    %479 = arith.mulf %478, %477 : vector<1x4xf32>
    %480 = arith.addf %475, %479 : vector<1x4xf32>
    %c3_386 = arith.constant 3 : index
    %c4_387 = arith.constant 4 : index
    %481 = memref.load %arg9[%c3_386, %c4_387] : memref<6x8xf32, #tpu.memory_space<smem>>
    %482 = vector.extract_strided_slice %461 {offsets = [4, 0], sizes = [1, 4], strides = [1, 1]} : vector<8x4xf32> to vector<1x4xf32>
    %483 = vector.broadcast %481 : f32 to vector<1x4xf32>
    %484 = arith.mulf %483, %482 : vector<1x4xf32>
    %485 = arith.addf %480, %484 : vector<1x4xf32>
    %c3_388 = arith.constant 3 : index
    %c5_389 = arith.constant 5 : index
    %486 = memref.load %arg9[%c3_388, %c5_389] : memref<6x8xf32, #tpu.memory_space<smem>>
    %487 = vector.extract_strided_slice %461 {offsets = [5, 0], sizes = [1, 4], strides = [1, 1]} : vector<8x4xf32> to vector<1x4xf32>
    %488 = vector.broadcast %486 : f32 to vector<1x4xf32>
    %489 = arith.mulf %488, %487 : vector<1x4xf32>
    %490 = arith.addf %485, %489 : vector<1x4xf32>
    %c3_390 = arith.constant 3 : index
    %c6_391 = arith.constant 6 : index
    %491 = memref.load %arg9[%c3_390, %c6_391] : memref<6x8xf32, #tpu.memory_space<smem>>
    %492 = vector.extract_strided_slice %461 {offsets = [6, 0], sizes = [1, 4], strides = [1, 1]} : vector<8x4xf32> to vector<1x4xf32>
    %493 = vector.broadcast %491 : f32 to vector<1x4xf32>
    %494 = arith.mulf %493, %492 : vector<1x4xf32>
    %495 = arith.addf %490, %494 : vector<1x4xf32>
    %c3_392 = arith.constant 3 : index
    %c7_393 = arith.constant 7 : index
    %496 = memref.load %arg9[%c3_392, %c7_393] : memref<6x8xf32, #tpu.memory_space<smem>>
    %497 = vector.extract_strided_slice %461 {offsets = [7, 0], sizes = [1, 4], strides = [1, 1]} : vector<8x4xf32> to vector<1x4xf32>
    %498 = vector.broadcast %496 : f32 to vector<1x4xf32>
    %499 = arith.mulf %498, %497 : vector<1x4xf32>
    %500 = arith.addf %495, %499 : vector<1x4xf32>
    %cst_394 = arith.constant 0.000000e+00 : f32
    %501 = vector.broadcast %cst_394 : f32 to vector<32x30xf32>
    %c0_395 = arith.constant 0 : index
    %c0_396 = arith.constant 0 : index
    %502 = vector.load %arg11[%c0_395, %c0_396] : memref<32x30xf32, #tpu.memory_space<vmem>>, vector<32x30xf32>
    tpu.vector_store %arg11[%c0_395, %c0_396], %501 {strides = array<i32>} : memref<32x30xf32, #tpu.memory_space<vmem>>, vector<32x30xf32>,
    %c0_397 = arith.constant 0 : index
    %c7_398 = arith.constant 7 : index
    %503 = vector.load %arg11[%c0_397, %c7_398] : memref<32x30xf32, #tpu.memory_space<vmem>>, vector<32x4xf32>
    tpu.vector_store %arg11[%c0_397, %c7_398], %413 {strides = array<i32>} : memref<32x30xf32, #tpu.memory_space<vmem>>, vector<32x4xf32>,
    %c0_399 = arith.constant 0 : index
    %c0_400 = arith.constant 0 : index
    %504 = vector.load %arg11[%c0_399, %c0_400] : memref<32x30xf32, #tpu.memory_space<vmem>>, vector<32x4xf32>
    %c0_401 = arith.constant 0 : index
    %c0_402 = arith.constant 0 : index
    %505 = vector.load %arg13[%c0_401, %c0_402] : memref<488x16xf32, #tpu.memory_space<vmem>>, vector<32x4xf32>
    tpu.vector_store %arg13[%c0_401, %c0_402], %504 {strides = array<i32>} : memref<488x16xf32, #tpu.memory_space<vmem>>, vector<32x4xf32>,
    %c0_403 = arith.constant 0 : index
    %c1_404 = arith.constant 1 : index
    %506 = vector.load %arg11[%c0_403, %c1_404] : memref<32x30xf32, #tpu.memory_space<vmem>>, vector<32x4xf32>
    %c32_405 = arith.constant 32 : index
    %c0_406 = arith.constant 0 : index
    %507 = vector.load %arg13[%c32_405, %c0_406] : memref<488x16xf32, #tpu.memory_space<vmem>>, vector<32x4xf32>
    tpu.vector_store %arg13[%c32_405, %c0_406], %506 {strides = array<i32>} : memref<488x16xf32, #tpu.memory_space<vmem>>, vector<32x4xf32>,
    %c0_407 = arith.constant 0 : index
    %c2_408 = arith.constant 2 : index
    %508 = vector.load %arg11[%c0_407, %c2_408] : memref<32x30xf32, #tpu.memory_space<vmem>>, vector<32x4xf32>
    %c64_409 = arith.constant 64 : index
    %c0_410 = arith.constant 0 : index
    %509 = vector.load %arg13[%c64_409, %c0_410] : memref<488x16xf32, #tpu.memory_space<vmem>>, vector<32x4xf32>
    tpu.vector_store %arg13[%c64_409, %c0_410], %508 {strides = array<i32>} : memref<488x16xf32, #tpu.memory_space<vmem>>, vector<32x4xf32>,
    %c0_411 = arith.constant 0 : index
    %c3_412 = arith.constant 3 : index
    %510 = vector.load %arg11[%c0_411, %c3_412] : memref<32x30xf32, #tpu.memory_space<vmem>>, vector<32x4xf32>
    %c96_413 = arith.constant 96 : index
    %c0_414 = arith.constant 0 : index
    %511 = vector.load %arg13[%c96_413, %c0_414] : memref<488x16xf32, #tpu.memory_space<vmem>>, vector<32x4xf32>
    tpu.vector_store %arg13[%c96_413, %c0_414], %510 {strides = array<i32>} : memref<488x16xf32, #tpu.memory_space<vmem>>, vector<32x4xf32>,
    %c0_415 = arith.constant 0 : index
    %c4_416 = arith.constant 4 : index
    %512 = vector.load %arg11[%c0_415, %c4_416] : memref<32x30xf32, #tpu.memory_space<vmem>>, vector<32x4xf32>
    %c128_417 = arith.constant 128 : index
    %c0_418 = arith.constant 0 : index
    %513 = vector.load %arg13[%c128_417, %c0_418] : memref<488x16xf32, #tpu.memory_space<vmem>>, vector<32x4xf32>
    tpu.vector_store %arg13[%c128_417, %c0_418], %512 {strides = array<i32>} : memref<488x16xf32, #tpu.memory_space<vmem>>, vector<32x4xf32>,
    %c0_419 = arith.constant 0 : index
    %c5_420 = arith.constant 5 : index
    %514 = vector.load %arg11[%c0_419, %c5_420] : memref<32x30xf32, #tpu.memory_space<vmem>>, vector<32x4xf32>
    %c160_421 = arith.constant 160 : index
    %c0_422 = arith.constant 0 : index
    %515 = vector.load %arg13[%c160_421, %c0_422] : memref<488x16xf32, #tpu.memory_space<vmem>>, vector<32x4xf32>
    tpu.vector_store %arg13[%c160_421, %c0_422], %514 {strides = array<i32>} : memref<488x16xf32, #tpu.memory_space<vmem>>, vector<32x4xf32>,
    %c0_423 = arith.constant 0 : index
    %c6_424 = arith.constant 6 : index
    %516 = vector.load %arg11[%c0_423, %c6_424] : memref<32x30xf32, #tpu.memory_space<vmem>>, vector<32x4xf32>
    %c192_425 = arith.constant 192 : index
    %c0_426 = arith.constant 0 : index
    %517 = vector.load %arg13[%c192_425, %c0_426] : memref<488x16xf32, #tpu.memory_space<vmem>>, vector<32x4xf32>
    tpu.vector_store %arg13[%c192_425, %c0_426], %516 {strides = array<i32>} : memref<488x16xf32, #tpu.memory_space<vmem>>, vector<32x4xf32>,
    %c0_427 = arith.constant 0 : index
    %c7_428 = arith.constant 7 : index
    %518 = vector.load %arg11[%c0_427, %c7_428] : memref<32x30xf32, #tpu.memory_space<vmem>>, vector<32x4xf32>
    %c224_429 = arith.constant 224 : index
    %c0_430 = arith.constant 0 : index
    %519 = vector.load %arg13[%c224_429, %c0_430] : memref<488x16xf32, #tpu.memory_space<vmem>>, vector<32x4xf32>
    tpu.vector_store %arg13[%c224_429, %c0_430], %518 {strides = array<i32>} : memref<488x16xf32, #tpu.memory_space<vmem>>, vector<32x4xf32>,
    %c0_431 = arith.constant 0 : index
    %c8_432 = arith.constant 8 : index
    %520 = vector.load %arg11[%c0_431, %c8_432] : memref<32x30xf32, #tpu.memory_space<vmem>>, vector<32x4xf32>
    %c256_433 = arith.constant 256 : index
    %c0_434 = arith.constant 0 : index
    %521 = vector.load %arg13[%c256_433, %c0_434] : memref<488x16xf32, #tpu.memory_space<vmem>>, vector<32x4xf32>
    tpu.vector_store %arg13[%c256_433, %c0_434], %520 {strides = array<i32>} : memref<488x16xf32, #tpu.memory_space<vmem>>, vector<32x4xf32>,
    %c0_435 = arith.constant 0 : index
    %c9_436 = arith.constant 9 : index
    %522 = vector.load %arg11[%c0_435, %c9_436] : memref<32x30xf32, #tpu.memory_space<vmem>>, vector<32x4xf32>
    %c288_437 = arith.constant 288 : index
    %c0_438 = arith.constant 0 : index
    %523 = vector.load %arg13[%c288_437, %c0_438] : memref<488x16xf32, #tpu.memory_space<vmem>>, vector<32x4xf32>
    tpu.vector_store %arg13[%c288_437, %c0_438], %522 {strides = array<i32>} : memref<488x16xf32, #tpu.memory_space<vmem>>, vector<32x4xf32>,
    %c0_439 = arith.constant 0 : index
    %c10_440 = arith.constant 10 : index
    %524 = vector.load %arg11[%c0_439, %c10_440] : memref<32x30xf32, #tpu.memory_space<vmem>>, vector<32x4xf32>
    %c320_441 = arith.constant 320 : index
    %c0_442 = arith.constant 0 : index
    %525 = vector.load %arg13[%c320_441, %c0_442] : memref<488x16xf32, #tpu.memory_space<vmem>>, vector<32x4xf32>
    tpu.vector_store %arg13[%c320_441, %c0_442], %524 {strides = array<i32>} : memref<488x16xf32, #tpu.memory_space<vmem>>, vector<32x4xf32>,
    %c0_443 = arith.constant 0 : index
    %c11_444 = arith.constant 11 : index
    %526 = vector.load %arg11[%c0_443, %c11_444] : memref<32x30xf32, #tpu.memory_space<vmem>>, vector<32x4xf32>
    %c352_445 = arith.constant 352 : index
    %c0_446 = arith.constant 0 : index
    %527 = vector.load %arg13[%c352_445, %c0_446] : memref<488x16xf32, #tpu.memory_space<vmem>>, vector<32x4xf32>
    tpu.vector_store %arg13[%c352_445, %c0_446], %526 {strides = array<i32>} : memref<488x16xf32, #tpu.memory_space<vmem>>, vector<32x4xf32>,
    %c0_447 = arith.constant 0 : index
    %c12_448 = arith.constant 12 : index
    %528 = vector.load %arg11[%c0_447, %c12_448] : memref<32x30xf32, #tpu.memory_space<vmem>>, vector<32x4xf32>
    %c384_449 = arith.constant 384 : index
    %c0_450 = arith.constant 0 : index
    %529 = vector.load %arg13[%c384_449, %c0_450] : memref<488x16xf32, #tpu.memory_space<vmem>>, vector<32x4xf32>
    tpu.vector_store %arg13[%c384_449, %c0_450], %528 {strides = array<i32>} : memref<488x16xf32, #tpu.memory_space<vmem>>, vector<32x4xf32>,
    %c0_451 = arith.constant 0 : index
    %c13_452 = arith.constant 13 : index
    %530 = vector.load %arg11[%c0_451, %c13_452] : memref<32x30xf32, #tpu.memory_space<vmem>>, vector<32x4xf32>
    %c416_453 = arith.constant 416 : index
    %c0_454 = arith.constant 0 : index
    %531 = vector.load %arg13[%c416_453, %c0_454] : memref<488x16xf32, #tpu.memory_space<vmem>>, vector<32x4xf32>
    tpu.vector_store %arg13[%c416_453, %c0_454], %530 {strides = array<i32>} : memref<488x16xf32, #tpu.memory_space<vmem>>, vector<32x4xf32>,
    %c0_455 = arith.constant 0 : index
    %c14_456 = arith.constant 14 : index
    %532 = vector.load %arg11[%c0_455, %c14_456] : memref<32x30xf32, #tpu.memory_space<vmem>>, vector<32x4xf32>
    %c448_457 = arith.constant 448 : index
    %c0_458 = arith.constant 0 : index
    %533 = vector.load %arg13[%c448_457, %c0_458] : memref<488x16xf32, #tpu.memory_space<vmem>>, vector<32x4xf32>
    tpu.vector_store %arg13[%c448_457, %c0_458], %532 {strides = array<i32>} : memref<488x16xf32, #tpu.memory_space<vmem>>, vector<32x4xf32>,
    %c0_459 = arith.constant 0 : index
    %c0_460 = arith.constant 0 : index
    %534 = vector.load %arg13[%c0_459, %c0_460] : memref<488x16xf32, #tpu.memory_space<vmem>>, vector<488x4xf32>
    %c0_461 = arith.constant 0 : index
    %c0_462 = arith.constant 0 : index
    %535 = vector.load %arg6[%c0_461, %c0_462] : memref<264x488xf32, #tpu.memory_space<vmem>>, vector<264x488xf32>
    %cst_463 = arith.constant dense<0.000000e+00> : vector<264x4xf32>
    %536 = tpu.matmul %535, %534, %cst_463 {dimension_numbers = #tpu.dot_dimension_numbers<[1], [0], [0], [1], [0, 0, 1, 1], [], []>} : vector<264x488xf32>, vector<488x4xf32>, vector<264x4xf32> -> vector<264x4xf32>
    %537 = vector.extract_strided_slice %536 {offsets = [0, 0], sizes = [256, 4], strides = [1, 1]} : vector<264x4xf32> to vector<256x4xf32>
    %cst_464 = arith.constant 0.000000e+00 : f32
    %538 = vector.broadcast %cst_464 : f32 to vector<256x4xf32>
    %539 = arith.maximumf %537, %538 : vector<256x4xf32>
    %c2_465 = arith.constant 2 : index
    %c0_466 = arith.constant 0 : index
    %540 = memref.load %arg9[%c2_465, %c0_466] : memref<6x8xf32, #tpu.memory_space<smem>>
    %541 = vector.extract_strided_slice %539 {offsets = [0, 0], sizes = [32, 4], strides = [1, 1]} : vector<256x4xf32> to vector<32x4xf32>
    %542 = vector.broadcast %540 : f32 to vector<32x4xf32>
    %543 = arith.mulf %542, %541 : vector<32x4xf32>
    %c2_467 = arith.constant 2 : index
    %c1_468 = arith.constant 1 : index
    %544 = memref.load %arg9[%c2_467, %c1_468] : memref<6x8xf32, #tpu.memory_space<smem>>
    %545 = vector.extract_strided_slice %539 {offsets = [32, 0], sizes = [32, 4], strides = [1, 1]} : vector<256x4xf32> to vector<32x4xf32>
    %546 = vector.broadcast %544 : f32 to vector<32x4xf32>
    %547 = arith.mulf %546, %545 : vector<32x4xf32>
    %548 = arith.addf %543, %547 : vector<32x4xf32>
    %c2_469 = arith.constant 2 : index
    %c2_470 = arith.constant 2 : index
    %549 = memref.load %arg9[%c2_469, %c2_470] : memref<6x8xf32, #tpu.memory_space<smem>>
    %550 = vector.extract_strided_slice %539 {offsets = [64, 0], sizes = [32, 4], strides = [1, 1]} : vector<256x4xf32> to vector<32x4xf32>
    %551 = vector.broadcast %549 : f32 to vector<32x4xf32>
    %552 = arith.mulf %551, %550 : vector<32x4xf32>
    %553 = arith.addf %548, %552 : vector<32x4xf32>
    %c2_471 = arith.constant 2 : index
    %c3_472 = arith.constant 3 : index
    %554 = memref.load %arg9[%c2_471, %c3_472] : memref<6x8xf32, #tpu.memory_space<smem>>
    %555 = vector.extract_strided_slice %539 {offsets = [96, 0], sizes = [32, 4], strides = [1, 1]} : vector<256x4xf32> to vector<32x4xf32>
    %556 = vector.broadcast %554 : f32 to vector<32x4xf32>
    %557 = arith.mulf %556, %555 : vector<32x4xf32>
    %558 = arith.addf %553, %557 : vector<32x4xf32>
    %c2_473 = arith.constant 2 : index
    %c4_474 = arith.constant 4 : index
    %559 = memref.load %arg9[%c2_473, %c4_474] : memref<6x8xf32, #tpu.memory_space<smem>>
    %560 = vector.extract_strided_slice %539 {offsets = [128, 0], sizes = [32, 4], strides = [1, 1]} : vector<256x4xf32> to vector<32x4xf32>
    %561 = vector.broadcast %559 : f32 to vector<32x4xf32>
    %562 = arith.mulf %561, %560 : vector<32x4xf32>
    %563 = arith.addf %558, %562 : vector<32x4xf32>
    %c2_475 = arith.constant 2 : index
    %c5_476 = arith.constant 5 : index
    %564 = memref.load %arg9[%c2_475, %c5_476] : memref<6x8xf32, #tpu.memory_space<smem>>
    %565 = vector.extract_strided_slice %539 {offsets = [160, 0], sizes = [32, 4], strides = [1, 1]} : vector<256x4xf32> to vector<32x4xf32>
    %566 = vector.broadcast %564 : f32 to vector<32x4xf32>
    %567 = arith.mulf %566, %565 : vector<32x4xf32>
    %568 = arith.addf %563, %567 : vector<32x4xf32>
    %c2_477 = arith.constant 2 : index
    %c6_478 = arith.constant 6 : index
    %569 = memref.load %arg9[%c2_477, %c6_478] : memref<6x8xf32, #tpu.memory_space<smem>>
    %570 = vector.extract_strided_slice %539 {offsets = [192, 0], sizes = [32, 4], strides = [1, 1]} : vector<256x4xf32> to vector<32x4xf32>
    %571 = vector.broadcast %569 : f32 to vector<32x4xf32>
    %572 = arith.mulf %571, %570 : vector<32x4xf32>
    %573 = arith.addf %568, %572 : vector<32x4xf32>
    %c2_479 = arith.constant 2 : index
    %c7_480 = arith.constant 7 : index
    %574 = memref.load %arg9[%c2_479, %c7_480] : memref<6x8xf32, #tpu.memory_space<smem>>
    %575 = vector.extract_strided_slice %539 {offsets = [224, 0], sizes = [32, 4], strides = [1, 1]} : vector<256x4xf32> to vector<32x4xf32>
    %576 = vector.broadcast %574 : f32 to vector<32x4xf32>
    %577 = arith.mulf %576, %575 : vector<32x4xf32>
    %578 = arith.addf %573, %577 : vector<32x4xf32>
    %579 = vector.extract_strided_slice %536 {offsets = [256, 0], sizes = [8, 4], strides = [1, 1]} : vector<264x4xf32> to vector<8x4xf32>
    %580 = arith.negf %579 : vector<8x4xf32>
    %581 = math.exp %580 : vector<8x4xf32>
    %cst_481 = arith.constant 1.000000e+00 : f32
    %582 = vector.broadcast %cst_481 : f32 to vector<8x4xf32>
    %583 = arith.addf %582, %581 : vector<8x4xf32>
    %584 = arith.divf %582, %583 : vector<8x4xf32>
    %c4_482 = arith.constant 4 : index
    %c0_483 = arith.constant 0 : index
    %585 = memref.load %arg9[%c4_482, %c0_483] : memref<6x8xf32, #tpu.memory_space<smem>>
    %586 = vector.extract_strided_slice %584 {offsets = [0, 0], sizes = [1, 4], strides = [1, 1]} : vector<8x4xf32> to vector<1x4xf32>
    %587 = vector.broadcast %585 : f32 to vector<1x4xf32>
    %588 = arith.mulf %587, %586 : vector<1x4xf32>
    %c4_484 = arith.constant 4 : index
    %c1_485 = arith.constant 1 : index
    %589 = memref.load %arg9[%c4_484, %c1_485] : memref<6x8xf32, #tpu.memory_space<smem>>
    %590 = vector.extract_strided_slice %584 {offsets = [1, 0], sizes = [1, 4], strides = [1, 1]} : vector<8x4xf32> to vector<1x4xf32>
    %591 = vector.broadcast %589 : f32 to vector<1x4xf32>
    %592 = arith.mulf %591, %590 : vector<1x4xf32>
    %593 = arith.addf %588, %592 : vector<1x4xf32>
    %c4_486 = arith.constant 4 : index
    %c2_487 = arith.constant 2 : index
    %594 = memref.load %arg9[%c4_486, %c2_487] : memref<6x8xf32, #tpu.memory_space<smem>>
    %595 = vector.extract_strided_slice %584 {offsets = [2, 0], sizes = [1, 4], strides = [1, 1]} : vector<8x4xf32> to vector<1x4xf32>
    %596 = vector.broadcast %594 : f32 to vector<1x4xf32>
    %597 = arith.mulf %596, %595 : vector<1x4xf32>
    %598 = arith.addf %593, %597 : vector<1x4xf32>
    %c4_488 = arith.constant 4 : index
    %c3_489 = arith.constant 3 : index
    %599 = memref.load %arg9[%c4_488, %c3_489] : memref<6x8xf32, #tpu.memory_space<smem>>
    %600 = vector.extract_strided_slice %584 {offsets = [3, 0], sizes = [1, 4], strides = [1, 1]} : vector<8x4xf32> to vector<1x4xf32>
    %601 = vector.broadcast %599 : f32 to vector<1x4xf32>
    %602 = arith.mulf %601, %600 : vector<1x4xf32>
    %603 = arith.addf %598, %602 : vector<1x4xf32>
    %c4_490 = arith.constant 4 : index
    %c4_491 = arith.constant 4 : index
    %604 = memref.load %arg9[%c4_490, %c4_491] : memref<6x8xf32, #tpu.memory_space<smem>>
    %605 = vector.extract_strided_slice %584 {offsets = [4, 0], sizes = [1, 4], strides = [1, 1]} : vector<8x4xf32> to vector<1x4xf32>
    %606 = vector.broadcast %604 : f32 to vector<1x4xf32>
    %607 = arith.mulf %606, %605 : vector<1x4xf32>
    %608 = arith.addf %603, %607 : vector<1x4xf32>
    %c4_492 = arith.constant 4 : index
    %c5_493 = arith.constant 5 : index
    %609 = memref.load %arg9[%c4_492, %c5_493] : memref<6x8xf32, #tpu.memory_space<smem>>
    %610 = vector.extract_strided_slice %584 {offsets = [5, 0], sizes = [1, 4], strides = [1, 1]} : vector<8x4xf32> to vector<1x4xf32>
    %611 = vector.broadcast %609 : f32 to vector<1x4xf32>
    %612 = arith.mulf %611, %610 : vector<1x4xf32>
    %613 = arith.addf %608, %612 : vector<1x4xf32>
    %c4_494 = arith.constant 4 : index
    %c6_495 = arith.constant 6 : index
    %614 = memref.load %arg9[%c4_494, %c6_495] : memref<6x8xf32, #tpu.memory_space<smem>>
    %615 = vector.extract_strided_slice %584 {offsets = [6, 0], sizes = [1, 4], strides = [1, 1]} : vector<8x4xf32> to vector<1x4xf32>
    %616 = vector.broadcast %614 : f32 to vector<1x4xf32>
    %617 = arith.mulf %616, %615 : vector<1x4xf32>
    %618 = arith.addf %613, %617 : vector<1x4xf32>
    %c4_496 = arith.constant 4 : index
    %c7_497 = arith.constant 7 : index
    %619 = memref.load %arg9[%c4_496, %c7_497] : memref<6x8xf32, #tpu.memory_space<smem>>
    %620 = vector.extract_strided_slice %584 {offsets = [7, 0], sizes = [1, 4], strides = [1, 1]} : vector<8x4xf32> to vector<1x4xf32>
    %621 = vector.broadcast %619 : f32 to vector<1x4xf32>
    %622 = arith.mulf %621, %620 : vector<1x4xf32>
    %623 = arith.addf %618, %622 : vector<1x4xf32>
    %624 = arith.addf %455, %578 : vector<32x4xf32>
    %cst_498 = arith.constant 0.000000e+00 : f32
    %625 = vector.broadcast %cst_498 : f32 to vector<32x30xf32>
    %c0_499 = arith.constant 0 : index
    %c0_500 = arith.constant 0 : index
    %626 = vector.load %arg11[%c0_499, %c0_500] : memref<32x30xf32, #tpu.memory_space<vmem>>, vector<32x30xf32>
    tpu.vector_store %arg11[%c0_499, %c0_500], %625 {strides = array<i32>} : memref<32x30xf32, #tpu.memory_space<vmem>>, vector<32x30xf32>,
    %c0_501 = arith.constant 0 : index
    %c7_502 = arith.constant 7 : index
    %627 = vector.load %arg11[%c0_501, %c7_502] : memref<32x30xf32, #tpu.memory_space<vmem>>, vector<32x4xf32>
    tpu.vector_store %arg11[%c0_501, %c7_502], %624 {strides = array<i32>} : memref<32x30xf32, #tpu.memory_space<vmem>>, vector<32x4xf32>,
    %c0_503 = arith.constant 0 : index
    %c0_504 = arith.constant 0 : index
    %628 = vector.load %arg11[%c0_503, %c0_504] : memref<32x30xf32, #tpu.memory_space<vmem>>, vector<32x4xf32>
    %c0_505 = arith.constant 0 : index
    %c0_506 = arith.constant 0 : index
    %629 = vector.load %arg12[%c0_505, %c0_506] : memref<488x16xf32, #tpu.memory_space<vmem>>, vector<32x4xf32>
    tpu.vector_store %arg12[%c0_505, %c0_506], %628 {strides = array<i32>} : memref<488x16xf32, #tpu.memory_space<vmem>>, vector<32x4xf32>,
    %c0_507 = arith.constant 0 : index
    %c1_508 = arith.constant 1 : index
    %630 = vector.load %arg11[%c0_507, %c1_508] : memref<32x30xf32, #tpu.memory_space<vmem>>, vector<32x4xf32>
    %c32_509 = arith.constant 32 : index
    %c0_510 = arith.constant 0 : index
    %631 = vector.load %arg12[%c32_509, %c0_510] : memref<488x16xf32, #tpu.memory_space<vmem>>, vector<32x4xf32>
    tpu.vector_store %arg12[%c32_509, %c0_510], %630 {strides = array<i32>} : memref<488x16xf32, #tpu.memory_space<vmem>>, vector<32x4xf32>,
    %c0_511 = arith.constant 0 : index
    %c2_512 = arith.constant 2 : index
    %632 = vector.load %arg11[%c0_511, %c2_512] : memref<32x30xf32, #tpu.memory_space<vmem>>, vector<32x4xf32>
    %c64_513 = arith.constant 64 : index
    %c0_514 = arith.constant 0 : index
    %633 = vector.load %arg12[%c64_513, %c0_514] : memref<488x16xf32, #tpu.memory_space<vmem>>, vector<32x4xf32>
    tpu.vector_store %arg12[%c64_513, %c0_514], %632 {strides = array<i32>} : memref<488x16xf32, #tpu.memory_space<vmem>>, vector<32x4xf32>,
    %c0_515 = arith.constant 0 : index
    %c3_516 = arith.constant 3 : index
    %634 = vector.load %arg11[%c0_515, %c3_516] : memref<32x30xf32, #tpu.memory_space<vmem>>, vector<32x4xf32>
    %c96_517 = arith.constant 96 : index
    %c0_518 = arith.constant 0 : index
    %635 = vector.load %arg12[%c96_517, %c0_518] : memref<488x16xf32, #tpu.memory_space<vmem>>, vector<32x4xf32>
    tpu.vector_store %arg12[%c96_517, %c0_518], %634 {strides = array<i32>} : memref<488x16xf32, #tpu.memory_space<vmem>>, vector<32x4xf32>,
    %c0_519 = arith.constant 0 : index
    %c4_520 = arith.constant 4 : index
    %636 = vector.load %arg11[%c0_519, %c4_520] : memref<32x30xf32, #tpu.memory_space<vmem>>, vector<32x4xf32>
    %c128_521 = arith.constant 128 : index
    %c0_522 = arith.constant 0 : index
    %637 = vector.load %arg12[%c128_521, %c0_522] : memref<488x16xf32, #tpu.memory_space<vmem>>, vector<32x4xf32>
    tpu.vector_store %arg12[%c128_521, %c0_522], %636 {strides = array<i32>} : memref<488x16xf32, #tpu.memory_space<vmem>>, vector<32x4xf32>,
    %c0_523 = arith.constant 0 : index
    %c5_524 = arith.constant 5 : index
    %638 = vector.load %arg11[%c0_523, %c5_524] : memref<32x30xf32, #tpu.memory_space<vmem>>, vector<32x4xf32>
    %c160_525 = arith.constant 160 : index
    %c0_526 = arith.constant 0 : index
    %639 = vector.load %arg12[%c160_525, %c0_526] : memref<488x16xf32, #tpu.memory_space<vmem>>, vector<32x4xf32>
    tpu.vector_store %arg12[%c160_525, %c0_526], %638 {strides = array<i32>} : memref<488x16xf32, #tpu.memory_space<vmem>>, vector<32x4xf32>,
    %c0_527 = arith.constant 0 : index
    %c6_528 = arith.constant 6 : index
    %640 = vector.load %arg11[%c0_527, %c6_528] : memref<32x30xf32, #tpu.memory_space<vmem>>, vector<32x4xf32>
    %c192_529 = arith.constant 192 : index
    %c0_530 = arith.constant 0 : index
    %641 = vector.load %arg12[%c192_529, %c0_530] : memref<488x16xf32, #tpu.memory_space<vmem>>, vector<32x4xf32>
    tpu.vector_store %arg12[%c192_529, %c0_530], %640 {strides = array<i32>} : memref<488x16xf32, #tpu.memory_space<vmem>>, vector<32x4xf32>,
    %c0_531 = arith.constant 0 : index
    %c7_532 = arith.constant 7 : index
    %642 = vector.load %arg11[%c0_531, %c7_532] : memref<32x30xf32, #tpu.memory_space<vmem>>, vector<32x4xf32>
    %c224_533 = arith.constant 224 : index
    %c0_534 = arith.constant 0 : index
    %643 = vector.load %arg12[%c224_533, %c0_534] : memref<488x16xf32, #tpu.memory_space<vmem>>, vector<32x4xf32>
    tpu.vector_store %arg12[%c224_533, %c0_534], %642 {strides = array<i32>} : memref<488x16xf32, #tpu.memory_space<vmem>>, vector<32x4xf32>,
    %c0_535 = arith.constant 0 : index
    %c8_536 = arith.constant 8 : index
    %644 = vector.load %arg11[%c0_535, %c8_536] : memref<32x30xf32, #tpu.memory_space<vmem>>, vector<32x4xf32>
    %c256_537 = arith.constant 256 : index
    %c0_538 = arith.constant 0 : index
    %645 = vector.load %arg12[%c256_537, %c0_538] : memref<488x16xf32, #tpu.memory_space<vmem>>, vector<32x4xf32>
    tpu.vector_store %arg12[%c256_537, %c0_538], %644 {strides = array<i32>} : memref<488x16xf32, #tpu.memory_space<vmem>>, vector<32x4xf32>,
    %c0_539 = arith.constant 0 : index
    %c9_540 = arith.constant 9 : index
    %646 = vector.load %arg11[%c0_539, %c9_540] : memref<32x30xf32, #tpu.memory_space<vmem>>, vector<32x4xf32>
    %c288_541 = arith.constant 288 : index
    %c0_542 = arith.constant 0 : index
    %647 = vector.load %arg12[%c288_541, %c0_542] : memref<488x16xf32, #tpu.memory_space<vmem>>, vector<32x4xf32>
    tpu.vector_store %arg12[%c288_541, %c0_542], %646 {strides = array<i32>} : memref<488x16xf32, #tpu.memory_space<vmem>>, vector<32x4xf32>,
    %c0_543 = arith.constant 0 : index
    %c10_544 = arith.constant 10 : index
    %648 = vector.load %arg11[%c0_543, %c10_544] : memref<32x30xf32, #tpu.memory_space<vmem>>, vector<32x4xf32>
    %c320_545 = arith.constant 320 : index
    %c0_546 = arith.constant 0 : index
    %649 = vector.load %arg12[%c320_545, %c0_546] : memref<488x16xf32, #tpu.memory_space<vmem>>, vector<32x4xf32>
    tpu.vector_store %arg12[%c320_545, %c0_546], %648 {strides = array<i32>} : memref<488x16xf32, #tpu.memory_space<vmem>>, vector<32x4xf32>,
    %c0_547 = arith.constant 0 : index
    %c11_548 = arith.constant 11 : index
    %650 = vector.load %arg11[%c0_547, %c11_548] : memref<32x30xf32, #tpu.memory_space<vmem>>, vector<32x4xf32>
    %c352_549 = arith.constant 352 : index
    %c0_550 = arith.constant 0 : index
    %651 = vector.load %arg12[%c352_549, %c0_550] : memref<488x16xf32, #tpu.memory_space<vmem>>, vector<32x4xf32>
    tpu.vector_store %arg12[%c352_549, %c0_550], %650 {strides = array<i32>} : memref<488x16xf32, #tpu.memory_space<vmem>>, vector<32x4xf32>,
    %c0_551 = arith.constant 0 : index
    %c12_552 = arith.constant 12 : index
    %652 = vector.load %arg11[%c0_551, %c12_552] : memref<32x30xf32, #tpu.memory_space<vmem>>, vector<32x4xf32>
    %c384_553 = arith.constant 384 : index
    %c0_554 = arith.constant 0 : index
    %653 = vector.load %arg12[%c384_553, %c0_554] : memref<488x16xf32, #tpu.memory_space<vmem>>, vector<32x4xf32>
    tpu.vector_store %arg12[%c384_553, %c0_554], %652 {strides = array<i32>} : memref<488x16xf32, #tpu.memory_space<vmem>>, vector<32x4xf32>,
    %c0_555 = arith.constant 0 : index
    %c13_556 = arith.constant 13 : index
    %654 = vector.load %arg11[%c0_555, %c13_556] : memref<32x30xf32, #tpu.memory_space<vmem>>, vector<32x4xf32>
    %c416_557 = arith.constant 416 : index
    %c0_558 = arith.constant 0 : index
    %655 = vector.load %arg12[%c416_557, %c0_558] : memref<488x16xf32, #tpu.memory_space<vmem>>, vector<32x4xf32>
    tpu.vector_store %arg12[%c416_557, %c0_558], %654 {strides = array<i32>} : memref<488x16xf32, #tpu.memory_space<vmem>>, vector<32x4xf32>,
    %c0_559 = arith.constant 0 : index
    %c14_560 = arith.constant 14 : index
    %656 = vector.load %arg11[%c0_559, %c14_560] : memref<32x30xf32, #tpu.memory_space<vmem>>, vector<32x4xf32>
    %c448_561 = arith.constant 448 : index
    %c0_562 = arith.constant 0 : index
    %657 = vector.load %arg12[%c448_561, %c0_562] : memref<488x16xf32, #tpu.memory_space<vmem>>, vector<32x4xf32>
    tpu.vector_store %arg12[%c448_561, %c0_562], %656 {strides = array<i32>} : memref<488x16xf32, #tpu.memory_space<vmem>>, vector<32x4xf32>,
    %c0_563 = arith.constant 0 : index
    %c0_564 = arith.constant 0 : index
    %658 = vector.load %arg12[%c0_563, %c0_564] : memref<488x16xf32, #tpu.memory_space<vmem>>, vector<488x4xf32>
    %c0_565 = arith.constant 0 : index
    %c0_566 = arith.constant 0 : index
    %659 = vector.load %arg7[%c0_565, %c0_566] : memref<8x488xf32, #tpu.memory_space<vmem>>, vector<8x488xf32>
    %cst_567 = arith.constant dense<0.000000e+00> : vector<8x4xf32>
    %660 = tpu.matmul %659, %658, %cst_567 {dimension_numbers = #tpu.dot_dimension_numbers<[1], [0], [0], [1], [0, 0, 1, 1], [], []>} : vector<8x488xf32>, vector<488x4xf32>, vector<8x4xf32> -> vector<8x4xf32>
    %661 = arith.negf %660 : vector<8x4xf32>
    %662 = math.exp %661 : vector<8x4xf32>
    %cst_568 = arith.constant 1.000000e+00 : f32
    %663 = vector.broadcast %cst_568 : f32 to vector<8x4xf32>
    %664 = arith.addf %663, %662 : vector<8x4xf32>
    %665 = arith.divf %663, %664 : vector<8x4xf32>
    %c5_569 = arith.constant 5 : index
    %c0_570 = arith.constant 0 : index
    %666 = memref.load %arg9[%c5_569, %c0_570] : memref<6x8xf32, #tpu.memory_space<smem>>
    %667 = vector.extract_strided_slice %665 {offsets = [0, 0], sizes = [1, 4], strides = [1, 1]} : vector<8x4xf32> to vector<1x4xf32>
    %668 = vector.broadcast %666 : f32 to vector<1x4xf32>
    %669 = arith.mulf %668, %667 : vector<1x4xf32>
    %c5_571 = arith.constant 5 : index
    %c1_572 = arith.constant 1 : index
    %670 = memref.load %arg9[%c5_571, %c1_572] : memref<6x8xf32, #tpu.memory_space<smem>>
    %671 = vector.extract_strided_slice %665 {offsets = [1, 0], sizes = [1, 4], strides = [1, 1]} : vector<8x4xf32> to vector<1x4xf32>
    %672 = vector.broadcast %670 : f32 to vector<1x4xf32>
    %673 = arith.mulf %672, %671 : vector<1x4xf32>
    %674 = arith.addf %669, %673 : vector<1x4xf32>
    %c5_573 = arith.constant 5 : index
    %c2_574 = arith.constant 2 : index
    %675 = memref.load %arg9[%c5_573, %c2_574] : memref<6x8xf32, #tpu.memory_space<smem>>
    %676 = vector.extract_strided_slice %665 {offsets = [2, 0], sizes = [1, 4], strides = [1, 1]} : vector<8x4xf32> to vector<1x4xf32>
    %677 = vector.broadcast %675 : f32 to vector<1x4xf32>
    %678 = arith.mulf %677, %676 : vector<1x4xf32>
    %679 = arith.addf %674, %678 : vector<1x4xf32>
    %c5_575 = arith.constant 5 : index
    %c3_576 = arith.constant 3 : index
    %680 = memref.load %arg9[%c5_575, %c3_576] : memref<6x8xf32, #tpu.memory_space<smem>>
    %681 = vector.extract_strided_slice %665 {offsets = [3, 0], sizes = [1, 4], strides = [1, 1]} : vector<8x4xf32> to vector<1x4xf32>
    %682 = vector.broadcast %680 : f32 to vector<1x4xf32>
    %683 = arith.mulf %682, %681 : vector<1x4xf32>
    %684 = arith.addf %679, %683 : vector<1x4xf32>
    %c5_577 = arith.constant 5 : index
    %c4_578 = arith.constant 4 : index
    %685 = memref.load %arg9[%c5_577, %c4_578] : memref<6x8xf32, #tpu.memory_space<smem>>
    %686 = vector.extract_strided_slice %665 {offsets = [4, 0], sizes = [1, 4], strides = [1, 1]} : vector<8x4xf32> to vector<1x4xf32>
    %687 = vector.broadcast %685 : f32 to vector<1x4xf32>
    %688 = arith.mulf %687, %686 : vector<1x4xf32>
    %689 = arith.addf %684, %688 : vector<1x4xf32>
    %c5_579 = arith.constant 5 : index
    %c5_580 = arith.constant 5 : index
    %690 = memref.load %arg9[%c5_579, %c5_580] : memref<6x8xf32, #tpu.memory_space<smem>>
    %691 = vector.extract_strided_slice %665 {offsets = [5, 0], sizes = [1, 4], strides = [1, 1]} : vector<8x4xf32> to vector<1x4xf32>
    %692 = vector.broadcast %690 : f32 to vector<1x4xf32>
    %693 = arith.mulf %692, %691 : vector<1x4xf32>
    %694 = arith.addf %689, %693 : vector<1x4xf32>
    %c5_581 = arith.constant 5 : index
    %c6_582 = arith.constant 6 : index
    %695 = memref.load %arg9[%c5_581, %c6_582] : memref<6x8xf32, #tpu.memory_space<smem>>
    %696 = vector.extract_strided_slice %665 {offsets = [6, 0], sizes = [1, 4], strides = [1, 1]} : vector<8x4xf32> to vector<1x4xf32>
    %697 = vector.broadcast %695 : f32 to vector<1x4xf32>
    %698 = arith.mulf %697, %696 : vector<1x4xf32>
    %699 = arith.addf %694, %698 : vector<1x4xf32>
    %c5_583 = arith.constant 5 : index
    %c7_584 = arith.constant 7 : index
    %700 = memref.load %arg9[%c5_583, %c7_584] : memref<6x8xf32, #tpu.memory_space<smem>>
    %701 = vector.extract_strided_slice %665 {offsets = [7, 0], sizes = [1, 4], strides = [1, 1]} : vector<8x4xf32> to vector<1x4xf32>
    %702 = vector.broadcast %700 : f32 to vector<1x4xf32>
    %703 = arith.mulf %702, %701 : vector<1x4xf32>
    %704 = arith.addf %699, %703 : vector<1x4xf32>
    %705 = arith.addf %500, %623 : vector<1x4xf32>
    %706 = arith.addf %705, %704 : vector<1x4xf32>
    %cst_585 = arith.constant 0.333333343 : f32
    %707 = vector.broadcast %cst_585 : f32 to vector<1x4xf32>
    %708 = arith.mulf %706, %707 : vector<1x4xf32>
    %709 = tpu.iota {dimensions = array<i32: 0>} : vector<4x4xi32>
    %710 = tpu.iota {dimensions = array<i32: 1>} : vector<4x4xi32>
    %711 = arith.cmpi eq, %709, %710 : vector<4x4xi32>
    %cst_586 = arith.constant 1.000000e+00 : f32
    %cst_587 = arith.constant 0.000000e+00 : f32
    %712 = vector.broadcast %cst_586 : f32 to vector<4x4xf32>
    %713 = vector.broadcast %cst_587 : f32 to vector<4x4xf32>
    %714 = arith.select %711, %712, %713 : vector<4x4xi1>, vector<4x4xf32>
    %cst_588 = arith.constant dense<0.000000e+00> : vector<4x1xf32>
    %715 = tpu.matmul %714, %708, %cst_588 {dimension_numbers = #tpu.dot_dimension_numbers<[1], [1], [0], [0], [0, 0, 1, 0], [], []>} : vector<4x4xf32>, vector<1x4xf32>, vector<4x1xf32> -> vector<4x1xf32>
    %716 = vector.broadcast %715 : vector<4x1xf32> to vector<4x16xf32>
    %717 = arith.mulf %331, %716 : vector<4x16xf32>
    %c0_589 = arith.constant 0 : index
    %c0_590 = arith.constant 0 : index
    %c0_591 = arith.constant 0 : index
    %718 = vector.load %arg10[%c0_589, %c0_590, %c0_591] : memref<1x4x16xf32, #tpu.memory_space<vmem>>, vector<1x4x16xf32>
    %719 = vector.shape_cast %718 : vector<1x4x16xf32> to vector<4x16xf32>
    %720 = vector.shape_cast %717 : vector<4x16xf32> to vector<1x4x16xf32>
    tpu.vector_store %arg10[%c0_589, %c0_590, %c0_591], %720 {strides = array<i32>} : memref<1x4x16xf32, #tpu.memory_space<vmem>>, vector<1x4x16xf32>,
    return
  }
  func.func @transform_0(%arg0: i32) -> (i32, i32, i32) {
    %c0_i32 = arith.constant 0 : i32
    %c0_i32_0 = arith.constant 0 : i32
    %c0_i32_1 = arith.constant 0 : i32
    return %arg0, %c0_i32, %c0_i32_0 : i32, i32, i32
  }
  func.func @transform_1(%arg0: i32) -> (i32, i32) {
    %c0_i32 = arith.constant 0 : i32
    %c0_i32_0 = arith.constant 0 : i32
    %c0_i32_1 = arith.constant 0 : i32
    return %c0_i32, %c0_i32_0 : i32, i32
  }
  func.func @transform_2(%arg0: i32) -> (i32, i32) {
    %c0_i32 = arith.constant 0 : i32
    %c0_i32_0 = arith.constant 0 : i32
    %c0_i32_1 = arith.constant 0 : i32
    return %c0_i32, %c0_i32_0 : i32, i32
  }
  func.func @transform_3(%arg0: i32) -> (i32, i32) {
    %c0_i32 = arith.constant 0 : i32
    %c0_i32_0 = arith.constant 0 : i32
    %c0_i32_1 = arith.constant 0 : i32
    return %c0_i32, %c0_i32_0 : i32, i32
  }
  func.func @transform_4(%arg0: i32) -> (i32, i32) {
    %c0_i32 = arith.constant 0 : i32
    %c0_i32_0 = arith.constant 0 : i32
    %c0_i32_1 = arith.constant 0 : i32
    return %c0_i32, %c0_i32_0 : i32, i32
  }
  func.func @transform_5(%arg0: i32) -> (i32, i32) {
    %c0_i32 = arith.constant 0 : i32
    %c0_i32_0 = arith.constant 0 : i32
    %c0_i32_1 = arith.constant 0 : i32
    return %c0_i32, %c0_i32_0 : i32, i32
  }
  func.func @transform_6(%arg0: i32) -> (i32, i32) {
    %c0_i32 = arith.constant 0 : i32
    %c0_i32_0 = arith.constant 0 : i32
    %c0_i32_1 = arith.constant 0 : i32
    return %c0_i32, %c0_i32_0 : i32, i32
  }
  func.func @transform_7(%arg0: i32) -> (i32, i32) {
    %c0_i32 = arith.constant 0 : i32
    %c0_i32_0 = arith.constant 0 : i32
    %c0_i32_1 = arith.constant 0 : i32
    return %c0_i32, %c0_i32_0 : i32, i32
  }
  func.func @transform_8(%arg0: i32) -> (i32, i32) {
    %c0_i32 = arith.constant 0 : i32
    %c0_i32_0 = arith.constant 0 : i32
    %c0_i32_1 = arith.constant 0 : i32
    return %c0_i32, %c0_i32_0 : i32, i32
  }
  func.func @transform_9(%arg0: i32) -> (i32, i32, i32) {
    %c0_i32 = arith.constant 0 : i32
    %c0_i32_0 = arith.constant 0 : i32
    %c0_i32_1 = arith.constant 0 : i32
    return %arg0, %c0_i32, %c0_i32_0 : i32, i32, i32
  }
}

</mosaic_0001>

<llo_original>
// kernel: tpu_custom_call.1
$region0: #{tpu_custom_call.1}
  #allocation0 [shape = 'u32[]', space=smem, size = 0x4, offset = 0x4, fixed_abs, tag = 'smem constant byte address 0x4 - core index']
  #allocation1 [shape = 'u32[144,128]{1,0:T(1,128)}', space=vmem, size = 0x12000, scoped, tag = 'internal scratch']
  #allocation2 [shape = 'f32[32,30]{1,0:T(8,128)}', space=vmem, size = 0x4000, scoped, tag = 'scratch operand']
  #allocation3 [shape = 'f32[488,16]{1,0:T(8,128)}', space=vmem, size = 0x3d000, scoped, tag = 'scratch operand']
  #allocation4 [shape = 'f32[488,16]{1,0:T(8,128)}', space=vmem, size = 0x3d000, scoped, tag = 'scratch operand']
  %s0 = inlined_call_operand.hbm [shape: f32[2,4,16], index: 0, kind: input, shape index: {}]
  %s1 = inlined_call_operand.hbm [shape: f32[392,488], index: 1, kind: input, shape index: {}]
  %s2 = inlined_call_operand.hbm [shape: f32[200,488], index: 2, kind: input, shape index: {}]
  %s3 = inlined_call_operand.hbm [shape: f32[8,488], index: 3, kind: input, shape index: {}]
  %s4 = inlined_call_operand.hbm [shape: f32[520,488], index: 4, kind: input, shape index: {}]
  %s5 = inlined_call_operand.hbm [shape: f32[264,488], index: 5, kind: input, shape index: {}]
  %s6 = inlined_call_operand.hbm [shape: f32[8,488], index: 6, kind: input, shape index: {}]
  %s7 = inlined_call_operand.hbm [shape: f32[6,6], index: 7, kind: input, shape index: {}]
  %s8 = inlined_call_operand.hbm [shape: f32[6,8], index: 8, kind: input, shape index: {}]
  %s9 = inlined_call_operand.hbm [shape: f32[2,4,16], index: 9, kind: output, shape index: {}]
  %s10 = sld [smem:[#allocation0]]
  $region105: #{tpu_custom_call.1} parent=0
    _
  %s12 = ssub.s32 1, %s10
  %s13 = scalar_select 0, %s12, %s10
  $region1: #{tpu_custom_call.1} parent=0
    #allocation5 [shape = 'u8[4096]{0}', space=vmem, size = 0x1000, scoped, tag = 'input window, operand 0']
    #allocation6 [shape = 's32[2]{0}', space=sflag, size = 0x8, scoped, tag = 'scoped memory for tpu_custom_call.1']
    #allocation7 [shape = 's32[2]{0}', space=sflag, size = 0x8, scoped, tag = 'scoped memory for tpu_custom_call.1']
    #allocation8 [shape = 's32[2]{0}', space=sflag, size = 0x8, scoped, tag = 'scoped memory for tpu_custom_call.1']
    #allocation9 [shape = 'u8[802816]{0}', space=vmem, size = 0xc4000, scoped, tag = 'input window, operand 1, single buffered']
    #allocation10 [shape = 's32[1]{0}', space=sflag, size = 0x4, scoped, tag = 'scoped memory for tpu_custom_call.1']
    #allocation11 [shape = 'u8[409600]{0}', space=vmem, size = 0x64000, scoped, tag = 'input window, operand 2, single buffered']
    #allocation12 [shape = 'u8[16384]{0}', space=vmem, size = 0x4000, scoped, tag = 'input window, operand 3, single buffered']
    #allocation13 [shape = 's32[1]{0}', space=sflag, size = 0x4, scoped, tag = 'scoped memory for tpu_custom_call.1']
    #allocation14 [shape = 'u8[1064960]{0}', space=vmem, size = 0x104000, scoped, tag = 'input window, operand 4, single buffered']
    #allocation15 [shape = 'u8[540672]{0}', space=vmem, size = 0x84000, scoped, tag = 'input window, operand 5, single buffered']
    #allocation16 [shape = 's32[1]{0}', space=sflag, size = 0x4, scoped, tag = 'scoped memory for tpu_custom_call.1']
    #allocation17 [shape = 'u8[16384]{0}', space=vmem, size = 0x4000, scoped, tag = 'input window, operand 6, single buffered']
    #allocation18 [shape = 'u8[4096]{0}', space=smem, size = 0x1000, scoped, tag = 'input window, operand 7, single buffered']
    #allocation19 [shape = 'u8[4096]{0}', space=smem, size = 0x1000, scoped, tag = 'input window, operand 8, single buffered']
    #allocation20 [shape = 's32[1]{0}', space=sflag, size = 0x4, scoped, tag = 'scoped memory for tpu_custom_call.1']
    #allocation21 [shape = 'u8[4096]{0}', space=vmem, size = 0x1000, scoped, tag = 'output window, operand 0']
    %14 = vsyncpa [#allocation6], 0
    %s15 = scalar_lea.sflag [#allocation6], 1
    %16 = vsyncpa %s15, 0
    %17 = vsyncpa [#allocation10], 0
    %18 = vsyncpa [#allocation13], 0
    %19 = vsyncpa [#allocation16], 0
    %20 = vsyncpa [#allocation8], 0
    %21 = vsyncpa [#allocation20], 0
    %22 = vsyncpa [#allocation7], 0
    %s23 = scalar_lea.sflag [#allocation7], 1
    %24 = vsyncpa %s23, 0
    loop: start=0, step=1, limit=4
    $region2: #{tpu_custom_call.1} parent=1 // loop_pre_header
      _
    $region3: #{tpu_custom_call.1} parent=1 // loop_header
      %s26 = sphi 0, %s30
      %p27 = scmp.ge.s32.totalorder %s26, 4
      %s36 = sphi 0, %s38
      %s39 = sphi 0, %s36
      %s40 = sphi 0, %s39
      %s56 = sphi 0, %s40
      %s60 = sphi 0, %s60
      %s62 = sphi 0, %s60
      %s63 = sphi 0, %s62
      %s77 = sphi 0, %s63
      %s81 = sphi 0, %s81
      %s83 = sphi 0, %s81
      %s84 = sphi 0, %s83
      %s98 = sphi 0, %s84
      %s102 = sphi 0, %s102
      %s104 = sphi 0, %s102
      %s105 = sphi 0, %s104
      %s119 = sphi 0, %s105
      %s123 = sphi 0, %s123
      %s125 = sphi 0, %s123
      %s126 = sphi 0, %s125
      %s140 = sphi 0, %s126
      %s144 = sphi 0, %s144
      %s146 = sphi 0, %s144
      %s147 = sphi 0, %s146
      %s161 = sphi 0, %s147
      %s165 = sphi 0, %s165
      %s167 = sphi 0, %s165
      %s168 = sphi 0, %s167
      %s182 = sphi 0, %s168
      %s186 = sphi 0, %s186
      %s188 = sphi 0, %s186
      %s189 = sphi 0, %s188
      %s203 = sphi 0, %s189
      %s207 = sphi 0, %s207
      %s209 = sphi 0, %s207
      %s210 = sphi 0, %s209
      %s224 = sphi 0, %s210
      %s230 = sphi 0, %s232
      %s233 = sphi 0, %s230
      %s234 = sphi 0, %s233
      %s250 = sphi 0, %s234
    $region4: #{tpu_custom_call.1} parent=1 // loop_header_branch
      %29 = sbr.rel (%p27) target = $region8
    $region5: #{tpu_custom_call.1} parent=1 // loop_body
      %s31 = ssub.s32 %s26, 1
      %s32 = ssub.s32 %s26, 2
      %s33 = sadd.s32 %s26, 1
      %s34 = ssub.s32 %s26, %s33
      %p35 = scmp.eq.s32.totalorder %s34, 0
      %s37 = sadd.s32 %s36, 1
      %s38 = scalar_select %p35, %s36, %s37
      %p41 = pneg %p35
      %p42 = scmp.eq.s32.totalorder %s26, 1
      %p43 = por %p41, %p42
      %p44 = scmp.ne.s32.totalorder %s36, %s39
      %p45 = scmp.eq.s32.totalorder %s26, 0
      %p46 = por %p44, %p45
      %p47 = scmp.ne.s32.totalorder %s36, %s39
      %p48 = scmp.eq.s32.totalorder %s31, 1
      %p49 = por %p47, %p48
      %p50 = scmp.ne.s32.totalorder %s39, %s40
      %p51 = scmp.eq.s32.totalorder %s31, 0
      %p52 = por %p50, %p51
      %p53 = scmp.ne.s32.totalorder %s39, %s40
      %p54 = scmp.eq.s32.totalorder %s32, 1
      %p55 = por %p53, %p54
      %p57 = scmp.ne.s32.totalorder %s40, %s56
      %p58 = scmp.eq.s32.totalorder %s32, 0
      %p59 = por %p57, %p58
      %s61 = sadd.s32 %s60, 1
      %p64 = scmp.eq.s32.totalorder %s26, 1
      %p65 = scmp.ne.s32.totalorder %s60, %s62
      %p66 = scmp.eq.s32.totalorder %s26, 0
      %p67 = por %p65, %p66
      %p68 = scmp.ne.s32.totalorder %s60, %s62
      %p69 = scmp.eq.s32.totalorder %s31, 1
      %p70 = por %p68, %p69
      %p71 = scmp.ne.s32.totalorder %s62, %s63
      %p72 = scmp.eq.s32.totalorder %s31, 0
      %p73 = por %p71, %p72
      %p74 = scmp.ne.s32.totalorder %s62, %s63
      %p75 = scmp.eq.s32.totalorder %s32, 1
      %p76 = por %p74, %p75
      %p78 = scmp.ne.s32.totalorder %s63, %s77
      %p79 = scmp.eq.s32.totalorder %s32, 0
      %p80 = por %p78, %p79
      %s82 = sadd.s32 %s81, 1
      %p85 = scmp.eq.s32.totalorder %s26, 1
      %p86 = scmp.ne.s32.totalorder %s81, %s83
      %p87 = scmp.eq.s32.totalorder %s26, 0
      %p88 = por %p86, %p87
      %p89 = scmp.ne.s32.totalorder %s81, %s83
      %p90 = scmp.eq.s32.totalorder %s31, 1
      %p91 = por %p89, %p90
      %p92 = scmp.ne.s32.totalorder %s83, %s84
      %p93 = scmp.eq.s32.totalorder %s31, 0
      %p94 = por %p92, %p93
      %p95 = scmp.ne.s32.totalorder %s83, %s84
      %p96 = scmp.eq.s32.totalorder %s32, 1
      %p97 = por %p95, %p96
      %p99 = scmp.ne.s32.totalorder %s84, %s98
      %p100 = scmp.eq.s32.totalorder %s32, 0
      %p101 = por %p99, %p100
      %s103 = sadd.s32 %s102, 1
      %p106 = scmp.eq.s32.totalorder %s26, 1
      %p107 = scmp.ne.s32.totalorder %s102, %s104
      %p108 = scmp.eq.s32.totalorder %s26, 0
      %p109 = por %p107, %p108
      %p110 = scmp.ne.s32.totalorder %s102, %s104
      %p111 = scmp.eq.s32.totalorder %s31, 1
      %p112 = por %p110, %p111
      %p113 = scmp.ne.s32.totalorder %s104, %s105
      %p114 = scmp.eq.s32.totalorder %s31, 0
      %p115 = por %p113, %p114
      %p116 = scmp.ne.s32.totalorder %s104, %s105
      %p117 = scmp.eq.s32.totalorder %s32, 1
      %p118 = por %p116, %p117
      %p120 = scmp.ne.s32.totalorder %s105, %s119
      %p121 = scmp.eq.s32.totalorder %s32, 0
      %p122 = por %p120, %p121
      %s124 = sadd.s32 %s123, 1
      %p127 = scmp.eq.s32.totalorder %s26, 1
      %p128 = scmp.ne.s32.totalorder %s123, %s125
      %p129 = scmp.eq.s32.totalorder %s26, 0
      %p130 = por %p128, %p129
      %p131 = scmp.ne.s32.totalorder %s123, %s125
      %p132 = scmp.eq.s32.totalorder %s31, 1
      %p133 = por %p131, %p132
      %p134 = scmp.ne.s32.totalorder %s125, %s126
      %p135 = scmp.eq.s32.totalorder %s31, 0
      %p136 = por %p134, %p135
      %p137 = scmp.ne.s32.totalorder %s125, %s126
      %p138 = scmp.eq.s32.totalorder %s32, 1
      %p139 = por %p137, %p138
      %p141 = scmp.ne.s32.totalorder %s126, %s140
      %p142 = scmp.eq.s32.totalorder %s32, 0
      %p143 = por %p141, %p142
      %s145 = sadd.s32 %s144, 1
      %p148 = scmp.eq.s32.totalorder %s26, 1
      %p149 = scmp.ne.s32.totalorder %s144, %s146
      %p150 = scmp.eq.s32.totalorder %s26, 0
      %p151 = por %p149, %p150
      %p152 = scmp.ne.s32.totalorder %s144, %s146
      %p153 = scmp.eq.s32.totalorder %s31, 1
      %p154 = por %p152, %p153
      %p155 = scmp.ne.s32.totalorder %s146, %s147
      %p156 = scmp.eq.s32.totalorder %s31, 0
      %p157 = por %p155, %p156
      %p158 = scmp.ne.s32.totalorder %s146, %s147
      %p159 = scmp.eq.s32.totalorder %s32, 1
      %p160 = por %p158, %p159
      %p162 = scmp.ne.s32.totalorder %s147, %s161
      %p163 = scmp.eq.s32.totalorder %s32, 0
      %p164 = por %p162, %p163
      %s166 = sadd.s32 %s165, 1
      %p169 = scmp.eq.s32.totalorder %s26, 1
      %p170 = scmp.ne.s32.totalorder %s165, %s167
      %p171 = scmp.eq.s32.totalorder %s26, 0
      %p172 = por %p170, %p171
      %p173 = scmp.ne.s32.totalorder %s165, %s167
      %p174 = scmp.eq.s32.totalorder %s31, 1
      %p175 = por %p173, %p174
      %p176 = scmp.ne.s32.totalorder %s167, %s168
      %p177 = scmp.eq.s32.totalorder %s31, 0
      %p178 = por %p176, %p177
      %p179 = scmp.ne.s32.totalorder %s167, %s168
      %p180 = scmp.eq.s32.totalorder %s32, 1
      %p181 = por %p179, %p180
      %p183 = scmp.ne.s32.totalorder %s168, %s182
      %p184 = scmp.eq.s32.totalorder %s32, 0
      %p185 = por %p183, %p184
      %s187 = sadd.s32 %s186, 1
      %p190 = scmp.eq.s32.totalorder %s26, 1
      %p191 = scmp.ne.s32.totalorder %s186, %s188
      %p192 = scmp.eq.s32.totalorder %s26, 0
      %p193 = por %p191, %p192
      %p194 = scmp.ne.s32.totalorder %s186, %s188
      %p195 = scmp.eq.s32.totalorder %s31, 1
      %p196 = por %p194, %p195
      %p197 = scmp.ne.s32.totalorder %s188, %s189
      %p198 = scmp.eq.s32.totalorder %s31, 0
      %p199 = por %p197, %p198
      %p200 = scmp.ne.s32.totalorder %s188, %s189
      %p201 = scmp.eq.s32.totalorder %s32, 1
      %p202 = por %p200, %p201
      %p204 = scmp.ne.s32.totalorder %s189, %s203
      %p205 = scmp.eq.s32.totalorder %s32, 0
      %p206 = por %p204, %p205
      %s208 = sadd.s32 %s207, 1
      %p211 = scmp.eq.s32.totalorder %s26, 1
      %p212 = scmp.ne.s32.totalorder %s207, %s209
      %p213 = scmp.eq.s32.totalorder %s26, 0
      %p214 = por %p212, %p213
      %p215 = scmp.ne.s32.totalorder %s207, %s209
      %p216 = scmp.eq.s32.totalorder %s31, 1
      %p217 = por %p215, %p216
      %p218 = scmp.ne.s32.totalorder %s209, %s210
      %p219 = scmp.eq.s32.totalorder %s31, 0
      %p220 = por %p218, %p219
      %p221 = scmp.ne.s32.totalorder %s209, %s210
      %p222 = scmp.eq.s32.totalorder %s32, 1
      %p223 = por %p221, %p222
      %p225 = scmp.ne.s32.totalorder %s210, %s224
      %p226 = scmp.eq.s32.totalorder %s32, 0
      %p227 = por %p225, %p226
      %s228 = ssub.s32 %s26, %s33
      %p229 = scmp.eq.s32.totalorder %s228, 0
      %s231 = sadd.s32 %s230, 1
      %s232 = scalar_select %p229, %s230, %s231
      %p235 = pneg %p229
      %p236 = scmp.eq.s32.totalorder %s26, 1
      %p237 = por %p235, %p236
      %p238 = scmp.ne.s32.totalorder %s230, %s233
      %p239 = scmp.eq.s32.totalorder %s26, 0
      %p240 = por %p238, %p239
      %p241 = scmp.ne.s32.totalorder %s230, %s233
      %p242 = scmp.eq.s32.totalorder %s31, 1
      %p243 = por %p241, %p242
      %p244 = scmp.ne.s32.totalorder %s233, %s234
      %p245 = scmp.eq.s32.totalorder %s31, 0
      %p246 = por %p244, %p245
      %p247 = scmp.ne.s32.totalorder %s233, %s234
      %p248 = scmp.eq.s32.totalorder %s32, 1
      %p249 = por %p247, %p248
      %p251 = scmp.ne.s32.totalorder %s234, %s250
      %p252 = scmp.eq.s32.totalorder %s32, 0
      %p253 = por %p251, %p252
      %p254 = scmp.le.s32.totalorder 1, %s26
      %p255 = scmp.lt.s32.totalorder %s26, 3
      %p256 = pnand %p254, %p255
      %p257 = pneg %p256
      // Predicated region
      $region9: #{tpu_custom_call.1} parent=5 // pred_check
        _
      $region10: #{tpu_custom_call.1} parent=5 // pred_check_branch
        %259 = sbr.rel (%p256) target = $region12
      $region11: #{tpu_custom_call.1} parent=5 // pred_region
        %s260 = ssub.s32 %s26, 1
        // Predicated region
        $region13: #{tpu_custom_call.1} parent=11 // pred_check
          %p261 = pneg %p73
        $region14: #{tpu_custom_call.1} parent=11 // pred_check_branch
          %263 = sbr.rel (%p261) target = $region16
        $region15: #{tpu_custom_call.1} parent=11 // pred_region
          %s265 = ssub.s32 25088, 25088
          %266 = vsyncadd [#allocation10], %s265
          %s267 = sshll.u32 [#allocation9], 4
          %s268 = int_to_ptr.vmem [resolvable:$true] %s267
          %273 = dma.hbm_to_vmem [thread:$0]  %s1, 25088, %s268, [#allocation10], 512, 512, 32
        $region16: #{tpu_custom_call.1} parent=11 // pred_fallthru
          _
        // Predicated region
        $region17: #{tpu_custom_call.1} parent=11 // pred_check
          %p274 = pneg %p94
        $region18: #{tpu_custom_call.1} parent=11 // pred_check_branch
          %276 = sbr.rel (%p274) target = $region20
        $region19: #{tpu_custom_call.1} parent=11 // pred_region
          %s278 = ssub.s32 12800, 12800
          %279 = vsyncadd [#allocation10], %s278
          %s280 = sshll.u32 [#allocation11], 4
          %s281 = int_to_ptr.vmem [resolvable:$true] %s280
          %286 = dma.hbm_to_vmem [thread:$0]  %s2, 12800, %s281, [#allocation10], 512, 512, 32
        $region20: #{tpu_custom_call.1} parent=11 // pred_fallthru
          _
        // Predicated region
        $region21: #{tpu_custom_call.1} parent=11 // pred_check
          %p287 = pneg %p115
        $region22: #{tpu_custom_call.1} parent=11 // pred_check_branch
          %289 = sbr.rel (%p287) target = $region24
        $region23: #{tpu_custom_call.1} parent=11 // pred_region
          %s291 = ssub.s32 512, 512
          %292 = vsyncadd [#allocation13], %s291
          %s294 = sshll.u32 [#allocation12], 4
          %s295 = int_to_ptr.vmem [resolvable:$true] %s294
          %297 = dma.hbm_to_vmem [thread:$0]  %s3, 512, %s295, [#allocation13]
        $region24: #{tpu_custom_call.1} parent=11 // pred_fallthru
          _
        // Predicated region
        $region25: #{tpu_custom_call.1} parent=11 // pred_check
          %p298 = pneg %p136
        $region26: #{tpu_custom_call.1} parent=11 // pred_check_branch
          %300 = sbr.rel (%p298) target = $region28
        $region27: #{tpu_custom_call.1} parent=11 // pred_region
          %s302 = ssub.s32 33280, 33280
          %303 = vsyncadd [#allocation13], %s302
          %s304 = sshll.u32 [#allocation14], 4
          %s305 = int_to_ptr.vmem [resolvable:$true] %s304
          %310 = dma.hbm_to_vmem [thread:$0]  %s4, 33280, %s305, [#allocation13], 512, 512, 32
        $region28: #{tpu_custom_call.1} parent=11 // pred_fallthru
          _
        // Predicated region
        $region29: #{tpu_custom_call.1} parent=11 // pred_check
          %p311 = pneg %p157
        $region30: #{tpu_custom_call.1} parent=11 // pred_check_branch
          %313 = sbr.rel (%p311) target = $region32
        $region31: #{tpu_custom_call.1} parent=11 // pred_region
          %s315 = ssub.s32 16896, 16896
          %316 = vsyncadd [#allocation16], %s315
          %s317 = sshll.u32 [#allocation15], 4
          %s318 = int_to_ptr.vmem [resolvable:$true] %s317
          %323 = dma.hbm_to_vmem [thread:$0]  %s5, 16896, %s318, [#allocation16], 512, 512, 32
        $region32: #{tpu_custom_call.1} parent=11 // pred_fallthru
          _
        // Predicated region
        $region33: #{tpu_custom_call.1} parent=11 // pred_check
          %p324 = pneg %p178
        $region34: #{tpu_custom_call.1} parent=11 // pred_check_branch
          %326 = sbr.rel (%p324) target = $region36
        $region35: #{tpu_custom_call.1} parent=11 // pred_region
          %s328 = ssub.s32 512, 512
          %329 = vsyncadd [#allocation16], %s328
          %s331 = sshll.u32 [#allocation17], 4
          %s332 = int_to_ptr.vmem [resolvable:$true] %s331
          %334 = dma.hbm_to_vmem [thread:$0]  %s6, 512, %s332, [#allocation16]
        $region36: #{tpu_custom_call.1} parent=11 // pred_fallthru
          _
        // Predicated region
        $region37: #{tpu_custom_call.1} parent=11 // pred_check
          %p335 = pneg %p199
        $region38: #{tpu_custom_call.1} parent=11 // pred_check_branch
          %337 = sbr.rel (%p335) target = $region40
        $region39: #{tpu_custom_call.1} parent=11 // pred_region
          %s339 = ssub.s32 128, 128
          %340 = vsyncadd [#allocation8], %s339
          %343 = dma.hbm_to_smem %s7, 128, [#allocation18], [#allocation8]
        $region40: #{tpu_custom_call.1} parent=11 // pred_fallthru
          _
        // Predicated region
        $region41: #{tpu_custom_call.1} parent=11 // pred_check
          %p344 = pneg %p220
        $region42: #{tpu_custom_call.1} parent=11 // pred_check_branch
          %346 = sbr.rel (%p344) target = $region44
        $region43: #{tpu_custom_call.1} parent=11 // pred_region
          %s348 = ssub.s32 128, 128
          %349 = vsyncadd [#allocation20], %s348
          %352 = dma.hbm_to_smem %s8, 128, [#allocation19], [#allocation20]
        $region44: #{tpu_custom_call.1} parent=11 // pred_fallthru
          _
      $region12: #{tpu_custom_call.1} parent=5 // pred_fallthru
        _
      %p353 = scmp.lt.s32.totalorder %s26, 2
      // Predicated region
      $region45: #{tpu_custom_call.1} parent=5 // pred_check
        %p354 = pneg %p353
      $region46: #{tpu_custom_call.1} parent=5 // pred_check_branch
        %356 = sbr.rel (%p354) target = $region48
      $region47: #{tpu_custom_call.1} parent=5 // pred_region
        // Predicated region
        $region49: #{tpu_custom_call.1} parent=47 // pred_check
          %p357 = pneg %p46
        $region50: #{tpu_custom_call.1} parent=47 // pred_check_branch
          %359 = sbr.rel (%p357) target = $region52
        $region51: #{tpu_custom_call.1} parent=47 // pred_region
          %s360 = sand.u32 %s36, 1
          %s361 = scalar_lea.sflag [#allocation6], %s360
          %s362 = sand.u32 %s36, 1
          %s363 = smul.addr %s362, 4
          %s364 = scalar_lea.vmem [#allocation5], %s363
          %s366 = ssub.s32 64, 64
          %367 = vsyncadd %s361, %s366
          %s368 = smul.addr %s26, 64
          %s369 = scalar_lea.hbm %s0, %s368
          %s371 = sshll.u32 %s364, 4
          %s372 = int_to_ptr.vmem [resolvable:$true] %s371
          %374 = dma.hbm_to_vmem [thread:$0]  %s369, 64, %s372, %s361
        $region52: #{tpu_custom_call.1} parent=47 // pred_fallthru
          _
      $region48: #{tpu_custom_call.1} parent=5 // pred_fallthru
        _
      %p375 = scmp.le.s32.totalorder 1, %s26
      %p376 = scmp.lt.s32.totalorder %s26, 3
      %p377 = pnand %p375, %p376
      %p378 = pneg %p377
      // Predicated region
      $region53: #{tpu_custom_call.1} parent=5 // pred_check
        _
      $region54: #{tpu_custom_call.1} parent=5 // pred_check_branch
        %380 = sbr.rel (%p377) target = $region56
      $region55: #{tpu_custom_call.1} parent=5 // pred_region
        %s381 = ssub.s32 %s26, 1
        %s382 = sand.u32 %s39, 1
        %s383 = scalar_lea.sflag [#allocation6], %s382
        %s384 = sand.u32 %s39, 1
        %s385 = smul.addr %s384, 4
        %s386 = scalar_lea.vmem [#allocation5], %s385
        // Predicated region
        $region57: #{tpu_custom_call.1} parent=55 // pred_check
          %p387 = pneg %p52
        $region58: #{tpu_custom_call.1} parent=55 // pred_check_branch
          %389 = sbr.rel (%p387) target = $region60
        $region59: #{tpu_custom_call.1} parent=55 // pred_region
          %390 = dma.done %s383, 64
        $region60: #{tpu_custom_call.1} parent=55 // pred_fallthru
          _
        // Predicated region
        $region61: #{tpu_custom_call.1} parent=55 // pred_check
          %p391 = pneg %p73
        $region62: #{tpu_custom_call.1} parent=55 // pred_check_branch
          %393 = sbr.rel (%p391) target = $region64
        $region63: #{tpu_custom_call.1} parent=55 // pred_region
          %394 = dma.done [#allocation10], 25088
        $region64: #{tpu_custom_call.1} parent=55 // pred_fallthru
          _
        // Predicated region
        $region65: #{tpu_custom_call.1} parent=55 // pred_check
          %p395 = pneg %p94
        $region66: #{tpu_custom_call.1} parent=55 // pred_check_branch
          %397 = sbr.rel (%p395) target = $region68
        $region67: #{tpu_custom_call.1} parent=55 // pred_region
          %398 = dma.done [#allocation10], 12800
        $region68: #{tpu_custom_call.1} parent=55 // pred_fallthru
          _
        // Predicated region
        $region69: #{tpu_custom_call.1} parent=55 // pred_check
          %p399 = pneg %p115
        $region70: #{tpu_custom_call.1} parent=55 // pred_check_branch
          %401 = sbr.rel (%p399) target = $region72
        $region71: #{tpu_custom_call.1} parent=55 // pred_region
          %402 = dma.done [#allocation13], 512
        $region72: #{tpu_custom_call.1} parent=55 // pred_fallthru
          _
        // Predicated region
        $region73: #{tpu_custom_call.1} parent=55 // pred_check
          %p403 = pneg %p136
        $region74: #{tpu_custom_call.1} parent=55 // pred_check_branch
          %405 = sbr.rel (%p403) target = $region76
        $region75: #{tpu_custom_call.1} parent=55 // pred_region
          %406 = dma.done [#allocation13], 33280
        $region76: #{tpu_custom_call.1} parent=55 // pred_fallthru
          _
        // Predicated region
        $region77: #{tpu_custom_call.1} parent=55 // pred_check
          %p407 = pneg %p157
        $region78: #{tpu_custom_call.1} parent=55 // pred_check_branch
          %409 = sbr.rel (%p407) target = $region80
        $region79: #{tpu_custom_call.1} parent=55 // pred_region
          %410 = dma.done [#allocation16], 16896
        $region80: #{tpu_custom_call.1} parent=55 // pred_fallthru
          _
        // Predicated region
        $region81: #{tpu_custom_call.1} parent=55 // pred_check
          %p411 = pneg %p178
        $region82: #{tpu_custom_call.1} parent=55 // pred_check_branch
          %413 = sbr.rel (%p411) target = $region84
        $region83: #{tpu_custom_call.1} parent=55 // pred_region
          %414 = dma.done [#allocation16], 512
        $region84: #{tpu_custom_call.1} parent=55 // pred_fallthru
          _
        // Predicated region
        $region85: #{tpu_custom_call.1} parent=55 // pred_check
          %p415 = pneg %p199
        $region86: #{tpu_custom_call.1} parent=55 // pred_check_branch
          %417 = sbr.rel (%p415) target = $region88
        $region87: #{tpu_custom_call.1} parent=55 // pred_region
          %418 = dma.done [#allocation8], 128
        $region88: #{tpu_custom_call.1} parent=55 // pred_fallthru
          _
        // Predicated region
        $region89: #{tpu_custom_call.1} parent=55 // pred_check
          %p419 = pneg %p220
        $region90: #{tpu_custom_call.1} parent=55 // pred_check_branch
          %421 = sbr.rel (%p419) target = $region92
        $region91: #{tpu_custom_call.1} parent=55 // pred_region
          %422 = dma.done [#allocation20], 128
        $region92: #{tpu_custom_call.1} parent=55 // pred_fallthru
          _
        %423 = sfence
        %s424 = sand.u32 %s39, 1
        %s425 = scalar_lea.sflag [#allocation6], %s424
        %s426 = sand.u32 %s39, 1
        %s427 = smul.addr %s426, 4
        %s428 = scalar_lea.vmem [#allocation5], %s427
        %p429 = pneg %p52
        %p430 = pneg %p49
        %p431 = pneg %p73
        %p432 = pneg %p70
        %p433 = pneg %p94
        %p434 = pneg %p91
        %p435 = pneg %p115
        %p436 = pneg %p112
        %p437 = pneg %p136
        %p438 = pneg %p133
        %p439 = pneg %p157
        %p440 = pneg %p154
        %p441 = pneg %p178
        %p442 = pneg %p175
        %p443 = pneg %p199
        %p444 = pneg %p196
        %p445 = pneg %p220
        %p446 = pneg %p217
        %p447 = pneg %p246
        %p448 = pneg %p243
        %s449 = sand.u32 %s233, 1
        %s450 = scalar_lea.sflag [#allocation7], %s449
        %s451 = sand.u32 %s233, 1
        %s452 = smul.addr %s451, 4
        %s453 = scalar_lea.vmem [#allocation21], %s452
        %v454 = vlaneseq
        %v455 = vshrl.u32 %v454, 7
        %vm456 = vcmp.eq.s32.totalorder %v455, 0
        %v457 = vsel %vm456, 1.0, 0.0
        %vm458 = vcmask 130048
        %459 = vst.msk [vmem:[#allocation3 + $0x1e0] sm:$0xff] %vm458, %v457
        %460 = vst.msk [vmem:[#allocation4 + $0x1e0] sm:$0xff] %vm458, %v457
        %v461 = vld [vmem:[%s386] sm:$0xf]
        %vm462 = vcmask 244736
        %463 = vst.msk [vmem:[#allocation2] sm:$0xff] %vm462, 0.0
        %464 = vst.msk [vmem:[#allocation2 + $0x8] sm:$0xff] %vm462, 0.0
        %465 = vst.msk [vmem:[#allocation2 + $0x10] sm:$0xff] %vm462, 0.0
        %466 = vst.msk [vmem:[#allocation2 + $0x18] sm:$0xff] %vm462, 0.0
        %468 = vrot.lane.b32.xlu0 %v461, 7
        %v469 = vpop.permute.xlu0 %468
        %vm471 = vcmask 183352
        %472 = vst.msk [vmem:[#allocation2] sm:$0xf] %vm471, %v469
        %v473 = vld [vmem:[#allocation2] sm:$0xff]
        %v474 = vld [vmem:[#allocation2 + $0x8] sm:$0xff]
        %v475 = vld [vmem:[#allocation2 + $0x10] sm:$0xff]
        %v476 = vld [vmem:[#allocation2 + $0x18] sm:$0xff]
        %477 = vst.msk [vmem:[#allocation3] sm:$0xff] %vm458, %v473
        %478 = vst.msk [vmem:[#allocation3 + $0x8] sm:$0xff] %vm458, %v474
        %479 = vst.msk [vmem:[#allocation3 + $0x10] sm:$0xff] %vm458, %v475
        %480 = vst.msk [vmem:[#allocation3 + $0x18] sm:$0xff] %vm458, %v476
        %v481 = vld [vmem:[#allocation2] sm:$0xff]
        %v482 = vld [vmem:[#allocation2 + $0x8] sm:$0xff]
        %v483 = vld [vmem:[#allocation2 + $0x10] sm:$0xff]
        %v484 = vld [vmem:[#allocation2 + $0x18] sm:$0xff]
        %489 = vrot.lane.b32.xlu0 %v481, 127
        %v490 = vpop.permute.xlu0 %489
        %491 = vrot.lane.b32.xlu0 %v482, 127
        %v492 = vpop.permute.xlu0 %491
        %493 = vrot.lane.b32.xlu0 %v483, 127
        %v494 = vpop.permute.xlu0 %493
        %495 = vrot.lane.b32.xlu0 %v484, 127
        %v496 = vpop.permute.xlu0 %495
        %501 = vst.msk [vmem:[#allocation3 + $0x20] sm:$0xff] %vm458, %v490
        %502 = vst.msk [vmem:[#allocation3 + $0x28] sm:$0xff] %vm458, %v492
        %503 = vst.msk [vmem:[#allocation3 + $0x30] sm:$0xff] %vm458, %v494
        %504 = vst.msk [vmem:[#allocation3 + $0x38] sm:$0xff] %vm458, %v496
        %v505 = vld [vmem:[#allocation2] sm:$0xff]
        %v506 = vld [vmem:[#allocation2 + $0x8] sm:$0xff]
        %v507 = vld [vmem:[#allocation2 + $0x10] sm:$0xff]
        %v508 = vld [vmem:[#allocation2 + $0x18] sm:$0xff]
        %513 = vrot.lane.b32.xlu0 %v505, 126
        %v514 = vpop.permute.xlu0 %513
        %515 = vrot.lane.b32.xlu0 %v506, 126
        %v516 = vpop.permute.xlu0 %515
        %517 = vrot.lane.b32.xlu0 %v507, 126
        %v518 = vpop.permute.xlu0 %517
        %519 = vrot.lane.b32.xlu0 %v508, 126
        %v520 = vpop.permute.xlu0 %519
        %525 = vst.msk [vmem:[#allocation3 + $0x40] sm:$0xff] %vm458, %v514
        %526 = vst.msk [vmem:[#allocation3 + $0x48] sm:$0xff] %vm458, %v516
        %527 = vst.msk [vmem:[#allocation3 + $0x50] sm:$0xff] %vm458, %v518
        %528 = vst.msk [vmem:[#allocation3 + $0x58] sm:$0xff] %vm458, %v520
        %v529 = vld [vmem:[#allocation2] sm:$0xff]
        %v530 = vld [vmem:[#allocation2 + $0x8] sm:$0xff]
        %v531 = vld [vmem:[#allocation2 + $0x10] sm:$0xff]
        %v532 = vld [vmem:[#allocation2 + $0x18] sm:$0xff]
        %537 = vrot.lane.b32.xlu0 %v529, 125
        %v538 = vpop.permute.xlu0 %537
        %539 = vrot.lane.b32.xlu0 %v530, 125
        %v540 = vpop.permute.xlu0 %539
        %541 = vrot.lane.b32.xlu0 %v531, 125
        %v542 = vpop.permute.xlu0 %541
        %543 = vrot.lane.b32.xlu0 %v532, 125
        %v544 = vpop.permute.xlu0 %543
        %549 = vst.msk [vmem:[#allocation3 + $0x60] sm:$0xff] %vm458, %v538
        %550 = vst.msk [vmem:[#allocation3 + $0x68] sm:$0xff] %vm458, %v540
        %551 = vst.msk [vmem:[#allocation3 + $0x70] sm:$0xff] %vm458, %v542
        %552 = vst.msk [vmem:[#allocation3 + $0x78] sm:$0xff] %vm458, %v544
        %v553 = vld [vmem:[#allocation2] sm:$0xff]
        %v554 = vld [vmem:[#allocation2 + $0x8] sm:$0xff]
        %v555 = vld [vmem:[#allocation2 + $0x10] sm:$0xff]
        %v556 = vld [vmem:[#allocation2 + $0x18] sm:$0xff]
        %561 = vrot.lane.b32.xlu0 %v553, 124
        %v562 = vpop.permute.xlu0 %561
        %563 = vrot.lane.b32.xlu0 %v554, 124
        %v564 = vpop.permute.xlu0 %563
        %565 = vrot.lane.b32.xlu0 %v555, 124
        %v566 = vpop.permute.xlu0 %565
        %567 = vrot.lane.b32.xlu0 %v556, 124
        %v568 = vpop.permute.xlu0 %567
        %573 = vst.msk [vmem:[#allocation3 + $0x80] sm:$0xff] %vm458, %v562
        %574 = vst.msk [vmem:[#allocation3 + $0x88] sm:$0xff] %vm458, %v564
        %575 = vst.msk [vmem:[#allocation3 + $0x90] sm:$0xff] %vm458, %v566
        %576 = vst.msk [vmem:[#allocation3 + $0x98] sm:$0xff] %vm458, %v568
        %v577 = vld [vmem:[#allocation2] sm:$0xff]
        %v578 = vld [vmem:[#allocation2 + $0x8] sm:$0xff]
        %v579 = vld [vmem:[#allocation2 + $0x10] sm:$0xff]
        %v580 = vld [vmem:[#allocation2 + $0x18] sm:$0xff]
        %585 = vrot.lane.b32.xlu0 %v577, 123
        %v586 = vpop.permute.xlu0 %585
        %587 = vrot.lane.b32.xlu0 %v578, 123
        %v588 = vpop.permute.xlu0 %587
        %589 = vrot.lane.b32.xlu0 %v579, 123
        %v590 = vpop.permute.xlu0 %589
        %591 = vrot.lane.b32.xlu0 %v580, 123
        %v592 = vpop.permute.xlu0 %591
        %597 = vst.msk [vmem:[#allocation3 + $0xa0] sm:$0xff] %vm458, %v586
        %598 = vst.msk [vmem:[#allocation3 + $0xa8] sm:$0xff] %vm458, %v588
        %599 = vst.msk [vmem:[#allocation3 + $0xb0] sm:$0xff] %vm458, %v590
        %600 = vst.msk [vmem:[#allocation3 + $0xb8] sm:$0xff] %vm458, %v592
        %v601 = vld [vmem:[#allocation2] sm:$0xff]
        %v602 = vld [vmem:[#allocation2 + $0x8] sm:$0xff]
        %v603 = vld [vmem:[#allocation2 + $0x10] sm:$0xff]
        %v604 = vld [vmem:[#allocation2 + $0x18] sm:$0xff]
        %609 = vrot.lane.b32.xlu0 %v601, 122
        %v610 = vpop.permute.xlu0 %609
        %611 = vrot.lane.b32.xlu0 %v602, 122
        %v612 = vpop.permute.xlu0 %611
        %613 = vrot.lane.b32.xlu0 %v603, 122
        %v614 = vpop.permute.xlu0 %613
        %615 = vrot.lane.b32.xlu0 %v604, 122
        %v616 = vpop.permute.xlu0 %615
        %621 = vst.msk [vmem:[#allocation3 + $0xc0] sm:$0xff] %vm458, %v610
        %622 = vst.msk [vmem:[#allocation3 + $0xc8] sm:$0xff] %vm458, %v612
        %623 = vst.msk [vmem:[#allocation3 + $0xd0] sm:$0xff] %vm458, %v614
        %624 = vst.msk [vmem:[#allocation3 + $0xd8] sm:$0xff] %vm458, %v616
        %v625 = vld [vmem:[#allocation2] sm:$0xff]
        %v626 = vld [vmem:[#allocation2 + $0x8] sm:$0xff]
        %v627 = vld [vmem:[#allocation2 + $0x10] sm:$0xff]
        %v628 = vld [vmem:[#allocation2 + $0x18] sm:$0xff]
        %633 = vrot.lane.b32.xlu0 %v625, 121
        %v634 = vpop.permute.xlu0 %633
        %635 = vrot.lane.b32.xlu0 %v626, 121
        %v636 = vpop.permute.xlu0 %635
        %637 = vrot.lane.b32.xlu0 %v627, 121
        %v638 = vpop.permute.xlu0 %637
        %639 = vrot.lane.b32.xlu0 %v628, 121
        %v640 = vpop.permute.xlu0 %639
        %645 = vst.msk [vmem:[#allocation3 + $0xe0] sm:$0xff] %vm458, %v634
        %646 = vst.msk [vmem:[#allocation3 + $0xe8] sm:$0xff] %vm458, %v636
        %647 = vst.msk [vmem:[#allocation3 + $0xf0] sm:$0xff] %vm458, %v638
        %648 = vst.msk [vmem:[#allocation3 + $0xf8] sm:$0xff] %vm458, %v640
        %v649 = vld [vmem:[#allocation2] sm:$0xff]
        %v650 = vld [vmem:[#allocation2 + $0x8] sm:$0xff]
        %v651 = vld [vmem:[#allocation2 + $0x10] sm:$0xff]
        %v652 = vld [vmem:[#allocation2 + $0x18] sm:$0xff]
        %657 = vrot.lane.b32.xlu0 %v649, 120
        %v658 = vpop.permute.xlu0 %657
        %659 = vrot.lane.b32.xlu0 %v650, 120
        %v660 = vpop.permute.xlu0 %659
        %661 = vrot.lane.b32.xlu0 %v651, 120
        %v662 = vpop.permute.xlu0 %661
        %663 = vrot.lane.b32.xlu0 %v652, 120
        %v664 = vpop.permute.xlu0 %663
        %669 = vst.msk [vmem:[#allocation3 + $0x100] sm:$0xff] %vm458, %v658
        %670 = vst.msk [vmem:[#allocation3 + $0x108] sm:$0xff] %vm458, %v660
        %671 = vst.msk [vmem:[#allocation3 + $0x110] sm:$0xff] %vm458, %v662
        %672 = vst.msk [vmem:[#allocation3 + $0x118] sm:$0xff] %vm458, %v664
        %v673 = vld [vmem:[#allocation2] sm:$0xff]
        %v674 = vld [vmem:[#allocation2 + $0x8] sm:$0xff]
        %v675 = vld [vmem:[#allocation2 + $0x10] sm:$0xff]
        %v676 = vld [vmem:[#allocation2 + $0x18] sm:$0xff]
        %681 = vrot.lane.b32.xlu0 %v673, 119
        %v682 = vpop.permute.xlu0 %681
        %683 = vrot.lane.b32.xlu0 %v674, 119
        %v684 = vpop.permute.xlu0 %683
        %685 = vrot.lane.b32.xlu0 %v675, 119
        %v686 = vpop.permute.xlu0 %685
        %687 = vrot.lane.b32.xlu0 %v676, 119
        %v688 = vpop.permute.xlu0 %687
        %693 = vst.msk [vmem:[#allocation3 + $0x120] sm:$0xff] %vm458, %v682
        %694 = vst.msk [vmem:[#allocation3 + $0x128] sm:$0xff] %vm458, %v684
        %695 = vst.msk [vmem:[#allocation3 + $0x130] sm:$0xff] %vm458, %v686
        %696 = vst.msk [vmem:[#allocation3 + $0x138] sm:$0xff] %vm458, %v688
        %v697 = vld [vmem:[#allocation2] sm:$0xff]
        %v698 = vld [vmem:[#allocation2 + $0x8] sm:$0xff]
        %v699 = vld [vmem:[#allocation2 + $0x10] sm:$0xff]
        %v700 = vld [vmem:[#allocation2 + $0x18] sm:$0xff]
        %705 = vrot.lane.b32.xlu0 %v697, 118
        %v706 = vpop.permute.xlu0 %705
        %707 = vrot.lane.b32.xlu0 %v698, 118
        %v708 = vpop.permute.xlu0 %707
        %709 = vrot.lane.b32.xlu0 %v699, 118
        %v710 = vpop.permute.xlu0 %709
        %711 = vrot.lane.b32.xlu0 %v700, 118
        %v712 = vpop.permute.xlu0 %711
        %717 = vst.msk [vmem:[#allocation3 + $0x140] sm:$0xff] %vm458, %v706
        %718 = vst.msk [vmem:[#allocation3 + $0x148] sm:$0xff] %vm458, %v708
        %719 = vst.msk [vmem:[#allocation3 + $0x150] sm:$0xff] %vm458, %v710
        %720 = vst.msk [vmem:[#allocation3 + $0x158] sm:$0xff] %vm458, %v712
        %v721 = vld [vmem:[#allocation2] sm:$0xff]
        %v722 = vld [vmem:[#allocation2 + $0x8] sm:$0xff]
        %v723 = vld [vmem:[#allocation2 + $0x10] sm:$0xff]
        %v724 = vld [vmem:[#allocation2 + $0x18] sm:$0xff]
        %729 = vrot.lane.b32.xlu0 %v721, 117
        %v730 = vpop.permute.xlu0 %729
        %731 = vrot.lane.b32.xlu0 %v722, 117
        %v732 = vpop.permute.xlu0 %731
        %733 = vrot.lane.b32.xlu0 %v723, 117
        %v734 = vpop.permute.xlu0 %733
        %735 = vrot.lane.b32.xlu0 %v724, 117
        %v736 = vpop.permute.xlu0 %735
        %741 = vst.msk [vmem:[#allocation3 + $0x160] sm:$0xff] %vm458, %v730
        %742 = vst.msk [vmem:[#allocation3 + $0x168] sm:$0xff] %vm458, %v732
        %743 = vst.msk [vmem:[#allocation3 + $0x170] sm:$0xff] %vm458, %v734
        %744 = vst.msk [vmem:[#allocation3 + $0x178] sm:$0xff] %vm458, %v736
        %v745 = vld [vmem:[#allocation2] sm:$0xff]
        %v746 = vld [vmem:[#allocation2 + $0x8] sm:$0xff]
        %v747 = vld [vmem:[#allocation2 + $0x10] sm:$0xff]
        %v748 = vld [vmem:[#allocation2 + $0x18] sm:$0xff]
        %753 = vrot.lane.b32.xlu0 %v745, 116
        %v754 = vpop.permute.xlu0 %753
        %755 = vrot.lane.b32.xlu0 %v746, 116
        %v756 = vpop.permute.xlu0 %755
        %757 = vrot.lane.b32.xlu0 %v747, 116
        %v758 = vpop.permute.xlu0 %757
        %759 = vrot.lane.b32.xlu0 %v748, 116
        %v760 = vpop.permute.xlu0 %759
        %765 = vst.msk [vmem:[#allocation3 + $0x180] sm:$0xff] %vm458, %v754
        %766 = vst.msk [vmem:[#allocation3 + $0x188] sm:$0xff] %vm458, %v756
        %767 = vst.msk [vmem:[#allocation3 + $0x190] sm:$0xff] %vm458, %v758
        %768 = vst.msk [vmem:[#allocation3 + $0x198] sm:$0xff] %vm458, %v760
        %v769 = vld [vmem:[#allocation2] sm:$0xff]
        %v770 = vld [vmem:[#allocation2 + $0x8] sm:$0xff]
        %v771 = vld [vmem:[#allocation2 + $0x10] sm:$0xff]
        %v772 = vld [vmem:[#allocation2 + $0x18] sm:$0xff]
        %777 = vrot.lane.b32.xlu0 %v769, 115
        %v778 = vpop.permute.xlu0 %777
        %779 = vrot.lane.b32.xlu0 %v770, 115
        %v780 = vpop.permute.xlu0 %779
        %781 = vrot.lane.b32.xlu0 %v771, 115
        %v782 = vpop.permute.xlu0 %781
        %783 = vrot.lane.b32.xlu0 %v772, 115
        %v784 = vpop.permute.xlu0 %783
        %789 = vst.msk [vmem:[#allocation3 + $0x1a0] sm:$0xff] %vm458, %v778
        %790 = vst.msk [vmem:[#allocation3 + $0x1a8] sm:$0xff] %vm458, %v780
        %791 = vst.msk [vmem:[#allocation3 + $0x1b0] sm:$0xff] %vm458, %v782
        %792 = vst.msk [vmem:[#allocation3 + $0x1b8] sm:$0xff] %vm458, %v784
        %v793 = vld [vmem:[#allocation2] sm:$0xff]
        %v794 = vld [vmem:[#allocation2 + $0x8] sm:$0xff]
        %v795 = vld [vmem:[#allocation2 + $0x10] sm:$0xff]
        %v796 = vld [vmem:[#allocation2 + $0x18] sm:$0xff]
        %801 = vrot.lane.b32.xlu0 %v793, 114
        %v802 = vpop.permute.xlu0 %801
        %803 = vrot.lane.b32.xlu0 %v794, 114
        %v804 = vpop.permute.xlu0 %803
        %805 = vrot.lane.b32.xlu0 %v795, 114
        %v806 = vpop.permute.xlu0 %805
        %807 = vrot.lane.b32.xlu0 %v796, 114
        %v808 = vpop.permute.xlu0 %807
        %813 = vst.msk [vmem:[#allocation3 + $0x1c0] sm:$0xff] %vm458, %v802
        %814 = vst.msk [vmem:[#allocation3 + $0x1c8] sm:$0xff] %vm458, %v804
        %815 = vst.msk [vmem:[#allocation3 + $0x1d0] sm:$0xff] %vm458, %v806
        %816 = vst.msk [vmem:[#allocation3 + $0x1d8] sm:$0xff] %vm458, %v808
        %v817 = vld [vmem:[#allocation3] sm:$0xff]
        %v818 = vld [vmem:[#allocation3 + $0x8] sm:$0xff]
        %v819 = vld [vmem:[#allocation3 + $0x10] sm:$0xff]
        %v820 = vld [vmem:[#allocation3 + $0x18] sm:$0xff]
        %v821 = vld [vmem:[#allocation3 + $0x20] sm:$0xff]
        %v822 = vld [vmem:[#allocation3 + $0x28] sm:$0xff]
        %v823 = vld [vmem:[#allocation3 + $0x30] sm:$0xff]
        %v824 = vld [vmem:[#allocation3 + $0x38] sm:$0xff]
        %v825 = vld [vmem:[#allocation3 + $0x40] sm:$0xff]
        %v826 = vld [vmem:[#allocation3 + $0x48] sm:$0xff]
        %v827 = vld [vmem:[#allocation3 + $0x50] sm:$0xff]
        %v828 = vld [vmem:[#allocation3 + $0x58] sm:$0xff]
        %v829 = vld [vmem:[#allocation3 + $0x60] sm:$0xff]
        %v830 = vld [vmem:[#allocation3 + $0x68] sm:$0xff]
        %v831 = vld [vmem:[#allocation3 + $0x70] sm:$0xff]
        %v832 = vld [vmem:[#allocation3 + $0x78] sm:$0xff]
        %v833 = vld [vmem:[#allocation3 + $0x80] sm:$0xff]
        %v834 = vld [vmem:[#allocation3 + $0x88] sm:$0xff]
        %v835 = vld [vmem:[#allocation3 + $0x90] sm:$0xff]
        %v836 = vld [vmem:[#allocation3 + $0x98] sm:$0xff]
        %v837 = vld [vmem:[#allocation3 + $0xa0] sm:$0xff]
        %v838 = vld [vmem:[#allocation3 + $0xa8] sm:$0xff]
        %v839 = vld [vmem:[#allocation3 + $0xb0] sm:$0xff]
        %v840 = vld [vmem:[#allocation3 + $0xb8] sm:$0xff]
        %v841 = vld [vmem:[#allocation3 + $0xc0] sm:$0xff]
        %v842 = vld [vmem:[#allocation3 + $0xc8] sm:$0xff]
        %v843 = vld [vmem:[#allocation3 + $0xd0] sm:$0xff]
        %v844 = vld [vmem:[#allocation3 + $0xd8] sm:$0xff]
        %v845 = vld [vmem:[#allocation3 + $0xe0] sm:$0xff]
        %v846 = vld [vmem:[#allocation3 + $0xe8] sm:$0xff]
        %v847 = vld [vmem:[#allocation3 + $0xf0] sm:$0xff]
        %v848 = vld [vmem:[#allocation3 + $0xf8] sm:$0xff]
        %v849 = vld [vmem:[#allocation3 + $0x100] sm:$0xff]
        %v850 = vld [vmem:[#allocation3 + $0x108] sm:$0xff]
        %v851 = vld [vmem:[#allocation3 + $0x110] sm:$0xff]
        %v852 = vld [vmem:[#allocation3 + $0x118] sm:$0xff]
        %v853 = vld [vmem:[#allocation3 + $0x120] sm:$0xff]
        %v854 = vld [vmem:[#allocation3 + $0x128] sm:$0xff]
        %v855 = vld [vmem:[#allocation3 + $0x130] sm:$0xff]
        %v856 = vld [vmem:[#allocation3 + $0x138] sm:$0xff]
        %v857 = vld [vmem:[#allocation3 + $0x140] sm:$0xff]
        %v858 = vld [vmem:[#allocation3 + $0x148] sm:$0xff]
        %v859 = vld [vmem:[#allocation3 + $0x150] sm:$0xff]
        %v860 = vld [vmem:[#allocation3 + $0x158] sm:$0xff]
        %v861 = vld [vmem:[#allocation3 + $0x160] sm:$0xff]
        %v862 = vld [vmem:[#allocation3 + $0x168] sm:$0xff]
        %v863 = vld [vmem:[#allocation3 + $0x170] sm:$0xff]
        %v864 = vld [vmem:[#allocation3 + $0x178] sm:$0xff]
        %v865 = vld [vmem:[#allocation3 + $0x180] sm:$0xff]
        %v866 = vld [vmem:[#allocation3 + $0x188] sm:$0xff]
        %v867 = vld [vmem:[#allocation3 + $0x190] sm:$0xff]
        %v868 = vld [vmem:[#allocation3 + $0x198] sm:$0xff]
        %v869 = vld [vmem:[#allocation3 + $0x1a0] sm:$0xff]
        %v870 = vld [vmem:[#allocation3 + $0x1a8] sm:$0xff]
        %v871 = vld [vmem:[#allocation3 + $0x1b0] sm:$0xff]
        %v872 = vld [vmem:[#allocation3 + $0x1b8] sm:$0xff]
        %v873 = vld [vmem:[#allocation3 + $0x1c0] sm:$0xff]
        %v874 = vld [vmem:[#allocation3 + $0x1c8] sm:$0xff]
        %v875 = vld [vmem:[#allocation3 + $0x1d0] sm:$0xff]
        %v876 = vld [vmem:[#allocation3 + $0x1d8] sm:$0xff]
        %v877 = vld [vmem:[#allocation3 + $0x1e0] sm:$0xff]
        %v878 = vld [vmem:[#allocation9] sm:$0xff]
        %v879 = vld [vmem:[#allocation9 + $0x8] sm:$0xff]
        %v880 = vld [vmem:[#allocation9 + $0x10] sm:$0xff]
        %v881 = vld [vmem:[#allocation9 + $0x18] sm:$0xff]
        %v882 = vld [vmem:[#allocation9 + $0x20] sm:$0xff]
        %v883 = vld [vmem:[#allocation9 + $0x28] sm:$0xff]
        %v884 = vld [vmem:[#allocation9 + $0x30] sm:$0xff]
        %v885 = vld [vmem:[#allocation9 + $0x38] sm:$0xff]
        %v886 = vld [vmem:[#allocation9 + $0x40] sm:$0xff]
        %v887 = vld [vmem:[#allocation9 + $0x48] sm:$0xff]
        %v888 = vld [vmem:[#allocation9 + $0x50] sm:$0xff]
        %v889 = vld [vmem:[#allocation9 + $0x58] sm:$0xff]
        %v890 = vld [vmem:[#allocation9 + $0x60] sm:$0xff]
        %v891 = vld [vmem:[#allocation9 + $0x68] sm:$0xff]
        %v892 = vld [vmem:[#allocation9 + $0x70] sm:$0xff]
        %v893 = vld [vmem:[#allocation9 + $0x78] sm:$0xff]
        %v894 = vld [vmem:[#allocation9 + $0x80] sm:$0xff]
        %v895 = vld [vmem:[#allocation9 + $0x88] sm:$0xff]
        %v896 = vld [vmem:[#allocation9 + $0x90] sm:$0xff]
        %v897 = vld [vmem:[#allocation9 + $0x98] sm:$0xff]
        %v898 = vld [vmem:[#allocation9 + $0xa0] sm:$0xff]
        %v899 = vld [vmem:[#allocation9 + $0xa8] sm:$0xff]
        %v900 = vld [vmem:[#allocation9 + $0xb0] sm:$0xff]
        %v901 = vld [vmem:[#allocation9 + $0xb8] sm:$0xff]
        %v902 = vld [vmem:[#allocation9 + $0xc0] sm:$0xff]
        %v903 = vld [vmem:[#allocation9 + $0xc8] sm:$0xff]
        %v904 = vld [vmem:[#allocation9 + $0xd0] sm:$0xff]
        %v905 = vld [vmem:[#allocation9 + $0xd8] sm:$0xff]
        %v906 = vld [vmem:[#allocation9 + $0xe0] sm:$0xff]
        %v907 = vld [vmem:[#allocation9 + $0xe8] sm:$0xff]
        %v908 = vld [vmem:[#allocation9 + $0xf0] sm:$0xff]
        %v909 = vld [vmem:[#allocation9 + $0xf8] sm:$0xff]
        %v910 = vld [vmem:[#allocation9 + $0x100] sm:$0xff]
        %v911 = vld [vmem:[#allocation9 + $0x108] sm:$0xff]
        %v912 = vld [vmem:[#allocation9 + $0x110] sm:$0xff]
        %v913 = vld [vmem:[#allocation9 + $0x118] sm:$0xff]
        %v914 = vld [vmem:[#allocation9 + $0x120] sm:$0xff]
        %v915 = vld [vmem:[#allocation9 + $0x128] sm:$0xff]
        %v916 = vld [vmem:[#allocation9 + $0x130] sm:$0xff]
        %v917 = vld [vmem:[#allocation9 + $0x138] sm:$0xff]
        %v918 = vld [vmem:[#allocation9 + $0x140] sm:$0xff]
        %v919 = vld [vmem:[#allocation9 + $0x148] sm:$0xff]
        %v920 = vld [vmem:[#allocation9 + $0x150] sm:$0xff]
        %v921 = vld [vmem:[#allocation9 + $0x158] sm:$0xff]
        %v922 = vld [vmem:[#allocation9 + $0x160] sm:$0xff]
        %v923 = vld [vmem:[#allocation9 + $0x168] sm:$0xff]
        %v924 = vld [vmem:[#allocation9 + $0x170] sm:$0xff]
        %v925 = vld [vmem:[#allocation9 + $0x178] sm:$0xff]
        %v926 = vld [vmem:[#allocation9 + $0x180] sm:$0xff]
        %v927 = vld [vmem:[#allocation9 + $0x188] sm:$0xff]
        %v928 = vld [vmem:[#allocation9 + $0x190] sm:$0xff]
        %v929 = vld [vmem:[#allocation9 + $0x198] sm:$0xff]
        %v930 = vld [vmem:[#allocation9 + $0x1a0] sm:$0xff]
        %v931 = vld [vmem:[#allocation9 + $0x1a8] sm:$0xff]
        %v932 = vld [vmem:[#allocation9 + $0x1b0] sm:$0xff]
        %v933 = vld [vmem:[#allocation9 + $0x1b8] sm:$0xff]
        %v934 = vld [vmem:[#allocation9 + $0x1c0] sm:$0xff]
        %v935 = vld [vmem:[#allocation9 + $0x1c8] sm:$0xff]
        %v936 = vld [vmem:[#allocation9 + $0x1d0] sm:$0xff]
        %v937 = vld [vmem:[#allocation9 + $0x1d8] sm:$0xff]
        %v938 = vld [vmem:[#allocation9 + $0x1e0] sm:$0xff]
        %v939 = vld [vmem:[#allocation9 + $0x1e8] sm:$0xff]
        %v940 = vld [vmem:[#allocation9 + $0x1f0] sm:$0xff]
        %v941 = vld [vmem:[#allocation9 + $0x1f8] sm:$0xff]
        %v942 = vld [vmem:[#allocation9 + $0x200] sm:$0xff]
        %v943 = vld [vmem:[#allocation9 + $0x208] sm:$0xff]
        %v944 = vld [vmem:[#allocation9 + $0x210] sm:$0xff]
        %v945 = vld [vmem:[#allocation9 + $0x218] sm:$0xff]
        %v946 = vld [vmem:[#allocation9 + $0x220] sm:$0xff]
        %v947 = vld [vmem:[#allocation9 + $0x228] sm:$0xff]
        %v948 = vld [vmem:[#allocation9 + $0x230] sm:$0xff]
        %v949 = vld [vmem:[#allocation9 + $0x238] sm:$0xff]
        %v950 = vld [vmem:[#allocation9 + $0x240] sm:$0xff]
        %v951 = vld [vmem:[#allocation9 + $0x248] sm:$0xff]
        %v952 = vld [vmem:[#allocation9 + $0x250] sm:$0xff]
        %v953 = vld [vmem:[#allocation9 + $0x258] sm:$0xff]
        %v954 = vld [vmem:[#allocation9 + $0x260] sm:$0xff]
        %v955 = vld [vmem:[#allocation9 + $0x268] sm:$0xff]
        %v956 = vld [vmem:[#allocation9 + $0x270] sm:$0xff]
        %v957 = vld [vmem:[#allocation9 + $0x278] sm:$0xff]
        %v958 = vld [vmem:[#allocation9 + $0x280] sm:$0xff]
        %v959 = vld [vmem:[#allocation9 + $0x288] sm:$0xff]
        %v960 = vld [vmem:[#allocation9 + $0x290] sm:$0xff]
        %v961 = vld [vmem:[#allocation9 + $0x298] sm:$0xff]
        %v962 = vld [vmem:[#allocation9 + $0x2a0] sm:$0xff]
        %v963 = vld [vmem:[#allocation9 + $0x2a8] sm:$0xff]
        %v964 = vld [vmem:[#allocation9 + $0x2b0] sm:$0xff]
        %v965 = vld [vmem:[#allocation9 + $0x2b8] sm:$0xff]
        %v966 = vld [vmem:[#allocation9 + $0x2c0] sm:$0xff]
        %v967 = vld [vmem:[#allocation9 + $0x2c8] sm:$0xff]
        %v968 = vld [vmem:[#allocation9 + $0x2d0] sm:$0xff]
        %v969 = vld [vmem:[#allocation9 + $0x2d8] sm:$0xff]
        %v970 = vld [vmem:[#allocation9 + $0x2e0] sm:$0xff]
        %v971 = vld [vmem:[#allocation9 + $0x2e8] sm:$0xff]
        %v972 = vld [vmem:[#allocation9 + $0x2f0] sm:$0xff]
        %v973 = vld [vmem:[#allocation9 + $0x2f8] sm:$0xff]
        %v974 = vld [vmem:[#allocation9 + $0x300] sm:$0xff]
        %v975 = vld [vmem:[#allocation9 + $0x308] sm:$0xff]
        %v976 = vld [vmem:[#allocation9 + $0x310] sm:$0xff]
        %v977 = vld [vmem:[#allocation9 + $0x318] sm:$0xff]
        %v978 = vld [vmem:[#allocation9 + $0x320] sm:$0xff]
        %v979 = vld [vmem:[#allocation9 + $0x328] sm:$0xff]
        %v980 = vld [vmem:[#allocation9 + $0x330] sm:$0xff]
        %v981 = vld [vmem:[#allocation9 + $0x338] sm:$0xff]
        %v982 = vld [vmem:[#allocation9 + $0x340] sm:$0xff]
        %v983 = vld [vmem:[#allocation9 + $0x348] sm:$0xff]
        %v984 = vld [vmem:[#allocation9 + $0x350] sm:$0xff]
        %v985 = vld [vmem:[#allocation9 + $0x358] sm:$0xff]
        %v986 = vld [vmem:[#allocation9 + $0x360] sm:$0xff]
        %v987 = vld [vmem:[#allocation9 + $0x368] sm:$0xff]
        %v988 = vld [vmem:[#allocation9 + $0x370] sm:$0xff]
        %v989 = vld [vmem:[#allocation9 + $0x378] sm:$0xff]
        %v990 = vld [vmem:[#allocation9 + $0x380] sm:$0xff]
        %v991 = vld [vmem:[#allocation9 + $0x388] sm:$0xff]
        %v992 = vld [vmem:[#allocation9 + $0x390] sm:$0xff]
        %v993 = vld [vmem:[#allocation9 + $0x398] sm:$0xff]
        %v994 = vld [vmem:[#allocation9 + $0x3a0] sm:$0xff]
        %v995 = vld [vmem:[#allocation9 + $0x3a8] sm:$0xff]
        %v996 = vld [vmem:[#allocation9 + $0x3b0] sm:$0xff]
        %v997 = vld [vmem:[#allocation9 + $0x3b8] sm:$0xff]
        %v998 = vld [vmem:[#allocation9 + $0x3c0] sm:$0xff]
        %v999 = vld [vmem:[#allocation9 + $0x3c8] sm:$0xff]
        %v1000 = vld [vmem:[#allocation9 + $0x3d0] sm:$0xff]
        %v1001 = vld [vmem:[#allocation9 + $0x3d8] sm:$0xff]
        %v1002 = vld [vmem:[#allocation9 + $0x3e0] sm:$0xff]
        %v1003 = vld [vmem:[#allocation9 + $0x3e8] sm:$0xff]
        %v1004 = vld [vmem:[#allocation9 + $0x3f0] sm:$0xff]
        %v1005 = vld [vmem:[#allocation9 + $0x3f8] sm:$0xff]
        %v1006 = vld [vmem:[#allocation9 + $0x400] sm:$0xff]
        %v1007 = vld [vmem:[#allocation9 + $0x408] sm:$0xff]
        %v1008 = vld [vmem:[#allocation9 + $0x410] sm:$0xff]
        %v1009 = vld [vmem:[#allocation9 + $0x418] sm:$0xff]
        %v1010 = vld [vmem:[#allocation9 + $0x420] sm:$0xff]
        %v1011 = vld [vmem:[#allocation9 + $0x428] sm:$0xff]
        %v1012 = vld [vmem:[#allocation9 + $0x430] sm:$0xff]
        %v1013 = vld [vmem:[#allocation9 + $0x438] sm:$0xff]
        %v1014 = vld [vmem:[#allocation9 + $0x440] sm:$0xff]
        %v1015 = vld [vmem:[#allocation9 + $0x448] sm:$0xff]
        %v1016 = vld [vmem:[#allocation9 + $0x450] sm:$0xff]
        %v1017 = vld [vmem:[#allocation9 + $0x458] sm:$0xff]
        %v1018 = vld [vmem:[#allocation9 + $0x460] sm:$0xff]
        %v1019 = vld [vmem:[#allocation9 + $0x468] sm:$0xff]
        %v1020 = vld [vmem:[#allocation9 + $0x470] sm:$0xff]
        %v1021 = vld [vmem:[#allocation9 + $0x478] sm:$0xff]
        %v1022 = vld [vmem:[#allocation9 + $0x480] sm:$0xff]
        %v1023 = vld [vmem:[#allocation9 + $0x488] sm:$0xff]
        %v1024 = vld [vmem:[#allocation9 + $0x490] sm:$0xff]
        %v1025 = vld [vmem:[#allocation9 + $0x498] sm:$0xff]
        %v1026 = vld [vmem:[#allocation9 + $0x4a0] sm:$0xff]
        %v1027 = vld [vmem:[#allocation9 + $0x4a8] sm:$0xff]
        %v1028 = vld [vmem:[#allocation9 + $0x4b0] sm:$0xff]
        %v1029 = vld [vmem:[#allocation9 + $0x4b8] sm:$0xff]
        %v1030 = vld [vmem:[#allocation9 + $0x4c0] sm:$0xff]
        %v1031 = vld [vmem:[#allocation9 + $0x4c8] sm:$0xff]
        %v1032 = vld [vmem:[#allocation9 + $0x4d0] sm:$0xff]
        %v1033 = vld [vmem:[#allocation9 + $0x4d8] sm:$0xff]
        %v1034 = vld [vmem:[#allocation9 + $0x4e0] sm:$0xff]
        %v1035 = vld [vmem:[#allocation9 + $0x4e8] sm:$0xff]
        %v1036 = vld [vmem:[#allocation9 + $0x4f0] sm:$0xff]
        %v1037 = vld [vmem:[#allocation9 + $0x4f8] sm:$0xff]
        %v1038 = vld [vmem:[#allocation9 + $0x500] sm:$0xff]
        %v1039 = vld [vmem:[#allocation9 + $0x508] sm:$0xff]
        %v1040 = vld [vmem:[#allocation9 + $0x510] sm:$0xff]
        %v1041 = vld [vmem:[#allocation9 + $0x518] sm:$0xff]
        %v1042 = vld [vmem:[#allocation9 + $0x520] sm:$0xff]
        %v1043 = vld [vmem:[#allocation9 + $0x528] sm:$0xff]
        %v1044 = vld [vmem:[#allocation9 + $0x530] sm:$0xff]
        %v1045 = vld [vmem:[#allocation9 + $0x538] sm:$0xff]
        %v1046 = vld [vmem:[#allocation9 + $0x540] sm:$0xff]
        %v1047 = vld [vmem:[#allocation9 + $0x548] sm:$0xff]
        %v1048 = vld [vmem:[#allocation9 + $0x550] sm:$0xff]
        %v1049 = vld [vmem:[#allocation9 + $0x558] sm:$0xff]
        %v1050 = vld [vmem:[#allocation9 + $0x560] sm:$0xff]
        %v1051 = vld [vmem:[#allocation9 + $0x568] sm:$0xff]
        %v1052 = vld [vmem:[#allocation9 + $0x570] sm:$0xff]
        %v1053 = vld [vmem:[#allocation9 + $0x578] sm:$0xff]
        %v1054 = vld [vmem:[#allocation9 + $0x580] sm:$0xff]
        %v1055 = vld [vmem:[#allocation9 + $0x588] sm:$0xff]
        %v1056 = vld [vmem:[#allocation9 + $0x590] sm:$0xff]
        %v1057 = vld [vmem:[#allocation9 + $0x598] sm:$0xff]
        %v1058 = vld [vmem:[#allocation9 + $0x5a0] sm:$0xff]
        %v1059 = vld [vmem:[#allocation9 + $0x5a8] sm:$0xff]
        %v1060 = vld [vmem:[#allocation9 + $0x5b0] sm:$0xff]
        %v1061 = vld [vmem:[#allocation9 + $0x5b8] sm:$0xff]
        %v1062 = vld [vmem:[#allocation9 + $0x5c0] sm:$0xff]
        %v1063 = vld [vmem:[#allocation9 + $0x5c8] sm:$0xff]
        %v1064 = vld [vmem:[#allocation9 + $0x5d0] sm:$0xff]
        %v1065 = vld [vmem:[#allocation9 + $0x5d8] sm:$0xff]
        %v1066 = vld [vmem:[#allocation9 + $0x5e0] sm:$0xff]
        %v1067 = vld [vmem:[#allocation9 + $0x5e8] sm:$0xff]
        %v1068 = vld [vmem:[#allocation9 + $0x5f0] sm:$0xff]
        %v1069 = vld [vmem:[#allocation9 + $0x5f8] sm:$0xff]
        %v1070 = vld [vmem:[#allocation9 + $0x600] sm:$0xff]
        %v1071 = vld [vmem:[#allocation9 + $0x608] sm:$0xff]
        %v1072 = vld [vmem:[#allocation9 + $0x610] sm:$0xff]
        %v1073 = vld [vmem:[#allocation9 + $0x618] sm:$0xff]
        %vm1074 = vcmask 850944
        %v1076 = vsel %vm1074, %v881, 0
        %v1079 = vsel %vm1074, %v885, 0
        %v1082 = vsel %vm1074, %v889, 0
        %v1085 = vsel %vm1074, %v893, 0
        %v1088 = vsel %vm1074, %v897, 0
        %v1091 = vsel %vm1074, %v901, 0
        %v1094 = vsel %vm1074, %v905, 0
        %v1097 = vsel %vm1074, %v909, 0
        %v1100 = vsel %vm1074, %v913, 0
        %v1103 = vsel %vm1074, %v917, 0
        %v1106 = vsel %vm1074, %v921, 0
        %v1109 = vsel %vm1074, %v925, 0
        %v1112 = vsel %vm1074, %v929, 0
        %v1115 = vsel %vm1074, %v933, 0
        %v1118 = vsel %vm1074, %v937, 0
        %v1121 = vsel %vm1074, %v941, 0
        %v1124 = vsel %vm1074, %v945, 0
        %v1127 = vsel %vm1074, %v949, 0
        %v1130 = vsel %vm1074, %v953, 0
        %v1133 = vsel %vm1074, %v957, 0
        %v1136 = vsel %vm1074, %v961, 0
        %v1139 = vsel %vm1074, %v965, 0
        %v1142 = vsel %vm1074, %v969, 0
        %v1145 = vsel %vm1074, %v973, 0
        %v1148 = vsel %vm1074, %v977, 0
        %v1151 = vsel %vm1074, %v981, 0
        %v1154 = vsel %vm1074, %v985, 0
        %v1157 = vsel %vm1074, %v989, 0
        %v1160 = vsel %vm1074, %v993, 0
        %v1163 = vsel %vm1074, %v997, 0
        %v1166 = vsel %vm1074, %v1001, 0
        %v1169 = vsel %vm1074, %v1005, 0
        %v1172 = vsel %vm1074, %v1009, 0
        %v1175 = vsel %vm1074, %v1013, 0
        %v1178 = vsel %vm1074, %v1017, 0
        %v1181 = vsel %vm1074, %v1021, 0
        %v1184 = vsel %vm1074, %v1025, 0
        %v1187 = vsel %vm1074, %v1029, 0
        %v1190 = vsel %vm1074, %v1033, 0
        %v1193 = vsel %vm1074, %v1037, 0
        %v1196 = vsel %vm1074, %v1041, 0
        %v1199 = vsel %vm1074, %v1045, 0
        %v1202 = vsel %vm1074, %v1049, 0
        %v1205 = vsel %vm1074, %v1053, 0
        %v1208 = vsel %vm1074, %v1057, 0
        %v1211 = vsel %vm1074, %v1061, 0
        %v1214 = vsel %vm1074, %v1065, 0
        %v1217 = vsel %vm1074, %v1069, 0
        %v1220 = vsel %vm1074, %v1073, 0
        %1222 = vmatprep.subr.mxu0 0.0
        %1223 = vmatpush1.msra.mxu0 %v817
        %1224 = vmatprep.subr.mxu0 0.0
        %1225 = vmatpush1.msra.mxu0 %v818
        %1226 = vmatprep.subr.mxu0 0.0
        %1227 = vmatpush1.msra.mxu0 %v819
        %1228 = vmatprep.subr.mxu0 0.0
        %1229 = vmatpush1.msra.mxu0 %v820
        %1230 = vmatprep.subr.mxu0 0.0
        %1231 = vmatpush1.msra.mxu0 %v821
        %1232 = vmatprep.subr.mxu0 0.0
        %1233 = vmatpush1.msra.mxu0 %v822
        %1234 = vmatprep.subr.mxu0 0.0
        %1235 = vmatpush1.msra.mxu0 %v823
        %1236 = vmatprep.subr.mxu0 0.0
        %1237 = vmatpush1.msra.mxu0 %v824
        %1238 = vmatprep.subr.mxu0 0.0
        %1239 = vmatpush1.msra.mxu0 %v825
        %1240 = vmatprep.subr.mxu0 0.0
        %1241 = vmatpush1.msra.mxu0 %v826
        %1242 = vmatprep.subr.mxu0 0.0
        %1243 = vmatpush1.msra.mxu0 %v827
        %1244 = vmatprep.subr.mxu0 0.0
        %1245 = vmatpush1.msra.mxu0 %v828
        %1246 = vmatprep.subr.mxu0 0.0
        %1247 = vmatpush1.msra.mxu0 %v829
        %1248 = vmatprep.subr.mxu0 0.0
        %1249 = vmatpush1.msra.mxu0 %v830
        %1250 = vmatprep.subr.mxu0 0.0
        %1251 = vmatpush1.msra.mxu0 %v831
        %1252 = vmatprep.subr.mxu0 0.0
        %1253 = vmatpush1.msra.mxu0 %v832
        %1254 = vmatprep.subr.mxu0 0.0
        %1255 = vmatpush1.msra.mxu0 %v833
        %1256 = vmatprep.subr.mxu0 0.0
        %1257 = vmatpush1.msra.mxu0 %v834
        %1258 = vmatprep.subr.mxu0 0.0
        %1259 = vmatpush1.msra.mxu0 %v835
        %1260 = vmatprep.subr.mxu0 0.0
        %1261 = vmatpush1.msra.mxu0 %v836
        %1262 = vmatprep.subr.mxu0 0.0
        %1263 = vmatpush1.msra.mxu0 %v837
        %1264 = vmatprep.subr.mxu0 0.0
        %1265 = vmatpush1.msra.mxu0 %v838
        %1266 = vmatprep.subr.mxu0 0.0
        %1267 = vmatpush1.msra.mxu0 %v839
        %1268 = vmatprep.subr.mxu0 0.0
        %1269 = vmatpush1.msra.mxu0 %v840
        %1270 = vmatprep.subr.mxu0 0.0
        %1271 = vmatpush1.msra.mxu0 %v841
        %1272 = vmatprep.subr.mxu0 0.0
        %1273 = vmatpush1.msra.mxu0 %v842
        %1274 = vmatprep.subr.mxu0 0.0
        %1275 = vmatpush1.msra.mxu0 %v843
        %1276 = vmatprep.subr.mxu0 0.0
        %1277 = vmatpush1.msra.mxu0 %v844
        %1278 = vmatprep.subr.mxu0 0.0
        %1279 = vmatpush1.msra.mxu0 %v845
        %1280 = vmatprep.subr.mxu0 0.0
        %1281 = vmatpush1.msra.mxu0 %v846
        %1282 = vmatprep.subr.mxu0 0.0
        %1283 = vmatpush1.msra.mxu0 %v847
        %1284 = vmatprep.subr.mxu0 0.0
        %1285 = vmatpush1.msra.mxu0 %v848
        %1286 = vmatprep.mubr.f32.mxu0 %v879
        %1287 = vmatmul.mubr.f32.gmra.mrb[0].mxu0 %v878
        %v1288 = vpop.f32.mrb[0].mxu0
        %v1289 = vadd.f32 0.0, %v1288
        %v1290 = vpop.f32.mrb[0].mxu0
        %1291 = vmatprep.mubr.f32.mxu0 %v883
        %1292 = vmatmul.mubr.f32.gmra.mrb[0].mxu0 %v882
        %v1293 = vpop.f32.mrb[0].mxu0
        %v1294 = vadd.f32 0.0, %v1293
        %v1295 = vpop.f32.mrb[0].mxu0
        %1296 = vmatprep.mubr.f32.mxu0 %v887
        %1297 = vmatmul.mubr.f32.gmra.mrb[0].mxu0 %v886
        %v1298 = vpop.f32.mrb[0].mxu0
        %v1299 = vadd.f32 0.0, %v1298
        %v1300 = vpop.f32.mrb[0].mxu0
        %1301 = vmatprep.mubr.f32.mxu0 %v891
        %1302 = vmatmul.mubr.f32.gmra.mrb[0].mxu0 %v890
        %v1303 = vpop.f32.mrb[0].mxu0
        %v1304 = vadd.f32 0.0, %v1303
        %v1305 = vpop.f32.mrb[0].mxu0
        %1306 = vmatprep.mubr.f32.mxu0 %v895
        %1307 = vmatmul.mubr.f32.gmra.mrb[0].mxu0 %v894
        %v1308 = vpop.f32.mrb[0].mxu0
        %v1309 = vadd.f32 0.0, %v1308
        %v1310 = vpop.f32.mrb[0].mxu0
        %1311 = vmatprep.mubr.f32.mxu0 %v899
        %1312 = vmatmul.mubr.f32.gmra.mrb[0].mxu0 %v898
        %v1313 = vpop.f32.mrb[0].mxu0
        %v1314 = vadd.f32 0.0, %v1313
        %v1315 = vpop.f32.mrb[0].mxu0
        %1316 = vmatprep.mubr.f32.mxu0 %v903
        %1317 = vmatmul.mubr.f32.gmra.mrb[0].mxu0 %v902
        %v1318 = vpop.f32.mrb[0].mxu0
        %v1319 = vadd.f32 0.0, %v1318
        %v1320 = vpop.f32.mrb[0].mxu0
        %1321 = vmatprep.mubr.f32.mxu0 %v907
        %1322 = vmatmul.mubr.f32.gmra.mrb[0].mxu0 %v906
        %v1323 = vpop.f32.mrb[0].mxu0
        %v1324 = vadd.f32 0.0, %v1323
        %v1325 = vpop.f32.mrb[0].mxu0
        %1326 = vmatprep.mubr.f32.mxu0 %v911
        %1327 = vmatmul.mubr.f32.gmra.mrb[0].mxu0 %v910
        %v1328 = vpop.f32.mrb[0].mxu0
        %v1329 = vadd.f32 0.0, %v1328
        %v1330 = vpop.f32.mrb[0].mxu0
        %1331 = vmatprep.mubr.f32.mxu0 %v915
        %1332 = vmatmul.mubr.f32.gmra.mrb[0].mxu0 %v914
        %v1333 = vpop.f32.mrb[0].mxu0
        %v1334 = vadd.f32 0.0, %v1333
        %v1335 = vpop.f32.mrb[0].mxu0
        %1336 = vmatprep.mubr.f32.mxu0 %v919
        %1337 = vmatmul.mubr.f32.gmra.mrb[0].mxu0 %v918
        %v1338 = vpop.f32.mrb[0].mxu0
        %v1339 = vadd.f32 0.0, %v1338
        %v1340 = vpop.f32.mrb[0].mxu0
        %1341 = vmatprep.mubr.f32.mxu0 %v923
        %1342 = vmatmul.mubr.f32.gmra.mrb[0].mxu0 %v922
        %v1343 = vpop.f32.mrb[0].mxu0
        %v1344 = vadd.f32 0.0, %v1343
        %v1345 = vpop.f32.mrb[0].mxu0
        %1346 = vmatprep.mubr.f32.mxu0 %v927
        %1347 = vmatmul.mubr.f32.gmra.mrb[0].mxu0 %v926
        %v1348 = vpop.f32.mrb[0].mxu0
        %v1349 = vadd.f32 0.0, %v1348
        %v1350 = vpop.f32.mrb[0].mxu0
        %1351 = vmatprep.mubr.f32.mxu0 %v931
        %1352 = vmatmul.mubr.f32.gmra.mrb[0].mxu0 %v930
        %v1353 = vpop.f32.mrb[0].mxu0
        %v1354 = vadd.f32 0.0, %v1353
        %v1355 = vpop.f32.mrb[0].mxu0
        %1356 = vmatprep.mubr.f32.mxu0 %v935
        %1357 = vmatmul.mubr.f32.gmra.mrb[0].mxu0 %v934
        %v1358 = vpop.f32.mrb[0].mxu0
        %v1359 = vadd.f32 0.0, %v1358
        %v1360 = vpop.f32.mrb[0].mxu0
        %1361 = vmatprep.mubr.f32.mxu0 %v939
        %1362 = vmatmul.mubr.f32.gmra.mrb[0].mxu0 %v938
        %v1363 = vpop.f32.mrb[0].mxu0
        %v1364 = vadd.f32 0.0, %v1363
        %v1365 = vpop.f32.mrb[0].mxu0
        %1366 = vmatprep.mubr.f32.mxu0 %v943
        %1367 = vmatmul.mubr.f32.gmra.mrb[0].mxu0 %v942
        %v1368 = vpop.f32.mrb[0].mxu0
        %v1369 = vadd.f32 0.0, %v1368
        %v1370 = vpop.f32.mrb[0].mxu0
        %1371 = vmatprep.mubr.f32.mxu0 %v947
        %1372 = vmatmul.mubr.f32.gmra.mrb[0].mxu0 %v946
        %v1373 = vpop.f32.mrb[0].mxu0
        %v1374 = vadd.f32 0.0, %v1373
        %v1375 = vpop.f32.mrb[0].mxu0
        %1376 = vmatprep.mubr.f32.mxu0 %v951
        %1377 = vmatmul.mubr.f32.gmra.mrb[0].mxu0 %v950
        %v1378 = vpop.f32.mrb[0].mxu0
        %v1379 = vadd.f32 0.0, %v1378
        %v1380 = vpop.f32.mrb[0].mxu0
        %1381 = vmatprep.mubr.f32.mxu0 %v955
        %1382 = vmatmul.mubr.f32.gmra.mrb[0].mxu0 %v954
        %v1383 = vpop.f32.mrb[0].mxu0
        %v1384 = vadd.f32 0.0, %v1383
        %v1385 = vpop.f32.mrb[0].mxu0
        %1386 = vmatprep.mubr.f32.mxu0 %v959
        %1387 = vmatmul.mubr.f32.gmra.mrb[0].mxu0 %v958
        %v1388 = vpop.f32.mrb[0].mxu0
        %v1389 = vadd.f32 0.0, %v1388
        %v1390 = vpop.f32.mrb[0].mxu0
        %1391 = vmatprep.mubr.f32.mxu0 %v963
        %1392 = vmatmul.mubr.f32.gmra.mrb[0].mxu0 %v962
        %v1393 = vpop.f32.mrb[0].mxu0
        %v1394 = vadd.f32 0.0, %v1393
        %v1395 = vpop.f32.mrb[0].mxu0
        %1396 = vmatprep.mubr.f32.mxu0 %v967
        %1397 = vmatmul.mubr.f32.gmra.mrb[0].mxu0 %v966
        %v1398 = vpop.f32.mrb[0].mxu0
        %v1399 = vadd.f32 0.0, %v1398
        %v1400 = vpop.f32.mrb[0].mxu0
        %1401 = vmatprep.mubr.f32.mxu0 %v971
        %1402 = vmatmul.mubr.f32.gmra.mrb[0].mxu0 %v970
        %v1403 = vpop.f32.mrb[0].mxu0
        %v1404 = vadd.f32 0.0, %v1403
        %v1405 = vpop.f32.mrb[0].mxu0
        %1406 = vmatprep.mubr.f32.mxu0 %v975
        %1407 = vmatmul.mubr.f32.gmra.mrb[0].mxu0 %v974
        %v1408 = vpop.f32.mrb[0].mxu0
        %v1409 = vadd.f32 0.0, %v1408
        %v1410 = vpop.f32.mrb[0].mxu0
        %1411 = vmatprep.mubr.f32.mxu0 %v979
        %1412 = vmatmul.mubr.f32.gmra.mrb[0].mxu0 %v978
        %v1413 = vpop.f32.mrb[0].mxu0
        %v1414 = vadd.f32 0.0, %v1413
        %v1415 = vpop.f32.mrb[0].mxu0
        %1416 = vmatprep.mubr.f32.mxu0 %v983
        %1417 = vmatmul.mubr.f32.gmra.mrb[0].mxu0 %v982
        %v1418 = vpop.f32.mrb[0].mxu0
        %v1419 = vadd.f32 0.0, %v1418
        %v1420 = vpop.f32.mrb[0].mxu0
        %1421 = vmatprep.mubr.f32.mxu0 %v987
        %1422 = vmatmul.mubr.f32.gmra.mrb[0].mxu0 %v986
        %v1423 = vpop.f32.mrb[0].mxu0
        %v1424 = vadd.f32 0.0, %v1423
        %v1425 = vpop.f32.mrb[0].mxu0
        %1426 = vmatprep.mubr.f32.mxu0 %v991
        %1427 = vmatmul.mubr.f32.gmra.mrb[0].mxu0 %v990
        %v1428 = vpop.f32.mrb[0].mxu0
        %v1429 = vadd.f32 0.0, %v1428
        %v1430 = vpop.f32.mrb[0].mxu0
        %1431 = vmatprep.mubr.f32.mxu0 %v995
        %1432 = vmatmul.mubr.f32.gmra.mrb[0].mxu0 %v994
        %v1433 = vpop.f32.mrb[0].mxu0
        %v1434 = vadd.f32 0.0, %v1433
        %v1435 = vpop.f32.mrb[0].mxu0
        %1436 = vmatprep.mubr.f32.mxu0 %v999
        %1437 = vmatmul.mubr.f32.gmra.mrb[0].mxu0 %v998
        %v1438 = vpop.f32.mrb[0].mxu0
        %v1439 = vadd.f32 0.0, %v1438
        %v1440 = vpop.f32.mrb[0].mxu0
        %1441 = vmatprep.mubr.f32.mxu0 %v1003
        %1442 = vmatmul.mubr.f32.gmra.mrb[0].mxu0 %v1002
        %v1443 = vpop.f32.mrb[0].mxu0
        %v1444 = vadd.f32 0.0, %v1443
        %v1445 = vpop.f32.mrb[0].mxu0
        %1446 = vmatprep.mubr.f32.mxu0 %v1007
        %1447 = vmatmul.mubr.f32.gmra.mrb[0].mxu0 %v1006
        %v1448 = vpop.f32.mrb[0].mxu0
        %v1449 = vadd.f32 0.0, %v1448
        %v1450 = vpop.f32.mrb[0].mxu0
        %1451 = vmatprep.mubr.f32.mxu0 %v1011
        %1452 = vmatmul.mubr.f32.gmra.mrb[0].mxu0 %v1010
        %v1453 = vpop.f32.mrb[0].mxu0
        %v1454 = vadd.f32 0.0, %v1453
        %v1455 = vpop.f32.mrb[0].mxu0
        %1456 = vmatprep.mubr.f32.mxu0 %v1015
        %1457 = vmatmul.mubr.f32.gmra.mrb[0].mxu0 %v1014
        %v1458 = vpop.f32.mrb[0].mxu0
        %v1459 = vadd.f32 0.0, %v1458
        %v1460 = vpop.f32.mrb[0].mxu0
        %1461 = vmatprep.mubr.f32.mxu0 %v1019
        %1462 = vmatmul.mubr.f32.gmra.mrb[0].mxu0 %v1018
        %v1463 = vpop.f32.mrb[0].mxu0
        %v1464 = vadd.f32 0.0, %v1463
        %v1465 = vpop.f32.mrb[0].mxu0
        %1466 = vmatprep.mubr.f32.mxu0 %v1023
        %1467 = vmatmul.mubr.f32.gmra.mrb[0].mxu0 %v1022
        %v1468 = vpop.f32.mrb[0].mxu0
        %v1469 = vadd.f32 0.0, %v1468
        %v1470 = vpop.f32.mrb[0].mxu0
        %1471 = vmatprep.mubr.f32.mxu0 %v1027
        %1472 = vmatmul.mubr.f32.gmra.mrb[0].mxu0 %v1026
        %v1473 = vpop.f32.mrb[0].mxu0
        %v1474 = vadd.f32 0.0, %v1473
        %v1475 = vpop.f32.mrb[0].mxu0
        %1476 = vmatprep.mubr.f32.mxu0 %v1031
        %1477 = vmatmul.mubr.f32.gmra.mrb[0].mxu0 %v1030
        %v1478 = vpop.f32.mrb[0].mxu0
        %v1479 = vadd.f32 0.0, %v1478
        %v1480 = vpop.f32.mrb[0].mxu0
        %1481 = vmatprep.mubr.f32.mxu0 %v1035
        %1482 = vmatmul.mubr.f32.gmra.mrb[0].mxu0 %v1034
        %v1483 = vpop.f32.mrb[0].mxu0
        %v1484 = vadd.f32 0.0, %v1483
        %v1485 = vpop.f32.mrb[0].mxu0
        %1486 = vmatprep.mubr.f32.mxu0 %v1039
        %1487 = vmatmul.mubr.f32.gmra.mrb[0].mxu0 %v1038
        %v1488 = vpop.f32.mrb[0].mxu0
        %v1489 = vadd.f32 0.0, %v1488
        %v1490 = vpop.f32.mrb[0].mxu0
        %1491 = vmatprep.mubr.f32.mxu0 %v1043
        %1492 = vmatmul.mubr.f32.gmra.mrb[0].mxu0 %v1042
        %v1493 = vpop.f32.mrb[0].mxu0
        %v1494 = vadd.f32 0.0, %v1493
        %v1495 = vpop.f32.mrb[0].mxu0
        %1496 = vmatprep.mubr.f32.mxu0 %v1047
        %1497 = vmatmul.mubr.f32.gmra.mrb[0].mxu0 %v1046
        %v1498 = vpop.f32.mrb[0].mxu0
        %v1499 = vadd.f32 0.0, %v1498
        %v1500 = vpop.f32.mrb[0].mxu0
        %1501 = vmatprep.mubr.f32.mxu0 %v1051
        %1502 = vmatmul.mubr.f32.gmra.mrb[0].mxu0 %v1050
        %v1503 = vpop.f32.mrb[0].mxu0
        %v1504 = vadd.f32 0.0, %v1503
        %v1505 = vpop.f32.mrb[0].mxu0
        %1506 = vmatprep.mubr.f32.mxu0 %v1055
        %1507 = vmatmul.mubr.f32.gmra.mrb[0].mxu0 %v1054
        %v1508 = vpop.f32.mrb[0].mxu0
        %v1509 = vadd.f32 0.0, %v1508
        %v1510 = vpop.f32.mrb[0].mxu0
        %1511 = vmatprep.mubr.f32.mxu0 %v1059
        %1512 = vmatmul.mubr.f32.gmra.mrb[0].mxu0 %v1058
        %v1513 = vpop.f32.mrb[0].mxu0
        %v1514 = vadd.f32 0.0, %v1513
        %v1515 = vpop.f32.mrb[0].mxu0
        %1516 = vmatprep.mubr.f32.mxu0 %v1063
        %1517 = vmatmul.mubr.f32.gmra.mrb[0].mxu0 %v1062
        %v1518 = vpop.f32.mrb[0].mxu0
        %v1519 = vadd.f32 0.0, %v1518
        %v1520 = vpop.f32.mrb[0].mxu0
        %1521 = vmatprep.mubr.f32.mxu0 %v1067
        %1522 = vmatmul.mubr.f32.gmra.mrb[0].mxu0 %v1066
        %v1523 = vpop.f32.mrb[0].mxu0
        %v1524 = vadd.f32 0.0, %v1523
        %v1525 = vpop.f32.mrb[0].mxu0
        %1526 = vmatprep.mubr.f32.mxu0 %v1071
        %1527 = vmatmul.mubr.f32.gmra.mrb[0].mxu0 %v1070
        %v1528 = vpop.f32.mrb[0].mxu0
        %v1529 = vadd.f32 0.0, %v1528
        %v1530 = vpop.f32.mrb[0].mxu0
        %1531 = vdwg.mxu0
        %1532 = vmatprep.subr.mxu0 0.0
        %1533 = vmatpush1.msra.mxu0 %v849
        %1534 = vmatprep.subr.mxu0 0.0
        %1535 = vmatpush1.msra.mxu0 %v850
        %1536 = vmatprep.subr.mxu0 0.0
        %1537 = vmatpush1.msra.mxu0 %v851
        %1538 = vmatprep.subr.mxu0 0.0
        %1539 = vmatpush1.msra.mxu0 %v852
        %1540 = vmatprep.subr.mxu0 0.0
        %1541 = vmatpush1.msra.mxu0 %v853
        %1542 = vmatprep.subr.mxu0 0.0
        %1543 = vmatpush1.msra.mxu0 %v854
        %1544 = vmatprep.subr.mxu0 0.0
        %1545 = vmatpush1.msra.mxu0 %v855
        %1546 = vmatprep.subr.mxu0 0.0
        %1547 = vmatpush1.msra.mxu0 %v856
        %1548 = vmatprep.subr.mxu0 0.0
        %1549 = vmatpush1.msra.mxu0 %v857
        %1550 = vmatprep.subr.mxu0 0.0
        %1551 = vmatpush1.msra.mxu0 %v858
        %1552 = vmatprep.subr.mxu0 0.0
        %1553 = vmatpush1.msra.mxu0 %v859
        %1554 = vmatprep.subr.mxu0 0.0
        %1555 = vmatpush1.msra.mxu0 %v860
        %1556 = vmatprep.subr.mxu0 0.0
        %1557 = vmatpush1.msra.mxu0 %v861
        %1558 = vmatprep.subr.mxu0 0.0
        %1559 = vmatpush1.msra.mxu0 %v862
        %1560 = vmatprep.subr.mxu0 0.0
        %1561 = vmatpush1.msra.mxu0 %v863
        %1562 = vmatprep.subr.mxu0 0.0
        %1563 = vmatpush1.msra.mxu0 %v864
        %1564 = vmatprep.subr.mxu0 0.0
        %1565 = vmatpush1.msra.mxu0 %v865
        %1566 = vmatprep.subr.mxu0 0.0
        %1567 = vmatpush1.msra.mxu0 %v866
        %1568 = vmatprep.subr.mxu0 0.0
        %1569 = vmatpush1.msra.mxu0 %v867
        %1570 = vmatprep.subr.mxu0 0.0
        %1571 = vmatpush1.msra.mxu0 %v868
        %1572 = vmatprep.subr.mxu0 0.0
        %1573 = vmatpush1.msra.mxu0 %v869
        %1574 = vmatprep.subr.mxu0 0.0
        %1575 = vmatpush1.msra.mxu0 %v870
        %1576 = vmatprep.subr.mxu0 0.0
        %1577 = vmatpush1.msra.mxu0 %v871
        %1578 = vmatprep.subr.mxu0 0.0
        %1579 = vmatpush1.msra.mxu0 %v872
        %1580 = vmatprep.subr.mxu0 0.0
        %1581 = vmatpush1.msra.mxu0 %v873
        %1582 = vmatprep.subr.mxu0 0.0
        %1583 = vmatpush1.msra.mxu0 %v874
        %1584 = vmatprep.subr.mxu0 0.0
        %1585 = vmatpush1.msra.mxu0 %v875
        %1586 = vmatprep.subr.mxu0 0.0
        %1587 = vmatpush1.msra.mxu0 %v876
        %1588 = vmatprep.subr.mxu0 0.0
        %1589 = vmatpush1.msra.mxu0 %v877
        %1590 = vmatprep.subr.mxu0 0.0
        %1591 = vmatpush1.msra.mxu0 0.0
        %1592 = vmatprep.subr.mxu0 0.0
        %1593 = vmatpush1.msra.mxu0 0.0
        %1594 = vmatprep.subr.mxu0 0.0
        %1595 = vmatpush1.msra.mxu0 0.0
        %1596 = vmatprep.mubr.f32.mxu0 %v1076
        %1597 = vmatmul.mubr.f32.gmra.mrb[0].mxu0 %v880
        %v1598 = vpop.f32.mrb[0].mxu0
        %v1599 = vadd.f32 %v1289, %v1598
        %v1600 = vpop.f32.mrb[0].mxu0
        %1601 = vmatprep.mubr.f32.mxu0 %v1079
        %1602 = vmatmul.mubr.f32.gmra.mrb[0].mxu0 %v884
        %v1603 = vpop.f32.mrb[0].mxu0
        %v1604 = vadd.f32 %v1294, %v1603
        %v1605 = vpop.f32.mrb[0].mxu0
        %1606 = vmatprep.mubr.f32.mxu0 %v1082
        %1607 = vmatmul.mubr.f32.gmra.mrb[0].mxu0 %v888
        %v1608 = vpop.f32.mrb[0].mxu0
        %v1609 = vadd.f32 %v1299, %v1608
        %v1610 = vpop.f32.mrb[0].mxu0
        %1611 = vmatprep.mubr.f32.mxu0 %v1085
        %1612 = vmatmul.mubr.f32.gmra.mrb[0].mxu0 %v892
        %v1613 = vpop.f32.mrb[0].mxu0
        %v1614 = vadd.f32 %v1304, %v1613
        %v1615 = vpop.f32.mrb[0].mxu0
        %1616 = vmatprep.mubr.f32.mxu0 %v1088
        %1617 = vmatmul.mubr.f32.gmra.mrb[0].mxu0 %v896
        %v1618 = vpop.f32.mrb[0].mxu0
        %v1619 = vadd.f32 %v1309, %v1618
        %v1620 = vpop.f32.mrb[0].mxu0
        %1621 = vmatprep.mubr.f32.mxu0 %v1091
        %1622 = vmatmul.mubr.f32.gmra.mrb[0].mxu0 %v900
        %v1623 = vpop.f32.mrb[0].mxu0
        %v1624 = vadd.f32 %v1314, %v1623
        %v1625 = vpop.f32.mrb[0].mxu0
        %1626 = vmatprep.mubr.f32.mxu0 %v1094
        %1627 = vmatmul.mubr.f32.gmra.mrb[0].mxu0 %v904
        %v1628 = vpop.f32.mrb[0].mxu0
        %v1629 = vadd.f32 %v1319, %v1628
        %v1630 = vpop.f32.mrb[0].mxu0
        %1631 = vmatprep.mubr.f32.mxu0 %v1097
        %1632 = vmatmul.mubr.f32.gmra.mrb[0].mxu0 %v908
        %v1633 = vpop.f32.mrb[0].mxu0
        %v1634 = vadd.f32 %v1324, %v1633
        %v1635 = vpop.f32.mrb[0].mxu0
        %1636 = vmatprep.mubr.f32.mxu0 %v1100
        %1637 = vmatmul.mubr.f32.gmra.mrb[0].mxu0 %v912
        %v1638 = vpop.f32.mrb[0].mxu0
        %v1639 = vadd.f32 %v1329, %v1638
        %v1640 = vpop.f32.mrb[0].mxu0
        %1641 = vmatprep.mubr.f32.mxu0 %v1103
        %1642 = vmatmul.mubr.f32.gmra.mrb[0].mxu0 %v916
        %v1643 = vpop.f32.mrb[0].mxu0
        %v1644 = vadd.f32 %v1334, %v1643
        %v1645 = vpop.f32.mrb[0].mxu0
        %1646 = vmatprep.mubr.f32.mxu0 %v1106
        %1647 = vmatmul.mubr.f32.gmra.mrb[0].mxu0 %v920
        %v1648 = vpop.f32.mrb[0].mxu0
        %v1649 = vadd.f32 %v1339, %v1648
        %v1650 = vpop.f32.mrb[0].mxu0
        %1651 = vmatprep.mubr.f32.mxu0 %v1109
        %1652 = vmatmul.mubr.f32.gmra.mrb[0].mxu0 %v924
        %v1653 = vpop.f32.mrb[0].mxu0
        %v1654 = vadd.f32 %v1344, %v1653
        %v1655 = vpop.f32.mrb[0].mxu0
        %1656 = vmatprep.mubr.f32.mxu0 %v1112
        %1657 = vmatmul.mubr.f32.gmra.mrb[0].mxu0 %v928
        %v1658 = vpop.f32.mrb[0].mxu0
        %v1659 = vadd.f32 %v1349, %v1658
        %v1660 = vpop.f32.mrb[0].mxu0
        %1661 = vmatprep.mubr.f32.mxu0 %v1115
        %1662 = vmatmul.mubr.f32.gmra.mrb[0].mxu0 %v932
        %v1663 = vpop.f32.mrb[0].mxu0
        %v1664 = vadd.f32 %v1354, %v1663
        %v1665 = vpop.f32.mrb[0].mxu0
        %1666 = vmatprep.mubr.f32.mxu0 %v1118
        %1667 = vmatmul.mubr.f32.gmra.mrb[0].mxu0 %v936
        %v1668 = vpop.f32.mrb[0].mxu0
        %v1669 = vadd.f32 %v1359, %v1668
        %v1670 = vpop.f32.mrb[0].mxu0
        %1671 = vmatprep.mubr.f32.mxu0 %v1121
        %1672 = vmatmul.mubr.f32.gmra.mrb[0].mxu0 %v940
        %v1673 = vpop.f32.mrb[0].mxu0
        %v1674 = vadd.f32 %v1364, %v1673
        %v1675 = vpop.f32.mrb[0].mxu0
        %1676 = vmatprep.mubr.f32.mxu0 %v1124
        %1677 = vmatmul.mubr.f32.gmra.mrb[0].mxu0 %v944
        %v1678 = vpop.f32.mrb[0].mxu0
        %v1679 = vadd.f32 %v1369, %v1678
        %v1680 = vpop.f32.mrb[0].mxu0
        %1681 = vmatprep.mubr.f32.mxu0 %v1127
        %1682 = vmatmul.mubr.f32.gmra.mrb[0].mxu0 %v948
        %v1683 = vpop.f32.mrb[0].mxu0
        %v1684 = vadd.f32 %v1374, %v1683
        %v1685 = vpop.f32.mrb[0].mxu0
        %1686 = vmatprep.mubr.f32.mxu0 %v1130
        %1687 = vmatmul.mubr.f32.gmra.mrb[0].mxu0 %v952
        %v1688 = vpop.f32.mrb[0].mxu0
        %v1689 = vadd.f32 %v1379, %v1688
        %v1690 = vpop.f32.mrb[0].mxu0
        %1691 = vmatprep.mubr.f32.mxu0 %v1133
        %1692 = vmatmul.mubr.f32.gmra.mrb[0].mxu0 %v956
        %v1693 = vpop.f32.mrb[0].mxu0
        %v1694 = vadd.f32 %v1384, %v1693
        %v1695 = vpop.f32.mrb[0].mxu0
        %1696 = vmatprep.mubr.f32.mxu0 %v1136
        %1697 = vmatmul.mubr.f32.gmra.mrb[0].mxu0 %v960
        %v1698 = vpop.f32.mrb[0].mxu0
        %v1699 = vadd.f32 %v1389, %v1698
        %v1700 = vpop.f32.mrb[0].mxu0
        %1701 = vmatprep.mubr.f32.mxu0 %v1139
        %1702 = vmatmul.mubr.f32.gmra.mrb[0].mxu0 %v964
        %v1703 = vpop.f32.mrb[0].mxu0
        %v1704 = vadd.f32 %v1394, %v1703
        %v1705 = vpop.f32.mrb[0].mxu0
        %1706 = vmatprep.mubr.f32.mxu0 %v1142
        %1707 = vmatmul.mubr.f32.gmra.mrb[0].mxu0 %v968
        %v1708 = vpop.f32.mrb[0].mxu0
        %v1709 = vadd.f32 %v1399, %v1708
        %v1710 = vpop.f32.mrb[0].mxu0
        %1711 = vmatprep.mubr.f32.mxu0 %v1145
        %1712 = vmatmul.mubr.f32.gmra.mrb[0].mxu0 %v972
        %v1713 = vpop.f32.mrb[0].mxu0
        %v1714 = vadd.f32 %v1404, %v1713
        %v1715 = vpop.f32.mrb[0].mxu0
        %1716 = vmatprep.mubr.f32.mxu0 %v1148
        %1717 = vmatmul.mubr.f32.gmra.mrb[0].mxu0 %v976
        %v1718 = vpop.f32.mrb[0].mxu0
        %v1719 = vadd.f32 %v1409, %v1718
        %v1720 = vpop.f32.mrb[0].mxu0
        %1721 = vmatprep.mubr.f32.mxu0 %v1151
        %1722 = vmatmul.mubr.f32.gmra.mrb[0].mxu0 %v980
        %v1723 = vpop.f32.mrb[0].mxu0
        %v1724 = vadd.f32 %v1414, %v1723
        %v1725 = vpop.f32.mrb[0].mxu0
        %1726 = vmatprep.mubr.f32.mxu0 %v1154
        %1727 = vmatmul.mubr.f32.gmra.mrb[0].mxu0 %v984
        %v1728 = vpop.f32.mrb[0].mxu0
        %v1729 = vadd.f32 %v1419, %v1728
        %v1730 = vpop.f32.mrb[0].mxu0
        %1731 = vmatprep.mubr.f32.mxu0 %v1157
        %1732 = vmatmul.mubr.f32.gmra.mrb[0].mxu0 %v988
        %v1733 = vpop.f32.mrb[0].mxu0
        %v1734 = vadd.f32 %v1424, %v1733
        %v1735 = vpop.f32.mrb[0].mxu0
        %1736 = vmatprep.mubr.f32.mxu0 %v1160
        %1737 = vmatmul.mubr.f32.gmra.mrb[0].mxu0 %v992
        %v1738 = vpop.f32.mrb[0].mxu0
        %v1739 = vadd.f32 %v1429, %v1738
        %v1740 = vpop.f32.mrb[0].mxu0
        %1741 = vmatprep.mubr.f32.mxu0 %v1163
        %1742 = vmatmul.mubr.f32.gmra.mrb[0].mxu0 %v996
        %v1743 = vpop.f32.mrb[0].mxu0
        %v1744 = vadd.f32 %v1434, %v1743
        %v1745 = vpop.f32.mrb[0].mxu0
        %1746 = vmatprep.mubr.f32.mxu0 %v1166
        %1747 = vmatmul.mubr.f32.gmra.mrb[0].mxu0 %v1000
        %v1748 = vpop.f32.mrb[0].mxu0
        %v1749 = vadd.f32 %v1439, %v1748
        %v1750 = vpop.f32.mrb[0].mxu0
        %1751 = vmatprep.mubr.f32.mxu0 %v1169
        %1752 = vmatmul.mubr.f32.gmra.mrb[0].mxu0 %v1004
        %v1753 = vpop.f32.mrb[0].mxu0
        %v1754 = vadd.f32 %v1444, %v1753
        %v1755 = vpop.f32.mrb[0].mxu0
        %1756 = vmatprep.mubr.f32.mxu0 %v1172
        %1757 = vmatmul.mubr.f32.gmra.mrb[0].mxu0 %v1008
        %v1758 = vpop.f32.mrb[0].mxu0
        %v1759 = vadd.f32 %v1449, %v1758
        %v1760 = vpop.f32.mrb[0].mxu0
        %1761 = vmatprep.mubr.f32.mxu0 %v1175
        %1762 = vmatmul.mubr.f32.gmra.mrb[0].mxu0 %v1012
        %v1763 = vpop.f32.mrb[0].mxu0
        %v1764 = vadd.f32 %v1454, %v1763
        %v1765 = vpop.f32.mrb[0].mxu0
        %1766 = vmatprep.mubr.f32.mxu0 %v1178
        %1767 = vmatmul.mubr.f32.gmra.mrb[0].mxu0 %v1016
        %v1768 = vpop.f32.mrb[0].mxu0
        %v1769 = vadd.f32 %v1459, %v1768
        %v1770 = vpop.f32.mrb[0].mxu0
        %1771 = vmatprep.mubr.f32.mxu0 %v1181
        %1772 = vmatmul.mubr.f32.gmra.mrb[0].mxu0 %v1020
        %v1773 = vpop.f32.mrb[0].mxu0
        %v1774 = vadd.f32 %v1464, %v1773
        %v1775 = vpop.f32.mrb[0].mxu0
        %1776 = vmatprep.mubr.f32.mxu0 %v1184
        %1777 = vmatmul.mubr.f32.gmra.mrb[0].mxu0 %v1024
        %v1778 = vpop.f32.mrb[0].mxu0
        %v1779 = vadd.f32 %v1469, %v1778
        %v1780 = vpop.f32.mrb[0].mxu0
        %1781 = vmatprep.mubr.f32.mxu0 %v1187
        %1782 = vmatmul.mubr.f32.gmra.mrb[0].mxu0 %v1028
        %v1783 = vpop.f32.mrb[0].mxu0
        %v1784 = vadd.f32 %v1474, %v1783
        %v1785 = vpop.f32.mrb[0].mxu0
        %1786 = vmatprep.mubr.f32.mxu0 %v1190
        %1787 = vmatmul.mubr.f32.gmra.mrb[0].mxu0 %v1032
        %v1788 = vpop.f32.mrb[0].mxu0
        %v1789 = vadd.f32 %v1479, %v1788
        %v1790 = vpop.f32.mrb[0].mxu0
        %1791 = vmatprep.mubr.f32.mxu0 %v1193
        %1792 = vmatmul.mubr.f32.gmra.mrb[0].mxu0 %v1036
        %v1793 = vpop.f32.mrb[0].mxu0
        %v1794 = vadd.f32 %v1484, %v1793
        %v1795 = vpop.f32.mrb[0].mxu0
        %1796 = vmatprep.mubr.f32.mxu0 %v1196
        %1797 = vmatmul.mubr.f32.gmra.mrb[0].mxu0 %v1040
        %v1798 = vpop.f32.mrb[0].mxu0
        %v1799 = vadd.f32 %v1489, %v1798
        %v1800 = vpop.f32.mrb[0].mxu0
        %1801 = vmatprep.mubr.f32.mxu0 %v1199
        %1802 = vmatmul.mubr.f32.gmra.mrb[0].mxu0 %v1044
        %v1803 = vpop.f32.mrb[0].mxu0
        %v1804 = vadd.f32 %v1494, %v1803
        %v1805 = vpop.f32.mrb[0].mxu0
        %1806 = vmatprep.mubr.f32.mxu0 %v1202
        %1807 = vmatmul.mubr.f32.gmra.mrb[0].mxu0 %v1048
        %v1808 = vpop.f32.mrb[0].mxu0
        %v1809 = vadd.f32 %v1499, %v1808
        %v1810 = vpop.f32.mrb[0].mxu0
        %1811 = vmatprep.mubr.f32.mxu0 %v1205
        %1812 = vmatmul.mubr.f32.gmra.mrb[0].mxu0 %v1052
        %v1813 = vpop.f32.mrb[0].mxu0
        %v1814 = vadd.f32 %v1504, %v1813
        %v1815 = vpop.f32.mrb[0].mxu0
        %1816 = vmatprep.mubr.f32.mxu0 %v1208
        %1817 = vmatmul.mubr.f32.gmra.mrb[0].mxu0 %v1056
        %v1818 = vpop.f32.mrb[0].mxu0
        %v1819 = vadd.f32 %v1509, %v1818
        %v1820 = vpop.f32.mrb[0].mxu0
        %1821 = vmatprep.mubr.f32.mxu0 %v1211
        %1822 = vmatmul.mubr.f32.gmra.mrb[0].mxu0 %v1060
        %v1823 = vpop.f32.mrb[0].mxu0
        %v1824 = vadd.f32 %v1514, %v1823
        %v1825 = vpop.f32.mrb[0].mxu0
        %1826 = vmatprep.mubr.f32.mxu0 %v1214
        %1827 = vmatmul.mubr.f32.gmra.mrb[0].mxu0 %v1064
        %v1828 = vpop.f32.mrb[0].mxu0
        %v1829 = vadd.f32 %v1519, %v1828
        %v1830 = vpop.f32.mrb[0].mxu0
        %1831 = vmatprep.mubr.f32.mxu0 %v1217
        %1832 = vmatmul.mubr.f32.gmra.mrb[0].mxu0 %v1068
        %v1833 = vpop.f32.mrb[0].mxu0
        %v1834 = vadd.f32 %v1524, %v1833
        %v1835 = vpop.f32.mrb[0].mxu0
        %1836 = vmatprep.mubr.f32.mxu0 %v1220
        %1837 = vmatmul.mubr.f32.gmra.mrb[0].mxu0 %v1072
        %v1838 = vpop.f32.mrb[0].mxu0
        %v1839 = vadd.f32 %v1529, %v1838
        %v1840 = vpop.f32.mrb[0].mxu0
        %1841 = vdwg.mxu0
        %v1842 = vmax.f32 %v1599, 0.0
        %v1843 = vmax.f32 %v1604, 0.0
        %v1844 = vmax.f32 %v1609, 0.0
        %v1845 = vmax.f32 %v1614, 0.0
        %v1846 = vmax.f32 %v1619, 0.0
        %v1847 = vmax.f32 %v1624, 0.0
        %v1848 = vmax.f32 %v1629, 0.0
        %v1849 = vmax.f32 %v1634, 0.0
        %v1850 = vmax.f32 %v1639, 0.0
        %v1851 = vmax.f32 %v1644, 0.0
        %v1852 = vmax.f32 %v1649, 0.0
        %v1853 = vmax.f32 %v1654, 0.0
        %v1854 = vmax.f32 %v1659, 0.0
        %v1855 = vmax.f32 %v1664, 0.0
        %v1856 = vmax.f32 %v1669, 0.0
        %v1857 = vmax.f32 %v1674, 0.0
        %v1858 = vmax.f32 %v1679, 0.0
        %v1859 = vmax.f32 %v1684, 0.0
        %v1860 = vmax.f32 %v1689, 0.0
        %v1861 = vmax.f32 %v1694, 0.0
        %v1862 = vmax.f32 %v1699, 0.0
        %v1863 = vmax.f32 %v1704, 0.0
        %v1864 = vmax.f32 %v1709, 0.0
        %v1865 = vmax.f32 %v1714, 0.0
        %s1866 = sld [smem:[#allocation18]]
        %v1867 = vstv %s1866
        %v1868 = vmul.f32 %v1867, %v1842
        %v1869 = vmul.f32 %v1867, %v1843
        %v1870 = vmul.f32 %v1867, %v1844
        %v1871 = vmul.f32 %v1867, %v1845
        %s1872 = sld [smem:[#allocation18 + $0x1]]
        %v1873 = vstv %s1872
        %v1874 = vmul.f32 %v1873, %v1846
        %v1875 = vmul.f32 %v1873, %v1847
        %v1876 = vmul.f32 %v1873, %v1848
        %v1877 = vmul.f32 %v1873, %v1849
        %v1878 = vadd.f32 %v1868, %v1874
        %v1879 = vadd.f32 %v1869, %v1875
        %v1880 = vadd.f32 %v1870, %v1876
        %v1881 = vadd.f32 %v1871, %v1877
        %s1882 = sld [smem:[#allocation18 + $0x2]]
        %v1883 = vstv %s1882
        %v1884 = vmul.f32 %v1883, %v1850
        %v1885 = vmul.f32 %v1883, %v1851
        %v1886 = vmul.f32 %v1883, %v1852
        %v1887 = vmul.f32 %v1883, %v1853
        %v1888 = vadd.f32 %v1878, %v1884
        %v1889 = vadd.f32 %v1879, %v1885
        %v1890 = vadd.f32 %v1880, %v1886
        %v1891 = vadd.f32 %v1881, %v1887
        %s1892 = sld [smem:[#allocation18 + $0x3]]
        %v1893 = vstv %s1892
        %v1894 = vmul.f32 %v1893, %v1854
        %v1895 = vmul.f32 %v1893, %v1855
        %v1896 = vmul.f32 %v1893, %v1856
        %v1897 = vmul.f32 %v1893, %v1857
        %v1898 = vadd.f32 %v1888, %v1894
        %v1899 = vadd.f32 %v1889, %v1895
        %v1900 = vadd.f32 %v1890, %v1896
        %v1901 = vadd.f32 %v1891, %v1897
        %s1902 = sld [smem:[#allocation18 + $0x4]]
        %v1903 = vstv %s1902
        %v1904 = vmul.f32 %v1903, %v1858
        %v1905 = vmul.f32 %v1903, %v1859
        %v1906 = vmul.f32 %v1903, %v1860
        %v1907 = vmul.f32 %v1903, %v1861
        %v1908 = vadd.f32 %v1898, %v1904
        %v1909 = vadd.f32 %v1899, %v1905
        %v1910 = vadd.f32 %v1900, %v1906
        %v1911 = vadd.f32 %v1901, %v1907
        %s1912 = sld [smem:[#allocation18 + $0x5]]
        %v1913 = vstv %s1912
        %v1914 = vmul.f32 %v1913, %v1862
        %v1915 = vmul.f32 %v1913, %v1863
        %v1916 = vmul.f32 %v1913, %v1864
        %v1917 = vmul.f32 %v1913, %v1865
        %v1918 = vadd.f32 %v1908, %v1914
        %v1919 = vadd.f32 %v1909, %v1915
        %v1920 = vadd.f32 %v1910, %v1916
        %v1921 = vadd.f32 %v1911, %v1917
        %v1922 = vmax.f32 %v1719, 0.0
        %v1923 = vmax.f32 %v1724, 0.0
        %v1924 = vmax.f32 %v1729, 0.0
        %v1925 = vmax.f32 %v1734, 0.0
        %v1926 = vmax.f32 %v1739, 0.0
        %v1927 = vmax.f32 %v1744, 0.0
        %v1928 = vmax.f32 %v1749, 0.0
        %v1929 = vmax.f32 %v1754, 0.0
        %v1930 = vmax.f32 %v1759, 0.0
        %v1931 = vmax.f32 %v1764, 0.0
        %v1932 = vmax.f32 %v1769, 0.0
        %v1933 = vmax.f32 %v1774, 0.0
        %v1934 = vmax.f32 %v1779, 0.0
        %v1935 = vmax.f32 %v1784, 0.0
        %v1936 = vmax.f32 %v1789, 0.0
        %v1937 = vmax.f32 %v1794, 0.0
        %v1938 = vmax.f32 %v1799, 0.0
        %v1939 = vmax.f32 %v1804, 0.0
        %v1940 = vmax.f32 %v1809, 0.0
        %v1941 = vmax.f32 %v1814, 0.0
        %v1942 = vmax.f32 %v1819, 0.0
        %v1943 = vmax.f32 %v1824, 0.0
        %v1944 = vmax.f32 %v1829, 0.0
        %v1945 = vmax.f32 %v1834, 0.0
        %s1946 = sld [smem:[#allocation18 + $0x80]]
        %v1947 = vstv %s1946
        %v1948 = vmul.f32 %v1947, %v1922
        %v1949 = vmul.f32 %v1947, %v1923
        %v1950 = vmul.f32 %v1947, %v1924
        %v1951 = vmul.f32 %v1947, %v1925
        %s1952 = sld [smem:[#allocation18 + $0x81]]
        %v1953 = vstv %s1952
        %v1954 = vmul.f32 %v1953, %v1926
        %v1955 = vmul.f32 %v1953, %v1927
        %v1956 = vmul.f32 %v1953, %v1928
        %v1957 = vmul.f32 %v1953, %v1929
        %v1958 = vadd.f32 %v1948, %v1954
        %v1959 = vadd.f32 %v1949, %v1955
        %v1960 = vadd.f32 %v1950, %v1956
        %v1961 = vadd.f32 %v1951, %v1957
        %s1962 = sld [smem:[#allocation18 + $0x82]]
        %v1963 = vstv %s1962
        %v1964 = vmul.f32 %v1963, %v1930
        %v1965 = vmul.f32 %v1963, %v1931
        %v1966 = vmul.f32 %v1963, %v1932
        %v1967 = vmul.f32 %v1963, %v1933
        %v1968 = vadd.f32 %v1958, %v1964
        %v1969 = vadd.f32 %v1959, %v1965
        %v1970 = vadd.f32 %v1960, %v1966
        %v1971 = vadd.f32 %v1961, %v1967
        %s1972 = sld [smem:[#allocation18 + $0x83]]
        %v1973 = vstv %s1972
        %v1974 = vmul.f32 %v1973, %v1934
        %v1975 = vmul.f32 %v1973, %v1935
        %v1976 = vmul.f32 %v1973, %v1936
        %v1977 = vmul.f32 %v1973, %v1937
        %v1978 = vadd.f32 %v1968, %v1974
        %v1979 = vadd.f32 %v1969, %v1975
        %v1980 = vadd.f32 %v1970, %v1976
        %v1981 = vadd.f32 %v1971, %v1977
        %s1982 = sld [smem:[#allocation18 + $0x84]]
        %v1983 = vstv %s1982
        %v1984 = vmul.f32 %v1983, %v1938
        %v1985 = vmul.f32 %v1983, %v1939
        %v1986 = vmul.f32 %v1983, %v1940
        %v1987 = vmul.f32 %v1983, %v1941
        %v1988 = vadd.f32 %v1978, %v1984
        %v1989 = vadd.f32 %v1979, %v1985
        %v1990 = vadd.f32 %v1980, %v1986
        %v1991 = vadd.f32 %v1981, %v1987
        %s1992 = sld [smem:[#allocation18 + $0x85]]
        %v1993 = vstv %s1992
        %v1994 = vmul.f32 %v1993, %v1942
        %v1995 = vmul.f32 %v1993, %v1943
        %v1996 = vmul.f32 %v1993, %v1944
        %v1997 = vmul.f32 %v1993, %v1945
        %v1998 = vadd.f32 %v1988, %v1994
        %v1999 = vadd.f32 %v1989, %v1995
        %v2000 = vadd.f32 %v1990, %v1996
        %v2001 = vadd.f32 %v1991, %v1997
        %v2002 = vxor.u32 %v1839, 2147483648
        %v2003 = vmul.f32 %v2002, 1.442695
        %v2004 = vpow.pop %v2003
        %v2005 = vadd.f32 %v2004, 1.0
        %v2006 = vrcp.pop %v2005
        %v2007 = vmul.f32 1.0, %v2006
        %s2008 = sld [smem:[#allocation18 + $0x180]]
        %v2009 = vstv %s2008
        %v2010 = vmul.f32 %v2009, %v2007
        %s2011 = sld [smem:[#allocation18 + $0x181]]
        %v2012 = vstv %s2011
        %v2013 = vmul.f32 %v2012, %v2007
        %v2015 = vrot.slane %v2013, 1
        %v2017 = vadd.f32 %v2010, %v2015
        %s2018 = sld [smem:[#allocation18 + $0x182]]
        %v2019 = vstv %s2018
        %v2020 = vmul.f32 %v2019, %v2007
        %v2022 = vrot.slane %v2020, 2
        %v2024 = vadd.f32 %v2017, %v2022
        %s2025 = sld [smem:[#allocation18 + $0x183]]
        %v2026 = vstv %s2025
        %v2027 = vmul.f32 %v2026, %v2007
        %v2029 = vrot.slane %v2027, 3
        %v2031 = vadd.f32 %v2024, %v2029
        %s2032 = sld [smem:[#allocation18 + $0x184]]
        %v2033 = vstv %s2032
        %v2034 = vmul.f32 %v2033, %v2007
        %v2036 = vrot.slane %v2034, 4
        %v2038 = vadd.f32 %v2031, %v2036
        %s2039 = sld [smem:[#allocation18 + $0x185]]
        %v2040 = vstv %s2039
        %v2041 = vmul.f32 %v2040, %v2007
        %v2043 = vrot.slane %v2041, 5
        %v2045 = vadd.f32 %v2038, %v2043
        %2046 = vst.msk [vmem:[#allocation2] sm:$0xff] %vm462, 0.0
        %2047 = vst.msk [vmem:[#allocation2 + $0x8] sm:$0xff] %vm462, 0.0
        %2048 = vst.msk [vmem:[#allocation2 + $0x10] sm:$0xff] %vm462, 0.0
        %2049 = vst.msk [vmem:[#allocation2 + $0x18] sm:$0xff] %vm462, 0.0
        %2054 = vrot.lane.b32.xlu0 %v1918, 7
        %v2055 = vpop.permute.xlu0 %2054
        %2056 = vrot.lane.b32.xlu0 %v1919, 7
        %v2057 = vpop.permute.xlu0 %2056
        %2058 = vrot.lane.b32.xlu0 %v1920, 7
        %v2059 = vpop.permute.xlu0 %2058
        %2060 = vrot.lane.b32.xlu0 %v1921, 7
        %v2061 = vpop.permute.xlu0 %2060
        %vm2066 = vcmask 187448
        %2067 = vst.msk [vmem:[#allocation2] sm:$0xff] %vm2066, %v2055
        %2068 = vst.msk [vmem:[#allocation2 + $0x8] sm:$0xff] %vm2066, %v2057
        %2069 = vst.msk [vmem:[#allocation2 + $0x10] sm:$0xff] %vm2066, %v2059
        %2070 = vst.msk [vmem:[#allocation2 + $0x18] sm:$0xff] %vm2066, %v2061
        %v2071 = vld [vmem:[#allocation2] sm:$0xff]
        %v2072 = vld [vmem:[#allocation2 + $0x8] sm:$0xff]
        %v2073 = vld [vmem:[#allocation2 + $0x10] sm:$0xff]
        %v2074 = vld [vmem:[#allocation2 + $0x18] sm:$0xff]
        %2075 = vst.msk [vmem:[#allocation4] sm:$0xff] %vm458, %v2071
        %2076 = vst.msk [vmem:[#allocation4 + $0x8] sm:$0xff] %vm458, %v2072
        %2077 = vst.msk [vmem:[#allocation4 + $0x10] sm:$0xff] %vm458, %v2073
        %2078 = vst.msk [vmem:[#allocation4 + $0x18] sm:$0xff] %vm458, %v2074
        %v2079 = vld [vmem:[#allocation2] sm:$0xff]
        %v2080 = vld [vmem:[#allocation2 + $0x8] sm:$0xff]
        %v2081 = vld [vmem:[#allocation2 + $0x10] sm:$0xff]
        %v2082 = vld [vmem:[#allocation2 + $0x18] sm:$0xff]
        %2087 = vrot.lane.b32.xlu0 %v2079, 127
        %v2088 = vpop.permute.xlu0 %2087
        %2089 = vrot.lane.b32.xlu0 %v2080, 127
        %v2090 = vpop.permute.xlu0 %2089
        %2091 = vrot.lane.b32.xlu0 %v2081, 127
        %v2092 = vpop.permute.xlu0 %2091
        %2093 = vrot.lane.b32.xlu0 %v2082, 127
        %v2094 = vpop.permute.xlu0 %2093
        %2099 = vst.msk [vmem:[#allocation4 + $0x20] sm:$0xff] %vm458, %v2088
        %2100 = vst.msk [vmem:[#allocation4 + $0x28] sm:$0xff] %vm458, %v2090
        %2101 = vst.msk [vmem:[#allocation4 + $0x30] sm:$0xff] %vm458, %v2092
        %2102 = vst.msk [vmem:[#allocation4 + $0x38] sm:$0xff] %vm458, %v2094
        %v2103 = vld [vmem:[#allocation2] sm:$0xff]
        %v2104 = vld [vmem:[#allocation2 + $0x8] sm:$0xff]
        %v2105 = vld [vmem:[#allocation2 + $0x10] sm:$0xff]
        %v2106 = vld [vmem:[#allocation2 + $0x18] sm:$0xff]
        %2111 = vrot.lane.b32.xlu0 %v2103, 126
        %v2112 = vpop.permute.xlu0 %2111
        %2113 = vrot.lane.b32.xlu0 %v2104, 126
        %v2114 = vpop.permute.xlu0 %2113
        %2115 = vrot.lane.b32.xlu0 %v2105, 126
        %v2116 = vpop.permute.xlu0 %2115
        %2117 = vrot.lane.b32.xlu0 %v2106, 126
        %v2118 = vpop.permute.xlu0 %2117
        %2123 = vst.msk [vmem:[#allocation4 + $0x40] sm:$0xff] %vm458, %v2112
        %2124 = vst.msk [vmem:[#allocation4 + $0x48] sm:$0xff] %vm458, %v2114
        %2125 = vst.msk [vmem:[#allocation4 + $0x50] sm:$0xff] %vm458, %v2116
        %2126 = vst.msk [vmem:[#allocation4 + $0x58] sm:$0xff] %vm458, %v2118
        %v2127 = vld [vmem:[#allocation2] sm:$0xff]
        %v2128 = vld [vmem:[#allocation2 + $0x8] sm:$0xff]
        %v2129 = vld [vmem:[#allocation2 + $0x10] sm:$0xff]
        %v2130 = vld [vmem:[#allocation2 + $0x18] sm:$0xff]
        %2135 = vrot.lane.b32.xlu0 %v2127, 125
        %v2136 = vpop.permute.xlu0 %2135
        %2137 = vrot.lane.b32.xlu0 %v2128, 125
        %v2138 = vpop.permute.xlu0 %2137
        %2139 = vrot.lane.b32.xlu0 %v2129, 125
        %v2140 = vpop.permute.xlu0 %2139
        %2141 = vrot.lane.b32.xlu0 %v2130, 125
        %v2142 = vpop.permute.xlu0 %2141
        %2147 = vst.msk [vmem:[#allocation4 + $0x60] sm:$0xff] %vm458, %v2136
        %2148 = vst.msk [vmem:[#allocation4 + $0x68] sm:$0xff] %vm458, %v2138
        %2149 = vst.msk [vmem:[#allocation4 + $0x70] sm:$0xff] %vm458, %v2140
        %2150 = vst.msk [vmem:[#allocation4 + $0x78] sm:$0xff] %vm458, %v2142
        %v2151 = vld [vmem:[#allocation2] sm:$0xff]
        %v2152 = vld [vmem:[#allocation2 + $0x8] sm:$0xff]
        %v2153 = vld [vmem:[#allocation2 + $0x10] sm:$0xff]
        %v2154 = vld [vmem:[#allocation2 + $0x18] sm:$0xff]
        %2159 = vrot.lane.b32.xlu0 %v2151, 124
        %v2160 = vpop.permute.xlu0 %2159
        %2161 = vrot.lane.b32.xlu0 %v2152, 124
        %v2162 = vpop.permute.xlu0 %2161
        %2163 = vrot.lane.b32.xlu0 %v2153, 124
        %v2164 = vpop.permute.xlu0 %2163
        %2165 = vrot.lane.b32.xlu0 %v2154, 124
        %v2166 = vpop.permute.xlu0 %2165
        %2171 = vst.msk [vmem:[#allocation4 + $0x80] sm:$0xff] %vm458, %v2160
        %2172 = vst.msk [vmem:[#allocation4 + $0x88] sm:$0xff] %vm458, %v2162
        %2173 = vst.msk [vmem:[#allocation4 + $0x90] sm:$0xff] %vm458, %v2164
        %2174 = vst.msk [vmem:[#allocation4 + $0x98] sm:$0xff] %vm458, %v2166
        %v2175 = vld [vmem:[#allocation2] sm:$0xff]
        %v2176 = vld [vmem:[#allocation2 + $0x8] sm:$0xff]
        %v2177 = vld [vmem:[#allocation2 + $0x10] sm:$0xff]
        %v2178 = vld [vmem:[#allocation2 + $0x18] sm:$0xff]
        %2183 = vrot.lane.b32.xlu0 %v2175, 123
        %v2184 = vpop.permute.xlu0 %2183
        %2185 = vrot.lane.b32.xlu0 %v2176, 123
        %v2186 = vpop.permute.xlu0 %2185
        %2187 = vrot.lane.b32.xlu0 %v2177, 123
        %v2188 = vpop.permute.xlu0 %2187
        %2189 = vrot.lane.b32.xlu0 %v2178, 123
        %v2190 = vpop.permute.xlu0 %2189
        %2195 = vst.msk [vmem:[#allocation4 + $0xa0] sm:$0xff] %vm458, %v2184
        %2196 = vst.msk [vmem:[#allocation4 + $0xa8] sm:$0xff] %vm458, %v2186
        %2197 = vst.msk [vmem:[#allocation4 + $0xb0] sm:$0xff] %vm458, %v2188
        %2198 = vst.msk [vmem:[#allocation4 + $0xb8] sm:$0xff] %vm458, %v2190
        %v2199 = vld [vmem:[#allocation2] sm:$0xff]
        %v2200 = vld [vmem:[#allocation2 + $0x8] sm:$0xff]
        %v2201 = vld [vmem:[#allocation2 + $0x10] sm:$0xff]
        %v2202 = vld [vmem:[#allocation2 + $0x18] sm:$0xff]
        %2207 = vrot.lane.b32.xlu0 %v2199, 122
        %v2208 = vpop.permute.xlu0 %2207
        %2209 = vrot.lane.b32.xlu0 %v2200, 122
        %v2210 = vpop.permute.xlu0 %2209
        %2211 = vrot.lane.b32.xlu0 %v2201, 122
        %v2212 = vpop.permute.xlu0 %2211
        %2213 = vrot.lane.b32.xlu0 %v2202, 122
        %v2214 = vpop.permute.xlu0 %2213
        %2219 = vst.msk [vmem:[#allocation4 + $0xc0] sm:$0xff] %vm458, %v2208
        %2220 = vst.msk [vmem:[#allocation4 + $0xc8] sm:$0xff] %vm458, %v2210
        %2221 = vst.msk [vmem:[#allocation4 + $0xd0] sm:$0xff] %vm458, %v2212
        %2222 = vst.msk [vmem:[#allocation4 + $0xd8] sm:$0xff] %vm458, %v2214
        %v2223 = vld [vmem:[#allocation2] sm:$0xff]
        %v2224 = vld [vmem:[#allocation2 + $0x8] sm:$0xff]
        %v2225 = vld [vmem:[#allocation2 + $0x10] sm:$0xff]
        %v2226 = vld [vmem:[#allocation2 + $0x18] sm:$0xff]
        %2231 = vrot.lane.b32.xlu0 %v2223, 121
        %v2232 = vpop.permute.xlu0 %2231
        %2233 = vrot.lane.b32.xlu0 %v2224, 121
        %v2234 = vpop.permute.xlu0 %2233
        %2235 = vrot.lane.b32.xlu0 %v2225, 121
        %v2236 = vpop.permute.xlu0 %2235
        %2237 = vrot.lane.b32.xlu0 %v2226, 121
        %v2238 = vpop.permute.xlu0 %2237
        %2243 = vst.msk [vmem:[#allocation4 + $0xe0] sm:$0xff] %vm458, %v2232
        %2244 = vst.msk [vmem:[#allocation4 + $0xe8] sm:$0xff] %vm458, %v2234
        %2245 = vst.msk [vmem:[#allocation4 + $0xf0] sm:$0xff] %vm458, %v2236
        %2246 = vst.msk [vmem:[#allocation4 + $0xf8] sm:$0xff] %vm458, %v2238
        %v2247 = vld [vmem:[#allocation2] sm:$0xff]
        %v2248 = vld [vmem:[#allocation2 + $0x8] sm:$0xff]
        %v2249 = vld [vmem:[#allocation2 + $0x10] sm:$0xff]
        %v2250 = vld [vmem:[#allocation2 + $0x18] sm:$0xff]
        %2255 = vrot.lane.b32.xlu0 %v2247, 120
        %v2256 = vpop.permute.xlu0 %2255
        %2257 = vrot.lane.b32.xlu0 %v2248, 120
        %v2258 = vpop.permute.xlu0 %2257
        %2259 = vrot.lane.b32.xlu0 %v2249, 120
        %v2260 = vpop.permute.xlu0 %2259
        %2261 = vrot.lane.b32.xlu0 %v2250, 120
        %v2262 = vpop.permute.xlu0 %2261
        %2267 = vst.msk [vmem:[#allocation4 + $0x100] sm:$0xff] %vm458, %v2256
        %2268 = vst.msk [vmem:[#allocation4 + $0x108] sm:$0xff] %vm458, %v2258
        %2269 = vst.msk [vmem:[#allocation4 + $0x110] sm:$0xff] %vm458, %v2260
        %2270 = vst.msk [vmem:[#allocation4 + $0x118] sm:$0xff] %vm458, %v2262
        %v2271 = vld [vmem:[#allocation2] sm:$0xff]
        %v2272 = vld [vmem:[#allocation2 + $0x8] sm:$0xff]
        %v2273 = vld [vmem:[#allocation2 + $0x10] sm:$0xff]
        %v2274 = vld [vmem:[#allocation2 + $0x18] sm:$0xff]
        %2279 = vrot.lane.b32.xlu0 %v2271, 119
        %v2280 = vpop.permute.xlu0 %2279
        %2281 = vrot.lane.b32.xlu0 %v2272, 119
        %v2282 = vpop.permute.xlu0 %2281
        %2283 = vrot.lane.b32.xlu0 %v2273, 119
        %v2284 = vpop.permute.xlu0 %2283
        %2285 = vrot.lane.b32.xlu0 %v2274, 119
        %v2286 = vpop.permute.xlu0 %2285
        %2291 = vst.msk [vmem:[#allocation4 + $0x120] sm:$0xff] %vm458, %v2280
        %2292 = vst.msk [vmem:[#allocation4 + $0x128] sm:$0xff] %vm458, %v2282
        %2293 = vst.msk [vmem:[#allocation4 + $0x130] sm:$0xff] %vm458, %v2284
        %2294 = vst.msk [vmem:[#allocation4 + $0x138] sm:$0xff] %vm458, %v2286
        %v2295 = vld [vmem:[#allocation2] sm:$0xff]
        %v2296 = vld [vmem:[#allocation2 + $0x8] sm:$0xff]
        %v2297 = vld [vmem:[#allocation2 + $0x10] sm:$0xff]
        %v2298 = vld [vmem:[#allocation2 + $0x18] sm:$0xff]
        %2303 = vrot.lane.b32.xlu0 %v2295, 118
        %v2304 = vpop.permute.xlu0 %2303
        %2305 = vrot.lane.b32.xlu0 %v2296, 118
        %v2306 = vpop.permute.xlu0 %2305
        %2307 = vrot.lane.b32.xlu0 %v2297, 118
        %v2308 = vpop.permute.xlu0 %2307
        %2309 = vrot.lane.b32.xlu0 %v2298, 118
        %v2310 = vpop.permute.xlu0 %2309
        %2315 = vst.msk [vmem:[#allocation4 + $0x140] sm:$0xff] %vm458, %v2304
        %2316 = vst.msk [vmem:[#allocation4 + $0x148] sm:$0xff] %vm458, %v2306
        %2317 = vst.msk [vmem:[#allocation4 + $0x150] sm:$0xff] %vm458, %v2308
        %2318 = vst.msk [vmem:[#allocation4 + $0x158] sm:$0xff] %vm458, %v2310
        %v2319 = vld [vmem:[#allocation2] sm:$0xff]
        %v2320 = vld [vmem:[#allocation2 + $0x8] sm:$0xff]
        %v2321 = vld [vmem:[#allocation2 + $0x10] sm:$0xff]
        %v2322 = vld [vmem:[#allocation2 + $0x18] sm:$0xff]
        %2327 = vrot.lane.b32.xlu0 %v2319, 117
        %v2328 = vpop.permute.xlu0 %2327
        %2329 = vrot.lane.b32.xlu0 %v2320, 117
        %v2330 = vpop.permute.xlu0 %2329
        %2331 = vrot.lane.b32.xlu0 %v2321, 117
        %v2332 = vpop.permute.xlu0 %2331
        %2333 = vrot.lane.b32.xlu0 %v2322, 117
        %v2334 = vpop.permute.xlu0 %2333
        %2339 = vst.msk [vmem:[#allocation4 + $0x160] sm:$0xff] %vm458, %v2328
        %2340 = vst.msk [vmem:[#allocation4 + $0x168] sm:$0xff] %vm458, %v2330
        %2341 = vst.msk [vmem:[#allocation4 + $0x170] sm:$0xff] %vm458, %v2332
        %2342 = vst.msk [vmem:[#allocation4 + $0x178] sm:$0xff] %vm458, %v2334
        %v2343 = vld [vmem:[#allocation2] sm:$0xff]
        %v2344 = vld [vmem:[#allocation2 + $0x8] sm:$0xff]
        %v2345 = vld [vmem:[#allocation2 + $0x10] sm:$0xff]
        %v2346 = vld [vmem:[#allocation2 + $0x18] sm:$0xff]
        %2351 = vrot.lane.b32.xlu0 %v2343, 116
        %v2352 = vpop.permute.xlu0 %2351
        %2353 = vrot.lane.b32.xlu0 %v2344, 116
        %v2354 = vpop.permute.xlu0 %2353
        %2355 = vrot.lane.b32.xlu0 %v2345, 116
        %v2356 = vpop.permute.xlu0 %2355
        %2357 = vrot.lane.b32.xlu0 %v2346, 116
        %v2358 = vpop.permute.xlu0 %2357
        %2363 = vst.msk [vmem:[#allocation4 + $0x180] sm:$0xff] %vm458, %v2352
        %2364 = vst.msk [vmem:[#allocation4 + $0x188] sm:$0xff] %vm458, %v2354
        %2365 = vst.msk [vmem:[#allocation4 + $0x190] sm:$0xff] %vm458, %v2356
        %2366 = vst.msk [vmem:[#allocation4 + $0x198] sm:$0xff] %vm458, %v2358
        %v2367 = vld [vmem:[#allocation2] sm:$0xff]
        %v2368 = vld [vmem:[#allocation2 + $0x8] sm:$0xff]
        %v2369 = vld [vmem:[#allocation2 + $0x10] sm:$0xff]
        %v2370 = vld [vmem:[#allocation2 + $0x18] sm:$0xff]
        %2375 = vrot.lane.b32.xlu0 %v2367, 115
        %v2376 = vpop.permute.xlu0 %2375
        %2377 = vrot.lane.b32.xlu0 %v2368, 115
        %v2378 = vpop.permute.xlu0 %2377
        %2379 = vrot.lane.b32.xlu0 %v2369, 115
        %v2380 = vpop.permute.xlu0 %2379
        %2381 = vrot.lane.b32.xlu0 %v2370, 115
        %v2382 = vpop.permute.xlu0 %2381
        %2387 = vst.msk [vmem:[#allocation4 + $0x1a0] sm:$0xff] %vm458, %v2376
        %2388 = vst.msk [vmem:[#allocation4 + $0x1a8] sm:$0xff] %vm458, %v2378
        %2389 = vst.msk [vmem:[#allocation4 + $0x1b0] sm:$0xff] %vm458, %v2380
        %2390 = vst.msk [vmem:[#allocation4 + $0x1b8] sm:$0xff] %vm458, %v2382
        %v2391 = vld [vmem:[#allocation2] sm:$0xff]
        %v2392 = vld [vmem:[#allocation2 + $0x8] sm:$0xff]
        %v2393 = vld [vmem:[#allocation2 + $0x10] sm:$0xff]
        %v2394 = vld [vmem:[#allocation2 + $0x18] sm:$0xff]
        %2399 = vrot.lane.b32.xlu0 %v2391, 114
        %v2400 = vpop.permute.xlu0 %2399
        %2401 = vrot.lane.b32.xlu0 %v2392, 114
        %v2402 = vpop.permute.xlu0 %2401
        %2403 = vrot.lane.b32.xlu0 %v2393, 114
        %v2404 = vpop.permute.xlu0 %2403
        %2405 = vrot.lane.b32.xlu0 %v2394, 114
        %v2406 = vpop.permute.xlu0 %2405
        %2411 = vst.msk [vmem:[#allocation4 + $0x1c0] sm:$0xff] %vm458, %v2400
        %2412 = vst.msk [vmem:[#allocation4 + $0x1c8] sm:$0xff] %vm458, %v2402
        %2413 = vst.msk [vmem:[#allocation4 + $0x1d0] sm:$0xff] %vm458, %v2404
        %2414 = vst.msk [vmem:[#allocation4 + $0x1d8] sm:$0xff] %vm458, %v2406
        %v2415 = vld [vmem:[#allocation4] sm:$0xff]
        %v2416 = vld [vmem:[#allocation4 + $0x8] sm:$0xff]
        %v2417 = vld [vmem:[#allocation4 + $0x10] sm:$0xff]
        %v2418 = vld [vmem:[#allocation4 + $0x18] sm:$0xff]
        %v2419 = vld [vmem:[#allocation4 + $0x20] sm:$0xff]
        %v2420 = vld [vmem:[#allocation4 + $0x28] sm:$0xff]
        %v2421 = vld [vmem:[#allocation4 + $0x30] sm:$0xff]
        %v2422 = vld [vmem:[#allocation4 + $0x38] sm:$0xff]
        %v2423 = vld [vmem:[#allocation4 + $0x40] sm:$0xff]
        %v2424 = vld [vmem:[#allocation4 + $0x48] sm:$0xff]
        %v2425 = vld [vmem:[#allocation4 + $0x50] sm:$0xff]
        %v2426 = vld [vmem:[#allocation4 + $0x58] sm:$0xff]
        %v2427 = vld [vmem:[#allocation4 + $0x60] sm:$0xff]
        %v2428 = vld [vmem:[#allocation4 + $0x68] sm:$0xff]
        %v2429 = vld [vmem:[#allocation4 + $0x70] sm:$0xff]
        %v2430 = vld [vmem:[#allocation4 + $0x78] sm:$0xff]
        %v2431 = vld [vmem:[#allocation4 + $0x80] sm:$0xff]
        %v2432 = vld [vmem:[#allocation4 + $0x88] sm:$0xff]
        %v2433 = vld [vmem:[#allocation4 + $0x90] sm:$0xff]
        %v2434 = vld [vmem:[#allocation4 + $0x98] sm:$0xff]
        %v2435 = vld [vmem:[#allocation4 + $0xa0] sm:$0xff]
        %v2436 = vld [vmem:[#allocation4 + $0xa8] sm:$0xff]
        %v2437 = vld [vmem:[#allocation4 + $0xb0] sm:$0xff]
        %v2438 = vld [vmem:[#allocation4 + $0xb8] sm:$0xff]
        %v2439 = vld [vmem:[#allocation4 + $0xc0] sm:$0xff]
        %v2440 = vld [vmem:[#allocation4 + $0xc8] sm:$0xff]
        %v2441 = vld [vmem:[#allocation4 + $0xd0] sm:$0xff]
        %v2442 = vld [vmem:[#allocation4 + $0xd8] sm:$0xff]
        %v2443 = vld [vmem:[#allocation4 + $0xe0] sm:$0xff]
        %v2444 = vld [vmem:[#allocation4 + $0xe8] sm:$0xff]
        %v2445 = vld [vmem:[#allocation4 + $0xf0] sm:$0xff]
        %v2446 = vld [vmem:[#allocation4 + $0xf8] sm:$0xff]
        %v2447 = vld [vmem:[#allocation4 + $0x100] sm:$0xff]
        %v2448 = vld [vmem:[#allocation4 + $0x108] sm:$0xff]
        %v2449 = vld [vmem:[#allocation4 + $0x110] sm:$0xff]
        %v2450 = vld [vmem:[#allocation4 + $0x118] sm:$0xff]
        %v2451 = vld [vmem:[#allocation4 + $0x120] sm:$0xff]
        %v2452 = vld [vmem:[#allocation4 + $0x128] sm:$0xff]
        %v2453 = vld [vmem:[#allocation4 + $0x130] sm:$0xff]
        %v2454 = vld [vmem:[#allocation4 + $0x138] sm:$0xff]
        %v2455 = vld [vmem:[#allocation4 + $0x140] sm:$0xff]
        %v2456 = vld [vmem:[#allocation4 + $0x148] sm:$0xff]
        %v2457 = vld [vmem:[#allocation4 + $0x150] sm:$0xff]
        %v2458 = vld [vmem:[#allocation4 + $0x158] sm:$0xff]
        %v2459 = vld [vmem:[#allocation4 + $0x160] sm:$0xff]
        %v2460 = vld [vmem:[#allocation4 + $0x168] sm:$0xff]
        %v2461 = vld [vmem:[#allocation4 + $0x170] sm:$0xff]
        %v2462 = vld [vmem:[#allocation4 + $0x178] sm:$0xff]
        %v2463 = vld [vmem:[#allocation4 + $0x180] sm:$0xff]
        %v2464 = vld [vmem:[#allocation4 + $0x188] sm:$0xff]
        %v2465 = vld [vmem:[#allocation4 + $0x190] sm:$0xff]
        %v2466 = vld [vmem:[#allocation4 + $0x198] sm:$0xff]
        %v2467 = vld [vmem:[#allocation4 + $0x1a0] sm:$0xff]
        %v2468 = vld [vmem:[#allocation4 + $0x1a8] sm:$0xff]
        %v2469 = vld [vmem:[#allocation4 + $0x1b0] sm:$0xff]
        %v2470 = vld [vmem:[#allocation4 + $0x1b8] sm:$0xff]
        %v2471 = vld [vmem:[#allocation4 + $0x1c0] sm:$0xff]
        %v2472 = vld [vmem:[#allocation4 + $0x1c8] sm:$0xff]
        %v2473 = vld [vmem:[#allocation4 + $0x1d0] sm:$0xff]
        %v2474 = vld [vmem:[#allocation4 + $0x1d8] sm:$0xff]
        %v2475 = vld [vmem:[#allocation4 + $0x1e0] sm:$0xff]
        %v2476 = vld [vmem:[#allocation11] sm:$0xff]
        %v2477 = vld [vmem:[#allocation11 + $0x8] sm:$0xff]
        %v2478 = vld [vmem:[#allocation11 + $0x10] sm:$0xff]
        %v2479 = vld [vmem:[#allocation11 + $0x18] sm:$0xff]
        %v2480 = vld [vmem:[#allocation11 + $0x20] sm:$0xff]
        %v2481 = vld [vmem:[#allocation11 + $0x28] sm:$0xff]
        %v2482 = vld [vmem:[#allocation11 + $0x30] sm:$0xff]
        %v2483 = vld [vmem:[#allocation11 + $0x38] sm:$0xff]
        %v2484 = vld [vmem:[#allocation11 + $0x40] sm:$0xff]
        %v2485 = vld [vmem:[#allocation11 + $0x48] sm:$0xff]
        %v2486 = vld [vmem:[#allocation11 + $0x50] sm:$0xff]
        %v2487 = vld [vmem:[#allocation11 + $0x58] sm:$0xff]
        %v2488 = vld [vmem:[#allocation11 + $0x60] sm:$0xff]
        %v2489 = vld [vmem:[#allocation11 + $0x68] sm:$0xff]
        %v2490 = vld [vmem:[#allocation11 + $0x70] sm:$0xff]
        %v2491 = vld [vmem:[#allocation11 + $0x78] sm:$0xff]
        %v2492 = vld [vmem:[#allocation11 + $0x80] sm:$0xff]
        %v2493 = vld [vmem:[#allocation11 + $0x88] sm:$0xff]
        %v2494 = vld [vmem:[#allocation11 + $0x90] sm:$0xff]
        %v2495 = vld [vmem:[#allocation11 + $0x98] sm:$0xff]
        %v2496 = vld [vmem:[#allocation11 + $0xa0] sm:$0xff]
        %v2497 = vld [vmem:[#allocation11 + $0xa8] sm:$0xff]
        %v2498 = vld [vmem:[#allocation11 + $0xb0] sm:$0xff]
        %v2499 = vld [vmem:[#allocation11 + $0xb8] sm:$0xff]
        %v2500 = vld [vmem:[#allocation11 + $0xc0] sm:$0xff]
        %v2501 = vld [vmem:[#allocation11 + $0xc8] sm:$0xff]
        %v2502 = vld [vmem:[#allocation11 + $0xd0] sm:$0xff]
        %v2503 = vld [vmem:[#allocation11 + $0xd8] sm:$0xff]
        %v2504 = vld [vmem:[#allocation11 + $0xe0] sm:$0xff]
        %v2505 = vld [vmem:[#allocation11 + $0xe8] sm:$0xff]
        %v2506 = vld [vmem:[#allocation11 + $0xf0] sm:$0xff]
        %v2507 = vld [vmem:[#allocation11 + $0xf8] sm:$0xff]
        %v2508 = vld [vmem:[#allocation11 + $0x100] sm:$0xff]
        %v2509 = vld [vmem:[#allocation11 + $0x108] sm:$0xff]
        %v2510 = vld [vmem:[#allocation11 + $0x110] sm:$0xff]
        %v2511 = vld [vmem:[#allocation11 + $0x118] sm:$0xff]
        %v2512 = vld [vmem:[#allocation11 + $0x120] sm:$0xff]
        %v2513 = vld [vmem:[#allocation11 + $0x128] sm:$0xff]
        %v2514 = vld [vmem:[#allocation11 + $0x130] sm:$0xff]
        %v2515 = vld [vmem:[#allocation11 + $0x138] sm:$0xff]
        %v2516 = vld [vmem:[#allocation11 + $0x140] sm:$0xff]
        %v2517 = vld [vmem:[#allocation11 + $0x148] sm:$0xff]
        %v2518 = vld [vmem:[#allocation11 + $0x150] sm:$0xff]
        %v2519 = vld [vmem:[#allocation11 + $0x158] sm:$0xff]
        %v2520 = vld [vmem:[#allocation11 + $0x160] sm:$0xff]
        %v2521 = vld [vmem:[#allocation11 + $0x168] sm:$0xff]
        %v2522 = vld [vmem:[#allocation11 + $0x170] sm:$0xff]
        %v2523 = vld [vmem:[#allocation11 + $0x178] sm:$0xff]
        %v2524 = vld [vmem:[#allocation11 + $0x180] sm:$0xff]
        %v2525 = vld [vmem:[#allocation11 + $0x188] sm:$0xff]
        %v2526 = vld [vmem:[#allocation11 + $0x190] sm:$0xff]
        %v2527 = vld [vmem:[#allocation11 + $0x198] sm:$0xff]
        %v2528 = vld [vmem:[#allocation11 + $0x1a0] sm:$0xff]
        %v2529 = vld [vmem:[#allocation11 + $0x1a8] sm:$0xff]
        %v2530 = vld [vmem:[#allocation11 + $0x1b0] sm:$0xff]
        %v2531 = vld [vmem:[#allocation11 + $0x1b8] sm:$0xff]
        %v2532 = vld [vmem:[#allocation11 + $0x1c0] sm:$0xff]
        %v2533 = vld [vmem:[#allocation11 + $0x1c8] sm:$0xff]
        %v2534 = vld [vmem:[#allocation11 + $0x1d0] sm:$0xff]
        %v2535 = vld [vmem:[#allocation11 + $0x1d8] sm:$0xff]
        %v2536 = vld [vmem:[#allocation11 + $0x1e0] sm:$0xff]
        %v2537 = vld [vmem:[#allocation11 + $0x1e8] sm:$0xff]
        %v2538 = vld [vmem:[#allocation11 + $0x1f0] sm:$0xff]
        %v2539 = vld [vmem:[#allocation11 + $0x1f8] sm:$0xff]
        %v2540 = vld [vmem:[#allocation11 + $0x200] sm:$0xff]
        %v2541 = vld [vmem:[#allocation11 + $0x208] sm:$0xff]
        %v2542 = vld [vmem:[#allocation11 + $0x210] sm:$0xff]
        %v2543 = vld [vmem:[#allocation11 + $0x218] sm:$0xff]
        %v2544 = vld [vmem:[#allocation11 + $0x220] sm:$0xff]
        %v2545 = vld [vmem:[#allocation11 + $0x228] sm:$0xff]
        %v2546 = vld [vmem:[#allocation11 + $0x230] sm:$0xff]
        %v2547 = vld [vmem:[#allocation11 + $0x238] sm:$0xff]
        %v2548 = vld [vmem:[#allocation11 + $0x240] sm:$0xff]
        %v2549 = vld [vmem:[#allocation11 + $0x248] sm:$0xff]
        %v2550 = vld [vmem:[#allocation11 + $0x250] sm:$0xff]
        %v2551 = vld [vmem:[#allocation11 + $0x258] sm:$0xff]
        %v2552 = vld [vmem:[#allocation11 + $0x260] sm:$0xff]
        %v2553 = vld [vmem:[#allocation11 + $0x268] sm:$0xff]
        %v2554 = vld [vmem:[#allocation11 + $0x270] sm:$0xff]
        %v2555 = vld [vmem:[#allocation11 + $0x278] sm:$0xff]
        %v2556 = vld [vmem:[#allocation11 + $0x280] sm:$0xff]
        %v2557 = vld [vmem:[#allocation11 + $0x288] sm:$0xff]
        %v2558 = vld [vmem:[#allocation11 + $0x290] sm:$0xff]
        %v2559 = vld [vmem:[#allocation11 + $0x298] sm:$0xff]
        %v2560 = vld [vmem:[#allocation11 + $0x2a0] sm:$0xff]
        %v2561 = vld [vmem:[#allocation11 + $0x2a8] sm:$0xff]
        %v2562 = vld [vmem:[#allocation11 + $0x2b0] sm:$0xff]
        %v2563 = vld [vmem:[#allocation11 + $0x2b8] sm:$0xff]
        %v2564 = vld [vmem:[#allocation11 + $0x2c0] sm:$0xff]
        %v2565 = vld [vmem:[#allocation11 + $0x2c8] sm:$0xff]
        %v2566 = vld [vmem:[#allocation11 + $0x2d0] sm:$0xff]
        %v2567 = vld [vmem:[#allocation11 + $0x2d8] sm:$0xff]
        %v2568 = vld [vmem:[#allocation11 + $0x2e0] sm:$0xff]
        %v2569 = vld [vmem:[#allocation11 + $0x2e8] sm:$0xff]
        %v2570 = vld [vmem:[#allocation11 + $0x2f0] sm:$0xff]
        %v2571 = vld [vmem:[#allocation11 + $0x2f8] sm:$0xff]
        %v2572 = vld [vmem:[#allocation11 + $0x300] sm:$0xff]
        %v2573 = vld [vmem:[#allocation11 + $0x308] sm:$0xff]
        %v2574 = vld [vmem:[#allocation11 + $0x310] sm:$0xff]
        %v2575 = vld [vmem:[#allocation11 + $0x318] sm:$0xff]
        %v2577 = vsel %vm1074, %v2479, 0
        %v2580 = vsel %vm1074, %v2483, 0
        %v2583 = vsel %vm1074, %v2487, 0
        %v2586 = vsel %vm1074, %v2491, 0
        %v2589 = vsel %vm1074, %v2495, 0
        %v2592 = vsel %vm1074, %v2499, 0
        %v2595 = vsel %vm1074, %v2503, 0
        %v2598 = vsel %vm1074, %v2507, 0
        %v2601 = vsel %vm1074, %v2511, 0
        %v2604 = vsel %vm1074, %v2515, 0
        %v2607 = vsel %vm1074, %v2519, 0
        %v2610 = vsel %vm1074, %v2523, 0
        %v2613 = vsel %vm1074, %v2527, 0
        %v2616 = vsel %vm1074, %v2531, 0
        %v2619 = vsel %vm1074, %v2535, 0
        %v2622 = vsel %vm1074, %v2539, 0
        %v2625 = vsel %vm1074, %v2543, 0
        %v2628 = vsel %vm1074, %v2547, 0
        %v2631 = vsel %vm1074, %v2551, 0
        %v2634 = vsel %vm1074, %v2555, 0
        %v2637 = vsel %vm1074, %v2559, 0
        %v2640 = vsel %vm1074, %v2563, 0
        %v2643 = vsel %vm1074, %v2567, 0
        %v2646 = vsel %vm1074, %v2571, 0
        %v2649 = vsel %vm1074, %v2575, 0
        %2651 = vmatprep.subr.mxu0 0.0
        %2652 = vmatpush1.msra.mxu0 %v2415
        %2653 = vmatprep.subr.mxu0 0.0
        %2654 = vmatpush1.msra.mxu0 %v2416
        %2655 = vmatprep.subr.mxu0 0.0
        %2656 = vmatpush1.msra.mxu0 %v2417
        %2657 = vmatprep.subr.mxu0 0.0
        %2658 = vmatpush1.msra.mxu0 %v2418
        %2659 = vmatprep.subr.mxu0 0.0
        %2660 = vmatpush1.msra.mxu0 %v2419
        %2661 = vmatprep.subr.mxu0 0.0
        %2662 = vmatpush1.msra.mxu0 %v2420
        %2663 = vmatprep.subr.mxu0 0.0
        %2664 = vmatpush1.msra.mxu0 %v2421
        %2665 = vmatprep.subr.mxu0 0.0
        %2666 = vmatpush1.msra.mxu0 %v2422
        %2667 = vmatprep.subr.mxu0 0.0
        %2668 = vmatpush1.msra.mxu0 %v2423
        %2669 = vmatprep.subr.mxu0 0.0
        %2670 = vmatpush1.msra.mxu0 %v2424
        %2671 = vmatprep.subr.mxu0 0.0
        %2672 = vmatpush1.msra.mxu0 %v2425
        %2673 = vmatprep.subr.mxu0 0.0
        %2674 = vmatpush1.msra.mxu0 %v2426
        %2675 = vmatprep.subr.mxu0 0.0
        %2676 = vmatpush1.msra.mxu0 %v2427
        %2677 = vmatprep.subr.mxu0 0.0
        %2678 = vmatpush1.msra.mxu0 %v2428
        %2679 = vmatprep.subr.mxu0 0.0
        %2680 = vmatpush1.msra.mxu0 %v2429
        %2681 = vmatprep.subr.mxu0 0.0
        %2682 = vmatpush1.msra.mxu0 %v2430
        %2683 = vmatprep.subr.mxu0 0.0
        %2684 = vmatpush1.msra.mxu0 %v2431
        %2685 = vmatprep.subr.mxu0 0.0
        %2686 = vmatpush1.msra.mxu0 %v2432
        %2687 = vmatprep.subr.mxu0 0.0
        %2688 = vmatpush1.msra.mxu0 %v2433
        %2689 = vmatprep.subr.mxu0 0.0
        %2690 = vmatpush1.msra.mxu0 %v2434
        %2691 = vmatprep.subr.mxu0 0.0
        %2692 = vmatpush1.msra.mxu0 %v2435
        %2693 = vmatprep.subr.mxu0 0.0
        %2694 = vmatpush1.msra.mxu0 %v2436
        %2695 = vmatprep.subr.mxu0 0.0
        %2696 = vmatpush1.msra.mxu0 %v2437
        %2697 = vmatprep.subr.mxu0 0.0
        %2698 = vmatpush1.msra.mxu0 %v2438
        %2699 = vmatprep.subr.mxu0 0.0
        %2700 = vmatpush1.msra.mxu0 %v2439
        %2701 = vmatprep.subr.mxu0 0.0
        %2702 = vmatpush1.msra.mxu0 %v2440
        %2703 = vmatprep.subr.mxu0 0.0
        %2704 = vmatpush1.msra.mxu0 %v2441
        %2705 = vmatprep.subr.mxu0 0.0
        %2706 = vmatpush1.msra.mxu0 %v2442
        %2707 = vmatprep.subr.mxu0 0.0
        %2708 = vmatpush1.msra.mxu0 %v2443
        %2709 = vmatprep.subr.mxu0 0.0
        %2710 = vmatpush1.msra.mxu0 %v2444
        %2711 = vmatprep.subr.mxu0 0.0
        %2712 = vmatpush1.msra.mxu0 %v2445
        %2713 = vmatprep.subr.mxu0 0.0
        %2714 = vmatpush1.msra.mxu0 %v2446
        %2715 = vmatprep.mubr.f32.mxu0 %v2477
        %2716 = vmatmul.mubr.f32.gmra.mrb[0].mxu0 %v2476
        %v2717 = vpop.f32.mrb[0].mxu0
        %v2718 = vadd.f32 0.0, %v2717
        %v2719 = vpop.f32.mrb[0].mxu0
        %2720 = vmatprep.mubr.f32.mxu0 %v2481
        %2721 = vmatmul.mubr.f32.gmra.mrb[0].mxu0 %v2480
        %v2722 = vpop.f32.mrb[0].mxu0
        %v2723 = vadd.f32 0.0, %v2722
        %v2724 = vpop.f32.mrb[0].mxu0
        %2725 = vmatprep.mubr.f32.mxu0 %v2485
        %2726 = vmatmul.mubr.f32.gmra.mrb[0].mxu0 %v2484
        %v2727 = vpop.f32.mrb[0].mxu0
        %v2728 = vadd.f32 0.0, %v2727
        %v2729 = vpop.f32.mrb[0].mxu0
        %2730 = vmatprep.mubr.f32.mxu0 %v2489
        %2731 = vmatmul.mubr.f32.gmra.mrb[0].mxu0 %v2488
        %v2732 = vpop.f32.mrb[0].mxu0
        %v2733 = vadd.f32 0.0, %v2732
        %v2734 = vpop.f32.mrb[0].mxu0
        %2735 = vmatprep.mubr.f32.mxu0 %v2493
        %2736 = vmatmul.mubr.f32.gmra.mrb[0].mxu0 %v2492
        %v2737 = vpop.f32.mrb[0].mxu0
        %v2738 = vadd.f32 0.0, %v2737
        %v2739 = vpop.f32.mrb[0].mxu0
        %2740 = vmatprep.mubr.f32.mxu0 %v2497
        %2741 = vmatmul.mubr.f32.gmra.mrb[0].mxu0 %v2496
        %v2742 = vpop.f32.mrb[0].mxu0
        %v2743 = vadd.f32 0.0, %v2742
        %v2744 = vpop.f32.mrb[0].mxu0
        %2745 = vmatprep.mubr.f32.mxu0 %v2501
        %2746 = vmatmul.mubr.f32.gmra.mrb[0].mxu0 %v2500
        %v2747 = vpop.f32.mrb[0].mxu0
        %v2748 = vadd.f32 0.0, %v2747
        %v2749 = vpop.f32.mrb[0].mxu0
        %2750 = vmatprep.mubr.f32.mxu0 %v2505
        %2751 = vmatmul.mubr.f32.gmra.mrb[0].mxu0 %v2504
        %v2752 = vpop.f32.mrb[0].mxu0
        %v2753 = vadd.f32 0.0, %v2752
        %v2754 = vpop.f32.mrb[0].mxu0
        %2755 = vmatprep.mubr.f32.mxu0 %v2509
        %2756 = vmatmul.mubr.f32.gmra.mrb[0].mxu0 %v2508
        %v2757 = vpop.f32.mrb[0].mxu0
        %v2758 = vadd.f32 0.0, %v2757
        %v2759 = vpop.f32.mrb[0].mxu0
        %2760 = vmatprep.mubr.f32.mxu0 %v2513
        %2761 = vmatmul.mubr.f32.gmra.mrb[0].mxu0 %v2512
        %v2762 = vpop.f32.mrb[0].mxu0
        %v2763 = vadd.f32 0.0, %v2762
        %v2764 = vpop.f32.mrb[0].mxu0
        %2765 = vmatprep.mubr.f32.mxu0 %v2517
        %2766 = vmatmul.mubr.f32.gmra.mrb[0].mxu0 %v2516
        %v2767 = vpop.f32.mrb[0].mxu0
        %v2768 = vadd.f32 0.0, %v2767
        %v2769 = vpop.f32.mrb[0].mxu0
        %2770 = vmatprep.mubr.f32.mxu0 %v2521
        %2771 = vmatmul.mubr.f32.gmra.mrb[0].mxu0 %v2520
        %v2772 = vpop.f32.mrb[0].mxu0
        %v2773 = vadd.f32 0.0, %v2772
        %v2774 = vpop.f32.mrb[0].mxu0
        %2775 = vmatprep.mubr.f32.mxu0 %v2525
        %2776 = vmatmul.mubr.f32.gmra.mrb[0].mxu0 %v2524
        %v2777 = vpop.f32.mrb[0].mxu0
        %v2778 = vadd.f32 0.0, %v2777
        %v2779 = vpop.f32.mrb[0].mxu0
        %2780 = vmatprep.mubr.f32.mxu0 %v2529
        %2781 = vmatmul.mubr.f32.gmra.mrb[0].mxu0 %v2528
        %v2782 = vpop.f32.mrb[0].mxu0
        %v2783 = vadd.f32 0.0, %v2782
        %v2784 = vpop.f32.mrb[0].mxu0
        %2785 = vmatprep.mubr.f32.mxu0 %v2533
        %2786 = vmatmul.mubr.f32.gmra.mrb[0].mxu0 %v2532
        %v2787 = vpop.f32.mrb[0].mxu0
        %v2788 = vadd.f32 0.0, %v2787
        %v2789 = vpop.f32.mrb[0].mxu0
        %2790 = vmatprep.mubr.f32.mxu0 %v2537
        %2791 = vmatmul.mubr.f32.gmra.mrb[0].mxu0 %v2536
        %v2792 = vpop.f32.mrb[0].mxu0
        %v2793 = vadd.f32 0.0, %v2792
        %v2794 = vpop.f32.mrb[0].mxu0
        %2795 = vmatprep.mubr.f32.mxu0 %v2541
        %2796 = vmatmul.mubr.f32.gmra.mrb[0].mxu0 %v2540
        %v2797 = vpop.f32.mrb[0].mxu0
        %v2798 = vadd.f32 0.0, %v2797
        %v2799 = vpop.f32.mrb[0].mxu0
        %2800 = vmatprep.mubr.f32.mxu0 %v2545
        %2801 = vmatmul.mubr.f32.gmra.mrb[0].mxu0 %v2544
        %v2802 = vpop.f32.mrb[0].mxu0
        %v2803 = vadd.f32 0.0, %v2802
        %v2804 = vpop.f32.mrb[0].mxu0
        %2805 = vmatprep.mubr.f32.mxu0 %v2549
        %2806 = vmatmul.mubr.f32.gmra.mrb[0].mxu0 %v2548
        %v2807 = vpop.f32.mrb[0].mxu0
        %v2808 = vadd.f32 0.0, %v2807
        %v2809 = vpop.f32.mrb[0].mxu0
        %2810 = vmatprep.mubr.f32.mxu0 %v2553
        %2811 = vmatmul.mubr.f32.gmra.mrb[0].mxu0 %v2552
        %v2812 = vpop.f32.mrb[0].mxu0
        %v2813 = vadd.f32 0.0, %v2812
        %v2814 = vpop.f32.mrb[0].mxu0
        %2815 = vmatprep.mubr.f32.mxu0 %v2557
        %2816 = vmatmul.mubr.f32.gmra.mrb[0].mxu0 %v2556
        %v2817 = vpop.f32.mrb[0].mxu0
        %v2818 = vadd.f32 0.0, %v2817
        %v2819 = vpop.f32.mrb[0].mxu0
        %2820 = vmatprep.mubr.f32.mxu0 %v2561
        %2821 = vmatmul.mubr.f32.gmra.mrb[0].mxu0 %v2560
        %v2822 = vpop.f32.mrb[0].mxu0
        %v2823 = vadd.f32 0.0, %v2822
        %v2824 = vpop.f32.mrb[0].mxu0
        %2825 = vmatprep.mubr.f32.mxu0 %v2565
        %2826 = vmatmul.mubr.f32.gmra.mrb[0].mxu0 %v2564
        %v2827 = vpop.f32.mrb[0].mxu0
        %v2828 = vadd.f32 0.0, %v2827
        %v2829 = vpop.f32.mrb[0].mxu0
        %2830 = vmatprep.mubr.f32.mxu0 %v2569
        %2831 = vmatmul.mubr.f32.gmra.mrb[0].mxu0 %v2568
        %v2832 = vpop.f32.mrb[0].mxu0
        %v2833 = vadd.f32 0.0, %v2832
        %v2834 = vpop.f32.mrb[0].mxu0
        %2835 = vmatprep.mubr.f32.mxu0 %v2573
        %2836 = vmatmul.mubr.f32.gmra.mrb[0].mxu0 %v2572
        %v2837 = vpop.f32.mrb[0].mxu0
        %v2838 = vadd.f32 0.0, %v2837
        %v2839 = vpop.f32.mrb[0].mxu0
        %2840 = vdwg.mxu0
        %2841 = vmatprep.subr.mxu0 0.0
        %2842 = vmatpush1.msra.mxu0 %v2447
        %2843 = vmatprep.subr.mxu0 0.0
        %2844 = vmatpush1.msra.mxu0 %v2448
        %2845 = vmatprep.subr.mxu0 0.0
        %2846 = vmatpush1.msra.mxu0 %v2449
        %2847 = vmatprep.subr.mxu0 0.0
        %2848 = vmatpush1.msra.mxu0 %v2450
        %2849 = vmatprep.subr.mxu0 0.0
        %2850 = vmatpush1.msra.mxu0 %v2451
        %2851 = vmatprep.subr.mxu0 0.0
        %2852 = vmatpush1.msra.mxu0 %v2452
        %2853 = vmatprep.subr.mxu0 0.0
        %2854 = vmatpush1.msra.mxu0 %v2453
        %2855 = vmatprep.subr.mxu0 0.0
        %2856 = vmatpush1.msra.mxu0 %v2454
        %2857 = vmatprep.subr.mxu0 0.0
        %2858 = vmatpush1.msra.mxu0 %v2455
        %2859 = vmatprep.subr.mxu0 0.0
        %2860 = vmatpush1.msra.mxu0 %v2456
        %2861 = vmatprep.subr.mxu0 0.0
        %2862 = vmatpush1.msra.mxu0 %v2457
        %2863 = vmatprep.subr.mxu0 0.0
        %2864 = vmatpush1.msra.mxu0 %v2458
        %2865 = vmatprep.subr.mxu0 0.0
        %2866 = vmatpush1.msra.mxu0 %v2459
        %2867 = vmatprep.subr.mxu0 0.0
        %2868 = vmatpush1.msra.mxu0 %v2460
        %2869 = vmatprep.subr.mxu0 0.0
        %2870 = vmatpush1.msra.mxu0 %v2461
        %2871 = vmatprep.subr.mxu0 0.0
        %2872 = vmatpush1.msra.mxu0 %v2462
        %2873 = vmatprep.subr.mxu0 0.0
        %2874 = vmatpush1.msra.mxu0 %v2463
        %2875 = vmatprep.subr.mxu0 0.0
        %2876 = vmatpush1.msra.mxu0 %v2464
        %2877 = vmatprep.subr.mxu0 0.0
        %2878 = vmatpush1.msra.mxu0 %v2465
        %2879 = vmatprep.subr.mxu0 0.0
        %2880 = vmatpush1.msra.mxu0 %v2466
        %2881 = vmatprep.subr.mxu0 0.0
        %2882 = vmatpush1.msra.mxu0 %v2467
        %2883 = vmatprep.subr.mxu0 0.0
        %2884 = vmatpush1.msra.mxu0 %v2468
        %2885 = vmatprep.subr.mxu0 0.0
        %2886 = vmatpush1.msra.mxu0 %v2469
        %2887 = vmatprep.subr.mxu0 0.0
        %2888 = vmatpush1.msra.mxu0 %v2470
        %2889 = vmatprep.subr.mxu0 0.0
        %2890 = vmatpush1.msra.mxu0 %v2471
        %2891 = vmatprep.subr.mxu0 0.0
        %2892 = vmatpush1.msra.mxu0 %v2472
        %2893 = vmatprep.subr.mxu0 0.0
        %2894 = vmatpush1.msra.mxu0 %v2473
        %2895 = vmatprep.subr.mxu0 0.0
        %2896 = vmatpush1.msra.mxu0 %v2474
        %2897 = vmatprep.subr.mxu0 0.0
        %2898 = vmatpush1.msra.mxu0 %v2475
        %2899 = vmatprep.subr.mxu0 0.0
        %2900 = vmatpush1.msra.mxu0 0.0
        %2901 = vmatprep.subr.mxu0 0.0
        %2902 = vmatpush1.msra.mxu0 0.0
        %2903 = vmatprep.subr.mxu0 0.0
        %2904 = vmatpush1.msra.mxu0 0.0
        %2905 = vmatprep.mubr.f32.mxu0 %v2577
        %2906 = vmatmul.mubr.f32.gmra.mrb[0].mxu0 %v2478
        %v2907 = vpop.f32.mrb[0].mxu0
        %v2908 = vadd.f32 %v2718, %v2907
        %v2909 = vpop.f32.mrb[0].mxu0
        %2910 = vmatprep.mubr.f32.mxu0 %v2580
        %2911 = vmatmul.mubr.f32.gmra.mrb[0].mxu0 %v2482
        %v2912 = vpop.f32.mrb[0].mxu0
        %v2913 = vadd.f32 %v2723, %v2912
        %v2914 = vpop.f32.mrb[0].mxu0
        %2915 = vmatprep.mubr.f32.mxu0 %v2583
        %2916 = vmatmul.mubr.f32.gmra.mrb[0].mxu0 %v2486
        %v2917 = vpop.f32.mrb[0].mxu0
        %v2918 = vadd.f32 %v2728, %v2917
        %v2919 = vpop.f32.mrb[0].mxu0
        %2920 = vmatprep.mubr.f32.mxu0 %v2586
        %2921 = vmatmul.mubr.f32.gmra.mrb[0].mxu0 %v2490
        %v2922 = vpop.f32.mrb[0].mxu0
        %v2923 = vadd.f32 %v2733, %v2922
        %v2924 = vpop.f32.mrb[0].mxu0
        %2925 = vmatprep.mubr.f32.mxu0 %v2589
        %2926 = vmatmul.mubr.f32.gmra.mrb[0].mxu0 %v2494
        %v2927 = vpop.f32.mrb[0].mxu0
        %v2928 = vadd.f32 %v2738, %v2927
        %v2929 = vpop.f32.mrb[0].mxu0
        %2930 = vmatprep.mubr.f32.mxu0 %v2592
        %2931 = vmatmul.mubr.f32.gmra.mrb[0].mxu0 %v2498
        %v2932 = vpop.f32.mrb[0].mxu0
        %v2933 = vadd.f32 %v2743, %v2932
        %v2934 = vpop.f32.mrb[0].mxu0
        %2935 = vmatprep.mubr.f32.mxu0 %v2595
        %2936 = vmatmul.mubr.f32.gmra.mrb[0].mxu0 %v2502
        %v2937 = vpop.f32.mrb[0].mxu0
        %v2938 = vadd.f32 %v2748, %v2937
        %v2939 = vpop.f32.mrb[0].mxu0
        %2940 = vmatprep.mubr.f32.mxu0 %v2598
        %2941 = vmatmul.mubr.f32.gmra.mrb[0].mxu0 %v2506
        %v2942 = vpop.f32.mrb[0].mxu0
        %v2943 = vadd.f32 %v2753, %v2942
        %v2944 = vpop.f32.mrb[0].mxu0
        %2945 = vmatprep.mubr.f32.mxu0 %v2601
        %2946 = vmatmul.mubr.f32.gmra.mrb[0].mxu0 %v2510
        %v2947 = vpop.f32.mrb[0].mxu0
        %v2948 = vadd.f32 %v2758, %v2947
        %v2949 = vpop.f32.mrb[0].mxu0
        %2950 = vmatprep.mubr.f32.mxu0 %v2604
        %2951 = vmatmul.mubr.f32.gmra.mrb[0].mxu0 %v2514
        %v2952 = vpop.f32.mrb[0].mxu0
        %v2953 = vadd.f32 %v2763, %v2952
        %v2954 = vpop.f32.mrb[0].mxu0
        %2955 = vmatprep.mubr.f32.mxu0 %v2607
        %2956 = vmatmul.mubr.f32.gmra.mrb[0].mxu0 %v2518
        %v2957 = vpop.f32.mrb[0].mxu0
        %v2958 = vadd.f32 %v2768, %v2957
        %v2959 = vpop.f32.mrb[0].mxu0
        %2960 = vmatprep.mubr.f32.mxu0 %v2610
        %2961 = vmatmul.mubr.f32.gmra.mrb[0].mxu0 %v2522
        %v2962 = vpop.f32.mrb[0].mxu0
        %v2963 = vadd.f32 %v2773, %v2962
        %v2964 = vpop.f32.mrb[0].mxu0
        %2965 = vmatprep.mubr.f32.mxu0 %v2613
        %2966 = vmatmul.mubr.f32.gmra.mrb[0].mxu0 %v2526
        %v2967 = vpop.f32.mrb[0].mxu0
        %v2968 = vadd.f32 %v2778, %v2967
        %v2969 = vpop.f32.mrb[0].mxu0
        %2970 = vmatprep.mubr.f32.mxu0 %v2616
        %2971 = vmatmul.mubr.f32.gmra.mrb[0].mxu0 %v2530
        %v2972 = vpop.f32.mrb[0].mxu0
        %v2973 = vadd.f32 %v2783, %v2972
        %v2974 = vpop.f32.mrb[0].mxu0
        %2975 = vmatprep.mubr.f32.mxu0 %v2619
        %2976 = vmatmul.mubr.f32.gmra.mrb[0].mxu0 %v2534
        %v2977 = vpop.f32.mrb[0].mxu0
        %v2978 = vadd.f32 %v2788, %v2977
        %v2979 = vpop.f32.mrb[0].mxu0
        %2980 = vmatprep.mubr.f32.mxu0 %v2622
        %2981 = vmatmul.mubr.f32.gmra.mrb[0].mxu0 %v2538
        %v2982 = vpop.f32.mrb[0].mxu0
        %v2983 = vadd.f32 %v2793, %v2982
        %v2984 = vpop.f32.mrb[0].mxu0
        %2985 = vmatprep.mubr.f32.mxu0 %v2625
        %2986 = vmatmul.mubr.f32.gmra.mrb[0].mxu0 %v2542
        %v2987 = vpop.f32.mrb[0].mxu0
        %v2988 = vadd.f32 %v2798, %v2987
        %v2989 = vpop.f32.mrb[0].mxu0
        %2990 = vmatprep.mubr.f32.mxu0 %v2628
        %2991 = vmatmul.mubr.f32.gmra.mrb[0].mxu0 %v2546
        %v2992 = vpop.f32.mrb[0].mxu0
        %v2993 = vadd.f32 %v2803, %v2992
        %v2994 = vpop.f32.mrb[0].mxu0
        %2995 = vmatprep.mubr.f32.mxu0 %v2631
        %2996 = vmatmul.mubr.f32.gmra.mrb[0].mxu0 %v2550
        %v2997 = vpop.f32.mrb[0].mxu0
        %v2998 = vadd.f32 %v2808, %v2997
        %v2999 = vpop.f32.mrb[0].mxu0
        %3000 = vmatprep.mubr.f32.mxu0 %v2634
        %3001 = vmatmul.mubr.f32.gmra.mrb[0].mxu0 %v2554
        %v3002 = vpop.f32.mrb[0].mxu0
        %v3003 = vadd.f32 %v2813, %v3002
        %v3004 = vpop.f32.mrb[0].mxu0
        %3005 = vmatprep.mubr.f32.mxu0 %v2637
        %3006 = vmatmul.mubr.f32.gmra.mrb[0].mxu0 %v2558
        %v3007 = vpop.f32.mrb[0].mxu0
        %v3008 = vadd.f32 %v2818, %v3007
        %v3009 = vpop.f32.mrb[0].mxu0
        %3010 = vmatprep.mubr.f32.mxu0 %v2640
        %3011 = vmatmul.mubr.f32.gmra.mrb[0].mxu0 %v2562
        %v3012 = vpop.f32.mrb[0].mxu0
        %v3013 = vadd.f32 %v2823, %v3012
        %v3014 = vpop.f32.mrb[0].mxu0
        %3015 = vmatprep.mubr.f32.mxu0 %v2643
        %3016 = vmatmul.mubr.f32.gmra.mrb[0].mxu0 %v2566
        %v3017 = vpop.f32.mrb[0].mxu0
        %v3018 = vadd.f32 %v2828, %v3017
        %v3019 = vpop.f32.mrb[0].mxu0
        %3020 = vmatprep.mubr.f32.mxu0 %v2646
        %3021 = vmatmul.mubr.f32.gmra.mrb[0].mxu0 %v2570
        %v3022 = vpop.f32.mrb[0].mxu0
        %v3023 = vadd.f32 %v2833, %v3022
        %v3024 = vpop.f32.mrb[0].mxu0
        %3025 = vmatprep.mubr.f32.mxu0 %v2649
        %3026 = vmatmul.mubr.f32.gmra.mrb[0].mxu0 %v2574
        %v3027 = vpop.f32.mrb[0].mxu0
        %v3028 = vadd.f32 %v2838, %v3027
        %v3029 = vpop.f32.mrb[0].mxu0
        %3030 = vdwg.mxu0
        %v3031 = vmax.f32 %v2908, 0.0
        %v3032 = vmax.f32 %v2913, 0.0
        %v3033 = vmax.f32 %v2918, 0.0
        %v3034 = vmax.f32 %v2923, 0.0
        %v3035 = vmax.f32 %v2928, 0.0
        %v3036 = vmax.f32 %v2933, 0.0
        %v3037 = vmax.f32 %v2938, 0.0
        %v3038 = vmax.f32 %v2943, 0.0
        %v3039 = vmax.f32 %v2948, 0.0
        %v3040 = vmax.f32 %v2953, 0.0
        %v3041 = vmax.f32 %v2958, 0.0
        %v3042 = vmax.f32 %v2963, 0.0
        %v3043 = vmax.f32 %v2968, 0.0
        %v3044 = vmax.f32 %v2973, 0.0
        %v3045 = vmax.f32 %v2978, 0.0
        %v3046 = vmax.f32 %v2983, 0.0
        %v3047 = vmax.f32 %v2988, 0.0
        %v3048 = vmax.f32 %v2993, 0.0
        %v3049 = vmax.f32 %v2998, 0.0
        %v3050 = vmax.f32 %v3003, 0.0
        %v3051 = vmax.f32 %v3008, 0.0
        %v3052 = vmax.f32 %v3013, 0.0
        %v3053 = vmax.f32 %v3018, 0.0
        %v3054 = vmax.f32 %v3023, 0.0
        %s3055 = sld [smem:[#allocation18 + $0x100]]
        %v3056 = vstv %s3055
        %v3057 = vmul.f32 %v3056, %v3031
        %v3058 = vmul.f32 %v3056, %v3032
        %v3059 = vmul.f32 %v3056, %v3033
        %v3060 = vmul.f32 %v3056, %v3034
        %s3061 = sld [smem:[#allocation18 + $0x101]]
        %v3062 = vstv %s3061
        %v3063 = vmul.f32 %v3062, %v3035
        %v3064 = vmul.f32 %v3062, %v3036
        %v3065 = vmul.f32 %v3062, %v3037
        %v3066 = vmul.f32 %v3062, %v3038
        %v3067 = vadd.f32 %v3057, %v3063
        %v3068 = vadd.f32 %v3058, %v3064
        %v3069 = vadd.f32 %v3059, %v3065
        %v3070 = vadd.f32 %v3060, %v3066
        %s3071 = sld [smem:[#allocation18 + $0x102]]
        %v3072 = vstv %s3071
        %v3073 = vmul.f32 %v3072, %v3039
        %v3074 = vmul.f32 %v3072, %v3040
        %v3075 = vmul.f32 %v3072, %v3041
        %v3076 = vmul.f32 %v3072, %v3042
        %v3077 = vadd.f32 %v3067, %v3073
        %v3078 = vadd.f32 %v3068, %v3074
        %v3079 = vadd.f32 %v3069, %v3075
        %v3080 = vadd.f32 %v3070, %v3076
        %s3081 = sld [smem:[#allocation18 + $0x103]]
        %v3082 = vstv %s3081
        %v3083 = vmul.f32 %v3082, %v3043
        %v3084 = vmul.f32 %v3082, %v3044
        %v3085 = vmul.f32 %v3082, %v3045
        %v3086 = vmul.f32 %v3082, %v3046
        %v3087 = vadd.f32 %v3077, %v3083
        %v3088 = vadd.f32 %v3078, %v3084
        %v3089 = vadd.f32 %v3079, %v3085
        %v3090 = vadd.f32 %v3080, %v3086
        %s3091 = sld [smem:[#allocation18 + $0x104]]
        %v3092 = vstv %s3091
        %v3093 = vmul.f32 %v3092, %v3047
        %v3094 = vmul.f32 %v3092, %v3048
        %v3095 = vmul.f32 %v3092, %v3049
        %v3096 = vmul.f32 %v3092, %v3050
        %v3097 = vadd.f32 %v3087, %v3093
        %v3098 = vadd.f32 %v3088, %v3094
        %v3099 = vadd.f32 %v3089, %v3095
        %v3100 = vadd.f32 %v3090, %v3096
        %s3101 = sld [smem:[#allocation18 + $0x105]]
        %v3102 = vstv %s3101
        %v3103 = vmul.f32 %v3102, %v3051
        %v3104 = vmul.f32 %v3102, %v3052
        %v3105 = vmul.f32 %v3102, %v3053
        %v3106 = vmul.f32 %v3102, %v3054
        %v3107 = vadd.f32 %v3097, %v3103
        %v3108 = vadd.f32 %v3098, %v3104
        %v3109 = vadd.f32 %v3099, %v3105
        %v3110 = vadd.f32 %v3100, %v3106
        %v3111 = vxor.u32 %v3028, 2147483648
        %v3112 = vmul.f32 %v3111, 1.442695
        %v3113 = vpow.pop %v3112
        %v3114 = vadd.f32 %v3113, 1.0
        %v3115 = vrcp.pop %v3114
        %v3116 = vmul.f32 1.0, %v3115
        %s3117 = sld [smem:[#allocation18 + $0x200]]
        %v3118 = vstv %s3117
        %v3119 = vmul.f32 %v3118, %v3116
        %s3120 = sld [smem:[#allocation18 + $0x201]]
        %v3121 = vstv %s3120
        %v3122 = vmul.f32 %v3121, %v3116
        %v3124 = vrot.slane %v3122, 1
        %v3126 = vadd.f32 %v3119, %v3124
        %s3127 = sld [smem:[#allocation18 + $0x202]]
        %v3128 = vstv %s3127
        %v3129 = vmul.f32 %v3128, %v3116
        %v3131 = vrot.slane %v3129, 2
        %v3133 = vadd.f32 %v3126, %v3131
        %s3134 = sld [smem:[#allocation18 + $0x203]]
        %v3135 = vstv %s3134
        %v3136 = vmul.f32 %v3135, %v3116
        %v3138 = vrot.slane %v3136, 3
        %v3140 = vadd.f32 %v3133, %v3138
        %s3141 = sld [smem:[#allocation18 + $0x204]]
        %v3142 = vstv %s3141
        %v3143 = vmul.f32 %v3142, %v3116
        %v3145 = vrot.slane %v3143, 4
        %v3147 = vadd.f32 %v3140, %v3145
        %s3148 = sld [smem:[#allocation18 + $0x205]]
        %v3149 = vstv %s3148
        %v3150 = vmul.f32 %v3149, %v3116
        %v3152 = vrot.slane %v3150, 5
        %v3154 = vadd.f32 %v3147, %v3152
        %v3155 = vadd.f32 %v1998, %v3107
        %v3156 = vadd.f32 %v1999, %v3108
        %v3157 = vadd.f32 %v2000, %v3109
        %v3158 = vadd.f32 %v2001, %v3110
        %3159 = vst.msk [vmem:[#allocation2] sm:$0xff] %vm462, 0.0
        %3160 = vst.msk [vmem:[#allocation2 + $0x8] sm:$0xff] %vm462, 0.0
        %3161 = vst.msk [vmem:[#allocation2 + $0x10] sm:$0xff] %vm462, 0.0
        %3162 = vst.msk [vmem:[#allocation2 + $0x18] sm:$0xff] %vm462, 0.0
        %3167 = vrot.lane.b32.xlu0 %v3155, 7
        %v3168 = vpop.permute.xlu0 %3167
        %3169 = vrot.lane.b32.xlu0 %v3156, 7
        %v3170 = vpop.permute.xlu0 %3169
        %3171 = vrot.lane.b32.xlu0 %v3157, 7
        %v3172 = vpop.permute.xlu0 %3171
        %3173 = vrot.lane.b32.xlu0 %v3158, 7
        %v3174 = vpop.permute.xlu0 %3173
        %3179 = vst.msk [vmem:[#allocation2] sm:$0xff] %vm2066, %v3168
        %3180 = vst.msk [vmem:[#allocation2 + $0x8] sm:$0xff] %vm2066, %v3170
        %3181 = vst.msk [vmem:[#allocation2 + $0x10] sm:$0xff] %vm2066, %v3172
        %3182 = vst.msk [vmem:[#allocation2 + $0x18] sm:$0xff] %vm2066, %v3174
        %v3183 = vld [vmem:[#allocation2] sm:$0xff]
        %v3184 = vld [vmem:[#allocation2 + $0x8] sm:$0xff]
        %v3185 = vld [vmem:[#allocation2 + $0x10] sm:$0xff]
        %v3186 = vld [vmem:[#allocation2 + $0x18] sm:$0xff]
        %3187 = vst.msk [vmem:[#allocation3] sm:$0xff] %vm458, %v3183
        %3188 = vst.msk [vmem:[#allocation3 + $0x8] sm:$0xff] %vm458, %v3184
        %3189 = vst.msk [vmem:[#allocation3 + $0x10] sm:$0xff] %vm458, %v3185
        %3190 = vst.msk [vmem:[#allocation3 + $0x18] sm:$0xff] %vm458, %v3186
        %v3191 = vld [vmem:[#allocation2] sm:$0xff]
        %v3192 = vld [vmem:[#allocation2 + $0x8] sm:$0xff]
        %v3193 = vld [vmem:[#allocation2 + $0x10] sm:$0xff]
        %v3194 = vld [vmem:[#allocation2 + $0x18] sm:$0xff]
        %3199 = vrot.lane.b32.xlu0 %v3191, 127
        %v3200 = vpop.permute.xlu0 %3199
        %3201 = vrot.lane.b32.xlu0 %v3192, 127
        %v3202 = vpop.permute.xlu0 %3201
        %3203 = vrot.lane.b32.xlu0 %v3193, 127
        %v3204 = vpop.permute.xlu0 %3203
        %3205 = vrot.lane.b32.xlu0 %v3194, 127
        %v3206 = vpop.permute.xlu0 %3205
        %3211 = vst.msk [vmem:[#allocation3 + $0x20] sm:$0xff] %vm458, %v3200
        %3212 = vst.msk [vmem:[#allocation3 + $0x28] sm:$0xff] %vm458, %v3202
        %3213 = vst.msk [vmem:[#allocation3 + $0x30] sm:$0xff] %vm458, %v3204
        %3214 = vst.msk [vmem:[#allocation3 + $0x38] sm:$0xff] %vm458, %v3206
        %v3215 = vld [vmem:[#allocation2] sm:$0xff]
        %v3216 = vld [vmem:[#allocation2 + $0x8] sm:$0xff]
        %v3217 = vld [vmem:[#allocation2 + $0x10] sm:$0xff]
        %v3218 = vld [vmem:[#allocation2 + $0x18] sm:$0xff]
        %3223 = vrot.lane.b32.xlu0 %v3215, 126
        %v3224 = vpop.permute.xlu0 %3223
        %3225 = vrot.lane.b32.xlu0 %v3216, 126
        %v3226 = vpop.permute.xlu0 %3225
        %3227 = vrot.lane.b32.xlu0 %v3217, 126
        %v3228 = vpop.permute.xlu0 %3227
        %3229 = vrot.lane.b32.xlu0 %v3218, 126
        %v3230 = vpop.permute.xlu0 %3229
        %3235 = vst.msk [vmem:[#allocation3 + $0x40] sm:$0xff] %vm458, %v3224
        %3236 = vst.msk [vmem:[#allocation3 + $0x48] sm:$0xff] %vm458, %v3226
        %3237 = vst.msk [vmem:[#allocation3 + $0x50] sm:$0xff] %vm458, %v3228
        %3238 = vst.msk [vmem:[#allocation3 + $0x58] sm:$0xff] %vm458, %v3230
        %v3239 = vld [vmem:[#allocation2] sm:$0xff]
        %v3240 = vld [vmem:[#allocation2 + $0x8] sm:$0xff]
        %v3241 = vld [vmem:[#allocation2 + $0x10] sm:$0xff]
        %v3242 = vld [vmem:[#allocation2 + $0x18] sm:$0xff]
        %3247 = vrot.lane.b32.xlu0 %v3239, 125
        %v3248 = vpop.permute.xlu0 %3247
        %3249 = vrot.lane.b32.xlu0 %v3240, 125
        %v3250 = vpop.permute.xlu0 %3249
        %3251 = vrot.lane.b32.xlu0 %v3241, 125
        %v3252 = vpop.permute.xlu0 %3251
        %3253 = vrot.lane.b32.xlu0 %v3242, 125
        %v3254 = vpop.permute.xlu0 %3253
        %3259 = vst.msk [vmem:[#allocation3 + $0x60] sm:$0xff] %vm458, %v3248
        %3260 = vst.msk [vmem:[#allocation3 + $0x68] sm:$0xff] %vm458, %v3250
        %3261 = vst.msk [vmem:[#allocation3 + $0x70] sm:$0xff] %vm458, %v3252
        %3262 = vst.msk [vmem:[#allocation3 + $0x78] sm:$0xff] %vm458, %v3254
        %v3263 = vld [vmem:[#allocation2] sm:$0xff]
        %v3264 = vld [vmem:[#allocation2 + $0x8] sm:$0xff]
        %v3265 = vld [vmem:[#allocation2 + $0x10] sm:$0xff]
        %v3266 = vld [vmem:[#allocation2 + $0x18] sm:$0xff]
        %3271 = vrot.lane.b32.xlu0 %v3263, 124
        %v3272 = vpop.permute.xlu0 %3271
        %3273 = vrot.lane.b32.xlu0 %v3264, 124
        %v3274 = vpop.permute.xlu0 %3273
        %3275 = vrot.lane.b32.xlu0 %v3265, 124
        %v3276 = vpop.permute.xlu0 %3275
        %3277 = vrot.lane.b32.xlu0 %v3266, 124
        %v3278 = vpop.permute.xlu0 %3277
        %3283 = vst.msk [vmem:[#allocation3 + $0x80] sm:$0xff] %vm458, %v3272
        %3284 = vst.msk [vmem:[#allocation3 + $0x88] sm:$0xff] %vm458, %v3274
        %3285 = vst.msk [vmem:[#allocation3 + $0x90] sm:$0xff] %vm458, %v3276
        %3286 = vst.msk [vmem:[#allocation3 + $0x98] sm:$0xff] %vm458, %v3278
        %v3287 = vld [vmem:[#allocation2] sm:$0xff]
        %v3288 = vld [vmem:[#allocation2 + $0x8] sm:$0xff]
        %v3289 = vld [vmem:[#allocation2 + $0x10] sm:$0xff]
        %v3290 = vld [vmem:[#allocation2 + $0x18] sm:$0xff]
        %3295 = vrot.lane.b32.xlu0 %v3287, 123
        %v3296 = vpop.permute.xlu0 %3295
        %3297 = vrot.lane.b32.xlu0 %v3288, 123
        %v3298 = vpop.permute.xlu0 %3297
        %3299 = vrot.lane.b32.xlu0 %v3289, 123
        %v3300 = vpop.permute.xlu0 %3299
        %3301 = vrot.lane.b32.xlu0 %v3290, 123
        %v3302 = vpop.permute.xlu0 %3301
        %3307 = vst.msk [vmem:[#allocation3 + $0xa0] sm:$0xff] %vm458, %v3296
        %3308 = vst.msk [vmem:[#allocation3 + $0xa8] sm:$0xff] %vm458, %v3298
        %3309 = vst.msk [vmem:[#allocation3 + $0xb0] sm:$0xff] %vm458, %v3300
        %3310 = vst.msk [vmem:[#allocation3 + $0xb8] sm:$0xff] %vm458, %v3302
        %v3311 = vld [vmem:[#allocation2] sm:$0xff]
        %v3312 = vld [vmem:[#allocation2 + $0x8] sm:$0xff]
        %v3313 = vld [vmem:[#allocation2 + $0x10] sm:$0xff]
        %v3314 = vld [vmem:[#allocation2 + $0x18] sm:$0xff]
        %3319 = vrot.lane.b32.xlu0 %v3311, 122
        %v3320 = vpop.permute.xlu0 %3319
        %3321 = vrot.lane.b32.xlu0 %v3312, 122
        %v3322 = vpop.permute.xlu0 %3321
        %3323 = vrot.lane.b32.xlu0 %v3313, 122
        %v3324 = vpop.permute.xlu0 %3323
        %3325 = vrot.lane.b32.xlu0 %v3314, 122
        %v3326 = vpop.permute.xlu0 %3325
        %3331 = vst.msk [vmem:[#allocation3 + $0xc0] sm:$0xff] %vm458, %v3320
        %3332 = vst.msk [vmem:[#allocation3 + $0xc8] sm:$0xff] %vm458, %v3322
        %3333 = vst.msk [vmem:[#allocation3 + $0xd0] sm:$0xff] %vm458, %v3324
        %3334 = vst.msk [vmem:[#allocation3 + $0xd8] sm:$0xff] %vm458, %v3326
        %v3335 = vld [vmem:[#allocation2] sm:$0xff]
        %v3336 = vld [vmem:[#allocation2 + $0x8] sm:$0xff]
        %v3337 = vld [vmem:[#allocation2 + $0x10] sm:$0xff]
        %v3338 = vld [vmem:[#allocation2 + $0x18] sm:$0xff]
        %3343 = vrot.lane.b32.xlu0 %v3335, 121
        %v3344 = vpop.permute.xlu0 %3343
        %3345 = vrot.lane.b32.xlu0 %v3336, 121
        %v3346 = vpop.permute.xlu0 %3345
        %3347 = vrot.lane.b32.xlu0 %v3337, 121
        %v3348 = vpop.permute.xlu0 %3347
        %3349 = vrot.lane.b32.xlu0 %v3338, 121
        %v3350 = vpop.permute.xlu0 %3349
        %3355 = vst.msk [vmem:[#allocation3 + $0xe0] sm:$0xff] %vm458, %v3344
        %3356 = vst.msk [vmem:[#allocation3 + $0xe8] sm:$0xff] %vm458, %v3346
        %3357 = vst.msk [vmem:[#allocation3 + $0xf0] sm:$0xff] %vm458, %v3348
        %3358 = vst.msk [vmem:[#allocation3 + $0xf8] sm:$0xff] %vm458, %v3350
        %v3359 = vld [vmem:[#allocation2] sm:$0xff]
        %v3360 = vld [vmem:[#allocation2 + $0x8] sm:$0xff]
        %v3361 = vld [vmem:[#allocation2 + $0x10] sm:$0xff]
        %v3362 = vld [vmem:[#allocation2 + $0x18] sm:$0xff]
        %3367 = vrot.lane.b32.xlu0 %v3359, 120
        %v3368 = vpop.permute.xlu0 %3367
        %3369 = vrot.lane.b32.xlu0 %v3360, 120
        %v3370 = vpop.permute.xlu0 %3369
        %3371 = vrot.lane.b32.xlu0 %v3361, 120
        %v3372 = vpop.permute.xlu0 %3371
        %3373 = vrot.lane.b32.xlu0 %v3362, 120
        %v3374 = vpop.permute.xlu0 %3373
        %3379 = vst.msk [vmem:[#allocation3 + $0x100] sm:$0xff] %vm458, %v3368
        %3380 = vst.msk [vmem:[#allocation3 + $0x108] sm:$0xff] %vm458, %v3370
        %3381 = vst.msk [vmem:[#allocation3 + $0x110] sm:$0xff] %vm458, %v3372
        %3382 = vst.msk [vmem:[#allocation3 + $0x118] sm:$0xff] %vm458, %v3374
        %v3383 = vld [vmem:[#allocation2] sm:$0xff]
        %v3384 = vld [vmem:[#allocation2 + $0x8] sm:$0xff]
        %v3385 = vld [vmem:[#allocation2 + $0x10] sm:$0xff]
        %v3386 = vld [vmem:[#allocation2 + $0x18] sm:$0xff]
        %3391 = vrot.lane.b32.xlu0 %v3383, 119
        %v3392 = vpop.permute.xlu0 %3391
        %3393 = vrot.lane.b32.xlu0 %v3384, 119
        %v3394 = vpop.permute.xlu0 %3393
        %3395 = vrot.lane.b32.xlu0 %v3385, 119
        %v3396 = vpop.permute.xlu0 %3395
        %3397 = vrot.lane.b32.xlu0 %v3386, 119
        %v3398 = vpop.permute.xlu0 %3397
        %3403 = vst.msk [vmem:[#allocation3 + $0x120] sm:$0xff] %vm458, %v3392
        %3404 = vst.msk [vmem:[#allocation3 + $0x128] sm:$0xff] %vm458, %v3394
        %3405 = vst.msk [vmem:[#allocation3 + $0x130] sm:$0xff] %vm458, %v3396
        %3406 = vst.msk [vmem:[#allocation3 + $0x138] sm:$0xff] %vm458, %v3398
        %v3407 = vld [vmem:[#allocation2] sm:$0xff]
        %v3408 = vld [vmem:[#allocation2 + $0x8] sm:$0xff]
        %v3409 = vld [vmem:[#allocation2 + $0x10] sm:$0xff]
        %v3410 = vld [vmem:[#allocation2 + $0x18] sm:$0xff]
        %3415 = vrot.lane.b32.xlu0 %v3407, 118
        %v3416 = vpop.permute.xlu0 %3415
        %3417 = vrot.lane.b32.xlu0 %v3408, 118
        %v3418 = vpop.permute.xlu0 %3417
        %3419 = vrot.lane.b32.xlu0 %v3409, 118
        %v3420 = vpop.permute.xlu0 %3419
        %3421 = vrot.lane.b32.xlu0 %v3410, 118
        %v3422 = vpop.permute.xlu0 %3421
        %3427 = vst.msk [vmem:[#allocation3 + $0x140] sm:$0xff] %vm458, %v3416
        %3428 = vst.msk [vmem:[#allocation3 + $0x148] sm:$0xff] %vm458, %v3418
        %3429 = vst.msk [vmem:[#allocation3 + $0x150] sm:$0xff] %vm458, %v3420
        %3430 = vst.msk [vmem:[#allocation3 + $0x158] sm:$0xff] %vm458, %v3422
        %v3431 = vld [vmem:[#allocation2] sm:$0xff]
        %v3432 = vld [vmem:[#allocation2 + $0x8] sm:$0xff]
        %v3433 = vld [vmem:[#allocation2 + $0x10] sm:$0xff]
        %v3434 = vld [vmem:[#allocation2 + $0x18] sm:$0xff]
        %3439 = vrot.lane.b32.xlu0 %v3431, 117
        %v3440 = vpop.permute.xlu0 %3439
        %3441 = vrot.lane.b32.xlu0 %v3432, 117
        %v3442 = vpop.permute.xlu0 %3441
        %3443 = vrot.lane.b32.xlu0 %v3433, 117
        %v3444 = vpop.permute.xlu0 %3443
        %3445 = vrot.lane.b32.xlu0 %v3434, 117
        %v3446 = vpop.permute.xlu0 %3445
        %3451 = vst.msk [vmem:[#allocation3 + $0x160] sm:$0xff] %vm458, %v3440
        %3452 = vst.msk [vmem:[#allocation3 + $0x168] sm:$0xff] %vm458, %v3442
        %3453 = vst.msk [vmem:[#allocation3 + $0x170] sm:$0xff] %vm458, %v3444
        %3454 = vst.msk [vmem:[#allocation3 + $0x178] sm:$0xff] %vm458, %v3446
        %v3455 = vld [vmem:[#allocation2] sm:$0xff]
        %v3456 = vld [vmem:[#allocation2 + $0x8] sm:$0xff]
        %v3457 = vld [vmem:[#allocation2 + $0x10] sm:$0xff]
        %v3458 = vld [vmem:[#allocation2 + $0x18] sm:$0xff]
        %3463 = vrot.lane.b32.xlu0 %v3455, 116
        %v3464 = vpop.permute.xlu0 %3463
        %3465 = vrot.lane.b32.xlu0 %v3456, 116
        %v3466 = vpop.permute.xlu0 %3465
        %3467 = vrot.lane.b32.xlu0 %v3457, 116
        %v3468 = vpop.permute.xlu0 %3467
        %3469 = vrot.lane.b32.xlu0 %v3458, 116
        %v3470 = vpop.permute.xlu0 %3469
        %3475 = vst.msk [vmem:[#allocation3 + $0x180] sm:$0xff] %vm458, %v3464
        %3476 = vst.msk [vmem:[#allocation3 + $0x188] sm:$0xff] %vm458, %v3466
        %3477 = vst.msk [vmem:[#allocation3 + $0x190] sm:$0xff] %vm458, %v3468
        %3478 = vst.msk [vmem:[#allocation3 + $0x198] sm:$0xff] %vm458, %v3470
        %v3479 = vld [vmem:[#allocation2] sm:$0xff]
        %v3480 = vld [vmem:[#allocation2 + $0x8] sm:$0xff]
        %v3481 = vld [vmem:[#allocation2 + $0x10] sm:$0xff]
        %v3482 = vld [vmem:[#allocation2 + $0x18] sm:$0xff]
        %3487 = vrot.lane.b32.xlu0 %v3479, 115
        %v3488 = vpop.permute.xlu0 %3487
        %3489 = vrot.lane.b32.xlu0 %v3480, 115
        %v3490 = vpop.permute.xlu0 %3489
        %3491 = vrot.lane.b32.xlu0 %v3481, 115
        %v3492 = vpop.permute.xlu0 %3491
        %3493 = vrot.lane.b32.xlu0 %v3482, 115
        %v3494 = vpop.permute.xlu0 %3493
        %3499 = vst.msk [vmem:[#allocation3 + $0x1a0] sm:$0xff] %vm458, %v3488
        %3500 = vst.msk [vmem:[#allocation3 + $0x1a8] sm:$0xff] %vm458, %v3490
        %3501 = vst.msk [vmem:[#allocation3 + $0x1b0] sm:$0xff] %vm458, %v3492
        %3502 = vst.msk [vmem:[#allocation3 + $0x1b8] sm:$0xff] %vm458, %v3494
        %v3503 = vld [vmem:[#allocation2] sm:$0xff]
        %v3504 = vld [vmem:[#allocation2 + $0x8] sm:$0xff]
        %v3505 = vld [vmem:[#allocation2 + $0x10] sm:$0xff]
        %v3506 = vld [vmem:[#allocation2 + $0x18] sm:$0xff]
        %3511 = vrot.lane.b32.xlu0 %v3503, 114
        %v3512 = vpop.permute.xlu0 %3511
        %3513 = vrot.lane.b32.xlu0 %v3504, 114
        %v3514 = vpop.permute.xlu0 %3513
        %3515 = vrot.lane.b32.xlu0 %v3505, 114
        %v3516 = vpop.permute.xlu0 %3515
        %3517 = vrot.lane.b32.xlu0 %v3506, 114
        %v3518 = vpop.permute.xlu0 %3517
        %3523 = vst.msk [vmem:[#allocation3 + $0x1c0] sm:$0xff] %vm458, %v3512
        %3524 = vst.msk [vmem:[#allocation3 + $0x1c8] sm:$0xff] %vm458, %v3514
        %3525 = vst.msk [vmem:[#allocation3 + $0x1d0] sm:$0xff] %vm458, %v3516
        %3526 = vst.msk [vmem:[#allocation3 + $0x1d8] sm:$0xff] %vm458, %v3518
        %v3527 = vld [vmem:[#allocation3] sm:$0xff]
        %v3528 = vld [vmem:[#allocation3 + $0x8] sm:$0xff]
        %v3529 = vld [vmem:[#allocation3 + $0x10] sm:$0xff]
        %v3530 = vld [vmem:[#allocation3 + $0x18] sm:$0xff]
        %v3531 = vld [vmem:[#allocation3 + $0x20] sm:$0xff]
        %v3532 = vld [vmem:[#allocation3 + $0x28] sm:$0xff]
        %v3533 = vld [vmem:[#allocation3 + $0x30] sm:$0xff]
        %v3534 = vld [vmem:[#allocation3 + $0x38] sm:$0xff]
        %v3535 = vld [vmem:[#allocation3 + $0x40] sm:$0xff]
        %v3536 = vld [vmem:[#allocation3 + $0x48] sm:$0xff]
        %v3537 = vld [vmem:[#allocation3 + $0x50] sm:$0xff]
        %v3538 = vld [vmem:[#allocation3 + $0x58] sm:$0xff]
        %v3539 = vld [vmem:[#allocation3 + $0x60] sm:$0xff]
        %v3540 = vld [vmem:[#allocation3 + $0x68] sm:$0xff]
        %v3541 = vld [vmem:[#allocation3 + $0x70] sm:$0xff]
        %v3542 = vld [vmem:[#allocation3 + $0x78] sm:$0xff]
        %v3543 = vld [vmem:[#allocation3 + $0x80] sm:$0xff]
        %v3544 = vld [vmem:[#allocation3 + $0x88] sm:$0xff]
        %v3545 = vld [vmem:[#allocation3 + $0x90] sm:$0xff]
        %v3546 = vld [vmem:[#allocation3 + $0x98] sm:$0xff]
        %v3547 = vld [vmem:[#allocation3 + $0xa0] sm:$0xff]
        %v3548 = vld [vmem:[#allocation3 + $0xa8] sm:$0xff]
        %v3549 = vld [vmem:[#allocation3 + $0xb0] sm:$0xff]
        %v3550 = vld [vmem:[#allocation3 + $0xb8] sm:$0xff]
        %v3551 = vld [vmem:[#allocation3 + $0xc0] sm:$0xff]
        %v3552 = vld [vmem:[#allocation3 + $0xc8] sm:$0xff]
        %v3553 = vld [vmem:[#allocation3 + $0xd0] sm:$0xff]
        %v3554 = vld [vmem:[#allocation3 + $0xd8] sm:$0xff]
        %v3555 = vld [vmem:[#allocation3 + $0xe0] sm:$0xff]
        %v3556 = vld [vmem:[#allocation3 + $0xe8] sm:$0xff]
        %v3557 = vld [vmem:[#allocation3 + $0xf0] sm:$0xff]
        %v3558 = vld [vmem:[#allocation3 + $0xf8] sm:$0xff]
        %v3559 = vld [vmem:[#allocation3 + $0x100] sm:$0xff]
        %v3560 = vld [vmem:[#allocation3 + $0x108] sm:$0xff]
        %v3561 = vld [vmem:[#allocation3 + $0x110] sm:$0xff]
        %v3562 = vld [vmem:[#allocation3 + $0x118] sm:$0xff]
        %v3563 = vld [vmem:[#allocation3 + $0x120] sm:$0xff]
        %v3564 = vld [vmem:[#allocation3 + $0x128] sm:$0xff]
        %v3565 = vld [vmem:[#allocation3 + $0x130] sm:$0xff]
        %v3566 = vld [vmem:[#allocation3 + $0x138] sm:$0xff]
        %v3567 = vld [vmem:[#allocation3 + $0x140] sm:$0xff]
        %v3568 = vld [vmem:[#allocation3 + $0x148] sm:$0xff]
        %v3569 = vld [vmem:[#allocation3 + $0x150] sm:$0xff]
        %v3570 = vld [vmem:[#allocation3 + $0x158] sm:$0xff]
        %v3571 = vld [vmem:[#allocation3 + $0x160] sm:$0xff]
        %v3572 = vld [vmem:[#allocation3 + $0x168] sm:$0xff]
        %v3573 = vld [vmem:[#allocation3 + $0x170] sm:$0xff]
        %v3574 = vld [vmem:[#allocation3 + $0x178] sm:$0xff]
        %v3575 = vld [vmem:[#allocation3 + $0x180] sm:$0xff]
        %v3576 = vld [vmem:[#allocation3 + $0x188] sm:$0xff]
        %v3577 = vld [vmem:[#allocation3 + $0x190] sm:$0xff]
        %v3578 = vld [vmem:[#allocation3 + $0x198] sm:$0xff]
        %v3579 = vld [vmem:[#allocation3 + $0x1a0] sm:$0xff]
        %v3580 = vld [vmem:[#allocation3 + $0x1a8] sm:$0xff]
        %v3581 = vld [vmem:[#allocation3 + $0x1b0] sm:$0xff]
        %v3582 = vld [vmem:[#allocation3 + $0x1b8] sm:$0xff]
        %v3583 = vld [vmem:[#allocation3 + $0x1c0] sm:$0xff]
        %v3584 = vld [vmem:[#allocation3 + $0x1c8] sm:$0xff]
        %v3585 = vld [vmem:[#allocation3 + $0x1d0] sm:$0xff]
        %v3586 = vld [vmem:[#allocation3 + $0x1d8] sm:$0xff]
        %v3587 = vld [vmem:[#allocation3 + $0x1e0] sm:$0xff]
        %v3588 = vld [vmem:[#allocation12] sm:$0xff]
        %v3589 = vld [vmem:[#allocation12 + $0x8] sm:$0xff]
        %v3590 = vld [vmem:[#allocation12 + $0x10] sm:$0xff]
        %v3591 = vld [vmem:[#allocation12 + $0x18] sm:$0xff]
        %v3593 = vsel %vm1074, %v3591, 0
        %3595 = vmatprep.subr.mxu0 0.0
        %3596 = vmatpush1.msra.mxu0 %v3527
        %3597 = vmatprep.subr.mxu0 0.0
        %3598 = vmatpush1.msra.mxu0 %v3528
        %3599 = vmatprep.subr.mxu0 0.0
        %3600 = vmatpush1.msra.mxu0 %v3529
        %3601 = vmatprep.subr.mxu0 0.0
        %3602 = vmatpush1.msra.mxu0 %v3530
        %3603 = vmatprep.subr.mxu0 0.0
        %3604 = vmatpush1.msra.mxu0 %v3531
        %3605 = vmatprep.subr.mxu0 0.0
        %3606 = vmatpush1.msra.mxu0 %v3532
        %3607 = vmatprep.subr.mxu0 0.0
        %3608 = vmatpush1.msra.mxu0 %v3533
        %3609 = vmatprep.subr.mxu0 0.0
        %3610 = vmatpush1.msra.mxu0 %v3534
        %3611 = vmatprep.subr.mxu0 0.0
        %3612 = vmatpush1.msra.mxu0 %v3535
        %3613 = vmatprep.subr.mxu0 0.0
        %3614 = vmatpush1.msra.mxu0 %v3536
        %3615 = vmatprep.subr.mxu0 0.0
        %3616 = vmatpush1.msra.mxu0 %v3537
        %3617 = vmatprep.subr.mxu0 0.0
        %3618 = vmatpush1.msra.mxu0 %v3538
        %3619 = vmatprep.subr.mxu0 0.0
        %3620 = vmatpush1.msra.mxu0 %v3539
        %3621 = vmatprep.subr.mxu0 0.0
        %3622 = vmatpush1.msra.mxu0 %v3540
        %3623 = vmatprep.subr.mxu0 0.0
        %3624 = vmatpush1.msra.mxu0 %v3541
        %3625 = vmatprep.subr.mxu0 0.0
        %3626 = vmatpush1.msra.mxu0 %v3542
        %3627 = vmatprep.subr.mxu0 0.0
        %3628 = vmatpush1.msra.mxu0 %v3543
        %3629 = vmatprep.subr.mxu0 0.0
        %3630 = vmatpush1.msra.mxu0 %v3544
        %3631 = vmatprep.subr.mxu0 0.0
        %3632 = vmatpush1.msra.mxu0 %v3545
        %3633 = vmatprep.subr.mxu0 0.0
        %3634 = vmatpush1.msra.mxu0 %v3546
        %3635 = vmatprep.subr.mxu0 0.0
        %3636 = vmatpush1.msra.mxu0 %v3547
        %3637 = vmatprep.subr.mxu0 0.0
        %3638 = vmatpush1.msra.mxu0 %v3548
        %3639 = vmatprep.subr.mxu0 0.0
        %3640 = vmatpush1.msra.mxu0 %v3549
        %3641 = vmatprep.subr.mxu0 0.0
        %3642 = vmatpush1.msra.mxu0 %v3550
        %3643 = vmatprep.subr.mxu0 0.0
        %3644 = vmatpush1.msra.mxu0 %v3551
        %3645 = vmatprep.subr.mxu0 0.0
        %3646 = vmatpush1.msra.mxu0 %v3552
        %3647 = vmatprep.subr.mxu0 0.0
        %3648 = vmatpush1.msra.mxu0 %v3553
        %3649 = vmatprep.subr.mxu0 0.0
        %3650 = vmatpush1.msra.mxu0 %v3554
        %3651 = vmatprep.subr.mxu0 0.0
        %3652 = vmatpush1.msra.mxu0 %v3555
        %3653 = vmatprep.subr.mxu0 0.0
        %3654 = vmatpush1.msra.mxu0 %v3556
        %3655 = vmatprep.subr.mxu0 0.0
        %3656 = vmatpush1.msra.mxu0 %v3557
        %3657 = vmatprep.subr.mxu0 0.0
        %3658 = vmatpush1.msra.mxu0 %v3558
        %3659 = vmatprep.mubr.f32.mxu0 %v3589
        %3660 = vmatmul.mubr.f32.gmra.mrb[0].mxu0 %v3588
        %v3661 = vpop.f32.mrb[0].mxu0
        %v3662 = vadd.f32 0.0, %v3661
        %v3663 = vpop.f32.mrb[0].mxu0
        %3664 = vdwg.mxu0
        %3665 = vmatprep.subr.mxu0 0.0
        %3666 = vmatpush1.msra.mxu0 %v3559
        %3667 = vmatprep.subr.mxu0 0.0
        %3668 = vmatpush1.msra.mxu0 %v3560
        %3669 = vmatprep.subr.mxu0 0.0
        %3670 = vmatpush1.msra.mxu0 %v3561
        %3671 = vmatprep.subr.mxu0 0.0
        %3672 = vmatpush1.msra.mxu0 %v3562
        %3673 = vmatprep.subr.mxu0 0.0
        %3674 = vmatpush1.msra.mxu0 %v3563
        %3675 = vmatprep.subr.mxu0 0.0
        %3676 = vmatpush1.msra.mxu0 %v3564
        %3677 = vmatprep.subr.mxu0 0.0
        %3678 = vmatpush1.msra.mxu0 %v3565
        %3679 = vmatprep.subr.mxu0 0.0
        %3680 = vmatpush1.msra.mxu0 %v3566
        %3681 = vmatprep.subr.mxu0 0.0
        %3682 = vmatpush1.msra.mxu0 %v3567
        %3683 = vmatprep.subr.mxu0 0.0
        %3684 = vmatpush1.msra.mxu0 %v3568
        %3685 = vmatprep.subr.mxu0 0.0
        %3686 = vmatpush1.msra.mxu0 %v3569
        %3687 = vmatprep.subr.mxu0 0.0
        %3688 = vmatpush1.msra.mxu0 %v3570
        %3689 = vmatprep.subr.mxu0 0.0
        %3690 = vmatpush1.msra.mxu0 %v3571
        %3691 = vmatprep.subr.mxu0 0.0
        %3692 = vmatpush1.msra.mxu0 %v3572
        %3693 = vmatprep.subr.mxu0 0.0
        %3694 = vmatpush1.msra.mxu0 %v3573
        %3695 = vmatprep.subr.mxu0 0.0
        %3696 = vmatpush1.msra.mxu0 %v3574
        %3697 = vmatprep.subr.mxu0 0.0
        %3698 = vmatpush1.msra.mxu0 %v3575
        %3699 = vmatprep.subr.mxu0 0.0
        %3700 = vmatpush1.msra.mxu0 %v3576
        %3701 = vmatprep.subr.mxu0 0.0
        %3702 = vmatpush1.msra.mxu0 %v3577
        %3703 = vmatprep.subr.mxu0 0.0
        %3704 = vmatpush1.msra.mxu0 %v3578
        %3705 = vmatprep.subr.mxu0 0.0
        %3706 = vmatpush1.msra.mxu0 %v3579
        %3707 = vmatprep.subr.mxu0 0.0
        %3708 = vmatpush1.msra.mxu0 %v3580
        %3709 = vmatprep.subr.mxu0 0.0
        %3710 = vmatpush1.msra.mxu0 %v3581
        %3711 = vmatprep.subr.mxu0 0.0
        %3712 = vmatpush1.msra.mxu0 %v3582
        %3713 = vmatprep.subr.mxu0 0.0
        %3714 = vmatpush1.msra.mxu0 %v3583
        %3715 = vmatprep.subr.mxu0 0.0
        %3716 = vmatpush1.msra.mxu0 %v3584
        %3717 = vmatprep.subr.mxu0 0.0
        %3718 = vmatpush1.msra.mxu0 %v3585
        %3719 = vmatprep.subr.mxu0 0.0
        %3720 = vmatpush1.msra.mxu0 %v3586
        %3721 = vmatprep.subr.mxu0 0.0
        %3722 = vmatpush1.msra.mxu0 %v3587
        %3723 = vmatprep.subr.mxu0 0.0
        %3724 = vmatpush1.msra.mxu0 0.0
        %3725 = vmatprep.subr.mxu0 0.0
        %3726 = vmatpush1.msra.mxu0 0.0
        %3727 = vmatprep.subr.mxu0 0.0
        %3728 = vmatpush1.msra.mxu0 0.0
        %3729 = vmatprep.mubr.f32.mxu0 %v3593
        %3730 = vmatmul.mubr.f32.gmra.mrb[0].mxu0 %v3590
        %v3731 = vpop.f32.mrb[0].mxu0
        %v3732 = vadd.f32 %v3662, %v3731
        %v3733 = vpop.f32.mrb[0].mxu0
        %3734 = vdwg.mxu0
        %v3735 = vxor.u32 %v3732, 2147483648
        %v3736 = vmul.f32 %v3735, 1.442695
        %v3737 = vpow.pop %v3736
        %v3738 = vadd.f32 %v3737, 1.0
        %v3739 = vrcp.pop %v3738
        %v3740 = vmul.f32 1.0, %v3739
        %s3741 = sld [smem:[#allocation18 + $0x280]]
        %v3742 = vstv %s3741
        %v3743 = vmul.f32 %v3742, %v3740
        %s3744 = sld [smem:[#allocation18 + $0x281]]
        %v3745 = vstv %s3744
        %v3746 = vmul.f32 %v3745, %v3740
        %v3748 = vrot.slane %v3746, 1
        %v3750 = vadd.f32 %v3743, %v3748
        %s3751 = sld [smem:[#allocation18 + $0x282]]
        %v3752 = vstv %s3751
        %v3753 = vmul.f32 %v3752, %v3740
        %v3755 = vrot.slane %v3753, 2
        %v3757 = vadd.f32 %v3750, %v3755
        %s3758 = sld [smem:[#allocation18 + $0x283]]
        %v3759 = vstv %s3758
        %v3760 = vmul.f32 %v3759, %v3740
        %v3762 = vrot.slane %v3760, 3
        %v3764 = vadd.f32 %v3757, %v3762
        %s3765 = sld [smem:[#allocation18 + $0x284]]
        %v3766 = vstv %s3765
        %v3767 = vmul.f32 %v3766, %v3740
        %v3769 = vrot.slane %v3767, 4
        %v3771 = vadd.f32 %v3764, %v3769
        %s3772 = sld [smem:[#allocation18 + $0x285]]
        %v3773 = vstv %s3772
        %v3774 = vmul.f32 %v3773, %v3740
        %v3776 = vrot.slane %v3774, 5
        %v3778 = vadd.f32 %v3771, %v3776
        %v3779 = vadd.f32 %v2045, %v3154
        %v3780 = vadd.f32 %v3779, %v3778
        %v3781 = vmul.f32 %v3780, 0.33333334
        %v3782 = vlaneseq
        %v3783 = vshrl.u32 %v3782, 7
        %v3784 = vsub.s32 0, %v3783
        %v3785 = vrot.slane %v3781, %v3784
        %v3786 = vmul.f32 %v461, %v3785
        %v3788 = vsel %vm458, 1.0, 0
        %v3791 = vsel %vm458, %v3786, 0
        %3793 = vmatprep.subr.mxu0 0.0
        %3794 = vmatpush1.xpose.msra.mxu0 %v3791
        %3795 = vmatprep.subr.mxu0 0.0
        %3796 = vmatpush1.xpose.msra.mxu0 0.0
        %3797 = vmatprep.subr.mxu0 0.0
        %3798 = vmatpush1.xpose.msra.mxu0 0.0
        %3799 = vmatprep.subr.mxu0 0.0
        %3800 = vmatpush1.xpose.msra.mxu0 0.0
        %3801 = vmatprep.subr.mxu0 0.0
        %3802 = vmatpush1.xpose.msra.mxu0 0.0
        %3803 = vmatprep.subr.mxu0 0.0
        %3804 = vmatpush1.xpose.msra.mxu0 0.0
        %3805 = vmatprep.subr.mxu0 0.0
        %3806 = vmatpush1.xpose.msra.mxu0 0.0
        %3807 = vmatprep.subr.mxu0 0.0
        %3808 = vmatpush1.xpose.msra.mxu0 0.0
        %3809 = vmatprep.subr.mxu0 0.0
        %3810 = vmatpush1.xpose.msra.mxu0 0.0
        %3811 = vmatprep.subr.mxu0 0.0
        %3812 = vmatpush1.xpose.msra.mxu0 0.0
        %3813 = vmatprep.subr.mxu0 0.0
        %3814 = vmatpush1.xpose.msra.mxu0 0.0
        %3815 = vmatprep.subr.mxu0 0.0
        %3816 = vmatpush1.xpose.msra.mxu0 0.0
        %3817 = vmatprep.subr.mxu0 0.0
        %3818 = vmatpush1.xpose.msra.mxu0 0.0
        %3819 = vmatprep.subr.mxu0 0.0
        %3820 = vmatpush1.xpose.msra.mxu0 0.0
        %3821 = vmatprep.subr.mxu0 0.0
        %3822 = vmatpush1.xpose.msra.mxu0 0.0
        %3823 = vmatprep.subr.mxu0 0.0
        %3824 = vmatpush1.xpose.msra.mxu0 0.0
        %3825 = vmatprep.subr.mxu0 0.0
        %3826 = vmatpush1.xpose.msra.mxu0 0.0
        %3827 = vmatprep.subr.mxu0 0.0
        %3828 = vmatpush1.xpose.msra.mxu0 0.0
        %3829 = vmatprep.subr.mxu0 0.0
        %3830 = vmatpush1.xpose.msra.mxu0 0.0
        %3831 = vmatprep.subr.mxu0 0.0
        %3832 = vmatpush1.xpose.msra.mxu0 0.0
        %3833 = vmatprep.subr.mxu0 0.0
        %3834 = vmatpush1.xpose.msra.mxu0 0.0
        %3835 = vmatprep.subr.mxu0 0.0
        %3836 = vmatpush1.xpose.msra.mxu0 0.0
        %3837 = vmatprep.subr.mxu0 0.0
        %3838 = vmatpush1.xpose.msra.mxu0 0.0
        %3839 = vmatprep.subr.mxu0 0.0
        %3840 = vmatpush1.xpose.msra.mxu0 0.0
        %3841 = vmatprep.subr.mxu0 0.0
        %3842 = vmatpush1.xpose.msra.mxu0 0.0
        %3843 = vmatprep.subr.mxu0 0.0
        %3844 = vmatpush1.xpose.msra.mxu0 0.0
        %3845 = vmatprep.subr.mxu0 0.0
        %3846 = vmatpush1.xpose.msra.mxu0 0.0
        %3847 = vmatprep.subr.mxu0 0.0
        %3848 = vmatpush1.xpose.msra.mxu0 0.0
        %3849 = vmatprep.subr.mxu0 0.0
        %3850 = vmatpush1.xpose.msra.mxu0 0.0
        %3851 = vmatprep.subr.mxu0 0.0
        %3852 = vmatpush1.xpose.msra.mxu0 0.0
        %3853 = vmatprep.subr.mxu0 0.0
        %3854 = vmatpush1.xpose.msra.mxu0 0.0
        %3855 = vmatprep.subr.mxu0 0.0
        %3856 = vmatpush1.xpose.msra.mxu0 0.0
        %3857 = vmatprep.mubr.f32.mxu0 0.0
        %3858 = vmatmul.mubr.f32.gmra.mrb[0].mxu0 %v3788
        %v3859 = vpop.f32.mrb[0].mxu0
        %v3860 = vadd.f32 0.0, %v3859
        %v3861 = vpop.f32.mrb[0].mxu0
        %3862 = vdwg.mxu0
        %v3863 = vmul.f32 %v3860, 0.0625
        %3864 = vst.msk [vmem:[#allocation2] sm:$0xff] %vm462, 0.0
        %3865 = vst.msk [vmem:[#allocation2 + $0x8] sm:$0xff] %vm462, 0.0
        %3866 = vst.msk [vmem:[#allocation2 + $0x10] sm:$0xff] %vm462, 0.0
        %3867 = vst.msk [vmem:[#allocation2 + $0x18] sm:$0xff] %vm462, 0.0
        %3869 = vrot.lane.b32.xlu0 %v3863, 7
        %v3870 = vpop.permute.xlu0 %3869
        %vm3872 = vcmask 81976
        %3873 = vst.msk [vmem:[#allocation2] sm:$0x1] %vm3872, %v3870
        %v3874 = vld [vmem:[#allocation2] sm:$0xff]
        %v3875 = vld [vmem:[#allocation2 + $0x8] sm:$0xff]
        %v3876 = vld [vmem:[#allocation2 + $0x10] sm:$0xff]
        %v3877 = vld [vmem:[#allocation2 + $0x18] sm:$0xff]
        %vm3878 = vcmask 31744
        %3879 = vst.msk [vmem:[#allocation3] sm:$0xff] %vm3878, %v3874
        %3880 = vst.msk [vmem:[#allocation3 + $0x8] sm:$0xff] %vm3878, %v3875
        %3881 = vst.msk [vmem:[#allocation3 + $0x10] sm:$0xff] %vm3878, %v3876
        %3882 = vst.msk [vmem:[#allocation3 + $0x18] sm:$0xff] %vm3878, %v3877
        %v3883 = vld [vmem:[#allocation2] sm:$0xff]
        %v3884 = vld [vmem:[#allocation2 + $0x8] sm:$0xff]
        %v3885 = vld [vmem:[#allocation2 + $0x10] sm:$0xff]
        %v3886 = vld [vmem:[#allocation2 + $0x18] sm:$0xff]
        %3891 = vrot.lane.b32.xlu0 %v3883, 127
        %v3892 = vpop.permute.xlu0 %3891
        %3893 = vrot.lane.b32.xlu0 %v3884, 127
        %v3894 = vpop.permute.xlu0 %3893
        %3895 = vrot.lane.b32.xlu0 %v3885, 127
        %v3896 = vpop.permute.xlu0 %3895
        %3897 = vrot.lane.b32.xlu0 %v3886, 127
        %v3898 = vpop.permute.xlu0 %3897
        %3903 = vst.msk [vmem:[#allocation3 + $0x20] sm:$0xff] %vm3878, %v3892
        %3904 = vst.msk [vmem:[#allocation3 + $0x28] sm:$0xff] %vm3878, %v3894
        %3905 = vst.msk [vmem:[#allocation3 + $0x30] sm:$0xff] %vm3878, %v3896
        %3906 = vst.msk [vmem:[#allocation3 + $0x38] sm:$0xff] %vm3878, %v3898
        %v3907 = vld [vmem:[#allocation2] sm:$0xff]
        %v3908 = vld [vmem:[#allocation2 + $0x8] sm:$0xff]
        %v3909 = vld [vmem:[#allocation2 + $0x10] sm:$0xff]
        %v3910 = vld [vmem:[#allocation2 + $0x18] sm:$0xff]
        %3915 = vrot.lane.b32.xlu0 %v3907, 126
        %v3916 = vpop.permute.xlu0 %3915
        %3917 = vrot.lane.b32.xlu0 %v3908, 126
        %v3918 = vpop.permute.xlu0 %3917
        %3919 = vrot.lane.b32.xlu0 %v3909, 126
        %v3920 = vpop.permute.xlu0 %3919
        %3921 = vrot.lane.b32.xlu0 %v3910, 126
        %v3922 = vpop.permute.xlu0 %3921
        %3927 = vst.msk [vmem:[#allocation3 + $0x40] sm:$0xff] %vm3878, %v3916
        %3928 = vst.msk [vmem:[#allocation3 + $0x48] sm:$0xff] %vm3878, %v3918
        %3929 = vst.msk [vmem:[#allocation3 + $0x50] sm:$0xff] %vm3878, %v3920
        %3930 = vst.msk [vmem:[#allocation3 + $0x58] sm:$0xff] %vm3878, %v3922
        %v3931 = vld [vmem:[#allocation2] sm:$0xff]
        %v3932 = vld [vmem:[#allocation2 + $0x8] sm:$0xff]
        %v3933 = vld [vmem:[#allocation2 + $0x10] sm:$0xff]
        %v3934 = vld [vmem:[#allocation2 + $0x18] sm:$0xff]
        %3939 = vrot.lane.b32.xlu0 %v3931, 125
        %v3940 = vpop.permute.xlu0 %3939
        %3941 = vrot.lane.b32.xlu0 %v3932, 125
        %v3942 = vpop.permute.xlu0 %3941
        %3943 = vrot.lane.b32.xlu0 %v3933, 125
        %v3944 = vpop.permute.xlu0 %3943
        %3945 = vrot.lane.b32.xlu0 %v3934, 125
        %v3946 = vpop.permute.xlu0 %3945
        %3951 = vst.msk [vmem:[#allocation3 + $0x60] sm:$0xff] %vm3878, %v3940
        %3952 = vst.msk [vmem:[#allocation3 + $0x68] sm:$0xff] %vm3878, %v3942
        %3953 = vst.msk [vmem:[#allocation3 + $0x70] sm:$0xff] %vm3878, %v3944
        %3954 = vst.msk [vmem:[#allocation3 + $0x78] sm:$0xff] %vm3878, %v3946
        %v3955 = vld [vmem:[#allocation2] sm:$0xff]
        %v3956 = vld [vmem:[#allocation2 + $0x8] sm:$0xff]
        %v3957 = vld [vmem:[#allocation2 + $0x10] sm:$0xff]
        %v3958 = vld [vmem:[#allocation2 + $0x18] sm:$0xff]
        %3963 = vrot.lane.b32.xlu0 %v3955, 124
        %v3964 = vpop.permute.xlu0 %3963
        %3965 = vrot.lane.b32.xlu0 %v3956, 124
        %v3966 = vpop.permute.xlu0 %3965
        %3967 = vrot.lane.b32.xlu0 %v3957, 124
        %v3968 = vpop.permute.xlu0 %3967
        %3969 = vrot.lane.b32.xlu0 %v3958, 124
        %v3970 = vpop.permute.xlu0 %3969
        %3975 = vst.msk [vmem:[#allocation3 + $0x80] sm:$0xff] %vm3878, %v3964
        %3976 = vst.msk [vmem:[#allocation3 + $0x88] sm:$0xff] %vm3878, %v3966
        %3977 = vst.msk [vmem:[#allocation3 + $0x90] sm:$0xff] %vm3878, %v3968
        %3978 = vst.msk [vmem:[#allocation3 + $0x98] sm:$0xff] %vm3878, %v3970
        %v3979 = vld [vmem:[#allocation2] sm:$0xff]
        %v3980 = vld [vmem:[#allocation2 + $0x8] sm:$0xff]
        %v3981 = vld [vmem:[#allocation2 + $0x10] sm:$0xff]
        %v3982 = vld [vmem:[#allocation2 + $0x18] sm:$0xff]
        %3987 = vrot.lane.b32.xlu0 %v3979, 123
        %v3988 = vpop.permute.xlu0 %3987
        %3989 = vrot.lane.b32.xlu0 %v3980, 123
        %v3990 = vpop.permute.xlu0 %3989
        %3991 = vrot.lane.b32.xlu0 %v3981, 123
        %v3992 = vpop.permute.xlu0 %3991
        %3993 = vrot.lane.b32.xlu0 %v3982, 123
        %v3994 = vpop.permute.xlu0 %3993
        %3999 = vst.msk [vmem:[#allocation3 + $0xa0] sm:$0xff] %vm3878, %v3988
        %4000 = vst.msk [vmem:[#allocation3 + $0xa8] sm:$0xff] %vm3878, %v3990
        %4001 = vst.msk [vmem:[#allocation3 + $0xb0] sm:$0xff] %vm3878, %v3992
        %4002 = vst.msk [vmem:[#allocation3 + $0xb8] sm:$0xff] %vm3878, %v3994
        %v4003 = vld [vmem:[#allocation2] sm:$0xff]
        %v4004 = vld [vmem:[#allocation2 + $0x8] sm:$0xff]
        %v4005 = vld [vmem:[#allocation2 + $0x10] sm:$0xff]
        %v4006 = vld [vmem:[#allocation2 + $0x18] sm:$0xff]
        %4011 = vrot.lane.b32.xlu0 %v4003, 122
        %v4012 = vpop.permute.xlu0 %4011
        %4013 = vrot.lane.b32.xlu0 %v4004, 122
        %v4014 = vpop.permute.xlu0 %4013
        %4015 = vrot.lane.b32.xlu0 %v4005, 122
        %v4016 = vpop.permute.xlu0 %4015
        %4017 = vrot.lane.b32.xlu0 %v4006, 122
        %v4018 = vpop.permute.xlu0 %4017
        %4023 = vst.msk [vmem:[#allocation3 + $0xc0] sm:$0xff] %vm3878, %v4012
        %4024 = vst.msk [vmem:[#allocation3 + $0xc8] sm:$0xff] %vm3878, %v4014
        %4025 = vst.msk [vmem:[#allocation3 + $0xd0] sm:$0xff] %vm3878, %v4016
        %4026 = vst.msk [vmem:[#allocation3 + $0xd8] sm:$0xff] %vm3878, %v4018
        %v4027 = vld [vmem:[#allocation2] sm:$0xff]
        %v4028 = vld [vmem:[#allocation2 + $0x8] sm:$0xff]
        %v4029 = vld [vmem:[#allocation2 + $0x10] sm:$0xff]
        %v4030 = vld [vmem:[#allocation2 + $0x18] sm:$0xff]
        %4035 = vrot.lane.b32.xlu0 %v4027, 121
        %v4036 = vpop.permute.xlu0 %4035
        %4037 = vrot.lane.b32.xlu0 %v4028, 121
        %v4038 = vpop.permute.xlu0 %4037
        %4039 = vrot.lane.b32.xlu0 %v4029, 121
        %v4040 = vpop.permute.xlu0 %4039
        %4041 = vrot.lane.b32.xlu0 %v4030, 121
        %v4042 = vpop.permute.xlu0 %4041
        %4047 = vst.msk [vmem:[#allocation3 + $0xe0] sm:$0xff] %vm3878, %v4036
        %4048 = vst.msk [vmem:[#allocation3 + $0xe8] sm:$0xff] %vm3878, %v4038
        %4049 = vst.msk [vmem:[#allocation3 + $0xf0] sm:$0xff] %vm3878, %v4040
        %4050 = vst.msk [vmem:[#allocation3 + $0xf8] sm:$0xff] %vm3878, %v4042
        %v4051 = vld [vmem:[#allocation2] sm:$0xff]
        %v4052 = vld [vmem:[#allocation2 + $0x8] sm:$0xff]
        %v4053 = vld [vmem:[#allocation2 + $0x10] sm:$0xff]
        %v4054 = vld [vmem:[#allocation2 + $0x18] sm:$0xff]
        %4059 = vrot.lane.b32.xlu0 %v4051, 120
        %v4060 = vpop.permute.xlu0 %4059
        %4061 = vrot.lane.b32.xlu0 %v4052, 120
        %v4062 = vpop.permute.xlu0 %4061
        %4063 = vrot.lane.b32.xlu0 %v4053, 120
        %v4064 = vpop.permute.xlu0 %4063
        %4065 = vrot.lane.b32.xlu0 %v4054, 120
        %v4066 = vpop.permute.xlu0 %4065
        %4071 = vst.msk [vmem:[#allocation3 + $0x100] sm:$0xff] %vm3878, %v4060
        %4072 = vst.msk [vmem:[#allocation3 + $0x108] sm:$0xff] %vm3878, %v4062
        %4073 = vst.msk [vmem:[#allocation3 + $0x110] sm:$0xff] %vm3878, %v4064
        %4074 = vst.msk [vmem:[#allocation3 + $0x118] sm:$0xff] %vm3878, %v4066
        %v4075 = vld [vmem:[#allocation2] sm:$0xff]
        %v4076 = vld [vmem:[#allocation2 + $0x8] sm:$0xff]
        %v4077 = vld [vmem:[#allocation2 + $0x10] sm:$0xff]
        %v4078 = vld [vmem:[#allocation2 + $0x18] sm:$0xff]
        %4083 = vrot.lane.b32.xlu0 %v4075, 119
        %v4084 = vpop.permute.xlu0 %4083
        %4085 = vrot.lane.b32.xlu0 %v4076, 119
        %v4086 = vpop.permute.xlu0 %4085
        %4087 = vrot.lane.b32.xlu0 %v4077, 119
        %v4088 = vpop.permute.xlu0 %4087
        %4089 = vrot.lane.b32.xlu0 %v4078, 119
        %v4090 = vpop.permute.xlu0 %4089
        %4095 = vst.msk [vmem:[#allocation3 + $0x120] sm:$0xff] %vm3878, %v4084
        %4096 = vst.msk [vmem:[#allocation3 + $0x128] sm:$0xff] %vm3878, %v4086
        %4097 = vst.msk [vmem:[#allocation3 + $0x130] sm:$0xff] %vm3878, %v4088
        %4098 = vst.msk [vmem:[#allocation3 + $0x138] sm:$0xff] %vm3878, %v4090
        %v4099 = vld [vmem:[#allocation2] sm:$0xff]
        %v4100 = vld [vmem:[#allocation2 + $0x8] sm:$0xff]
        %v4101 = vld [vmem:[#allocation2 + $0x10] sm:$0xff]
        %v4102 = vld [vmem:[#allocation2 + $0x18] sm:$0xff]
        %4107 = vrot.lane.b32.xlu0 %v4099, 118
        %v4108 = vpop.permute.xlu0 %4107
        %4109 = vrot.lane.b32.xlu0 %v4100, 118
        %v4110 = vpop.permute.xlu0 %4109
        %4111 = vrot.lane.b32.xlu0 %v4101, 118
        %v4112 = vpop.permute.xlu0 %4111
        %4113 = vrot.lane.b32.xlu0 %v4102, 118
        %v4114 = vpop.permute.xlu0 %4113
        %4119 = vst.msk [vmem:[#allocation3 + $0x140] sm:$0xff] %vm3878, %v4108
        %4120 = vst.msk [vmem:[#allocation3 + $0x148] sm:$0xff] %vm3878, %v4110
        %4121 = vst.msk [vmem:[#allocation3 + $0x150] sm:$0xff] %vm3878, %v4112
        %4122 = vst.msk [vmem:[#allocation3 + $0x158] sm:$0xff] %vm3878, %v4114
        %v4123 = vld [vmem:[#allocation2] sm:$0xff]
        %v4124 = vld [vmem:[#allocation2 + $0x8] sm:$0xff]
        %v4125 = vld [vmem:[#allocation2 + $0x10] sm:$0xff]
        %v4126 = vld [vmem:[#allocation2 + $0x18] sm:$0xff]
        %4131 = vrot.lane.b32.xlu0 %v4123, 117
        %v4132 = vpop.permute.xlu0 %4131
        %4133 = vrot.lane.b32.xlu0 %v4124, 117
        %v4134 = vpop.permute.xlu0 %4133
        %4135 = vrot.lane.b32.xlu0 %v4125, 117
        %v4136 = vpop.permute.xlu0 %4135
        %4137 = vrot.lane.b32.xlu0 %v4126, 117
        %v4138 = vpop.permute.xlu0 %4137
        %4143 = vst.msk [vmem:[#allocation3 + $0x160] sm:$0xff] %vm3878, %v4132
        %4144 = vst.msk [vmem:[#allocation3 + $0x168] sm:$0xff] %vm3878, %v4134
        %4145 = vst.msk [vmem:[#allocation3 + $0x170] sm:$0xff] %vm3878, %v4136
        %4146 = vst.msk [vmem:[#allocation3 + $0x178] sm:$0xff] %vm3878, %v4138
        %v4147 = vld [vmem:[#allocation2] sm:$0xff]
        %v4148 = vld [vmem:[#allocation2 + $0x8] sm:$0xff]
        %v4149 = vld [vmem:[#allocation2 + $0x10] sm:$0xff]
        %v4150 = vld [vmem:[#allocation2 + $0x18] sm:$0xff]
        %4155 = vrot.lane.b32.xlu0 %v4147, 116
        %v4156 = vpop.permute.xlu0 %4155
        %4157 = vrot.lane.b32.xlu0 %v4148, 116
        %v4158 = vpop.permute.xlu0 %4157
        %4159 = vrot.lane.b32.xlu0 %v4149, 116
        %v4160 = vpop.permute.xlu0 %4159
        %4161 = vrot.lane.b32.xlu0 %v4150, 116
        %v4162 = vpop.permute.xlu0 %4161
        %4167 = vst.msk [vmem:[#allocation3 + $0x180] sm:$0xff] %vm3878, %v4156
        %4168 = vst.msk [vmem:[#allocation3 + $0x188] sm:$0xff] %vm3878, %v4158
        %4169 = vst.msk [vmem:[#allocation3 + $0x190] sm:$0xff] %vm3878, %v4160
        %4170 = vst.msk [vmem:[#allocation3 + $0x198] sm:$0xff] %vm3878, %v4162
        %v4171 = vld [vmem:[#allocation2] sm:$0xff]
        %v4172 = vld [vmem:[#allocation2 + $0x8] sm:$0xff]
        %v4173 = vld [vmem:[#allocation2 + $0x10] sm:$0xff]
        %v4174 = vld [vmem:[#allocation2 + $0x18] sm:$0xff]
        %4179 = vrot.lane.b32.xlu0 %v4171, 115
        %v4180 = vpop.permute.xlu0 %4179
        %4181 = vrot.lane.b32.xlu0 %v4172, 115
        %v4182 = vpop.permute.xlu0 %4181
        %4183 = vrot.lane.b32.xlu0 %v4173, 115
        %v4184 = vpop.permute.xlu0 %4183
        %4185 = vrot.lane.b32.xlu0 %v4174, 115
        %v4186 = vpop.permute.xlu0 %4185
        %4191 = vst.msk [vmem:[#allocation3 + $0x1a0] sm:$0xff] %vm3878, %v4180
        %4192 = vst.msk [vmem:[#allocation3 + $0x1a8] sm:$0xff] %vm3878, %v4182
        %4193 = vst.msk [vmem:[#allocation3 + $0x1b0] sm:$0xff] %vm3878, %v4184
        %4194 = vst.msk [vmem:[#allocation3 + $0x1b8] sm:$0xff] %vm3878, %v4186
        %v4195 = vld [vmem:[#allocation2] sm:$0xff]
        %v4196 = vld [vmem:[#allocation2 + $0x8] sm:$0xff]
        %v4197 = vld [vmem:[#allocation2 + $0x10] sm:$0xff]
        %v4198 = vld [vmem:[#allocation2 + $0x18] sm:$0xff]
        %4203 = vrot.lane.b32.xlu0 %v4195, 114
        %v4204 = vpop.permute.xlu0 %4203
        %4205 = vrot.lane.b32.xlu0 %v4196, 114
        %v4206 = vpop.permute.xlu0 %4205
        %4207 = vrot.lane.b32.xlu0 %v4197, 114
        %v4208 = vpop.permute.xlu0 %4207
        %4209 = vrot.lane.b32.xlu0 %v4198, 114
        %v4210 = vpop.permute.xlu0 %4209
        %4215 = vst.msk [vmem:[#allocation3 + $0x1c0] sm:$0xff] %vm3878, %v4204
        %4216 = vst.msk [vmem:[#allocation3 + $0x1c8] sm:$0xff] %vm3878, %v4206
        %4217 = vst.msk [vmem:[#allocation3 + $0x1d0] sm:$0xff] %vm3878, %v4208
        %4218 = vst.msk [vmem:[#allocation3 + $0x1d8] sm:$0xff] %vm3878, %v4210
        %v4219 = vld [vmem:[#allocation3] sm:$0xff]
        %v4220 = vld [vmem:[#allocation3 + $0x8] sm:$0xff]
        %v4221 = vld [vmem:[#allocation3 + $0x10] sm:$0xff]
        %v4222 = vld [vmem:[#allocation3 + $0x18] sm:$0xff]
        %v4223 = vld [vmem:[#allocation3 + $0x20] sm:$0xff]
        %v4224 = vld [vmem:[#allocation3 + $0x28] sm:$0xff]
        %v4225 = vld [vmem:[#allocation3 + $0x30] sm:$0xff]
        %v4226 = vld [vmem:[#allocation3 + $0x38] sm:$0xff]
        %v4227 = vld [vmem:[#allocation3 + $0x40] sm:$0xff]
        %v4228 = vld [vmem:[#allocation3 + $0x48] sm:$0xff]
        %v4229 = vld [vmem:[#allocation3 + $0x50] sm:$0xff]
        %v4230 = vld [vmem:[#allocation3 + $0x58] sm:$0xff]
        %v4231 = vld [vmem:[#allocation3 + $0x60] sm:$0xff]
        %v4232 = vld [vmem:[#allocation3 + $0x68] sm:$0xff]
        %v4233 = vld [vmem:[#allocation3 + $0x70] sm:$0xff]
        %v4234 = vld [vmem:[#allocation3 + $0x78] sm:$0xff]
        %v4235 = vld [vmem:[#allocation3 + $0x80] sm:$0xff]
        %v4236 = vld [vmem:[#allocation3 + $0x88] sm:$0xff]
        %v4237 = vld [vmem:[#allocation3 + $0x90] sm:$0xff]
        %v4238 = vld [vmem:[#allocation3 + $0x98] sm:$0xff]
        %v4239 = vld [vmem:[#allocation3 + $0xa0] sm:$0xff]
        %v4240 = vld [vmem:[#allocation3 + $0xa8] sm:$0xff]
        %v4241 = vld [vmem:[#allocation3 + $0xb0] sm:$0xff]
        %v4242 = vld [vmem:[#allocation3 + $0xb8] sm:$0xff]
        %v4243 = vld [vmem:[#allocation3 + $0xc0] sm:$0xff]
        %v4244 = vld [vmem:[#allocation3 + $0xc8] sm:$0xff]
        %v4245 = vld [vmem:[#allocation3 + $0xd0] sm:$0xff]
        %v4246 = vld [vmem:[#allocation3 + $0xd8] sm:$0xff]
        %v4247 = vld [vmem:[#allocation3 + $0xe0] sm:$0xff]
        %v4248 = vld [vmem:[#allocation3 + $0xe8] sm:$0xff]
        %v4249 = vld [vmem:[#allocation3 + $0xf0] sm:$0xff]
        %v4250 = vld [vmem:[#allocation3 + $0xf8] sm:$0xff]
        %v4251 = vld [vmem:[#allocation3 + $0x100] sm:$0xff]
        %v4252 = vld [vmem:[#allocation3 + $0x108] sm:$0xff]
        %v4253 = vld [vmem:[#allocation3 + $0x110] sm:$0xff]
        %v4254 = vld [vmem:[#allocation3 + $0x118] sm:$0xff]
        %v4255 = vld [vmem:[#allocation3 + $0x120] sm:$0xff]
        %v4256 = vld [vmem:[#allocation3 + $0x128] sm:$0xff]
        %v4257 = vld [vmem:[#allocation3 + $0x130] sm:$0xff]
        %v4258 = vld [vmem:[#allocation3 + $0x138] sm:$0xff]
        %v4259 = vld [vmem:[#allocation3 + $0x140] sm:$0xff]
        %v4260 = vld [vmem:[#allocation3 + $0x148] sm:$0xff]
        %v4261 = vld [vmem:[#allocation3 + $0x150] sm:$0xff]
        %v4262 = vld [vmem:[#allocation3 + $0x158] sm:$0xff]
        %v4263 = vld [vmem:[#allocation3 + $0x160] sm:$0xff]
        %v4264 = vld [vmem:[#allocation3 + $0x168] sm:$0xff]
        %v4265 = vld [vmem:[#allocation3 + $0x170] sm:$0xff]
        %v4266 = vld [vmem:[#allocation3 + $0x178] sm:$0xff]
        %v4267 = vld [vmem:[#allocation3 + $0x180] sm:$0xff]
        %v4268 = vld [vmem:[#allocation3 + $0x188] sm:$0xff]
        %v4269 = vld [vmem:[#allocation3 + $0x190] sm:$0xff]
        %v4270 = vld [vmem:[#allocation3 + $0x198] sm:$0xff]
        %v4271 = vld [vmem:[#allocation3 + $0x1a0] sm:$0xff]
        %v4272 = vld [vmem:[#allocation3 + $0x1a8] sm:$0xff]
        %v4273 = vld [vmem:[#allocation3 + $0x1b0] sm:$0xff]
        %v4274 = vld [vmem:[#allocation3 + $0x1b8] sm:$0xff]
        %v4275 = vld [vmem:[#allocation3 + $0x1c0] sm:$0xff]
        %v4276 = vld [vmem:[#allocation3 + $0x1c8] sm:$0xff]
        %v4277 = vld [vmem:[#allocation3 + $0x1d0] sm:$0xff]
        %v4278 = vld [vmem:[#allocation3 + $0x1d8] sm:$0xff]
        %v4279 = vld [vmem:[#allocation3 + $0x1e0] sm:$0xff]
        %v4280 = vld [vmem:[#allocation14] sm:$0xff]
        %v4281 = vld [vmem:[#allocation14 + $0x8] sm:$0xff]
        %v4282 = vld [vmem:[#allocation14 + $0x10] sm:$0xff]
        %v4283 = vld [vmem:[#allocation14 + $0x18] sm:$0xff]
        %v4284 = vld [vmem:[#allocation14 + $0x20] sm:$0xff]
        %v4285 = vld [vmem:[#allocation14 + $0x28] sm:$0xff]
        %v4286 = vld [vmem:[#allocation14 + $0x30] sm:$0xff]
        %v4287 = vld [vmem:[#allocation14 + $0x38] sm:$0xff]
        %v4288 = vld [vmem:[#allocation14 + $0x40] sm:$0xff]
        %v4289 = vld [vmem:[#allocation14 + $0x48] sm:$0xff]
        %v4290 = vld [vmem:[#allocation14 + $0x50] sm:$0xff]
        %v4291 = vld [vmem:[#allocation14 + $0x58] sm:$0xff]
        %v4292 = vld [vmem:[#allocation14 + $0x60] sm:$0xff]
        %v4293 = vld [vmem:[#allocation14 + $0x68] sm:$0xff]
        %v4294 = vld [vmem:[#allocation14 + $0x70] sm:$0xff]
        %v4295 = vld [vmem:[#allocation14 + $0x78] sm:$0xff]
        %v4296 = vld [vmem:[#allocation14 + $0x80] sm:$0xff]
        %v4297 = vld [vmem:[#allocation14 + $0x88] sm:$0xff]
        %v4298 = vld [vmem:[#allocation14 + $0x90] sm:$0xff]
        %v4299 = vld [vmem:[#allocation14 + $0x98] sm:$0xff]
        %v4300 = vld [vmem:[#allocation14 + $0xa0] sm:$0xff]
        %v4301 = vld [vmem:[#allocation14 + $0xa8] sm:$0xff]
        %v4302 = vld [vmem:[#allocation14 + $0xb0] sm:$0xff]
        %v4303 = vld [vmem:[#allocation14 + $0xb8] sm:$0xff]
        %v4304 = vld [vmem:[#allocation14 + $0xc0] sm:$0xff]
        %v4305 = vld [vmem:[#allocation14 + $0xc8] sm:$0xff]
        %v4306 = vld [vmem:[#allocation14 + $0xd0] sm:$0xff]
        %v4307 = vld [vmem:[#allocation14 + $0xd8] sm:$0xff]
        %v4308 = vld [vmem:[#allocation14 + $0xe0] sm:$0xff]
        %v4309 = vld [vmem:[#allocation14 + $0xe8] sm:$0xff]
        %v4310 = vld [vmem:[#allocation14 + $0xf0] sm:$0xff]
        %v4311 = vld [vmem:[#allocation14 + $0xf8] sm:$0xff]
        %v4312 = vld [vmem:[#allocation14 + $0x100] sm:$0xff]
        %v4313 = vld [vmem:[#allocation14 + $0x108] sm:$0xff]
        %v4314 = vld [vmem:[#allocation14 + $0x110] sm:$0xff]
        %v4315 = vld [vmem:[#allocation14 + $0x118] sm:$0xff]
        %v4316 = vld [vmem:[#allocation14 + $0x120] sm:$0xff]
        %v4317 = vld [vmem:[#allocation14 + $0x128] sm:$0xff]
        %v4318 = vld [vmem:[#allocation14 + $0x130] sm:$0xff]
        %v4319 = vld [vmem:[#allocation14 + $0x138] sm:$0xff]
        %v4320 = vld [vmem:[#allocation14 + $0x140] sm:$0xff]
        %v4321 = vld [vmem:[#allocation14 + $0x148] sm:$0xff]
        %v4322 = vld [vmem:[#allocation14 + $0x150] sm:$0xff]
        %v4323 = vld [vmem:[#allocation14 + $0x158] sm:$0xff]
        %v4324 = vld [vmem:[#allocation14 + $0x160] sm:$0xff]
        %v4325 = vld [vmem:[#allocation14 + $0x168] sm:$0xff]
        %v4326 = vld [vmem:[#allocation14 + $0x170] sm:$0xff]
        %v4327 = vld [vmem:[#allocation14 + $0x178] sm:$0xff]
        %v4328 = vld [vmem:[#allocation14 + $0x180] sm:$0xff]
        %v4329 = vld [vmem:[#allocation14 + $0x188] sm:$0xff]
        %v4330 = vld [vmem:[#allocation14 + $0x190] sm:$0xff]
        %v4331 = vld [vmem:[#allocation14 + $0x198] sm:$0xff]
        %v4332 = vld [vmem:[#allocation14 + $0x1a0] sm:$0xff]
        %v4333 = vld [vmem:[#allocation14 + $0x1a8] sm:$0xff]
        %v4334 = vld [vmem:[#allocation14 + $0x1b0] sm:$0xff]
        %v4335 = vld [vmem:[#allocation14 + $0x1b8] sm:$0xff]
        %v4336 = vld [vmem:[#allocation14 + $0x1c0] sm:$0xff]
        %v4337 = vld [vmem:[#allocation14 + $0x1c8] sm:$0xff]
        %v4338 = vld [vmem:[#allocation14 + $0x1d0] sm:$0xff]
        %v4339 = vld [vmem:[#allocation14 + $0x1d8] sm:$0xff]
        %v4340 = vld [vmem:[#allocation14 + $0x1e0] sm:$0xff]
        %v4341 = vld [vmem:[#allocation14 + $0x1e8] sm:$0xff]
        %v4342 = vld [vmem:[#allocation14 + $0x1f0] sm:$0xff]
        %v4343 = vld [vmem:[#allocation14 + $0x1f8] sm:$0xff]
        %v4344 = vld [vmem:[#allocation14 + $0x200] sm:$0xff]
        %v4345 = vld [vmem:[#allocation14 + $0x208] sm:$0xff]
        %v4346 = vld [vmem:[#allocation14 + $0x210] sm:$0xff]
        %v4347 = vld [vmem:[#allocation14 + $0x218] sm:$0xff]
        %v4348 = vld [vmem:[#allocation14 + $0x220] sm:$0xff]
        %v4349 = vld [vmem:[#allocation14 + $0x228] sm:$0xff]
        %v4350 = vld [vmem:[#allocation14 + $0x230] sm:$0xff]
        %v4351 = vld [vmem:[#allocation14 + $0x238] sm:$0xff]
        %v4352 = vld [vmem:[#allocation14 + $0x240] sm:$0xff]
        %v4353 = vld [vmem:[#allocation14 + $0x248] sm:$0xff]
        %v4354 = vld [vmem:[#allocation14 + $0x250] sm:$0xff]
        %v4355 = vld [vmem:[#allocation14 + $0x258] sm:$0xff]
        %v4356 = vld [vmem:[#allocation14 + $0x260] sm:$0xff]
        %v4357 = vld [vmem:[#allocation14 + $0x268] sm:$0xff]
        %v4358 = vld [vmem:[#allocation14 + $0x270] sm:$0xff]
        %v4359 = vld [vmem:[#allocation14 + $0x278] sm:$0xff]
        %v4360 = vld [vmem:[#allocation14 + $0x280] sm:$0xff]
        %v4361 = vld [vmem:[#allocation14 + $0x288] sm:$0xff]
        %v4362 = vld [vmem:[#allocation14 + $0x290] sm:$0xff]
        %v4363 = vld [vmem:[#allocation14 + $0x298] sm:$0xff]
        %v4364 = vld [vmem:[#allocation14 + $0x2a0] sm:$0xff]
        %v4365 = vld [vmem:[#allocation14 + $0x2a8] sm:$0xff]
        %v4366 = vld [vmem:[#allocation14 + $0x2b0] sm:$0xff]
        %v4367 = vld [vmem:[#allocation14 + $0x2b8] sm:$0xff]
        %v4368 = vld [vmem:[#allocation14 + $0x2c0] sm:$0xff]
        %v4369 = vld [vmem:[#allocation14 + $0x2c8] sm:$0xff]
        %v4370 = vld [vmem:[#allocation14 + $0x2d0] sm:$0xff]
        %v4371 = vld [vmem:[#allocation14 + $0x2d8] sm:$0xff]
        %v4372 = vld [vmem:[#allocation14 + $0x2e0] sm:$0xff]
        %v4373 = vld [vmem:[#allocation14 + $0x2e8] sm:$0xff]
        %v4374 = vld [vmem:[#allocation14 + $0x2f0] sm:$0xff]
        %v4375 = vld [vmem:[#allocation14 + $0x2f8] sm:$0xff]
        %v4376 = vld [vmem:[#allocation14 + $0x300] sm:$0xff]
        %v4377 = vld [vmem:[#allocation14 + $0x308] sm:$0xff]
        %v4378 = vld [vmem:[#allocation14 + $0x310] sm:$0xff]
        %v4379 = vld [vmem:[#allocation14 + $0x318] sm:$0xff]
        %v4380 = vld [vmem:[#allocation14 + $0x320] sm:$0xff]
        %v4381 = vld [vmem:[#allocation14 + $0x328] sm:$0xff]
        %v4382 = vld [vmem:[#allocation14 + $0x330] sm:$0xff]
        %v4383 = vld [vmem:[#allocation14 + $0x338] sm:$0xff]
        %v4384 = vld [vmem:[#allocation14 + $0x340] sm:$0xff]
        %v4385 = vld [vmem:[#allocation14 + $0x348] sm:$0xff]
        %v4386 = vld [vmem:[#allocation14 + $0x350] sm:$0xff]
        %v4387 = vld [vmem:[#allocation14 + $0x358] sm:$0xff]
        %v4388 = vld [vmem:[#allocation14 + $0x360] sm:$0xff]
        %v4389 = vld [vmem:[#allocation14 + $0x368] sm:$0xff]
        %v4390 = vld [vmem:[#allocation14 + $0x370] sm:$0xff]
        %v4391 = vld [vmem:[#allocation14 + $0x378] sm:$0xff]
        %v4392 = vld [vmem:[#allocation14 + $0x380] sm:$0xff]
        %v4393 = vld [vmem:[#allocation14 + $0x388] sm:$0xff]
        %v4394 = vld [vmem:[#allocation14 + $0x390] sm:$0xff]
        %v4395 = vld [vmem:[#allocation14 + $0x398] sm:$0xff]
        %v4396 = vld [vmem:[#allocation14 + $0x3a0] sm:$0xff]
        %v4397 = vld [vmem:[#allocation14 + $0x3a8] sm:$0xff]
        %v4398 = vld [vmem:[#allocation14 + $0x3b0] sm:$0xff]
        %v4399 = vld [vmem:[#allocation14 + $0x3b8] sm:$0xff]
        %v4400 = vld [vmem:[#allocation14 + $0x3c0] sm:$0xff]
        %v4401 = vld [vmem:[#allocation14 + $0x3c8] sm:$0xff]
        %v4402 = vld [vmem:[#allocation14 + $0x3d0] sm:$0xff]
        %v4403 = vld [vmem:[#allocation14 + $0x3d8] sm:$0xff]
        %v4404 = vld [vmem:[#allocation14 + $0x3e0] sm:$0xff]
        %v4405 = vld [vmem:[#allocation14 + $0x3e8] sm:$0xff]
        %v4406 = vld [vmem:[#allocation14 + $0x3f0] sm:$0xff]
        %v4407 = vld [vmem:[#allocation14 + $0x3f8] sm:$0xff]
        %v4408 = vld [vmem:[#allocation14 + $0x400] sm:$0xff]
        %v4409 = vld [vmem:[#allocation14 + $0x408] sm:$0xff]
        %v4410 = vld [vmem:[#allocation14 + $0x410] sm:$0xff]
        %v4411 = vld [vmem:[#allocation14 + $0x418] sm:$0xff]
        %v4412 = vld [vmem:[#allocation14 + $0x420] sm:$0xff]
        %v4413 = vld [vmem:[#allocation14 + $0x428] sm:$0xff]
        %v4414 = vld [vmem:[#allocation14 + $0x430] sm:$0xff]
        %v4415 = vld [vmem:[#allocation14 + $0x438] sm:$0xff]
        %v4416 = vld [vmem:[#allocation14 + $0x440] sm:$0xff]
        %v4417 = vld [vmem:[#allocation14 + $0x448] sm:$0xff]
        %v4418 = vld [vmem:[#allocation14 + $0x450] sm:$0xff]
        %v4419 = vld [vmem:[#allocation14 + $0x458] sm:$0xff]
        %v4420 = vld [vmem:[#allocation14 + $0x460] sm:$0xff]
        %v4421 = vld [vmem:[#allocation14 + $0x468] sm:$0xff]
        %v4422 = vld [vmem:[#allocation14 + $0x470] sm:$0xff]
        %v4423 = vld [vmem:[#allocation14 + $0x478] sm:$0xff]
        %v4424 = vld [vmem:[#allocation14 + $0x480] sm:$0xff]
        %v4425 = vld [vmem:[#allocation14 + $0x488] sm:$0xff]
        %v4426 = vld [vmem:[#allocation14 + $0x490] sm:$0xff]
        %v4427 = vld [vmem:[#allocation14 + $0x498] sm:$0xff]
        %v4428 = vld [vmem:[#allocation14 + $0x4a0] sm:$0xff]
        %v4429 = vld [vmem:[#allocation14 + $0x4a8] sm:$0xff]
        %v4430 = vld [vmem:[#allocation14 + $0x4b0] sm:$0xff]
        %v4431 = vld [vmem:[#allocation14 + $0x4b8] sm:$0xff]
        %v4432 = vld [vmem:[#allocation14 + $0x4c0] sm:$0xff]
        %v4433 = vld [vmem:[#allocation14 + $0x4c8] sm:$0xff]
        %v4434 = vld [vmem:[#allocation14 + $0x4d0] sm:$0xff]
        %v4435 = vld [vmem:[#allocation14 + $0x4d8] sm:$0xff]
        %v4436 = vld [vmem:[#allocation14 + $0x4e0] sm:$0xff]
        %v4437 = vld [vmem:[#allocation14 + $0x4e8] sm:$0xff]
        %v4438 = vld [vmem:[#allocation14 + $0x4f0] sm:$0xff]
        %v4439 = vld [vmem:[#allocation14 + $0x4f8] sm:$0xff]
        %v4440 = vld [vmem:[#allocation14 + $0x500] sm:$0xff]
        %v4441 = vld [vmem:[#allocation14 + $0x508] sm:$0xff]
        %v4442 = vld [vmem:[#allocation14 + $0x510] sm:$0xff]
        %v4443 = vld [vmem:[#allocation14 + $0x518] sm:$0xff]
        %v4444 = vld [vmem:[#allocation14 + $0x520] sm:$0xff]
        %v4445 = vld [vmem:[#allocation14 + $0x528] sm:$0xff]
        %v4446 = vld [vmem:[#allocation14 + $0x530] sm:$0xff]
        %v4447 = vld [vmem:[#allocation14 + $0x538] sm:$0xff]
        %v4448 = vld [vmem:[#allocation14 + $0x540] sm:$0xff]
        %v4449 = vld [vmem:[#allocation14 + $0x548] sm:$0xff]
        %v4450 = vld [vmem:[#allocation14 + $0x550] sm:$0xff]
        %v4451 = vld [vmem:[#allocation14 + $0x558] sm:$0xff]
        %v4452 = vld [vmem:[#allocation14 + $0x560] sm:$0xff]
        %v4453 = vld [vmem:[#allocation14 + $0x568] sm:$0xff]
        %v4454 = vld [vmem:[#allocation14 + $0x570] sm:$0xff]
        %v4455 = vld [vmem:[#allocation14 + $0x578] sm:$0xff]
        %v4456 = vld [vmem:[#allocation14 + $0x580] sm:$0xff]
        %v4457 = vld [vmem:[#allocation14 + $0x588] sm:$0xff]
        %v4458 = vld [vmem:[#allocation14 + $0x590] sm:$0xff]
        %v4459 = vld [vmem:[#allocation14 + $0x598] sm:$0xff]
        %v4460 = vld [vmem:[#allocation14 + $0x5a0] sm:$0xff]
        %v4461 = vld [vmem:[#allocation14 + $0x5a8] sm:$0xff]
        %v4462 = vld [vmem:[#allocation14 + $0x5b0] sm:$0xff]
        %v4463 = vld [vmem:[#allocation14 + $0x5b8] sm:$0xff]
        %v4464 = vld [vmem:[#allocation14 + $0x5c0] sm:$0xff]
        %v4465 = vld [vmem:[#allocation14 + $0x5c8] sm:$0xff]
        %v4466 = vld [vmem:[#allocation14 + $0x5d0] sm:$0xff]
        %v4467 = vld [vmem:[#allocation14 + $0x5d8] sm:$0xff]
        %v4468 = vld [vmem:[#allocation14 + $0x5e0] sm:$0xff]
        %v4469 = vld [vmem:[#allocation14 + $0x5e8] sm:$0xff]
        %v4470 = vld [vmem:[#allocation14 + $0x5f0] sm:$0xff]
        %v4471 = vld [vmem:[#allocation14 + $0x5f8] sm:$0xff]
        %v4472 = vld [vmem:[#allocation14 + $0x600] sm:$0xff]
        %v4473 = vld [vmem:[#allocation14 + $0x608] sm:$0xff]
        %v4474 = vld [vmem:[#allocation14 + $0x610] sm:$0xff]
        %v4475 = vld [vmem:[#allocation14 + $0x618] sm:$0xff]
        %v4476 = vld [vmem:[#allocation14 + $0x620] sm:$0xff]
        %v4477 = vld [vmem:[#allocation14 + $0x628] sm:$0xff]
        %v4478 = vld [vmem:[#allocation14 + $0x630] sm:$0xff]
        %v4479 = vld [vmem:[#allocation14 + $0x638] sm:$0xff]
        %v4480 = vld [vmem:[#allocation14 + $0x640] sm:$0xff]
        %v4481 = vld [vmem:[#allocation14 + $0x648] sm:$0xff]
        %v4482 = vld [vmem:[#allocation14 + $0x650] sm:$0xff]
        %v4483 = vld [vmem:[#allocation14 + $0x658] sm:$0xff]
        %v4484 = vld [vmem:[#allocation14 + $0x660] sm:$0xff]
        %v4485 = vld [vmem:[#allocation14 + $0x668] sm:$0xff]
        %v4486 = vld [vmem:[#allocation14 + $0x670] sm:$0xff]
        %v4487 = vld [vmem:[#allocation14 + $0x678] sm:$0xff]
        %v4488 = vld [vmem:[#allocation14 + $0x680] sm:$0xff]
        %v4489 = vld [vmem:[#allocation14 + $0x688] sm:$0xff]
        %v4490 = vld [vmem:[#allocation14 + $0x690] sm:$0xff]
        %v4491 = vld [vmem:[#allocation14 + $0x698] sm:$0xff]
        %v4492 = vld [vmem:[#allocation14 + $0x6a0] sm:$0xff]
        %v4493 = vld [vmem:[#allocation14 + $0x6a8] sm:$0xff]
        %v4494 = vld [vmem:[#allocation14 + $0x6b0] sm:$0xff]
        %v4495 = vld [vmem:[#allocation14 + $0x6b8] sm:$0xff]
        %v4496 = vld [vmem:[#allocation14 + $0x6c0] sm:$0xff]
        %v4497 = vld [vmem:[#allocation14 + $0x6c8] sm:$0xff]
        %v4498 = vld [vmem:[#allocation14 + $0x6d0] sm:$0xff]
        %v4499 = vld [vmem:[#allocation14 + $0x6d8] sm:$0xff]
        %v4500 = vld [vmem:[#allocation14 + $0x6e0] sm:$0xff]
        %v4501 = vld [vmem:[#allocation14 + $0x6e8] sm:$0xff]
        %v4502 = vld [vmem:[#allocation14 + $0x6f0] sm:$0xff]
        %v4503 = vld [vmem:[#allocation14 + $0x6f8] sm:$0xff]
        %v4504 = vld [vmem:[#allocation14 + $0x700] sm:$0xff]
        %v4505 = vld [vmem:[#allocation14 + $0x708] sm:$0xff]
        %v4506 = vld [vmem:[#allocation14 + $0x710] sm:$0xff]
        %v4507 = vld [vmem:[#allocation14 + $0x718] sm:$0xff]
        %v4508 = vld [vmem:[#allocation14 + $0x720] sm:$0xff]
        %v4509 = vld [vmem:[#allocation14 + $0x728] sm:$0xff]
        %v4510 = vld [vmem:[#allocation14 + $0x730] sm:$0xff]
        %v4511 = vld [vmem:[#allocation14 + $0x738] sm:$0xff]
        %v4512 = vld [vmem:[#allocation14 + $0x740] sm:$0xff]
        %v4513 = vld [vmem:[#allocation14 + $0x748] sm:$0xff]
        %v4514 = vld [vmem:[#allocation14 + $0x750] sm:$0xff]
        %v4515 = vld [vmem:[#allocation14 + $0x758] sm:$0xff]
        %v4516 = vld [vmem:[#allocation14 + $0x760] sm:$0xff]
        %v4517 = vld [vmem:[#allocation14 + $0x768] sm:$0xff]
        %v4518 = vld [vmem:[#allocation14 + $0x770] sm:$0xff]
        %v4519 = vld [vmem:[#allocation14 + $0x778] sm:$0xff]
        %v4520 = vld [vmem:[#allocation14 + $0x780] sm:$0xff]
        %v4521 = vld [vmem:[#allocation14 + $0x788] sm:$0xff]
        %v4522 = vld [vmem:[#allocation14 + $0x790] sm:$0xff]
        %v4523 = vld [vmem:[#allocation14 + $0x798] sm:$0xff]
        %v4524 = vld [vmem:[#allocation14 + $0x7a0] sm:$0xff]
        %v4525 = vld [vmem:[#allocation14 + $0x7a8] sm:$0xff]
        %v4526 = vld [vmem:[#allocation14 + $0x7b0] sm:$0xff]
        %v4527 = vld [vmem:[#allocation14 + $0x7b8] sm:$0xff]
        %v4528 = vld [vmem:[#allocation14 + $0x7c0] sm:$0xff]
        %v4529 = vld [vmem:[#allocation14 + $0x7c8] sm:$0xff]
        %v4530 = vld [vmem:[#allocation14 + $0x7d0] sm:$0xff]
        %v4531 = vld [vmem:[#allocation14 + $0x7d8] sm:$0xff]
        %v4532 = vld [vmem:[#allocation14 + $0x7e0] sm:$0xff]
        %v4533 = vld [vmem:[#allocation14 + $0x7e8] sm:$0xff]
        %v4534 = vld [vmem:[#allocation14 + $0x7f0] sm:$0xff]
        %v4535 = vld [vmem:[#allocation14 + $0x7f8] sm:$0xff]
        %v4536 = vld [vmem:[#allocation14 + $0x800] sm:$0xff]
        %v4537 = vld [vmem:[#allocation14 + $0x808] sm:$0xff]
        %v4538 = vld [vmem:[#allocation14 + $0x810] sm:$0xff]
        %v4539 = vld [vmem:[#allocation14 + $0x818] sm:$0xff]
        %v4541 = vsel %vm1074, %v4283, 0
        %v4544 = vsel %vm1074, %v4287, 0
        %v4547 = vsel %vm1074, %v4291, 0
        %v4550 = vsel %vm1074, %v4295, 0
        %v4553 = vsel %vm1074, %v4299, 0
        %v4556 = vsel %vm1074, %v4303, 0
        %v4559 = vsel %vm1074, %v4307, 0
        %v4562 = vsel %vm1074, %v4311, 0
        %v4565 = vsel %vm1074, %v4315, 0
        %v4568 = vsel %vm1074, %v4319, 0
        %v4571 = vsel %vm1074, %v4323, 0
        %v4574 = vsel %vm1074, %v4327, 0
        %v4577 = vsel %vm1074, %v4331, 0
        %v4580 = vsel %vm1074, %v4335, 0
        %v4583 = vsel %vm1074, %v4339, 0
        %v4586 = vsel %vm1074, %v4343, 0
        %v4589 = vsel %vm1074, %v4347, 0
        %v4592 = vsel %vm1074, %v4351, 0
        %v4595 = vsel %vm1074, %v4355, 0
        %v4598 = vsel %vm1074, %v4359, 0
        %v4601 = vsel %vm1074, %v4363, 0
        %v4604 = vsel %vm1074, %v4367, 0
        %v4607 = vsel %vm1074, %v4371, 0
        %v4610 = vsel %vm1074, %v4375, 0
        %v4613 = vsel %vm1074, %v4379, 0
        %v4616 = vsel %vm1074, %v4383, 0
        %v4619 = vsel %vm1074, %v4387, 0
        %v4622 = vsel %vm1074, %v4391, 0
        %v4625 = vsel %vm1074, %v4395, 0
        %v4628 = vsel %vm1074, %v4399, 0
        %v4631 = vsel %vm1074, %v4403, 0
        %v4634 = vsel %vm1074, %v4407, 0
        %v4637 = vsel %vm1074, %v4411, 0
        %v4640 = vsel %vm1074, %v4415, 0
        %v4643 = vsel %vm1074, %v4419, 0
        %v4646 = vsel %vm1074, %v4423, 0
        %v4649 = vsel %vm1074, %v4427, 0
        %v4652 = vsel %vm1074, %v4431, 0
        %v4655 = vsel %vm1074, %v4435, 0
        %v4658 = vsel %vm1074, %v4439, 0
        %v4661 = vsel %vm1074, %v4443, 0
        %v4664 = vsel %vm1074, %v4447, 0
        %v4667 = vsel %vm1074, %v4451, 0
        %v4670 = vsel %vm1074, %v4455, 0
        %v4673 = vsel %vm1074, %v4459, 0
        %v4676 = vsel %vm1074, %v4463, 0
        %v4679 = vsel %vm1074, %v4467, 0
        %v4682 = vsel %vm1074, %v4471, 0
        %v4685 = vsel %vm1074, %v4475, 0
        %v4688 = vsel %vm1074, %v4479, 0
        %v4691 = vsel %vm1074, %v4483, 0
        %v4694 = vsel %vm1074, %v4487, 0
        %v4697 = vsel %vm1074, %v4491, 0
        %v4700 = vsel %vm1074, %v4495, 0
        %v4703 = vsel %vm1074, %v4499, 0
        %v4706 = vsel %vm1074, %v4503, 0
        %v4709 = vsel %vm1074, %v4507, 0
        %v4712 = vsel %vm1074, %v4511, 0
        %v4715 = vsel %vm1074, %v4515, 0
        %v4718 = vsel %vm1074, %v4519, 0
        %v4721 = vsel %vm1074, %v4523, 0
        %v4724 = vsel %vm1074, %v4527, 0
        %v4727 = vsel %vm1074, %v4531, 0
        %v4730 = vsel %vm1074, %v4535, 0
        %v4733 = vsel %vm1074, %v4539, 0
        %4735 = vmatprep.subr.mxu0 0.0
        %4736 = vmatpush1.msra.mxu0 %v4219
        %4737 = vmatprep.subr.mxu0 0.0
        %4738 = vmatpush1.msra.mxu0 %v4220
        %4739 = vmatprep.subr.mxu0 0.0
        %4740 = vmatpush1.msra.mxu0 %v4221
        %4741 = vmatprep.subr.mxu0 0.0
        %4742 = vmatpush1.msra.mxu0 %v4222
        %4743 = vmatprep.subr.mxu0 0.0
        %4744 = vmatpush1.msra.mxu0 %v4223
        %4745 = vmatprep.subr.mxu0 0.0
        %4746 = vmatpush1.msra.mxu0 %v4224
        %4747 = vmatprep.subr.mxu0 0.0
        %4748 = vmatpush1.msra.mxu0 %v4225
        %4749 = vmatprep.subr.mxu0 0.0
        %4750 = vmatpush1.msra.mxu0 %v4226
        %4751 = vmatprep.subr.mxu0 0.0
        %4752 = vmatpush1.msra.mxu0 %v4227
        %4753 = vmatprep.subr.mxu0 0.0
        %4754 = vmatpush1.msra.mxu0 %v4228
        %4755 = vmatprep.subr.mxu0 0.0
        %4756 = vmatpush1.msra.mxu0 %v4229
        %4757 = vmatprep.subr.mxu0 0.0
        %4758 = vmatpush1.msra.mxu0 %v4230
        %4759 = vmatprep.subr.mxu0 0.0
        %4760 = vmatpush1.msra.mxu0 %v4231
        %4761 = vmatprep.subr.mxu0 0.0
        %4762 = vmatpush1.msra.mxu0 %v4232
        %4763 = vmatprep.subr.mxu0 0.0
        %4764 = vmatpush1.msra.mxu0 %v4233
        %4765 = vmatprep.subr.mxu0 0.0
        %4766 = vmatpush1.msra.mxu0 %v4234
        %4767 = vmatprep.subr.mxu0 0.0
        %4768 = vmatpush1.msra.mxu0 %v4235
        %4769 = vmatprep.subr.mxu0 0.0
        %4770 = vmatpush1.msra.mxu0 %v4236
        %4771 = vmatprep.subr.mxu0 0.0
        %4772 = vmatpush1.msra.mxu0 %v4237
        %4773 = vmatprep.subr.mxu0 0.0
        %4774 = vmatpush1.msra.mxu0 %v4238
        %4775 = vmatprep.subr.mxu0 0.0
        %4776 = vmatpush1.msra.mxu0 %v4239
        %4777 = vmatprep.subr.mxu0 0.0
        %4778 = vmatpush1.msra.mxu0 %v4240
        %4779 = vmatprep.subr.mxu0 0.0
        %4780 = vmatpush1.msra.mxu0 %v4241
        %4781 = vmatprep.subr.mxu0 0.0
        %4782 = vmatpush1.msra.mxu0 %v4242
        %4783 = vmatprep.subr.mxu0 0.0
        %4784 = vmatpush1.msra.mxu0 %v4243
        %4785 = vmatprep.subr.mxu0 0.0
        %4786 = vmatpush1.msra.mxu0 %v4244
        %4787 = vmatprep.subr.mxu0 0.0
        %4788 = vmatpush1.msra.mxu0 %v4245
        %4789 = vmatprep.subr.mxu0 0.0
        %4790 = vmatpush1.msra.mxu0 %v4246
        %4791 = vmatprep.subr.mxu0 0.0
        %4792 = vmatpush1.msra.mxu0 %v4247
        %4793 = vmatprep.subr.mxu0 0.0
        %4794 = vmatpush1.msra.mxu0 %v4248
        %4795 = vmatprep.subr.mxu0 0.0
        %4796 = vmatpush1.msra.mxu0 %v4249
        %4797 = vmatprep.subr.mxu0 0.0
        %4798 = vmatpush1.msra.mxu0 %v4250
        %4799 = vmatprep.mubr.f32.mxu0 %v4281
        %4800 = vmatmul.mubr.f32.gmra.mrb[0].mxu0 %v4280
        %v4801 = vpop.f32.mrb[0].mxu0
        %v4802 = vadd.f32 0.0, %v4801
        %v4803 = vpop.f32.mrb[0].mxu0
        %4804 = vmatprep.mubr.f32.mxu0 %v4285
        %4805 = vmatmul.mubr.f32.gmra.mrb[0].mxu0 %v4284
        %v4806 = vpop.f32.mrb[0].mxu0
        %v4807 = vadd.f32 0.0, %v4806
        %v4808 = vpop.f32.mrb[0].mxu0
        %4809 = vmatprep.mubr.f32.mxu0 %v4289
        %4810 = vmatmul.mubr.f32.gmra.mrb[0].mxu0 %v4288
        %v4811 = vpop.f32.mrb[0].mxu0
        %v4812 = vadd.f32 0.0, %v4811
        %v4813 = vpop.f32.mrb[0].mxu0
        %4814 = vmatprep.mubr.f32.mxu0 %v4293
        %4815 = vmatmul.mubr.f32.gmra.mrb[0].mxu0 %v4292
        %v4816 = vpop.f32.mrb[0].mxu0
        %v4817 = vadd.f32 0.0, %v4816
        %v4818 = vpop.f32.mrb[0].mxu0
        %4819 = vmatprep.mubr.f32.mxu0 %v4297
        %4820 = vmatmul.mubr.f32.gmra.mrb[0].mxu0 %v4296
        %v4821 = vpop.f32.mrb[0].mxu0
        %v4822 = vadd.f32 0.0, %v4821
        %v4823 = vpop.f32.mrb[0].mxu0
        %4824 = vmatprep.mubr.f32.mxu0 %v4301
        %4825 = vmatmul.mubr.f32.gmra.mrb[0].mxu0 %v4300
        %v4826 = vpop.f32.mrb[0].mxu0
        %v4827 = vadd.f32 0.0, %v4826
        %v4828 = vpop.f32.mrb[0].mxu0
        %4829 = vmatprep.mubr.f32.mxu0 %v4305
        %4830 = vmatmul.mubr.f32.gmra.mrb[0].mxu0 %v4304
        %v4831 = vpop.f32.mrb[0].mxu0
        %v4832 = vadd.f32 0.0, %v4831
        %v4833 = vpop.f32.mrb[0].mxu0
        %4834 = vmatprep.mubr.f32.mxu0 %v4309
        %4835 = vmatmul.mubr.f32.gmra.mrb[0].mxu0 %v4308
        %v4836 = vpop.f32.mrb[0].mxu0
        %v4837 = vadd.f32 0.0, %v4836
        %v4838 = vpop.f32.mrb[0].mxu0
        %4839 = vmatprep.mubr.f32.mxu0 %v4313
        %4840 = vmatmul.mubr.f32.gmra.mrb[0].mxu0 %v4312
        %v4841 = vpop.f32.mrb[0].mxu0
        %v4842 = vadd.f32 0.0, %v4841
        %v4843 = vpop.f32.mrb[0].mxu0
        %4844 = vmatprep.mubr.f32.mxu0 %v4317
        %4845 = vmatmul.mubr.f32.gmra.mrb[0].mxu0 %v4316
        %v4846 = vpop.f32.mrb[0].mxu0
        %v4847 = vadd.f32 0.0, %v4846
        %v4848 = vpop.f32.mrb[0].mxu0
        %4849 = vmatprep.mubr.f32.mxu0 %v4321
        %4850 = vmatmul.mubr.f32.gmra.mrb[0].mxu0 %v4320
        %v4851 = vpop.f32.mrb[0].mxu0
        %v4852 = vadd.f32 0.0, %v4851
        %v4853 = vpop.f32.mrb[0].mxu0
        %4854 = vmatprep.mubr.f32.mxu0 %v4325
        %4855 = vmatmul.mubr.f32.gmra.mrb[0].mxu0 %v4324
        %v4856 = vpop.f32.mrb[0].mxu0
        %v4857 = vadd.f32 0.0, %v4856
        %v4858 = vpop.f32.mrb[0].mxu0
        %4859 = vmatprep.mubr.f32.mxu0 %v4329
        %4860 = vmatmul.mubr.f32.gmra.mrb[0].mxu0 %v4328
        %v4861 = vpop.f32.mrb[0].mxu0
        %v4862 = vadd.f32 0.0, %v4861
        %v4863 = vpop.f32.mrb[0].mxu0
        %4864 = vmatprep.mubr.f32.mxu0 %v4333
        %4865 = vmatmul.mubr.f32.gmra.mrb[0].mxu0 %v4332
        %v4866 = vpop.f32.mrb[0].mxu0
        %v4867 = vadd.f32 0.0, %v4866
        %v4868 = vpop.f32.mrb[0].mxu0
        %4869 = vmatprep.mubr.f32.mxu0 %v4337
        %4870 = vmatmul.mubr.f32.gmra.mrb[0].mxu0 %v4336
        %v4871 = vpop.f32.mrb[0].mxu0
        %v4872 = vadd.f32 0.0, %v4871
        %v4873 = vpop.f32.mrb[0].mxu0
        %4874 = vmatprep.mubr.f32.mxu0 %v4341
        %4875 = vmatmul.mubr.f32.gmra.mrb[0].mxu0 %v4340
        %v4876 = vpop.f32.mrb[0].mxu0
        %v4877 = vadd.f32 0.0, %v4876
        %v4878 = vpop.f32.mrb[0].mxu0
        %4879 = vmatprep.mubr.f32.mxu0 %v4345
        %4880 = vmatmul.mubr.f32.gmra.mrb[0].mxu0 %v4344
        %v4881 = vpop.f32.mrb[0].mxu0
        %v4882 = vadd.f32 0.0, %v4881
        %v4883 = vpop.f32.mrb[0].mxu0
        %4884 = vmatprep.mubr.f32.mxu0 %v4349
        %4885 = vmatmul.mubr.f32.gmra.mrb[0].mxu0 %v4348
        %v4886 = vpop.f32.mrb[0].mxu0
        %v4887 = vadd.f32 0.0, %v4886
        %v4888 = vpop.f32.mrb[0].mxu0
        %4889 = vmatprep.mubr.f32.mxu0 %v4353
        %4890 = vmatmul.mubr.f32.gmra.mrb[0].mxu0 %v4352
        %v4891 = vpop.f32.mrb[0].mxu0
        %v4892 = vadd.f32 0.0, %v4891
        %v4893 = vpop.f32.mrb[0].mxu0
        %4894 = vmatprep.mubr.f32.mxu0 %v4357
        %4895 = vmatmul.mubr.f32.gmra.mrb[0].mxu0 %v4356
        %v4896 = vpop.f32.mrb[0].mxu0
        %v4897 = vadd.f32 0.0, %v4896
        %v4898 = vpop.f32.mrb[0].mxu0
        %4899 = vmatprep.mubr.f32.mxu0 %v4361
        %4900 = vmatmul.mubr.f32.gmra.mrb[0].mxu0 %v4360
        %v4901 = vpop.f32.mrb[0].mxu0
        %v4902 = vadd.f32 0.0, %v4901
        %v4903 = vpop.f32.mrb[0].mxu0
        %4904 = vmatprep.mubr.f32.mxu0 %v4365
        %4905 = vmatmul.mubr.f32.gmra.mrb[0].mxu0 %v4364
        %v4906 = vpop.f32.mrb[0].mxu0
        %v4907 = vadd.f32 0.0, %v4906
        %v4908 = vpop.f32.mrb[0].mxu0
        %4909 = vmatprep.mubr.f32.mxu0 %v4369
        %4910 = vmatmul.mubr.f32.gmra.mrb[0].mxu0 %v4368
        %v4911 = vpop.f32.mrb[0].mxu0
        %v4912 = vadd.f32 0.0, %v4911
        %v4913 = vpop.f32.mrb[0].mxu0
        %4914 = vmatprep.mubr.f32.mxu0 %v4373
        %4915 = vmatmul.mubr.f32.gmra.mrb[0].mxu0 %v4372
        %v4916 = vpop.f32.mrb[0].mxu0
        %v4917 = vadd.f32 0.0, %v4916
        %v4918 = vpop.f32.mrb[0].mxu0
        %4919 = vmatprep.mubr.f32.mxu0 %v4377
        %4920 = vmatmul.mubr.f32.gmra.mrb[0].mxu0 %v4376
        %v4921 = vpop.f32.mrb[0].mxu0
        %v4922 = vadd.f32 0.0, %v4921
        %v4923 = vpop.f32.mrb[0].mxu0
        %4924 = vmatprep.mubr.f32.mxu0 %v4381
        %4925 = vmatmul.mubr.f32.gmra.mrb[0].mxu0 %v4380
        %v4926 = vpop.f32.mrb[0].mxu0
        %v4927 = vadd.f32 0.0, %v4926
        %v4928 = vpop.f32.mrb[0].mxu0
        %4929 = vmatprep.mubr.f32.mxu0 %v4385
        %4930 = vmatmul.mubr.f32.gmra.mrb[0].mxu0 %v4384
        %v4931 = vpop.f32.mrb[0].mxu0
        %v4932 = vadd.f32 0.0, %v4931
        %v4933 = vpop.f32.mrb[0].mxu0
        %4934 = vmatprep.mubr.f32.mxu0 %v4389
        %4935 = vmatmul.mubr.f32.gmra.mrb[0].mxu0 %v4388
        %v4936 = vpop.f32.mrb[0].mxu0
        %v4937 = vadd.f32 0.0, %v4936
        %v4938 = vpop.f32.mrb[0].mxu0
        %4939 = vmatprep.mubr.f32.mxu0 %v4393
        %4940 = vmatmul.mubr.f32.gmra.mrb[0].mxu0 %v4392
        %v4941 = vpop.f32.mrb[0].mxu0
        %v4942 = vadd.f32 0.0, %v4941
        %v4943 = vpop.f32.mrb[0].mxu0
        %4944 = vmatprep.mubr.f32.mxu0 %v4397
        %4945 = vmatmul.mubr.f32.gmra.mrb[0].mxu0 %v4396
        %v4946 = vpop.f32.mrb[0].mxu0
        %v4947 = vadd.f32 0.0, %v4946
        %v4948 = vpop.f32.mrb[0].mxu0
        %4949 = vmatprep.mubr.f32.mxu0 %v4401
        %4950 = vmatmul.mubr.f32.gmra.mrb[0].mxu0 %v4400
        %v4951 = vpop.f32.mrb[0].mxu0
        %v4952 = vadd.f32 0.0, %v4951
        %v4953 = vpop.f32.mrb[0].mxu0
        %4954 = vmatprep.mubr.f32.mxu0 %v4405
        %4955 = vmatmul.mubr.f32.gmra.mrb[0].mxu0 %v4404
        %v4956 = vpop.f32.mrb[0].mxu0
        %v4957 = vadd.f32 0.0, %v4956
        %v4958 = vpop.f32.mrb[0].mxu0
        %4959 = vmatprep.mubr.f32.mxu0 %v4409
        %4960 = vmatmul.mubr.f32.gmra.mrb[0].mxu0 %v4408
        %v4961 = vpop.f32.mrb[0].mxu0
        %v4962 = vadd.f32 0.0, %v4961
        %v4963 = vpop.f32.mrb[0].mxu0
        %4964 = vmatprep.mubr.f32.mxu0 %v4413
        %4965 = vmatmul.mubr.f32.gmra.mrb[0].mxu0 %v4412
        %v4966 = vpop.f32.mrb[0].mxu0
        %v4967 = vadd.f32 0.0, %v4966
        %v4968 = vpop.f32.mrb[0].mxu0
        %4969 = vmatprep.mubr.f32.mxu0 %v4417
        %4970 = vmatmul.mubr.f32.gmra.mrb[0].mxu0 %v4416
        %v4971 = vpop.f32.mrb[0].mxu0
        %v4972 = vadd.f32 0.0, %v4971
        %v4973 = vpop.f32.mrb[0].mxu0
        %4974 = vmatprep.mubr.f32.mxu0 %v4421
        %4975 = vmatmul.mubr.f32.gmra.mrb[0].mxu0 %v4420
        %v4976 = vpop.f32.mrb[0].mxu0
        %v4977 = vadd.f32 0.0, %v4976
        %v4978 = vpop.f32.mrb[0].mxu0
        %4979 = vmatprep.mubr.f32.mxu0 %v4425
        %4980 = vmatmul.mubr.f32.gmra.mrb[0].mxu0 %v4424
        %v4981 = vpop.f32.mrb[0].mxu0
        %v4982 = vadd.f32 0.0, %v4981
        %v4983 = vpop.f32.mrb[0].mxu0
        %4984 = vmatprep.mubr.f32.mxu0 %v4429
        %4985 = vmatmul.mubr.f32.gmra.mrb[0].mxu0 %v4428
        %v4986 = vpop.f32.mrb[0].mxu0
        %v4987 = vadd.f32 0.0, %v4986
        %v4988 = vpop.f32.mrb[0].mxu0
        %4989 = vmatprep.mubr.f32.mxu0 %v4433
        %4990 = vmatmul.mubr.f32.gmra.mrb[0].mxu0 %v4432
        %v4991 = vpop.f32.mrb[0].mxu0
        %v4992 = vadd.f32 0.0, %v4991
        %v4993 = vpop.f32.mrb[0].mxu0
        %4994 = vmatprep.mubr.f32.mxu0 %v4437
        %4995 = vmatmul.mubr.f32.gmra.mrb[0].mxu0 %v4436
        %v4996 = vpop.f32.mrb[0].mxu0
        %v4997 = vadd.f32 0.0, %v4996
        %v4998 = vpop.f32.mrb[0].mxu0
        %4999 = vmatprep.mubr.f32.mxu0 %v4441
        %5000 = vmatmul.mubr.f32.gmra.mrb[0].mxu0 %v4440
        %v5001 = vpop.f32.mrb[0].mxu0
        %v5002 = vadd.f32 0.0, %v5001
        %v5003 = vpop.f32.mrb[0].mxu0
        %5004 = vmatprep.mubr.f32.mxu0 %v4445
        %5005 = vmatmul.mubr.f32.gmra.mrb[0].mxu0 %v4444
        %v5006 = vpop.f32.mrb[0].mxu0
        %v5007 = vadd.f32 0.0, %v5006
        %v5008 = vpop.f32.mrb[0].mxu0
        %5009 = vmatprep.mubr.f32.mxu0 %v4449
        %5010 = vmatmul.mubr.f32.gmra.mrb[0].mxu0 %v4448
        %v5011 = vpop.f32.mrb[0].mxu0
        %v5012 = vadd.f32 0.0, %v5011
        %v5013 = vpop.f32.mrb[0].mxu0
        %5014 = vmatprep.mubr.f32.mxu0 %v4453
        %5015 = vmatmul.mubr.f32.gmra.mrb[0].mxu0 %v4452
        %v5016 = vpop.f32.mrb[0].mxu0
        %v5017 = vadd.f32 0.0, %v5016
        %v5018 = vpop.f32.mrb[0].mxu0
        %5019 = vmatprep.mubr.f32.mxu0 %v4457
        %5020 = vmatmul.mubr.f32.gmra.mrb[0].mxu0 %v4456
        %v5021 = vpop.f32.mrb[0].mxu0
        %v5022 = vadd.f32 0.0, %v5021
        %v5023 = vpop.f32.mrb[0].mxu0
        %5024 = vmatprep.mubr.f32.mxu0 %v4461
        %5025 = vmatmul.mubr.f32.gmra.mrb[0].mxu0 %v4460
        %v5026 = vpop.f32.mrb[0].mxu0
        %v5027 = vadd.f32 0.0, %v5026
        %v5028 = vpop.f32.mrb[0].mxu0
        %5029 = vmatprep.mubr.f32.mxu0 %v4465
        %5030 = vmatmul.mubr.f32.gmra.mrb[0].mxu0 %v4464
        %v5031 = vpop.f32.mrb[0].mxu0
        %v5032 = vadd.f32 0.0, %v5031
        %v5033 = vpop.f32.mrb[0].mxu0
        %5034 = vmatprep.mubr.f32.mxu0 %v4469
        %5035 = vmatmul.mubr.f32.gmra.mrb[0].mxu0 %v4468
        %v5036 = vpop.f32.mrb[0].mxu0
        %v5037 = vadd.f32 0.0, %v5036
        %v5038 = vpop.f32.mrb[0].mxu0
        %5039 = vmatprep.mubr.f32.mxu0 %v4473
        %5040 = vmatmul.mubr.f32.gmra.mrb[0].mxu0 %v4472
        %v5041 = vpop.f32.mrb[0].mxu0
        %v5042 = vadd.f32 0.0, %v5041
        %v5043 = vpop.f32.mrb[0].mxu0
        %5044 = vmatprep.mubr.f32.mxu0 %v4477
        %5045 = vmatmul.mubr.f32.gmra.mrb[0].mxu0 %v4476
        %v5046 = vpop.f32.mrb[0].mxu0
        %v5047 = vadd.f32 0.0, %v5046
        %v5048 = vpop.f32.mrb[0].mxu0
        %5049 = vmatprep.mubr.f32.mxu0 %v4481
        %5050 = vmatmul.mubr.f32.gmra.mrb[0].mxu0 %v4480
        %v5051 = vpop.f32.mrb[0].mxu0
        %v5052 = vadd.f32 0.0, %v5051
        %v5053 = vpop.f32.mrb[0].mxu0
        %5054 = vmatprep.mubr.f32.mxu0 %v4485
        %5055 = vmatmul.mubr.f32.gmra.mrb[0].mxu0 %v4484
        %v5056 = vpop.f32.mrb[0].mxu0
        %v5057 = vadd.f32 0.0, %v5056
        %v5058 = vpop.f32.mrb[0].mxu0
        %5059 = vmatprep.mubr.f32.mxu0 %v4489
        %5060 = vmatmul.mubr.f32.gmra.mrb[0].mxu0 %v4488
        %v5061 = vpop.f32.mrb[0].mxu0
        %v5062 = vadd.f32 0.0, %v5061
        %v5063 = vpop.f32.mrb[0].mxu0
        %5064 = vmatprep.mubr.f32.mxu0 %v4493
        %5065 = vmatmul.mubr.f32.gmra.mrb[0].mxu0 %v4492
        %v5066 = vpop.f32.mrb[0].mxu0
        %v5067 = vadd.f32 0.0, %v5066
        %v5068 = vpop.f32.mrb[0].mxu0
        %5069 = vmatprep.mubr.f32.mxu0 %v4497
        %5070 = vmatmul.mubr.f32.gmra.mrb[0].mxu0 %v4496
        %v5071 = vpop.f32.mrb[0].mxu0
        %v5072 = vadd.f32 0.0, %v5071
        %v5073 = vpop.f32.mrb[0].mxu0
        %5074 = vmatprep.mubr.f32.mxu0 %v4501
        %5075 = vmatmul.mubr.f32.gmra.mrb[0].mxu0 %v4500
        %v5076 = vpop.f32.mrb[0].mxu0
        %v5077 = vadd.f32 0.0, %v5076
        %v5078 = vpop.f32.mrb[0].mxu0
        %5079 = vmatprep.mubr.f32.mxu0 %v4505
        %5080 = vmatmul.mubr.f32.gmra.mrb[0].mxu0 %v4504
        %v5081 = vpop.f32.mrb[0].mxu0
        %v5082 = vadd.f32 0.0, %v5081
        %v5083 = vpop.f32.mrb[0].mxu0
        %5084 = vmatprep.mubr.f32.mxu0 %v4509
        %5085 = vmatmul.mubr.f32.gmra.mrb[0].mxu0 %v4508
        %v5086 = vpop.f32.mrb[0].mxu0
        %v5087 = vadd.f32 0.0, %v5086
        %v5088 = vpop.f32.mrb[0].mxu0
        %5089 = vmatprep.mubr.f32.mxu0 %v4513
        %5090 = vmatmul.mubr.f32.gmra.mrb[0].mxu0 %v4512
        %v5091 = vpop.f32.mrb[0].mxu0
        %v5092 = vadd.f32 0.0, %v5091
        %v5093 = vpop.f32.mrb[0].mxu0
        %5094 = vmatprep.mubr.f32.mxu0 %v4517
        %5095 = vmatmul.mubr.f32.gmra.mrb[0].mxu0 %v4516
        %v5096 = vpop.f32.mrb[0].mxu0
        %v5097 = vadd.f32 0.0, %v5096
        %v5098 = vpop.f32.mrb[0].mxu0
        %5099 = vmatprep.mubr.f32.mxu0 %v4521
        %5100 = vmatmul.mubr.f32.gmra.mrb[0].mxu0 %v4520
        %v5101 = vpop.f32.mrb[0].mxu0
        %v5102 = vadd.f32 0.0, %v5101
        %v5103 = vpop.f32.mrb[0].mxu0
        %5104 = vmatprep.mubr.f32.mxu0 %v4525
        %5105 = vmatmul.mubr.f32.gmra.mrb[0].mxu0 %v4524
        %v5106 = vpop.f32.mrb[0].mxu0
        %v5107 = vadd.f32 0.0, %v5106
        %v5108 = vpop.f32.mrb[0].mxu0
        %5109 = vmatprep.mubr.f32.mxu0 %v4529
        %5110 = vmatmul.mubr.f32.gmra.mrb[0].mxu0 %v4528
        %v5111 = vpop.f32.mrb[0].mxu0
        %v5112 = vadd.f32 0.0, %v5111
        %v5113 = vpop.f32.mrb[0].mxu0
        %5114 = vmatprep.mubr.f32.mxu0 %v4533
        %5115 = vmatmul.mubr.f32.gmra.mrb[0].mxu0 %v4532
        %v5116 = vpop.f32.mrb[0].mxu0
        %v5117 = vadd.f32 0.0, %v5116
        %v5118 = vpop.f32.mrb[0].mxu0
        %5119 = vmatprep.mubr.f32.mxu0 %v4537
        %5120 = vmatmul.mubr.f32.gmra.mrb[0].mxu0 %v4536
        %v5121 = vpop.f32.mrb[0].mxu0
        %v5122 = vadd.f32 0.0, %v5121
        %v5123 = vpop.f32.mrb[0].mxu0
        %5124 = vdwg.mxu0
        %5125 = vmatprep.subr.mxu0 0.0
        %5126 = vmatpush1.msra.mxu0 %v4251
        %5127 = vmatprep.subr.mxu0 0.0
        %5128 = vmatpush1.msra.mxu0 %v4252
        %5129 = vmatprep.subr.mxu0 0.0
        %5130 = vmatpush1.msra.mxu0 %v4253
        %5131 = vmatprep.subr.mxu0 0.0
        %5132 = vmatpush1.msra.mxu0 %v4254
        %5133 = vmatprep.subr.mxu0 0.0
        %5134 = vmatpush1.msra.mxu0 %v4255
        %5135 = vmatprep.subr.mxu0 0.0
        %5136 = vmatpush1.msra.mxu0 %v4256
        %5137 = vmatprep.subr.mxu0 0.0
        %5138 = vmatpush1.msra.mxu0 %v4257
        %5139 = vmatprep.subr.mxu0 0.0
        %5140 = vmatpush1.msra.mxu0 %v4258
        %5141 = vmatprep.subr.mxu0 0.0
        %5142 = vmatpush1.msra.mxu0 %v4259
        %5143 = vmatprep.subr.mxu0 0.0
        %5144 = vmatpush1.msra.mxu0 %v4260
        %5145 = vmatprep.subr.mxu0 0.0
        %5146 = vmatpush1.msra.mxu0 %v4261
        %5147 = vmatprep.subr.mxu0 0.0
        %5148 = vmatpush1.msra.mxu0 %v4262
        %5149 = vmatprep.subr.mxu0 0.0
        %5150 = vmatpush1.msra.mxu0 %v4263
        %5151 = vmatprep.subr.mxu0 0.0
        %5152 = vmatpush1.msra.mxu0 %v4264
        %5153 = vmatprep.subr.mxu0 0.0
        %5154 = vmatpush1.msra.mxu0 %v4265
        %5155 = vmatprep.subr.mxu0 0.0
        %5156 = vmatpush1.msra.mxu0 %v4266
        %5157 = vmatprep.subr.mxu0 0.0
        %5158 = vmatpush1.msra.mxu0 %v4267
        %5159 = vmatprep.subr.mxu0 0.0
        %5160 = vmatpush1.msra.mxu0 %v4268
        %5161 = vmatprep.subr.mxu0 0.0
        %5162 = vmatpush1.msra.mxu0 %v4269
        %5163 = vmatprep.subr.mxu0 0.0
        %5164 = vmatpush1.msra.mxu0 %v4270
        %5165 = vmatprep.subr.mxu0 0.0
        %5166 = vmatpush1.msra.mxu0 %v4271
        %5167 = vmatprep.subr.mxu0 0.0
        %5168 = vmatpush1.msra.mxu0 %v4272
        %5169 = vmatprep.subr.mxu0 0.0
        %5170 = vmatpush1.msra.mxu0 %v4273
        %5171 = vmatprep.subr.mxu0 0.0
        %5172 = vmatpush1.msra.mxu0 %v4274
        %5173 = vmatprep.subr.mxu0 0.0
        %5174 = vmatpush1.msra.mxu0 %v4275
        %5175 = vmatprep.subr.mxu0 0.0
        %5176 = vmatpush1.msra.mxu0 %v4276
        %5177 = vmatprep.subr.mxu0 0.0
        %5178 = vmatpush1.msra.mxu0 %v4277
        %5179 = vmatprep.subr.mxu0 0.0
        %5180 = vmatpush1.msra.mxu0 %v4278
        %5181 = vmatprep.subr.mxu0 0.0
        %5182 = vmatpush1.msra.mxu0 %v4279
        %5183 = vmatprep.subr.mxu0 0.0
        %5184 = vmatpush1.msra.mxu0 0.0
        %5185 = vmatprep.subr.mxu0 0.0
        %5186 = vmatpush1.msra.mxu0 0.0
        %5187 = vmatprep.subr.mxu0 0.0
        %5188 = vmatpush1.msra.mxu0 0.0
        %5189 = vmatprep.mubr.f32.mxu0 %v4541
        %5190 = vmatmul.mubr.f32.gmra.mrb[0].mxu0 %v4282
        %v5191 = vpop.f32.mrb[0].mxu0
        %v5192 = vadd.f32 %v4802, %v5191
        %v5193 = vpop.f32.mrb[0].mxu0
        %5194 = vmatprep.mubr.f32.mxu0 %v4544
        %5195 = vmatmul.mubr.f32.gmra.mrb[0].mxu0 %v4286
        %v5196 = vpop.f32.mrb[0].mxu0
        %v5197 = vadd.f32 %v4807, %v5196
        %v5198 = vpop.f32.mrb[0].mxu0
        %5199 = vmatprep.mubr.f32.mxu0 %v4547
        %5200 = vmatmul.mubr.f32.gmra.mrb[0].mxu0 %v4290
        %v5201 = vpop.f32.mrb[0].mxu0
        %v5202 = vadd.f32 %v4812, %v5201
        %v5203 = vpop.f32.mrb[0].mxu0
        %5204 = vmatprep.mubr.f32.mxu0 %v4550
        %5205 = vmatmul.mubr.f32.gmra.mrb[0].mxu0 %v4294
        %v5206 = vpop.f32.mrb[0].mxu0
        %v5207 = vadd.f32 %v4817, %v5206
        %v5208 = vpop.f32.mrb[0].mxu0
        %5209 = vmatprep.mubr.f32.mxu0 %v4553
        %5210 = vmatmul.mubr.f32.gmra.mrb[0].mxu0 %v4298
        %v5211 = vpop.f32.mrb[0].mxu0
        %v5212 = vadd.f32 %v4822, %v5211
        %v5213 = vpop.f32.mrb[0].mxu0
        %5214 = vmatprep.mubr.f32.mxu0 %v4556
        %5215 = vmatmul.mubr.f32.gmra.mrb[0].mxu0 %v4302
        %v5216 = vpop.f32.mrb[0].mxu0
        %v5217 = vadd.f32 %v4827, %v5216
        %v5218 = vpop.f32.mrb[0].mxu0
        %5219 = vmatprep.mubr.f32.mxu0 %v4559
        %5220 = vmatmul.mubr.f32.gmra.mrb[0].mxu0 %v4306
        %v5221 = vpop.f32.mrb[0].mxu0
        %v5222 = vadd.f32 %v4832, %v5221
        %v5223 = vpop.f32.mrb[0].mxu0
        %5224 = vmatprep.mubr.f32.mxu0 %v4562
        %5225 = vmatmul.mubr.f32.gmra.mrb[0].mxu0 %v4310
        %v5226 = vpop.f32.mrb[0].mxu0
        %v5227 = vadd.f32 %v4837, %v5226
        %v5228 = vpop.f32.mrb[0].mxu0
        %5229 = vmatprep.mubr.f32.mxu0 %v4565
        %5230 = vmatmul.mubr.f32.gmra.mrb[0].mxu0 %v4314
        %v5231 = vpop.f32.mrb[0].mxu0
        %v5232 = vadd.f32 %v4842, %v5231
        %v5233 = vpop.f32.mrb[0].mxu0
        %5234 = vmatprep.mubr.f32.mxu0 %v4568
        %5235 = vmatmul.mubr.f32.gmra.mrb[0].mxu0 %v4318
        %v5236 = vpop.f32.mrb[0].mxu0
        %v5237 = vadd.f32 %v4847, %v5236
        %v5238 = vpop.f32.mrb[0].mxu0
        %5239 = vmatprep.mubr.f32.mxu0 %v4571
        %5240 = vmatmul.mubr.f32.gmra.mrb[0].mxu0 %v4322
        %v5241 = vpop.f32.mrb[0].mxu0
        %v5242 = vadd.f32 %v4852, %v5241
        %v5243 = vpop.f32.mrb[0].mxu0
        %5244 = vmatprep.mubr.f32.mxu0 %v4574
        %5245 = vmatmul.mubr.f32.gmra.mrb[0].mxu0 %v4326
        %v5246 = vpop.f32.mrb[0].mxu0
        %v5247 = vadd.f32 %v4857, %v5246
        %v5248 = vpop.f32.mrb[0].mxu0
        %5249 = vmatprep.mubr.f32.mxu0 %v4577
        %5250 = vmatmul.mubr.f32.gmra.mrb[0].mxu0 %v4330
        %v5251 = vpop.f32.mrb[0].mxu0
        %v5252 = vadd.f32 %v4862, %v5251
        %v5253 = vpop.f32.mrb[0].mxu0
        %5254 = vmatprep.mubr.f32.mxu0 %v4580
        %5255 = vmatmul.mubr.f32.gmra.mrb[0].mxu0 %v4334
        %v5256 = vpop.f32.mrb[0].mxu0
        %v5257 = vadd.f32 %v4867, %v5256
        %v5258 = vpop.f32.mrb[0].mxu0
        %5259 = vmatprep.mubr.f32.mxu0 %v4583
        %5260 = vmatmul.mubr.f32.gmra.mrb[0].mxu0 %v4338
        %v5261 = vpop.f32.mrb[0].mxu0
        %v5262 = vadd.f32 %v4872, %v5261
        %v5263 = vpop.f32.mrb[0].mxu0
        %5264 = vmatprep.mubr.f32.mxu0 %v4586
        %5265 = vmatmul.mubr.f32.gmra.mrb[0].mxu0 %v4342
        %v5266 = vpop.f32.mrb[0].mxu0
        %v5267 = vadd.f32 %v4877, %v5266
        %v5268 = vpop.f32.mrb[0].mxu0
        %5269 = vmatprep.mubr.f32.mxu0 %v4589
        %5270 = vmatmul.mubr.f32.gmra.mrb[0].mxu0 %v4346
        %v5271 = vpop.f32.mrb[0].mxu0
        %v5272 = vadd.f32 %v4882, %v5271
        %v5273 = vpop.f32.mrb[0].mxu0
        %5274 = vmatprep.mubr.f32.mxu0 %v4592
        %5275 = vmatmul.mubr.f32.gmra.mrb[0].mxu0 %v4350
        %v5276 = vpop.f32.mrb[0].mxu0
        %v5277 = vadd.f32 %v4887, %v5276
        %v5278 = vpop.f32.mrb[0].mxu0
        %5279 = vmatprep.mubr.f32.mxu0 %v4595
        %5280 = vmatmul.mubr.f32.gmra.mrb[0].mxu0 %v4354
        %v5281 = vpop.f32.mrb[0].mxu0
        %v5282 = vadd.f32 %v4892, %v5281
        %v5283 = vpop.f32.mrb[0].mxu0
        %5284 = vmatprep.mubr.f32.mxu0 %v4598
        %5285 = vmatmul.mubr.f32.gmra.mrb[0].mxu0 %v4358
        %v5286 = vpop.f32.mrb[0].mxu0
        %v5287 = vadd.f32 %v4897, %v5286
        %v5288 = vpop.f32.mrb[0].mxu0
        %5289 = vmatprep.mubr.f32.mxu0 %v4601
        %5290 = vmatmul.mubr.f32.gmra.mrb[0].mxu0 %v4362
        %v5291 = vpop.f32.mrb[0].mxu0
        %v5292 = vadd.f32 %v4902, %v5291
        %v5293 = vpop.f32.mrb[0].mxu0
        %5294 = vmatprep.mubr.f32.mxu0 %v4604
        %5295 = vmatmul.mubr.f32.gmra.mrb[0].mxu0 %v4366
        %v5296 = vpop.f32.mrb[0].mxu0
        %v5297 = vadd.f32 %v4907, %v5296
        %v5298 = vpop.f32.mrb[0].mxu0
        %5299 = vmatprep.mubr.f32.mxu0 %v4607
        %5300 = vmatmul.mubr.f32.gmra.mrb[0].mxu0 %v4370
        %v5301 = vpop.f32.mrb[0].mxu0
        %v5302 = vadd.f32 %v4912, %v5301
        %v5303 = vpop.f32.mrb[0].mxu0
        %5304 = vmatprep.mubr.f32.mxu0 %v4610
        %5305 = vmatmul.mubr.f32.gmra.mrb[0].mxu0 %v4374
        %v5306 = vpop.f32.mrb[0].mxu0
        %v5307 = vadd.f32 %v4917, %v5306
        %v5308 = vpop.f32.mrb[0].mxu0
        %5309 = vmatprep.mubr.f32.mxu0 %v4613
        %5310 = vmatmul.mubr.f32.gmra.mrb[0].mxu0 %v4378
        %v5311 = vpop.f32.mrb[0].mxu0
        %v5312 = vadd.f32 %v4922, %v5311
        %v5313 = vpop.f32.mrb[0].mxu0
        %5314 = vmatprep.mubr.f32.mxu0 %v4616
        %5315 = vmatmul.mubr.f32.gmra.mrb[0].mxu0 %v4382
        %v5316 = vpop.f32.mrb[0].mxu0
        %v5317 = vadd.f32 %v4927, %v5316
        %v5318 = vpop.f32.mrb[0].mxu0
        %5319 = vmatprep.mubr.f32.mxu0 %v4619
        %5320 = vmatmul.mubr.f32.gmra.mrb[0].mxu0 %v4386
        %v5321 = vpop.f32.mrb[0].mxu0
        %v5322 = vadd.f32 %v4932, %v5321
        %v5323 = vpop.f32.mrb[0].mxu0
        %5324 = vmatprep.mubr.f32.mxu0 %v4622
        %5325 = vmatmul.mubr.f32.gmra.mrb[0].mxu0 %v4390
        %v5326 = vpop.f32.mrb[0].mxu0
        %v5327 = vadd.f32 %v4937, %v5326
        %v5328 = vpop.f32.mrb[0].mxu0
        %5329 = vmatprep.mubr.f32.mxu0 %v4625
        %5330 = vmatmul.mubr.f32.gmra.mrb[0].mxu0 %v4394
        %v5331 = vpop.f32.mrb[0].mxu0
        %v5332 = vadd.f32 %v4942, %v5331
        %v5333 = vpop.f32.mrb[0].mxu0
        %5334 = vmatprep.mubr.f32.mxu0 %v4628
        %5335 = vmatmul.mubr.f32.gmra.mrb[0].mxu0 %v4398
        %v5336 = vpop.f32.mrb[0].mxu0
        %v5337 = vadd.f32 %v4947, %v5336
        %v5338 = vpop.f32.mrb[0].mxu0
        %5339 = vmatprep.mubr.f32.mxu0 %v4631
        %5340 = vmatmul.mubr.f32.gmra.mrb[0].mxu0 %v4402
        %v5341 = vpop.f32.mrb[0].mxu0
        %v5342 = vadd.f32 %v4952, %v5341
        %v5343 = vpop.f32.mrb[0].mxu0
        %5344 = vmatprep.mubr.f32.mxu0 %v4634
        %5345 = vmatmul.mubr.f32.gmra.mrb[0].mxu0 %v4406
        %v5346 = vpop.f32.mrb[0].mxu0
        %v5347 = vadd.f32 %v4957, %v5346
        %v5348 = vpop.f32.mrb[0].mxu0
        %5349 = vmatprep.mubr.f32.mxu0 %v4637
        %5350 = vmatmul.mubr.f32.gmra.mrb[0].mxu0 %v4410
        %v5351 = vpop.f32.mrb[0].mxu0
        %v5352 = vadd.f32 %v4962, %v5351
        %v5353 = vpop.f32.mrb[0].mxu0
        %5354 = vmatprep.mubr.f32.mxu0 %v4640
        %5355 = vmatmul.mubr.f32.gmra.mrb[0].mxu0 %v4414
        %v5356 = vpop.f32.mrb[0].mxu0
        %v5357 = vadd.f32 %v4967, %v5356
        %v5358 = vpop.f32.mrb[0].mxu0
        %5359 = vmatprep.mubr.f32.mxu0 %v4643
        %5360 = vmatmul.mubr.f32.gmra.mrb[0].mxu0 %v4418
        %v5361 = vpop.f32.mrb[0].mxu0
        %v5362 = vadd.f32 %v4972, %v5361
        %v5363 = vpop.f32.mrb[0].mxu0
        %5364 = vmatprep.mubr.f32.mxu0 %v4646
        %5365 = vmatmul.mubr.f32.gmra.mrb[0].mxu0 %v4422
        %v5366 = vpop.f32.mrb[0].mxu0
        %v5367 = vadd.f32 %v4977, %v5366
        %v5368 = vpop.f32.mrb[0].mxu0
        %5369 = vmatprep.mubr.f32.mxu0 %v4649
        %5370 = vmatmul.mubr.f32.gmra.mrb[0].mxu0 %v4426
        %v5371 = vpop.f32.mrb[0].mxu0
        %v5372 = vadd.f32 %v4982, %v5371
        %v5373 = vpop.f32.mrb[0].mxu0
        %5374 = vmatprep.mubr.f32.mxu0 %v4652
        %5375 = vmatmul.mubr.f32.gmra.mrb[0].mxu0 %v4430
        %v5376 = vpop.f32.mrb[0].mxu0
        %v5377 = vadd.f32 %v4987, %v5376
        %v5378 = vpop.f32.mrb[0].mxu0
        %5379 = vmatprep.mubr.f32.mxu0 %v4655
        %5380 = vmatmul.mubr.f32.gmra.mrb[0].mxu0 %v4434
        %v5381 = vpop.f32.mrb[0].mxu0
        %v5382 = vadd.f32 %v4992, %v5381
        %v5383 = vpop.f32.mrb[0].mxu0
        %5384 = vmatprep.mubr.f32.mxu0 %v4658
        %5385 = vmatmul.mubr.f32.gmra.mrb[0].mxu0 %v4438
        %v5386 = vpop.f32.mrb[0].mxu0
        %v5387 = vadd.f32 %v4997, %v5386
        %v5388 = vpop.f32.mrb[0].mxu0
        %5389 = vmatprep.mubr.f32.mxu0 %v4661
        %5390 = vmatmul.mubr.f32.gmra.mrb[0].mxu0 %v4442
        %v5391 = vpop.f32.mrb[0].mxu0
        %v5392 = vadd.f32 %v5002, %v5391
        %v5393 = vpop.f32.mrb[0].mxu0
        %5394 = vmatprep.mubr.f32.mxu0 %v4664
        %5395 = vmatmul.mubr.f32.gmra.mrb[0].mxu0 %v4446
        %v5396 = vpop.f32.mrb[0].mxu0
        %v5397 = vadd.f32 %v5007, %v5396
        %v5398 = vpop.f32.mrb[0].mxu0
        %5399 = vmatprep.mubr.f32.mxu0 %v4667
        %5400 = vmatmul.mubr.f32.gmra.mrb[0].mxu0 %v4450
        %v5401 = vpop.f32.mrb[0].mxu0
        %v5402 = vadd.f32 %v5012, %v5401
        %v5403 = vpop.f32.mrb[0].mxu0
        %5404 = vmatprep.mubr.f32.mxu0 %v4670
        %5405 = vmatmul.mubr.f32.gmra.mrb[0].mxu0 %v4454
        %v5406 = vpop.f32.mrb[0].mxu0
        %v5407 = vadd.f32 %v5017, %v5406
        %v5408 = vpop.f32.mrb[0].mxu0
        %5409 = vmatprep.mubr.f32.mxu0 %v4673
        %5410 = vmatmul.mubr.f32.gmra.mrb[0].mxu0 %v4458
        %v5411 = vpop.f32.mrb[0].mxu0
        %v5412 = vadd.f32 %v5022, %v5411
        %v5413 = vpop.f32.mrb[0].mxu0
        %5414 = vmatprep.mubr.f32.mxu0 %v4676
        %5415 = vmatmul.mubr.f32.gmra.mrb[0].mxu0 %v4462
        %v5416 = vpop.f32.mrb[0].mxu0
        %v5417 = vadd.f32 %v5027, %v5416
        %v5418 = vpop.f32.mrb[0].mxu0
        %5419 = vmatprep.mubr.f32.mxu0 %v4679
        %5420 = vmatmul.mubr.f32.gmra.mrb[0].mxu0 %v4466
        %v5421 = vpop.f32.mrb[0].mxu0
        %v5422 = vadd.f32 %v5032, %v5421
        %v5423 = vpop.f32.mrb[0].mxu0
        %5424 = vmatprep.mubr.f32.mxu0 %v4682
        %5425 = vmatmul.mubr.f32.gmra.mrb[0].mxu0 %v4470
        %v5426 = vpop.f32.mrb[0].mxu0
        %v5427 = vadd.f32 %v5037, %v5426
        %v5428 = vpop.f32.mrb[0].mxu0
        %5429 = vmatprep.mubr.f32.mxu0 %v4685
        %5430 = vmatmul.mubr.f32.gmra.mrb[0].mxu0 %v4474
        %v5431 = vpop.f32.mrb[0].mxu0
        %v5432 = vadd.f32 %v5042, %v5431
        %v5433 = vpop.f32.mrb[0].mxu0
        %5434 = vmatprep.mubr.f32.mxu0 %v4688
        %5435 = vmatmul.mubr.f32.gmra.mrb[0].mxu0 %v4478
        %v5436 = vpop.f32.mrb[0].mxu0
        %v5437 = vadd.f32 %v5047, %v5436
        %v5438 = vpop.f32.mrb[0].mxu0
        %5439 = vmatprep.mubr.f32.mxu0 %v4691
        %5440 = vmatmul.mubr.f32.gmra.mrb[0].mxu0 %v4482
        %v5441 = vpop.f32.mrb[0].mxu0
        %v5442 = vadd.f32 %v5052, %v5441
        %v5443 = vpop.f32.mrb[0].mxu0
        %5444 = vmatprep.mubr.f32.mxu0 %v4694
        %5445 = vmatmul.mubr.f32.gmra.mrb[0].mxu0 %v4486
        %v5446 = vpop.f32.mrb[0].mxu0
        %v5447 = vadd.f32 %v5057, %v5446
        %v5448 = vpop.f32.mrb[0].mxu0
        %5449 = vmatprep.mubr.f32.mxu0 %v4697
        %5450 = vmatmul.mubr.f32.gmra.mrb[0].mxu0 %v4490
        %v5451 = vpop.f32.mrb[0].mxu0
        %v5452 = vadd.f32 %v5062, %v5451
        %v5453 = vpop.f32.mrb[0].mxu0
        %5454 = vmatprep.mubr.f32.mxu0 %v4700
        %5455 = vmatmul.mubr.f32.gmra.mrb[0].mxu0 %v4494
        %v5456 = vpop.f32.mrb[0].mxu0
        %v5457 = vadd.f32 %v5067, %v5456
        %v5458 = vpop.f32.mrb[0].mxu0
        %5459 = vmatprep.mubr.f32.mxu0 %v4703
        %5460 = vmatmul.mubr.f32.gmra.mrb[0].mxu0 %v4498
        %v5461 = vpop.f32.mrb[0].mxu0
        %v5462 = vadd.f32 %v5072, %v5461
        %v5463 = vpop.f32.mrb[0].mxu0
        %5464 = vmatprep.mubr.f32.mxu0 %v4706
        %5465 = vmatmul.mubr.f32.gmra.mrb[0].mxu0 %v4502
        %v5466 = vpop.f32.mrb[0].mxu0
        %v5467 = vadd.f32 %v5077, %v5466
        %v5468 = vpop.f32.mrb[0].mxu0
        %5469 = vmatprep.mubr.f32.mxu0 %v4709
        %5470 = vmatmul.mubr.f32.gmra.mrb[0].mxu0 %v4506
        %v5471 = vpop.f32.mrb[0].mxu0
        %v5472 = vadd.f32 %v5082, %v5471
        %v5473 = vpop.f32.mrb[0].mxu0
        %5474 = vmatprep.mubr.f32.mxu0 %v4712
        %5475 = vmatmul.mubr.f32.gmra.mrb[0].mxu0 %v4510
        %v5476 = vpop.f32.mrb[0].mxu0
        %v5477 = vadd.f32 %v5087, %v5476
        %v5478 = vpop.f32.mrb[0].mxu0
        %5479 = vmatprep.mubr.f32.mxu0 %v4715
        %5480 = vmatmul.mubr.f32.gmra.mrb[0].mxu0 %v4514
        %v5481 = vpop.f32.mrb[0].mxu0
        %v5482 = vadd.f32 %v5092, %v5481
        %v5483 = vpop.f32.mrb[0].mxu0
        %5484 = vmatprep.mubr.f32.mxu0 %v4718
        %5485 = vmatmul.mubr.f32.gmra.mrb[0].mxu0 %v4518
        %v5486 = vpop.f32.mrb[0].mxu0
        %v5487 = vadd.f32 %v5097, %v5486
        %v5488 = vpop.f32.mrb[0].mxu0
        %5489 = vmatprep.mubr.f32.mxu0 %v4721
        %5490 = vmatmul.mubr.f32.gmra.mrb[0].mxu0 %v4522
        %v5491 = vpop.f32.mrb[0].mxu0
        %v5492 = vadd.f32 %v5102, %v5491
        %v5493 = vpop.f32.mrb[0].mxu0
        %5494 = vmatprep.mubr.f32.mxu0 %v4724
        %5495 = vmatmul.mubr.f32.gmra.mrb[0].mxu0 %v4526
        %v5496 = vpop.f32.mrb[0].mxu0
        %v5497 = vadd.f32 %v5107, %v5496
        %v5498 = vpop.f32.mrb[0].mxu0
        %5499 = vmatprep.mubr.f32.mxu0 %v4727
        %5500 = vmatmul.mubr.f32.gmra.mrb[0].mxu0 %v4530
        %v5501 = vpop.f32.mrb[0].mxu0
        %v5502 = vadd.f32 %v5112, %v5501
        %v5503 = vpop.f32.mrb[0].mxu0
        %5504 = vmatprep.mubr.f32.mxu0 %v4730
        %5505 = vmatmul.mubr.f32.gmra.mrb[0].mxu0 %v4534
        %v5506 = vpop.f32.mrb[0].mxu0
        %v5507 = vadd.f32 %v5117, %v5506
        %v5508 = vpop.f32.mrb[0].mxu0
        %5509 = vmatprep.mubr.f32.mxu0 %v4733
        %5510 = vmatmul.mubr.f32.gmra.mrb[0].mxu0 %v4538
        %v5511 = vpop.f32.mrb[0].mxu0
        %v5512 = vadd.f32 %v5122, %v5511
        %v5513 = vpop.f32.mrb[0].mxu0
        %5514 = vdwg.mxu0
        %v5515 = vmax.f32 %v5192, 0.0
        %v5516 = vmax.f32 %v5197, 0.0
        %v5517 = vmax.f32 %v5202, 0.0
        %v5518 = vmax.f32 %v5207, 0.0
        %v5519 = vmax.f32 %v5212, 0.0
        %v5520 = vmax.f32 %v5217, 0.0
        %v5521 = vmax.f32 %v5222, 0.0
        %v5522 = vmax.f32 %v5227, 0.0
        %v5523 = vmax.f32 %v5232, 0.0
        %v5524 = vmax.f32 %v5237, 0.0
        %v5525 = vmax.f32 %v5242, 0.0
        %v5526 = vmax.f32 %v5247, 0.0
        %v5527 = vmax.f32 %v5252, 0.0
        %v5528 = vmax.f32 %v5257, 0.0
        %v5529 = vmax.f32 %v5262, 0.0
        %v5530 = vmax.f32 %v5267, 0.0
        %v5531 = vmax.f32 %v5272, 0.0
        %v5532 = vmax.f32 %v5277, 0.0
        %v5533 = vmax.f32 %v5282, 0.0
        %v5534 = vmax.f32 %v5287, 0.0
        %v5535 = vmax.f32 %v5292, 0.0
        %v5536 = vmax.f32 %v5297, 0.0
        %v5537 = vmax.f32 %v5302, 0.0
        %v5538 = vmax.f32 %v5307, 0.0
        %v5539 = vmax.f32 %v5312, 0.0
        %v5540 = vmax.f32 %v5317, 0.0
        %v5541 = vmax.f32 %v5322, 0.0
        %v5542 = vmax.f32 %v5327, 0.0
        %v5543 = vmax.f32 %v5332, 0.0
        %v5544 = vmax.f32 %v5337, 0.0
        %v5545 = vmax.f32 %v5342, 0.0
        %v5546 = vmax.f32 %v5347, 0.0
        %s5547 = sld [smem:[#allocation19]]
        %v5548 = vstv %s5547
        %v5549 = vmul.f32 %v5548, %v5515
        %v5550 = vmul.f32 %v5548, %v5516
        %v5551 = vmul.f32 %v5548, %v5517
        %v5552 = vmul.f32 %v5548, %v5518
        %s5553 = sld [smem:[#allocation19 + $0x1]]
        %v5554 = vstv %s5553
        %v5555 = vmul.f32 %v5554, %v5519
        %v5556 = vmul.f32 %v5554, %v5520
        %v5557 = vmul.f32 %v5554, %v5521
        %v5558 = vmul.f32 %v5554, %v5522
        %v5559 = vadd.f32 %v5549, %v5555
        %v5560 = vadd.f32 %v5550, %v5556
        %v5561 = vadd.f32 %v5551, %v5557
        %v5562 = vadd.f32 %v5552, %v5558
        %s5563 = sld [smem:[#allocation19 + $0x2]]
        %v5564 = vstv %s5563
        %v5565 = vmul.f32 %v5564, %v5523
        %v5566 = vmul.f32 %v5564, %v5524
        %v5567 = vmul.f32 %v5564, %v5525
        %v5568 = vmul.f32 %v5564, %v5526
        %v5569 = vadd.f32 %v5559, %v5565
        %v5570 = vadd.f32 %v5560, %v5566
        %v5571 = vadd.f32 %v5561, %v5567
        %v5572 = vadd.f32 %v5562, %v5568
        %s5573 = sld [smem:[#allocation19 + $0x3]]
        %v5574 = vstv %s5573
        %v5575 = vmul.f32 %v5574, %v5527
        %v5576 = vmul.f32 %v5574, %v5528
        %v5577 = vmul.f32 %v5574, %v5529
        %v5578 = vmul.f32 %v5574, %v5530
        %v5579 = vadd.f32 %v5569, %v5575
        %v5580 = vadd.f32 %v5570, %v5576
        %v5581 = vadd.f32 %v5571, %v5577
        %v5582 = vadd.f32 %v5572, %v5578
        %s5583 = sld [smem:[#allocation19 + $0x4]]
        %v5584 = vstv %s5583
        %v5585 = vmul.f32 %v5584, %v5531
        %v5586 = vmul.f32 %v5584, %v5532
        %v5587 = vmul.f32 %v5584, %v5533
        %v5588 = vmul.f32 %v5584, %v5534
        %v5589 = vadd.f32 %v5579, %v5585
        %v5590 = vadd.f32 %v5580, %v5586
        %v5591 = vadd.f32 %v5581, %v5587
        %v5592 = vadd.f32 %v5582, %v5588
        %s5593 = sld [smem:[#allocation19 + $0x5]]
        %v5594 = vstv %s5593
        %v5595 = vmul.f32 %v5594, %v5535
        %v5596 = vmul.f32 %v5594, %v5536
        %v5597 = vmul.f32 %v5594, %v5537
        %v5598 = vmul.f32 %v5594, %v5538
        %v5599 = vadd.f32 %v5589, %v5595
        %v5600 = vadd.f32 %v5590, %v5596
        %v5601 = vadd.f32 %v5591, %v5597
        %v5602 = vadd.f32 %v5592, %v5598
        %s5603 = sld [smem:[#allocation19 + $0x6]]
        %v5604 = vstv %s5603
        %v5605 = vmul.f32 %v5604, %v5539
        %v5606 = vmul.f32 %v5604, %v5540
        %v5607 = vmul.f32 %v5604, %v5541
        %v5608 = vmul.f32 %v5604, %v5542
        %v5609 = vadd.f32 %v5599, %v5605
        %v5610 = vadd.f32 %v5600, %v5606
        %v5611 = vadd.f32 %v5601, %v5607
        %v5612 = vadd.f32 %v5602, %v5608
        %s5613 = sld [smem:[#allocation19 + $0x7]]
        %v5614 = vstv %s5613
        %v5615 = vmul.f32 %v5614, %v5543
        %v5616 = vmul.f32 %v5614, %v5544
        %v5617 = vmul.f32 %v5614, %v5545
        %v5618 = vmul.f32 %v5614, %v5546
        %v5619 = vadd.f32 %v5609, %v5615
        %v5620 = vadd.f32 %v5610, %v5616
        %v5621 = vadd.f32 %v5611, %v5617
        %v5622 = vadd.f32 %v5612, %v5618
        %v5623 = vmax.f32 %v5352, 0.0
        %v5624 = vmax.f32 %v5357, 0.0
        %v5625 = vmax.f32 %v5362, 0.0
        %v5626 = vmax.f32 %v5367, 0.0
        %v5627 = vmax.f32 %v5372, 0.0
        %v5628 = vmax.f32 %v5377, 0.0
        %v5629 = vmax.f32 %v5382, 0.0
        %v5630 = vmax.f32 %v5387, 0.0
        %v5631 = vmax.f32 %v5392, 0.0
        %v5632 = vmax.f32 %v5397, 0.0
        %v5633 = vmax.f32 %v5402, 0.0
        %v5634 = vmax.f32 %v5407, 0.0
        %v5635 = vmax.f32 %v5412, 0.0
        %v5636 = vmax.f32 %v5417, 0.0
        %v5637 = vmax.f32 %v5422, 0.0
        %v5638 = vmax.f32 %v5427, 0.0
        %v5639 = vmax.f32 %v5432, 0.0
        %v5640 = vmax.f32 %v5437, 0.0
        %v5641 = vmax.f32 %v5442, 0.0
        %v5642 = vmax.f32 %v5447, 0.0
        %v5643 = vmax.f32 %v5452, 0.0
        %v5644 = vmax.f32 %v5457, 0.0
        %v5645 = vmax.f32 %v5462, 0.0
        %v5646 = vmax.f32 %v5467, 0.0
        %v5647 = vmax.f32 %v5472, 0.0
        %v5648 = vmax.f32 %v5477, 0.0
        %v5649 = vmax.f32 %v5482, 0.0
        %v5650 = vmax.f32 %v5487, 0.0
        %v5651 = vmax.f32 %v5492, 0.0
        %v5652 = vmax.f32 %v5497, 0.0
        %v5653 = vmax.f32 %v5502, 0.0
        %v5654 = vmax.f32 %v5507, 0.0
        %s5655 = sld [smem:[#allocation19 + $0x80]]
        %v5656 = vstv %s5655
        %v5657 = vmul.f32 %v5656, %v5623
        %v5658 = vmul.f32 %v5656, %v5624
        %v5659 = vmul.f32 %v5656, %v5625
        %v5660 = vmul.f32 %v5656, %v5626
        %s5661 = sld [smem:[#allocation19 + $0x81]]
        %v5662 = vstv %s5661
        %v5663 = vmul.f32 %v5662, %v5627
        %v5664 = vmul.f32 %v5662, %v5628
        %v5665 = vmul.f32 %v5662, %v5629
        %v5666 = vmul.f32 %v5662, %v5630
        %v5667 = vadd.f32 %v5657, %v5663
        %v5668 = vadd.f32 %v5658, %v5664
        %v5669 = vadd.f32 %v5659, %v5665
        %v5670 = vadd.f32 %v5660, %v5666
        %s5671 = sld [smem:[#allocation19 + $0x82]]
        %v5672 = vstv %s5671
        %v5673 = vmul.f32 %v5672, %v5631
        %v5674 = vmul.f32 %v5672, %v5632
        %v5675 = vmul.f32 %v5672, %v5633
        %v5676 = vmul.f32 %v5672, %v5634
        %v5677 = vadd.f32 %v5667, %v5673
        %v5678 = vadd.f32 %v5668, %v5674
        %v5679 = vadd.f32 %v5669, %v5675
        %v5680 = vadd.f32 %v5670, %v5676
        %s5681 = sld [smem:[#allocation19 + $0x83]]
        %v5682 = vstv %s5681
        %v5683 = vmul.f32 %v5682, %v5635
        %v5684 = vmul.f32 %v5682, %v5636
        %v5685 = vmul.f32 %v5682, %v5637
        %v5686 = vmul.f32 %v5682, %v5638
        %v5687 = vadd.f32 %v5677, %v5683
        %v5688 = vadd.f32 %v5678, %v5684
        %v5689 = vadd.f32 %v5679, %v5685
        %v5690 = vadd.f32 %v5680, %v5686
        %s5691 = sld [smem:[#allocation19 + $0x84]]
        %v5692 = vstv %s5691
        %v5693 = vmul.f32 %v5692, %v5639
        %v5694 = vmul.f32 %v5692, %v5640
        %v5695 = vmul.f32 %v5692, %v5641
        %v5696 = vmul.f32 %v5692, %v5642
        %v5697 = vadd.f32 %v5687, %v5693
        %v5698 = vadd.f32 %v5688, %v5694
        %v5699 = vadd.f32 %v5689, %v5695
        %v5700 = vadd.f32 %v5690, %v5696
        %s5701 = sld [smem:[#allocation19 + $0x85]]
        %v5702 = vstv %s5701
        %v5703 = vmul.f32 %v5702, %v5643
        %v5704 = vmul.f32 %v5702, %v5644
        %v5705 = vmul.f32 %v5702, %v5645
        %v5706 = vmul.f32 %v5702, %v5646
        %v5707 = vadd.f32 %v5697, %v5703
        %v5708 = vadd.f32 %v5698, %v5704
        %v5709 = vadd.f32 %v5699, %v5705
        %v5710 = vadd.f32 %v5700, %v5706
        %s5711 = sld [smem:[#allocation19 + $0x86]]
        %v5712 = vstv %s5711
        %v5713 = vmul.f32 %v5712, %v5647
        %v5714 = vmul.f32 %v5712, %v5648
        %v5715 = vmul.f32 %v5712, %v5649
        %v5716 = vmul.f32 %v5712, %v5650
        %v5717 = vadd.f32 %v5707, %v5713
        %v5718 = vadd.f32 %v5708, %v5714
        %v5719 = vadd.f32 %v5709, %v5715
        %v5720 = vadd.f32 %v5710, %v5716
        %s5721 = sld [smem:[#allocation19 + $0x87]]
        %v5722 = vstv %s5721
        %v5723 = vmul.f32 %v5722, %v5651
        %v5724 = vmul.f32 %v5722, %v5652
        %v5725 = vmul.f32 %v5722, %v5653
        %v5726 = vmul.f32 %v5722, %v5654
        %v5727 = vadd.f32 %v5717, %v5723
        %v5728 = vadd.f32 %v5718, %v5724
        %v5729 = vadd.f32 %v5719, %v5725
        %v5730 = vadd.f32 %v5720, %v5726
        %v5731 = vxor.u32 %v5512, 2147483648
        %v5732 = vmul.f32 %v5731, 1.442695
        %v5733 = vpow.pop %v5732
        %v5734 = vadd.f32 %v5733, 1.0
        %v5735 = vrcp.pop %v5734
        %v5736 = vmul.f32 1.0, %v5735
        %s5737 = sld [smem:[#allocation19 + $0x180]]
        %v5738 = vstv %s5737
        %v5739 = vmul.f32 %v5738, %v5736
        %s5740 = sld [smem:[#allocation19 + $0x181]]
        %v5741 = vstv %s5740
        %v5742 = vmul.f32 %v5741, %v5736
        %v5744 = vrot.slane %v5742, 1
        %v5746 = vadd.f32 %v5739, %v5744
        %s5747 = sld [smem:[#allocation19 + $0x182]]
        %v5748 = vstv %s5747
        %v5749 = vmul.f32 %v5748, %v5736
        %v5751 = vrot.slane %v5749, 2
        %v5753 = vadd.f32 %v5746, %v5751
        %s5754 = sld [smem:[#allocation19 + $0x183]]
        %v5755 = vstv %s5754
        %v5756 = vmul.f32 %v5755, %v5736
        %v5758 = vrot.slane %v5756, 3
        %v5760 = vadd.f32 %v5753, %v5758
        %s5761 = sld [smem:[#allocation19 + $0x184]]
        %v5762 = vstv %s5761
        %v5763 = vmul.f32 %v5762, %v5736
        %v5765 = vrot.slane %v5763, 4
        %v5767 = vadd.f32 %v5760, %v5765
        %s5768 = sld [smem:[#allocation19 + $0x185]]
        %v5769 = vstv %s5768
        %v5770 = vmul.f32 %v5769, %v5736
        %v5772 = vrot.slane %v5770, 5
        %v5774 = vadd.f32 %v5767, %v5772
        %s5775 = sld [smem:[#allocation19 + $0x186]]
        %v5776 = vstv %s5775
        %v5777 = vmul.f32 %v5776, %v5736
        %v5779 = vrot.slane %v5777, 6
        %v5781 = vadd.f32 %v5774, %v5779
        %s5782 = sld [smem:[#allocation19 + $0x187]]
        %v5783 = vstv %s5782
        %v5784 = vmul.f32 %v5783, %v5736
        %v5786 = vrot.slane %v5784, 7
        %v5788 = vadd.f32 %v5781, %v5786
        %5789 = vst.msk [vmem:[#allocation2] sm:$0xff] %vm462, 0.0
        %5790 = vst.msk [vmem:[#allocation2 + $0x8] sm:$0xff] %vm462, 0.0
        %5791 = vst.msk [vmem:[#allocation2 + $0x10] sm:$0xff] %vm462, 0.0
        %5792 = vst.msk [vmem:[#allocation2 + $0x18] sm:$0xff] %vm462, 0.0
        %5797 = vrot.lane.b32.xlu0 %v5619, 7
        %v5798 = vpop.permute.xlu0 %5797
        %5799 = vrot.lane.b32.xlu0 %v5620, 7
        %v5800 = vpop.permute.xlu0 %5799
        %5801 = vrot.lane.b32.xlu0 %v5621, 7
        %v5802 = vpop.permute.xlu0 %5801
        %5803 = vrot.lane.b32.xlu0 %v5622, 7
        %v5804 = vpop.permute.xlu0 %5803
        %vm5809 = vcmask 89144
        %5810 = vst.msk [vmem:[#allocation2] sm:$0xff] %vm5809, %v5798
        %5811 = vst.msk [vmem:[#allocation2 + $0x8] sm:$0xff] %vm5809, %v5800
        %5812 = vst.msk [vmem:[#allocation2 + $0x10] sm:$0xff] %vm5809, %v5802
        %5813 = vst.msk [vmem:[#allocation2 + $0x18] sm:$0xff] %vm5809, %v5804
        %v5814 = vld [vmem:[#allocation2] sm:$0xff]
        %v5815 = vld [vmem:[#allocation2 + $0x8] sm:$0xff]
        %v5816 = vld [vmem:[#allocation2 + $0x10] sm:$0xff]
        %v5817 = vld [vmem:[#allocation2 + $0x18] sm:$0xff]
        %5818 = vst.msk [vmem:[#allocation4] sm:$0xff] %vm3878, %v5814
        %5819 = vst.msk [vmem:[#allocation4 + $0x8] sm:$0xff] %vm3878, %v5815
        %5820 = vst.msk [vmem:[#allocation4 + $0x10] sm:$0xff] %vm3878, %v5816
        %5821 = vst.msk [vmem:[#allocation4 + $0x18] sm:$0xff] %vm3878, %v5817
        %v5822 = vld [vmem:[#allocation2] sm:$0xff]
        %v5823 = vld [vmem:[#allocation2 + $0x8] sm:$0xff]
        %v5824 = vld [vmem:[#allocation2 + $0x10] sm:$0xff]
        %v5825 = vld [vmem:[#allocation2 + $0x18] sm:$0xff]
        %5830 = vrot.lane.b32.xlu0 %v5822, 127
        %v5831 = vpop.permute.xlu0 %5830
        %5832 = vrot.lane.b32.xlu0 %v5823, 127
        %v5833 = vpop.permute.xlu0 %5832
        %5834 = vrot.lane.b32.xlu0 %v5824, 127
        %v5835 = vpop.permute.xlu0 %5834
        %5836 = vrot.lane.b32.xlu0 %v5825, 127
        %v5837 = vpop.permute.xlu0 %5836
        %5842 = vst.msk [vmem:[#allocation4 + $0x20] sm:$0xff] %vm3878, %v5831
        %5843 = vst.msk [vmem:[#allocation4 + $0x28] sm:$0xff] %vm3878, %v5833
        %5844 = vst.msk [vmem:[#allocation4 + $0x30] sm:$0xff] %vm3878, %v5835
        %5845 = vst.msk [vmem:[#allocation4 + $0x38] sm:$0xff] %vm3878, %v5837
        %v5846 = vld [vmem:[#allocation2] sm:$0xff]
        %v5847 = vld [vmem:[#allocation2 + $0x8] sm:$0xff]
        %v5848 = vld [vmem:[#allocation2 + $0x10] sm:$0xff]
        %v5849 = vld [vmem:[#allocation2 + $0x18] sm:$0xff]
        %5854 = vrot.lane.b32.xlu0 %v5846, 126
        %v5855 = vpop.permute.xlu0 %5854
        %5856 = vrot.lane.b32.xlu0 %v5847, 126
        %v5857 = vpop.permute.xlu0 %5856
        %5858 = vrot.lane.b32.xlu0 %v5848, 126
        %v5859 = vpop.permute.xlu0 %5858
        %5860 = vrot.lane.b32.xlu0 %v5849, 126
        %v5861 = vpop.permute.xlu0 %5860
        %5866 = vst.msk [vmem:[#allocation4 + $0x40] sm:$0xff] %vm3878, %v5855
        %5867 = vst.msk [vmem:[#allocation4 + $0x48] sm:$0xff] %vm3878, %v5857
        %5868 = vst.msk [vmem:[#allocation4 + $0x50] sm:$0xff] %vm3878, %v5859
        %5869 = vst.msk [vmem:[#allocation4 + $0x58] sm:$0xff] %vm3878, %v5861
        %v5870 = vld [vmem:[#allocation2] sm:$0xff]
        %v5871 = vld [vmem:[#allocation2 + $0x8] sm:$0xff]
        %v5872 = vld [vmem:[#allocation2 + $0x10] sm:$0xff]
        %v5873 = vld [vmem:[#allocation2 + $0x18] sm:$0xff]
        %5878 = vrot.lane.b32.xlu0 %v5870, 125
        %v5879 = vpop.permute.xlu0 %5878
        %5880 = vrot.lane.b32.xlu0 %v5871, 125
        %v5881 = vpop.permute.xlu0 %5880
        %5882 = vrot.lane.b32.xlu0 %v5872, 125
        %v5883 = vpop.permute.xlu0 %5882
        %5884 = vrot.lane.b32.xlu0 %v5873, 125
        %v5885 = vpop.permute.xlu0 %5884
        %5890 = vst.msk [vmem:[#allocation4 + $0x60] sm:$0xff] %vm3878, %v5879
        %5891 = vst.msk [vmem:[#allocation4 + $0x68] sm:$0xff] %vm3878, %v5881
        %5892 = vst.msk [vmem:[#allocation4 + $0x70] sm:$0xff] %vm3878, %v5883
        %5893 = vst.msk [vmem:[#allocation4 + $0x78] sm:$0xff] %vm3878, %v5885
        %v5894 = vld [vmem:[#allocation2] sm:$0xff]
        %v5895 = vld [vmem:[#allocation2 + $0x8] sm:$0xff]
        %v5896 = vld [vmem:[#allocation2 + $0x10] sm:$0xff]
        %v5897 = vld [vmem:[#allocation2 + $0x18] sm:$0xff]
        %5902 = vrot.lane.b32.xlu0 %v5894, 124
        %v5903 = vpop.permute.xlu0 %5902
        %5904 = vrot.lane.b32.xlu0 %v5895, 124
        %v5905 = vpop.permute.xlu0 %5904
        %5906 = vrot.lane.b32.xlu0 %v5896, 124
        %v5907 = vpop.permute.xlu0 %5906
        %5908 = vrot.lane.b32.xlu0 %v5897, 124
        %v5909 = vpop.permute.xlu0 %5908
        %5914 = vst.msk [vmem:[#allocation4 + $0x80] sm:$0xff] %vm3878, %v5903
        %5915 = vst.msk [vmem:[#allocation4 + $0x88] sm:$0xff] %vm3878, %v5905
        %5916 = vst.msk [vmem:[#allocation4 + $0x90] sm:$0xff] %vm3878, %v5907
        %5917 = vst.msk [vmem:[#allocation4 + $0x98] sm:$0xff] %vm3878, %v5909
        %v5918 = vld [vmem:[#allocation2] sm:$0xff]
        %v5919 = vld [vmem:[#allocation2 + $0x8] sm:$0xff]
        %v5920 = vld [vmem:[#allocation2 + $0x10] sm:$0xff]
        %v5921 = vld [vmem:[#allocation2 + $0x18] sm:$0xff]
        %5926 = vrot.lane.b32.xlu0 %v5918, 123
        %v5927 = vpop.permute.xlu0 %5926
        %5928 = vrot.lane.b32.xlu0 %v5919, 123
        %v5929 = vpop.permute.xlu0 %5928
        %5930 = vrot.lane.b32.xlu0 %v5920, 123
        %v5931 = vpop.permute.xlu0 %5930
        %5932 = vrot.lane.b32.xlu0 %v5921, 123
        %v5933 = vpop.permute.xlu0 %5932
        %5938 = vst.msk [vmem:[#allocation4 + $0xa0] sm:$0xff] %vm3878, %v5927
        %5939 = vst.msk [vmem:[#allocation4 + $0xa8] sm:$0xff] %vm3878, %v5929
        %5940 = vst.msk [vmem:[#allocation4 + $0xb0] sm:$0xff] %vm3878, %v5931
        %5941 = vst.msk [vmem:[#allocation4 + $0xb8] sm:$0xff] %vm3878, %v5933
        %v5942 = vld [vmem:[#allocation2] sm:$0xff]
        %v5943 = vld [vmem:[#allocation2 + $0x8] sm:$0xff]
        %v5944 = vld [vmem:[#allocation2 + $0x10] sm:$0xff]
        %v5945 = vld [vmem:[#allocation2 + $0x18] sm:$0xff]
        %5950 = vrot.lane.b32.xlu0 %v5942, 122
        %v5951 = vpop.permute.xlu0 %5950
        %5952 = vrot.lane.b32.xlu0 %v5943, 122
        %v5953 = vpop.permute.xlu0 %5952
        %5954 = vrot.lane.b32.xlu0 %v5944, 122
        %v5955 = vpop.permute.xlu0 %5954
        %5956 = vrot.lane.b32.xlu0 %v5945, 122
        %v5957 = vpop.permute.xlu0 %5956
        %5962 = vst.msk [vmem:[#allocation4 + $0xc0] sm:$0xff] %vm3878, %v5951
        %5963 = vst.msk [vmem:[#allocation4 + $0xc8] sm:$0xff] %vm3878, %v5953
        %5964 = vst.msk [vmem:[#allocation4 + $0xd0] sm:$0xff] %vm3878, %v5955
        %5965 = vst.msk [vmem:[#allocation4 + $0xd8] sm:$0xff] %vm3878, %v5957
        %v5966 = vld [vmem:[#allocation2] sm:$0xff]
        %v5967 = vld [vmem:[#allocation2 + $0x8] sm:$0xff]
        %v5968 = vld [vmem:[#allocation2 + $0x10] sm:$0xff]
        %v5969 = vld [vmem:[#allocation2 + $0x18] sm:$0xff]
        %5974 = vrot.lane.b32.xlu0 %v5966, 121
        %v5975 = vpop.permute.xlu0 %5974
        %5976 = vrot.lane.b32.xlu0 %v5967, 121
        %v5977 = vpop.permute.xlu0 %5976
        %5978 = vrot.lane.b32.xlu0 %v5968, 121
        %v5979 = vpop.permute.xlu0 %5978
        %5980 = vrot.lane.b32.xlu0 %v5969, 121
        %v5981 = vpop.permute.xlu0 %5980
        %5986 = vst.msk [vmem:[#allocation4 + $0xe0] sm:$0xff] %vm3878, %v5975
        %5987 = vst.msk [vmem:[#allocation4 + $0xe8] sm:$0xff] %vm3878, %v5977
        %5988 = vst.msk [vmem:[#allocation4 + $0xf0] sm:$0xff] %vm3878, %v5979
        %5989 = vst.msk [vmem:[#allocation4 + $0xf8] sm:$0xff] %vm3878, %v5981
        %v5990 = vld [vmem:[#allocation2] sm:$0xff]
        %v5991 = vld [vmem:[#allocation2 + $0x8] sm:$0xff]
        %v5992 = vld [vmem:[#allocation2 + $0x10] sm:$0xff]
        %v5993 = vld [vmem:[#allocation2 + $0x18] sm:$0xff]
        %5998 = vrot.lane.b32.xlu0 %v5990, 120
        %v5999 = vpop.permute.xlu0 %5998
        %6000 = vrot.lane.b32.xlu0 %v5991, 120
        %v6001 = vpop.permute.xlu0 %6000
        %6002 = vrot.lane.b32.xlu0 %v5992, 120
        %v6003 = vpop.permute.xlu0 %6002
        %6004 = vrot.lane.b32.xlu0 %v5993, 120
        %v6005 = vpop.permute.xlu0 %6004
        %6010 = vst.msk [vmem:[#allocation4 + $0x100] sm:$0xff] %vm3878, %v5999
        %6011 = vst.msk [vmem:[#allocation4 + $0x108] sm:$0xff] %vm3878, %v6001
        %6012 = vst.msk [vmem:[#allocation4 + $0x110] sm:$0xff] %vm3878, %v6003
        %6013 = vst.msk [vmem:[#allocation4 + $0x118] sm:$0xff] %vm3878, %v6005
        %v6014 = vld [vmem:[#allocation2] sm:$0xff]
        %v6015 = vld [vmem:[#allocation2 + $0x8] sm:$0xff]
        %v6016 = vld [vmem:[#allocation2 + $0x10] sm:$0xff]
        %v6017 = vld [vmem:[#allocation2 + $0x18] sm:$0xff]
        %6022 = vrot.lane.b32.xlu0 %v6014, 119
        %v6023 = vpop.permute.xlu0 %6022
        %6024 = vrot.lane.b32.xlu0 %v6015, 119
        %v6025 = vpop.permute.xlu0 %6024
        %6026 = vrot.lane.b32.xlu0 %v6016, 119
        %v6027 = vpop.permute.xlu0 %6026
        %6028 = vrot.lane.b32.xlu0 %v6017, 119
        %v6029 = vpop.permute.xlu0 %6028
        %6034 = vst.msk [vmem:[#allocation4 + $0x120] sm:$0xff] %vm3878, %v6023
        %6035 = vst.msk [vmem:[#allocation4 + $0x128] sm:$0xff] %vm3878, %v6025
        %6036 = vst.msk [vmem:[#allocation4 + $0x130] sm:$0xff] %vm3878, %v6027
        %6037 = vst.msk [vmem:[#allocation4 + $0x138] sm:$0xff] %vm3878, %v6029
        %v6038 = vld [vmem:[#allocation2] sm:$0xff]
        %v6039 = vld [vmem:[#allocation2 + $0x8] sm:$0xff]
        %v6040 = vld [vmem:[#allocation2 + $0x10] sm:$0xff]
        %v6041 = vld [vmem:[#allocation2 + $0x18] sm:$0xff]
        %6046 = vrot.lane.b32.xlu0 %v6038, 118
        %v6047 = vpop.permute.xlu0 %6046
        %6048 = vrot.lane.b32.xlu0 %v6039, 118
        %v6049 = vpop.permute.xlu0 %6048
        %6050 = vrot.lane.b32.xlu0 %v6040, 118
        %v6051 = vpop.permute.xlu0 %6050
        %6052 = vrot.lane.b32.xlu0 %v6041, 118
        %v6053 = vpop.permute.xlu0 %6052
        %6058 = vst.msk [vmem:[#allocation4 + $0x140] sm:$0xff] %vm3878, %v6047
        %6059 = vst.msk [vmem:[#allocation4 + $0x148] sm:$0xff] %vm3878, %v6049
        %6060 = vst.msk [vmem:[#allocation4 + $0x150] sm:$0xff] %vm3878, %v6051
        %6061 = vst.msk [vmem:[#allocation4 + $0x158] sm:$0xff] %vm3878, %v6053
        %v6062 = vld [vmem:[#allocation2] sm:$0xff]
        %v6063 = vld [vmem:[#allocation2 + $0x8] sm:$0xff]
        %v6064 = vld [vmem:[#allocation2 + $0x10] sm:$0xff]
        %v6065 = vld [vmem:[#allocation2 + $0x18] sm:$0xff]
        %6070 = vrot.lane.b32.xlu0 %v6062, 117
        %v6071 = vpop.permute.xlu0 %6070
        %6072 = vrot.lane.b32.xlu0 %v6063, 117
        %v6073 = vpop.permute.xlu0 %6072
        %6074 = vrot.lane.b32.xlu0 %v6064, 117
        %v6075 = vpop.permute.xlu0 %6074
        %6076 = vrot.lane.b32.xlu0 %v6065, 117
        %v6077 = vpop.permute.xlu0 %6076
        %6082 = vst.msk [vmem:[#allocation4 + $0x160] sm:$0xff] %vm3878, %v6071
        %6083 = vst.msk [vmem:[#allocation4 + $0x168] sm:$0xff] %vm3878, %v6073
        %6084 = vst.msk [vmem:[#allocation4 + $0x170] sm:$0xff] %vm3878, %v6075
        %6085 = vst.msk [vmem:[#allocation4 + $0x178] sm:$0xff] %vm3878, %v6077
        %v6086 = vld [vmem:[#allocation2] sm:$0xff]
        %v6087 = vld [vmem:[#allocation2 + $0x8] sm:$0xff]
        %v6088 = vld [vmem:[#allocation2 + $0x10] sm:$0xff]
        %v6089 = vld [vmem:[#allocation2 + $0x18] sm:$0xff]
        %6094 = vrot.lane.b32.xlu0 %v6086, 116
        %v6095 = vpop.permute.xlu0 %6094
        %6096 = vrot.lane.b32.xlu0 %v6087, 116
        %v6097 = vpop.permute.xlu0 %6096
        %6098 = vrot.lane.b32.xlu0 %v6088, 116
        %v6099 = vpop.permute.xlu0 %6098
        %6100 = vrot.lane.b32.xlu0 %v6089, 116
        %v6101 = vpop.permute.xlu0 %6100
        %6106 = vst.msk [vmem:[#allocation4 + $0x180] sm:$0xff] %vm3878, %v6095
        %6107 = vst.msk [vmem:[#allocation4 + $0x188] sm:$0xff] %vm3878, %v6097
        %6108 = vst.msk [vmem:[#allocation4 + $0x190] sm:$0xff] %vm3878, %v6099
        %6109 = vst.msk [vmem:[#allocation4 + $0x198] sm:$0xff] %vm3878, %v6101
        %v6110 = vld [vmem:[#allocation2] sm:$0xff]
        %v6111 = vld [vmem:[#allocation2 + $0x8] sm:$0xff]
        %v6112 = vld [vmem:[#allocation2 + $0x10] sm:$0xff]
        %v6113 = vld [vmem:[#allocation2 + $0x18] sm:$0xff]
        %6118 = vrot.lane.b32.xlu0 %v6110, 115
        %v6119 = vpop.permute.xlu0 %6118
        %6120 = vrot.lane.b32.xlu0 %v6111, 115
        %v6121 = vpop.permute.xlu0 %6120
        %6122 = vrot.lane.b32.xlu0 %v6112, 115
        %v6123 = vpop.permute.xlu0 %6122
        %6124 = vrot.lane.b32.xlu0 %v6113, 115
        %v6125 = vpop.permute.xlu0 %6124
        %6130 = vst.msk [vmem:[#allocation4 + $0x1a0] sm:$0xff] %vm3878, %v6119
        %6131 = vst.msk [vmem:[#allocation4 + $0x1a8] sm:$0xff] %vm3878, %v6121
        %6132 = vst.msk [vmem:[#allocation4 + $0x1b0] sm:$0xff] %vm3878, %v6123
        %6133 = vst.msk [vmem:[#allocation4 + $0x1b8] sm:$0xff] %vm3878, %v6125
        %v6134 = vld [vmem:[#allocation2] sm:$0xff]
        %v6135 = vld [vmem:[#allocation2 + $0x8] sm:$0xff]
        %v6136 = vld [vmem:[#allocation2 + $0x10] sm:$0xff]
        %v6137 = vld [vmem:[#allocation2 + $0x18] sm:$0xff]
        %6142 = vrot.lane.b32.xlu0 %v6134, 114
        %v6143 = vpop.permute.xlu0 %6142
        %6144 = vrot.lane.b32.xlu0 %v6135, 114
        %v6145 = vpop.permute.xlu0 %6144
        %6146 = vrot.lane.b32.xlu0 %v6136, 114
        %v6147 = vpop.permute.xlu0 %6146
        %6148 = vrot.lane.b32.xlu0 %v6137, 114
        %v6149 = vpop.permute.xlu0 %6148
        %6154 = vst.msk [vmem:[#allocation4 + $0x1c0] sm:$0xff] %vm3878, %v6143
        %6155 = vst.msk [vmem:[#allocation4 + $0x1c8] sm:$0xff] %vm3878, %v6145
        %6156 = vst.msk [vmem:[#allocation4 + $0x1d0] sm:$0xff] %vm3878, %v6147
        %6157 = vst.msk [vmem:[#allocation4 + $0x1d8] sm:$0xff] %vm3878, %v6149
        %v6158 = vld [vmem:[#allocation4] sm:$0xff]
        %v6159 = vld [vmem:[#allocation4 + $0x8] sm:$0xff]
        %v6160 = vld [vmem:[#allocation4 + $0x10] sm:$0xff]
        %v6161 = vld [vmem:[#allocation4 + $0x18] sm:$0xff]
        %v6162 = vld [vmem:[#allocation4 + $0x20] sm:$0xff]
        %v6163 = vld [vmem:[#allocation4 + $0x28] sm:$0xff]
        %v6164 = vld [vmem:[#allocation4 + $0x30] sm:$0xff]
        %v6165 = vld [vmem:[#allocation4 + $0x38] sm:$0xff]
        %v6166 = vld [vmem:[#allocation4 + $0x40] sm:$0xff]
        %v6167 = vld [vmem:[#allocation4 + $0x48] sm:$0xff]
        %v6168 = vld [vmem:[#allocation4 + $0x50] sm:$0xff]
        %v6169 = vld [vmem:[#allocation4 + $0x58] sm:$0xff]
        %v6170 = vld [vmem:[#allocation4 + $0x60] sm:$0xff]
        %v6171 = vld [vmem:[#allocation4 + $0x68] sm:$0xff]
        %v6172 = vld [vmem:[#allocation4 + $0x70] sm:$0xff]
        %v6173 = vld [vmem:[#allocation4 + $0x78] sm:$0xff]
        %v6174 = vld [vmem:[#allocation4 + $0x80] sm:$0xff]
        %v6175 = vld [vmem:[#allocation4 + $0x88] sm:$0xff]
        %v6176 = vld [vmem:[#allocation4 + $0x90] sm:$0xff]
        %v6177 = vld [vmem:[#allocation4 + $0x98] sm:$0xff]
        %v6178 = vld [vmem:[#allocation4 + $0xa0] sm:$0xff]
        %v6179 = vld [vmem:[#allocation4 + $0xa8] sm:$0xff]
        %v6180 = vld [vmem:[#allocation4 + $0xb0] sm:$0xff]
        %v6181 = vld [vmem:[#allocation4 + $0xb8] sm:$0xff]
        %v6182 = vld [vmem:[#allocation4 + $0xc0] sm:$0xff]
        %v6183 = vld [vmem:[#allocation4 + $0xc8] sm:$0xff]
        %v6184 = vld [vmem:[#allocation4 + $0xd0] sm:$0xff]
        %v6185 = vld [vmem:[#allocation4 + $0xd8] sm:$0xff]
        %v6186 = vld [vmem:[#allocation4 + $0xe0] sm:$0xff]
        %v6187 = vld [vmem:[#allocation4 + $0xe8] sm:$0xff]
        %v6188 = vld [vmem:[#allocation4 + $0xf0] sm:$0xff]
        %v6189 = vld [vmem:[#allocation4 + $0xf8] sm:$0xff]
        %v6190 = vld [vmem:[#allocation4 + $0x100] sm:$0xff]
        %v6191 = vld [vmem:[#allocation4 + $0x108] sm:$0xff]
        %v6192 = vld [vmem:[#allocation4 + $0x110] sm:$0xff]
        %v6193 = vld [vmem:[#allocation4 + $0x118] sm:$0xff]
        %v6194 = vld [vmem:[#allocation4 + $0x120] sm:$0xff]
        %v6195 = vld [vmem:[#allocation4 + $0x128] sm:$0xff]
        %v6196 = vld [vmem:[#allocation4 + $0x130] sm:$0xff]
        %v6197 = vld [vmem:[#allocation4 + $0x138] sm:$0xff]
        %v6198 = vld [vmem:[#allocation4 + $0x140] sm:$0xff]
        %v6199 = vld [vmem:[#allocation4 + $0x148] sm:$0xff]
        %v6200 = vld [vmem:[#allocation4 + $0x150] sm:$0xff]
        %v6201 = vld [vmem:[#allocation4 + $0x158] sm:$0xff]
        %v6202 = vld [vmem:[#allocation4 + $0x160] sm:$0xff]
        %v6203 = vld [vmem:[#allocation4 + $0x168] sm:$0xff]
        %v6204 = vld [vmem:[#allocation4 + $0x170] sm:$0xff]
        %v6205 = vld [vmem:[#allocation4 + $0x178] sm:$0xff]
        %v6206 = vld [vmem:[#allocation4 + $0x180] sm:$0xff]
        %v6207 = vld [vmem:[#allocation4 + $0x188] sm:$0xff]
        %v6208 = vld [vmem:[#allocation4 + $0x190] sm:$0xff]
        %v6209 = vld [vmem:[#allocation4 + $0x198] sm:$0xff]
        %v6210 = vld [vmem:[#allocation4 + $0x1a0] sm:$0xff]
        %v6211 = vld [vmem:[#allocation4 + $0x1a8] sm:$0xff]
        %v6212 = vld [vmem:[#allocation4 + $0x1b0] sm:$0xff]
        %v6213 = vld [vmem:[#allocation4 + $0x1b8] sm:$0xff]
        %v6214 = vld [vmem:[#allocation4 + $0x1c0] sm:$0xff]
        %v6215 = vld [vmem:[#allocation4 + $0x1c8] sm:$0xff]
        %v6216 = vld [vmem:[#allocation4 + $0x1d0] sm:$0xff]
        %v6217 = vld [vmem:[#allocation4 + $0x1d8] sm:$0xff]
        %v6218 = vld [vmem:[#allocation4 + $0x1e0] sm:$0xff]
        %v6219 = vld [vmem:[#allocation15] sm:$0xff]
        %v6220 = vld [vmem:[#allocation15 + $0x8] sm:$0xff]
        %v6221 = vld [vmem:[#allocation15 + $0x10] sm:$0xff]
        %v6222 = vld [vmem:[#allocation15 + $0x18] sm:$0xff]
        %v6223 = vld [vmem:[#allocation15 + $0x20] sm:$0xff]
        %v6224 = vld [vmem:[#allocation15 + $0x28] sm:$0xff]
        %v6225 = vld [vmem:[#allocation15 + $0x30] sm:$0xff]
        %v6226 = vld [vmem:[#allocation15 + $0x38] sm:$0xff]
        %v6227 = vld [vmem:[#allocation15 + $0x40] sm:$0xff]
        %v6228 = vld [vmem:[#allocation15 + $0x48] sm:$0xff]
        %v6229 = vld [vmem:[#allocation15 + $0x50] sm:$0xff]
        %v6230 = vld [vmem:[#allocation15 + $0x58] sm:$0xff]
        %v6231 = vld [vmem:[#allocation15 + $0x60] sm:$0xff]
        %v6232 = vld [vmem:[#allocation15 + $0x68] sm:$0xff]
        %v6233 = vld [vmem:[#allocation15 + $0x70] sm:$0xff]
        %v6234 = vld [vmem:[#allocation15 + $0x78] sm:$0xff]
        %v6235 = vld [vmem:[#allocation15 + $0x80] sm:$0xff]
        %v6236 = vld [vmem:[#allocation15 + $0x88] sm:$0xff]
        %v6237 = vld [vmem:[#allocation15 + $0x90] sm:$0xff]
        %v6238 = vld [vmem:[#allocation15 + $0x98] sm:$0xff]
        %v6239 = vld [vmem:[#allocation15 + $0xa0] sm:$0xff]
        %v6240 = vld [vmem:[#allocation15 + $0xa8] sm:$0xff]
        %v6241 = vld [vmem:[#allocation15 + $0xb0] sm:$0xff]
        %v6242 = vld [vmem:[#allocation15 + $0xb8] sm:$0xff]
        %v6243 = vld [vmem:[#allocation15 + $0xc0] sm:$0xff]
        %v6244 = vld [vmem:[#allocation15 + $0xc8] sm:$0xff]
        %v6245 = vld [vmem:[#allocation15 + $0xd0] sm:$0xff]
        %v6246 = vld [vmem:[#allocation15 + $0xd8] sm:$0xff]
        %v6247 = vld [vmem:[#allocation15 + $0xe0] sm:$0xff]
        %v6248 = vld [vmem:[#allocation15 + $0xe8] sm:$0xff]
        %v6249 = vld [vmem:[#allocation15 + $0xf0] sm:$0xff]
        %v6250 = vld [vmem:[#allocation15 + $0xf8] sm:$0xff]
        %v6251 = vld [vmem:[#allocation15 + $0x100] sm:$0xff]
        %v6252 = vld [vmem:[#allocation15 + $0x108] sm:$0xff]
        %v6253 = vld [vmem:[#allocation15 + $0x110] sm:$0xff]
        %v6254 = vld [vmem:[#allocation15 + $0x118] sm:$0xff]
        %v6255 = vld [vmem:[#allocation15 + $0x120] sm:$0xff]
        %v6256 = vld [vmem:[#allocation15 + $0x128] sm:$0xff]
        %v6257 = vld [vmem:[#allocation15 + $0x130] sm:$0xff]
        %v6258 = vld [vmem:[#allocation15 + $0x138] sm:$0xff]
        %v6259 = vld [vmem:[#allocation15 + $0x140] sm:$0xff]
        %v6260 = vld [vmem:[#allocation15 + $0x148] sm:$0xff]
        %v6261 = vld [vmem:[#allocation15 + $0x150] sm:$0xff]
        %v6262 = vld [vmem:[#allocation15 + $0x158] sm:$0xff]
        %v6263 = vld [vmem:[#allocation15 + $0x160] sm:$0xff]
        %v6264 = vld [vmem:[#allocation15 + $0x168] sm:$0xff]
        %v6265 = vld [vmem:[#allocation15 + $0x170] sm:$0xff]
        %v6266 = vld [vmem:[#allocation15 + $0x178] sm:$0xff]
        %v6267 = vld [vmem:[#allocation15 + $0x180] sm:$0xff]
        %v6268 = vld [vmem:[#allocation15 + $0x188] sm:$0xff]
        %v6269 = vld [vmem:[#allocation15 + $0x190] sm:$0xff]
        %v6270 = vld [vmem:[#allocation15 + $0x198] sm:$0xff]
        %v6271 = vld [vmem:[#allocation15 + $0x1a0] sm:$0xff]
        %v6272 = vld [vmem:[#allocation15 + $0x1a8] sm:$0xff]
        %v6273 = vld [vmem:[#allocation15 + $0x1b0] sm:$0xff]
        %v6274 = vld [vmem:[#allocation15 + $0x1b8] sm:$0xff]
        %v6275 = vld [vmem:[#allocation15 + $0x1c0] sm:$0xff]
        %v6276 = vld [vmem:[#allocation15 + $0x1c8] sm:$0xff]
        %v6277 = vld [vmem:[#allocation15 + $0x1d0] sm:$0xff]
        %v6278 = vld [vmem:[#allocation15 + $0x1d8] sm:$0xff]
        %v6279 = vld [vmem:[#allocation15 + $0x1e0] sm:$0xff]
        %v6280 = vld [vmem:[#allocation15 + $0x1e8] sm:$0xff]
        %v6281 = vld [vmem:[#allocation15 + $0x1f0] sm:$0xff]
        %v6282 = vld [vmem:[#allocation15 + $0x1f8] sm:$0xff]
        %v6283 = vld [vmem:[#allocation15 + $0x200] sm:$0xff]
        %v6284 = vld [vmem:[#allocation15 + $0x208] sm:$0xff]
        %v6285 = vld [vmem:[#allocation15 + $0x210] sm:$0xff]
        %v6286 = vld [vmem:[#allocation15 + $0x218] sm:$0xff]
        %v6287 = vld [vmem:[#allocation15 + $0x220] sm:$0xff]
        %v6288 = vld [vmem:[#allocation15 + $0x228] sm:$0xff]
        %v6289 = vld [vmem:[#allocation15 + $0x230] sm:$0xff]
        %v6290 = vld [vmem:[#allocation15 + $0x238] sm:$0xff]
        %v6291 = vld [vmem:[#allocation15 + $0x240] sm:$0xff]
        %v6292 = vld [vmem:[#allocation15 + $0x248] sm:$0xff]
        %v6293 = vld [vmem:[#allocation15 + $0x250] sm:$0xff]
        %v6294 = vld [vmem:[#allocation15 + $0x258] sm:$0xff]
        %v6295 = vld [vmem:[#allocation15 + $0x260] sm:$0xff]
        %v6296 = vld [vmem:[#allocation15 + $0x268] sm:$0xff]
        %v6297 = vld [vmem:[#allocation15 + $0x270] sm:$0xff]
        %v6298 = vld [vmem:[#allocation15 + $0x278] sm:$0xff]
        %v6299 = vld [vmem:[#allocation15 + $0x280] sm:$0xff]
        %v6300 = vld [vmem:[#allocation15 + $0x288] sm:$0xff]
        %v6301 = vld [vmem:[#allocation15 + $0x290] sm:$0xff]
        %v6302 = vld [vmem:[#allocation15 + $0x298] sm:$0xff]
        %v6303 = vld [vmem:[#allocation15 + $0x2a0] sm:$0xff]
        %v6304 = vld [vmem:[#allocation15 + $0x2a8] sm:$0xff]
        %v6305 = vld [vmem:[#allocation15 + $0x2b0] sm:$0xff]
        %v6306 = vld [vmem:[#allocation15 + $0x2b8] sm:$0xff]
        %v6307 = vld [vmem:[#allocation15 + $0x2c0] sm:$0xff]
        %v6308 = vld [vmem:[#allocation15 + $0x2c8] sm:$0xff]
        %v6309 = vld [vmem:[#allocation15 + $0x2d0] sm:$0xff]
        %v6310 = vld [vmem:[#allocation15 + $0x2d8] sm:$0xff]
        %v6311 = vld [vmem:[#allocation15 + $0x2e0] sm:$0xff]
        %v6312 = vld [vmem:[#allocation15 + $0x2e8] sm:$0xff]
        %v6313 = vld [vmem:[#allocation15 + $0x2f0] sm:$0xff]
        %v6314 = vld [vmem:[#allocation15 + $0x2f8] sm:$0xff]
        %v6315 = vld [vmem:[#allocation15 + $0x300] sm:$0xff]
        %v6316 = vld [vmem:[#allocation15 + $0x308] sm:$0xff]
        %v6317 = vld [vmem:[#allocation15 + $0x310] sm:$0xff]
        %v6318 = vld [vmem:[#allocation15 + $0x318] sm:$0xff]
        %v6319 = vld [vmem:[#allocation15 + $0x320] sm:$0xff]
        %v6320 = vld [vmem:[#allocation15 + $0x328] sm:$0xff]
        %v6321 = vld [vmem:[#allocation15 + $0x330] sm:$0xff]
        %v6322 = vld [vmem:[#allocation15 + $0x338] sm:$0xff]
        %v6323 = vld [vmem:[#allocation15 + $0x340] sm:$0xff]
        %v6324 = vld [vmem:[#allocation15 + $0x348] sm:$0xff]
        %v6325 = vld [vmem:[#allocation15 + $0x350] sm:$0xff]
        %v6326 = vld [vmem:[#allocation15 + $0x358] sm:$0xff]
        %v6327 = vld [vmem:[#allocation15 + $0x360] sm:$0xff]
        %v6328 = vld [vmem:[#allocation15 + $0x368] sm:$0xff]
        %v6329 = vld [vmem:[#allocation15 + $0x370] sm:$0xff]
        %v6330 = vld [vmem:[#allocation15 + $0x378] sm:$0xff]
        %v6331 = vld [vmem:[#allocation15 + $0x380] sm:$0xff]
        %v6332 = vld [vmem:[#allocation15 + $0x388] sm:$0xff]
        %v6333 = vld [vmem:[#allocation15 + $0x390] sm:$0xff]
        %v6334 = vld [vmem:[#allocation15 + $0x398] sm:$0xff]
        %v6335 = vld [vmem:[#allocation15 + $0x3a0] sm:$0xff]
        %v6336 = vld [vmem:[#allocation15 + $0x3a8] sm:$0xff]
        %v6337 = vld [vmem:[#allocation15 + $0x3b0] sm:$0xff]
        %v6338 = vld [vmem:[#allocation15 + $0x3b8] sm:$0xff]
        %v6339 = vld [vmem:[#allocation15 + $0x3c0] sm:$0xff]
        %v6340 = vld [vmem:[#allocation15 + $0x3c8] sm:$0xff]
        %v6341 = vld [vmem:[#allocation15 + $0x3d0] sm:$0xff]
        %v6342 = vld [vmem:[#allocation15 + $0x3d8] sm:$0xff]
        %v6343 = vld [vmem:[#allocation15 + $0x3e0] sm:$0xff]
        %v6344 = vld [vmem:[#allocation15 + $0x3e8] sm:$0xff]
        %v6345 = vld [vmem:[#allocation15 + $0x3f0] sm:$0xff]
        %v6346 = vld [vmem:[#allocation15 + $0x3f8] sm:$0xff]
        %v6347 = vld [vmem:[#allocation15 + $0x400] sm:$0xff]
        %v6348 = vld [vmem:[#allocation15 + $0x408] sm:$0xff]
        %v6349 = vld [vmem:[#allocation15 + $0x410] sm:$0xff]
        %v6350 = vld [vmem:[#allocation15 + $0x418] sm:$0xff]
        %v6352 = vsel %vm1074, %v6222, 0
        %v6355 = vsel %vm1074, %v6226, 0
        %v6358 = vsel %vm1074, %v6230, 0
        %v6361 = vsel %vm1074, %v6234, 0
        %v6364 = vsel %vm1074, %v6238, 0
        %v6367 = vsel %vm1074, %v6242, 0
        %v6370 = vsel %vm1074, %v6246, 0
        %v6373 = vsel %vm1074, %v6250, 0
        %v6376 = vsel %vm1074, %v6254, 0
        %v6379 = vsel %vm1074, %v6258, 0
        %v6382 = vsel %vm1074, %v6262, 0
        %v6385 = vsel %vm1074, %v6266, 0
        %v6388 = vsel %vm1074, %v6270, 0
        %v6391 = vsel %vm1074, %v6274, 0
        %v6394 = vsel %vm1074, %v6278, 0
        %v6397 = vsel %vm1074, %v6282, 0
        %v6400 = vsel %vm1074, %v6286, 0
        %v6403 = vsel %vm1074, %v6290, 0
        %v6406 = vsel %vm1074, %v6294, 0
        %v6409 = vsel %vm1074, %v6298, 0
        %v6412 = vsel %vm1074, %v6302, 0
        %v6415 = vsel %vm1074, %v6306, 0
        %v6418 = vsel %vm1074, %v6310, 0
        %v6421 = vsel %vm1074, %v6314, 0
        %v6424 = vsel %vm1074, %v6318, 0
        %v6427 = vsel %vm1074, %v6322, 0
        %v6430 = vsel %vm1074, %v6326, 0
        %v6433 = vsel %vm1074, %v6330, 0
        %v6436 = vsel %vm1074, %v6334, 0
        %v6439 = vsel %vm1074, %v6338, 0
        %v6442 = vsel %vm1074, %v6342, 0
        %v6445 = vsel %vm1074, %v6346, 0
        %v6448 = vsel %vm1074, %v6350, 0
        %6450 = vmatprep.subr.mxu0 0.0
        %6451 = vmatpush1.msra.mxu0 %v6158
        %6452 = vmatprep.subr.mxu0 0.0
        %6453 = vmatpush1.msra.mxu0 %v6159
        %6454 = vmatprep.subr.mxu0 0.0
        %6455 = vmatpush1.msra.mxu0 %v6160
        %6456 = vmatprep.subr.mxu0 0.0
        %6457 = vmatpush1.msra.mxu0 %v6161
        %6458 = vmatprep.subr.mxu0 0.0
        %6459 = vmatpush1.msra.mxu0 %v6162
        %6460 = vmatprep.subr.mxu0 0.0
        %6461 = vmatpush1.msra.mxu0 %v6163
        %6462 = vmatprep.subr.mxu0 0.0
        %6463 = vmatpush1.msra.mxu0 %v6164
        %6464 = vmatprep.subr.mxu0 0.0
        %6465 = vmatpush1.msra.mxu0 %v6165
        %6466 = vmatprep.subr.mxu0 0.0
        %6467 = vmatpush1.msra.mxu0 %v6166
        %6468 = vmatprep.subr.mxu0 0.0
        %6469 = vmatpush1.msra.mxu0 %v6167
        %6470 = vmatprep.subr.mxu0 0.0
        %6471 = vmatpush1.msra.mxu0 %v6168
        %6472 = vmatprep.subr.mxu0 0.0
        %6473 = vmatpush1.msra.mxu0 %v6169
        %6474 = vmatprep.subr.mxu0 0.0
        %6475 = vmatpush1.msra.mxu0 %v6170
        %6476 = vmatprep.subr.mxu0 0.0
        %6477 = vmatpush1.msra.mxu0 %v6171
        %6478 = vmatprep.subr.mxu0 0.0
        %6479 = vmatpush1.msra.mxu0 %v6172
        %6480 = vmatprep.subr.mxu0 0.0
        %6481 = vmatpush1.msra.mxu0 %v6173
        %6482 = vmatprep.subr.mxu0 0.0
        %6483 = vmatpush1.msra.mxu0 %v6174
        %6484 = vmatprep.subr.mxu0 0.0
        %6485 = vmatpush1.msra.mxu0 %v6175
        %6486 = vmatprep.subr.mxu0 0.0
        %6487 = vmatpush1.msra.mxu0 %v6176
        %6488 = vmatprep.subr.mxu0 0.0
        %6489 = vmatpush1.msra.mxu0 %v6177
        %6490 = vmatprep.subr.mxu0 0.0
        %6491 = vmatpush1.msra.mxu0 %v6178
        %6492 = vmatprep.subr.mxu0 0.0
        %6493 = vmatpush1.msra.mxu0 %v6179
        %6494 = vmatprep.subr.mxu0 0.0
        %6495 = vmatpush1.msra.mxu0 %v6180
        %6496 = vmatprep.subr.mxu0 0.0
        %6497 = vmatpush1.msra.mxu0 %v6181
        %6498 = vmatprep.subr.mxu0 0.0
        %6499 = vmatpush1.msra.mxu0 %v6182
        %6500 = vmatprep.subr.mxu0 0.0
        %6501 = vmatpush1.msra.mxu0 %v6183
        %6502 = vmatprep.subr.mxu0 0.0
        %6503 = vmatpush1.msra.mxu0 %v6184
        %6504 = vmatprep.subr.mxu0 0.0
        %6505 = vmatpush1.msra.mxu0 %v6185
        %6506 = vmatprep.subr.mxu0 0.0
        %6507 = vmatpush1.msra.mxu0 %v6186
        %6508 = vmatprep.subr.mxu0 0.0
        %6509 = vmatpush1.msra.mxu0 %v6187
        %6510 = vmatprep.subr.mxu0 0.0
        %6511 = vmatpush1.msra.mxu0 %v6188
        %6512 = vmatprep.subr.mxu0 0.0
        %6513 = vmatpush1.msra.mxu0 %v6189
        %6514 = vmatprep.mubr.f32.mxu0 %v6220
        %6515 = vmatmul.mubr.f32.gmra.mrb[0].mxu0 %v6219
        %v6516 = vpop.f32.mrb[0].mxu0
        %v6517 = vadd.f32 0.0, %v6516
        %v6518 = vpop.f32.mrb[0].mxu0
        %6519 = vmatprep.mubr.f32.mxu0 %v6224
        %6520 = vmatmul.mubr.f32.gmra.mrb[0].mxu0 %v6223
        %v6521 = vpop.f32.mrb[0].mxu0
        %v6522 = vadd.f32 0.0, %v6521
        %v6523 = vpop.f32.mrb[0].mxu0
        %6524 = vmatprep.mubr.f32.mxu0 %v6228
        %6525 = vmatmul.mubr.f32.gmra.mrb[0].mxu0 %v6227
        %v6526 = vpop.f32.mrb[0].mxu0
        %v6527 = vadd.f32 0.0, %v6526
        %v6528 = vpop.f32.mrb[0].mxu0
        %6529 = vmatprep.mubr.f32.mxu0 %v6232
        %6530 = vmatmul.mubr.f32.gmra.mrb[0].mxu0 %v6231
        %v6531 = vpop.f32.mrb[0].mxu0
        %v6532 = vadd.f32 0.0, %v6531
        %v6533 = vpop.f32.mrb[0].mxu0
        %6534 = vmatprep.mubr.f32.mxu0 %v6236
        %6535 = vmatmul.mubr.f32.gmra.mrb[0].mxu0 %v6235
        %v6536 = vpop.f32.mrb[0].mxu0
        %v6537 = vadd.f32 0.0, %v6536
        %v6538 = vpop.f32.mrb[0].mxu0
        %6539 = vmatprep.mubr.f32.mxu0 %v6240
        %6540 = vmatmul.mubr.f32.gmra.mrb[0].mxu0 %v6239
        %v6541 = vpop.f32.mrb[0].mxu0
        %v6542 = vadd.f32 0.0, %v6541
        %v6543 = vpop.f32.mrb[0].mxu0
        %6544 = vmatprep.mubr.f32.mxu0 %v6244
        %6545 = vmatmul.mubr.f32.gmra.mrb[0].mxu0 %v6243
        %v6546 = vpop.f32.mrb[0].mxu0
        %v6547 = vadd.f32 0.0, %v6546
        %v6548 = vpop.f32.mrb[0].mxu0
        %6549 = vmatprep.mubr.f32.mxu0 %v6248
        %6550 = vmatmul.mubr.f32.gmra.mrb[0].mxu0 %v6247
        %v6551 = vpop.f32.mrb[0].mxu0
        %v6552 = vadd.f32 0.0, %v6551
        %v6553 = vpop.f32.mrb[0].mxu0
        %6554 = vmatprep.mubr.f32.mxu0 %v6252
        %6555 = vmatmul.mubr.f32.gmra.mrb[0].mxu0 %v6251
        %v6556 = vpop.f32.mrb[0].mxu0
        %v6557 = vadd.f32 0.0, %v6556
        %v6558 = vpop.f32.mrb[0].mxu0
        %6559 = vmatprep.mubr.f32.mxu0 %v6256
        %6560 = vmatmul.mubr.f32.gmra.mrb[0].mxu0 %v6255
        %v6561 = vpop.f32.mrb[0].mxu0
        %v6562 = vadd.f32 0.0, %v6561
        %v6563 = vpop.f32.mrb[0].mxu0
        %6564 = vmatprep.mubr.f32.mxu0 %v6260
        %6565 = vmatmul.mubr.f32.gmra.mrb[0].mxu0 %v6259
        %v6566 = vpop.f32.mrb[0].mxu0
        %v6567 = vadd.f32 0.0, %v6566
        %v6568 = vpop.f32.mrb[0].mxu0
        %6569 = vmatprep.mubr.f32.mxu0 %v6264
        %6570 = vmatmul.mubr.f32.gmra.mrb[0].mxu0 %v6263
        %v6571 = vpop.f32.mrb[0].mxu0
        %v6572 = vadd.f32 0.0, %v6571
        %v6573 = vpop.f32.mrb[0].mxu0
        %6574 = vmatprep.mubr.f32.mxu0 %v6268
        %6575 = vmatmul.mubr.f32.gmra.mrb[0].mxu0 %v6267
        %v6576 = vpop.f32.mrb[0].mxu0
        %v6577 = vadd.f32 0.0, %v6576
        %v6578 = vpop.f32.mrb[0].mxu0
        %6579 = vmatprep.mubr.f32.mxu0 %v6272
        %6580 = vmatmul.mubr.f32.gmra.mrb[0].mxu0 %v6271
        %v6581 = vpop.f32.mrb[0].mxu0
        %v6582 = vadd.f32 0.0, %v6581
        %v6583 = vpop.f32.mrb[0].mxu0
        %6584 = vmatprep.mubr.f32.mxu0 %v6276
        %6585 = vmatmul.mubr.f32.gmra.mrb[0].mxu0 %v6275
        %v6586 = vpop.f32.mrb[0].mxu0
        %v6587 = vadd.f32 0.0, %v6586
        %v6588 = vpop.f32.mrb[0].mxu0
        %6589 = vmatprep.mubr.f32.mxu0 %v6280
        %6590 = vmatmul.mubr.f32.gmra.mrb[0].mxu0 %v6279
        %v6591 = vpop.f32.mrb[0].mxu0
        %v6592 = vadd.f32 0.0, %v6591
        %v6593 = vpop.f32.mrb[0].mxu0
        %6594 = vmatprep.mubr.f32.mxu0 %v6284
        %6595 = vmatmul.mubr.f32.gmra.mrb[0].mxu0 %v6283
        %v6596 = vpop.f32.mrb[0].mxu0
        %v6597 = vadd.f32 0.0, %v6596
        %v6598 = vpop.f32.mrb[0].mxu0
        %6599 = vmatprep.mubr.f32.mxu0 %v6288
        %6600 = vmatmul.mubr.f32.gmra.mrb[0].mxu0 %v6287
        %v6601 = vpop.f32.mrb[0].mxu0
        %v6602 = vadd.f32 0.0, %v6601
        %v6603 = vpop.f32.mrb[0].mxu0
        %6604 = vmatprep.mubr.f32.mxu0 %v6292
        %6605 = vmatmul.mubr.f32.gmra.mrb[0].mxu0 %v6291
        %v6606 = vpop.f32.mrb[0].mxu0
        %v6607 = vadd.f32 0.0, %v6606
        %v6608 = vpop.f32.mrb[0].mxu0
        %6609 = vmatprep.mubr.f32.mxu0 %v6296
        %6610 = vmatmul.mubr.f32.gmra.mrb[0].mxu0 %v6295
        %v6611 = vpop.f32.mrb[0].mxu0
        %v6612 = vadd.f32 0.0, %v6611
        %v6613 = vpop.f32.mrb[0].mxu0
        %6614 = vmatprep.mubr.f32.mxu0 %v6300
        %6615 = vmatmul.mubr.f32.gmra.mrb[0].mxu0 %v6299
        %v6616 = vpop.f32.mrb[0].mxu0
        %v6617 = vadd.f32 0.0, %v6616
        %v6618 = vpop.f32.mrb[0].mxu0
        %6619 = vmatprep.mubr.f32.mxu0 %v6304
        %6620 = vmatmul.mubr.f32.gmra.mrb[0].mxu0 %v6303
        %v6621 = vpop.f32.mrb[0].mxu0
        %v6622 = vadd.f32 0.0, %v6621
        %v6623 = vpop.f32.mrb[0].mxu0
        %6624 = vmatprep.mubr.f32.mxu0 %v6308
        %6625 = vmatmul.mubr.f32.gmra.mrb[0].mxu0 %v6307
        %v6626 = vpop.f32.mrb[0].mxu0
        %v6627 = vadd.f32 0.0, %v6626
        %v6628 = vpop.f32.mrb[0].mxu0
        %6629 = vmatprep.mubr.f32.mxu0 %v6312
        %6630 = vmatmul.mubr.f32.gmra.mrb[0].mxu0 %v6311
        %v6631 = vpop.f32.mrb[0].mxu0
        %v6632 = vadd.f32 0.0, %v6631
        %v6633 = vpop.f32.mrb[0].mxu0
        %6634 = vmatprep.mubr.f32.mxu0 %v6316
        %6635 = vmatmul.mubr.f32.gmra.mrb[0].mxu0 %v6315
        %v6636 = vpop.f32.mrb[0].mxu0
        %v6637 = vadd.f32 0.0, %v6636
        %v6638 = vpop.f32.mrb[0].mxu0
        %6639 = vmatprep.mubr.f32.mxu0 %v6320
        %6640 = vmatmul.mubr.f32.gmra.mrb[0].mxu0 %v6319
        %v6641 = vpop.f32.mrb[0].mxu0
        %v6642 = vadd.f32 0.0, %v6641
        %v6643 = vpop.f32.mrb[0].mxu0
        %6644 = vmatprep.mubr.f32.mxu0 %v6324
        %6645 = vmatmul.mubr.f32.gmra.mrb[0].mxu0 %v6323
        %v6646 = vpop.f32.mrb[0].mxu0
        %v6647 = vadd.f32 0.0, %v6646
        %v6648 = vpop.f32.mrb[0].mxu0
        %6649 = vmatprep.mubr.f32.mxu0 %v6328
        %6650 = vmatmul.mubr.f32.gmra.mrb[0].mxu0 %v6327
        %v6651 = vpop.f32.mrb[0].mxu0
        %v6652 = vadd.f32 0.0, %v6651
        %v6653 = vpop.f32.mrb[0].mxu0
        %6654 = vmatprep.mubr.f32.mxu0 %v6332
        %6655 = vmatmul.mubr.f32.gmra.mrb[0].mxu0 %v6331
        %v6656 = vpop.f32.mrb[0].mxu0
        %v6657 = vadd.f32 0.0, %v6656
        %v6658 = vpop.f32.mrb[0].mxu0
        %6659 = vmatprep.mubr.f32.mxu0 %v6336
        %6660 = vmatmul.mubr.f32.gmra.mrb[0].mxu0 %v6335
        %v6661 = vpop.f32.mrb[0].mxu0
        %v6662 = vadd.f32 0.0, %v6661
        %v6663 = vpop.f32.mrb[0].mxu0
        %6664 = vmatprep.mubr.f32.mxu0 %v6340
        %6665 = vmatmul.mubr.f32.gmra.mrb[0].mxu0 %v6339
        %v6666 = vpop.f32.mrb[0].mxu0
        %v6667 = vadd.f32 0.0, %v6666
        %v6668 = vpop.f32.mrb[0].mxu0
        %6669 = vmatprep.mubr.f32.mxu0 %v6344
        %6670 = vmatmul.mubr.f32.gmra.mrb[0].mxu0 %v6343
        %v6671 = vpop.f32.mrb[0].mxu0
        %v6672 = vadd.f32 0.0, %v6671
        %v6673 = vpop.f32.mrb[0].mxu0
        %6674 = vmatprep.mubr.f32.mxu0 %v6348
        %6675 = vmatmul.mubr.f32.gmra.mrb[0].mxu0 %v6347
        %v6676 = vpop.f32.mrb[0].mxu0
        %v6677 = vadd.f32 0.0, %v6676
        %v6678 = vpop.f32.mrb[0].mxu0
        %6679 = vdwg.mxu0
        %6680 = vmatprep.subr.mxu0 0.0
        %6681 = vmatpush1.msra.mxu0 %v6190
        %6682 = vmatprep.subr.mxu0 0.0
        %6683 = vmatpush1.msra.mxu0 %v6191
        %6684 = vmatprep.subr.mxu0 0.0
        %6685 = vmatpush1.msra.mxu0 %v6192
        %6686 = vmatprep.subr.mxu0 0.0
        %6687 = vmatpush1.msra.mxu0 %v6193
        %6688 = vmatprep.subr.mxu0 0.0
        %6689 = vmatpush1.msra.mxu0 %v6194
        %6690 = vmatprep.subr.mxu0 0.0
        %6691 = vmatpush1.msra.mxu0 %v6195
        %6692 = vmatprep.subr.mxu0 0.0
        %6693 = vmatpush1.msra.mxu0 %v6196
        %6694 = vmatprep.subr.mxu0 0.0
        %6695 = vmatpush1.msra.mxu0 %v6197
        %6696 = vmatprep.subr.mxu0 0.0
        %6697 = vmatpush1.msra.mxu0 %v6198
        %6698 = vmatprep.subr.mxu0 0.0
        %6699 = vmatpush1.msra.mxu0 %v6199
        %6700 = vmatprep.subr.mxu0 0.0
        %6701 = vmatpush1.msra.mxu0 %v6200
        %6702 = vmatprep.subr.mxu0 0.0
        %6703 = vmatpush1.msra.mxu0 %v6201
        %6704 = vmatprep.subr.mxu0 0.0
        %6705 = vmatpush1.msra.mxu0 %v6202
        %6706 = vmatprep.subr.mxu0 0.0
        %6707 = vmatpush1.msra.mxu0 %v6203
        %6708 = vmatprep.subr.mxu0 0.0
        %6709 = vmatpush1.msra.mxu0 %v6204
        %6710 = vmatprep.subr.mxu0 0.0
        %6711 = vmatpush1.msra.mxu0 %v6205
        %6712 = vmatprep.subr.mxu0 0.0
        %6713 = vmatpush1.msra.mxu0 %v6206
        %6714 = vmatprep.subr.mxu0 0.0
        %6715 = vmatpush1.msra.mxu0 %v6207
        %6716 = vmatprep.subr.mxu0 0.0
        %6717 = vmatpush1.msra.mxu0 %v6208
        %6718 = vmatprep.subr.mxu0 0.0
        %6719 = vmatpush1.msra.mxu0 %v6209
        %6720 = vmatprep.subr.mxu0 0.0
        %6721 = vmatpush1.msra.mxu0 %v6210
        %6722 = vmatprep.subr.mxu0 0.0
        %6723 = vmatpush1.msra.mxu0 %v6211
        %6724 = vmatprep.subr.mxu0 0.0
        %6725 = vmatpush1.msra.mxu0 %v6212
        %6726 = vmatprep.subr.mxu0 0.0
        %6727 = vmatpush1.msra.mxu0 %v6213
        %6728 = vmatprep.subr.mxu0 0.0
        %6729 = vmatpush1.msra.mxu0 %v6214
        %6730 = vmatprep.subr.mxu0 0.0
        %6731 = vmatpush1.msra.mxu0 %v6215
        %6732 = vmatprep.subr.mxu0 0.0
        %6733 = vmatpush1.msra.mxu0 %v6216
        %6734 = vmatprep.subr.mxu0 0.0
        %6735 = vmatpush1.msra.mxu0 %v6217
        %6736 = vmatprep.subr.mxu0 0.0
        %6737 = vmatpush1.msra.mxu0 %v6218
        %6738 = vmatprep.subr.mxu0 0.0
        %6739 = vmatpush1.msra.mxu0 0.0
        %6740 = vmatprep.subr.mxu0 0.0
        %6741 = vmatpush1.msra.mxu0 0.0
        %6742 = vmatprep.subr.mxu0 0.0
        %6743 = vmatpush1.msra.mxu0 0.0
        %6744 = vmatprep.mubr.f32.mxu0 %v6352
        %6745 = vmatmul.mubr.f32.gmra.mrb[0].mxu0 %v6221
        %v6746 = vpop.f32.mrb[0].mxu0
        %v6747 = vadd.f32 %v6517, %v6746
        %v6748 = vpop.f32.mrb[0].mxu0
        %6749 = vmatprep.mubr.f32.mxu0 %v6355
        %6750 = vmatmul.mubr.f32.gmra.mrb[0].mxu0 %v6225
        %v6751 = vpop.f32.mrb[0].mxu0
        %v6752 = vadd.f32 %v6522, %v6751
        %v6753 = vpop.f32.mrb[0].mxu0
        %6754 = vmatprep.mubr.f32.mxu0 %v6358
        %6755 = vmatmul.mubr.f32.gmra.mrb[0].mxu0 %v6229
        %v6756 = vpop.f32.mrb[0].mxu0
        %v6757 = vadd.f32 %v6527, %v6756
        %v6758 = vpop.f32.mrb[0].mxu0
        %6759 = vmatprep.mubr.f32.mxu0 %v6361
        %6760 = vmatmul.mubr.f32.gmra.mrb[0].mxu0 %v6233
        %v6761 = vpop.f32.mrb[0].mxu0
        %v6762 = vadd.f32 %v6532, %v6761
        %v6763 = vpop.f32.mrb[0].mxu0
        %6764 = vmatprep.mubr.f32.mxu0 %v6364
        %6765 = vmatmul.mubr.f32.gmra.mrb[0].mxu0 %v6237
        %v6766 = vpop.f32.mrb[0].mxu0
        %v6767 = vadd.f32 %v6537, %v6766
        %v6768 = vpop.f32.mrb[0].mxu0
        %6769 = vmatprep.mubr.f32.mxu0 %v6367
        %6770 = vmatmul.mubr.f32.gmra.mrb[0].mxu0 %v6241
        %v6771 = vpop.f32.mrb[0].mxu0
        %v6772 = vadd.f32 %v6542, %v6771
        %v6773 = vpop.f32.mrb[0].mxu0
        %6774 = vmatprep.mubr.f32.mxu0 %v6370
        %6775 = vmatmul.mubr.f32.gmra.mrb[0].mxu0 %v6245
        %v6776 = vpop.f32.mrb[0].mxu0
        %v6777 = vadd.f32 %v6547, %v6776
        %v6778 = vpop.f32.mrb[0].mxu0
        %6779 = vmatprep.mubr.f32.mxu0 %v6373
        %6780 = vmatmul.mubr.f32.gmra.mrb[0].mxu0 %v6249
        %v6781 = vpop.f32.mrb[0].mxu0
        %v6782 = vadd.f32 %v6552, %v6781
        %v6783 = vpop.f32.mrb[0].mxu0
        %6784 = vmatprep.mubr.f32.mxu0 %v6376
        %6785 = vmatmul.mubr.f32.gmra.mrb[0].mxu0 %v6253
        %v6786 = vpop.f32.mrb[0].mxu0
        %v6787 = vadd.f32 %v6557, %v6786
        %v6788 = vpop.f32.mrb[0].mxu0
        %6789 = vmatprep.mubr.f32.mxu0 %v6379
        %6790 = vmatmul.mubr.f32.gmra.mrb[0].mxu0 %v6257
        %v6791 = vpop.f32.mrb[0].mxu0
        %v6792 = vadd.f32 %v6562, %v6791
        %v6793 = vpop.f32.mrb[0].mxu0
        %6794 = vmatprep.mubr.f32.mxu0 %v6382
        %6795 = vmatmul.mubr.f32.gmra.mrb[0].mxu0 %v6261
        %v6796 = vpop.f32.mrb[0].mxu0
        %v6797 = vadd.f32 %v6567, %v6796
        %v6798 = vpop.f32.mrb[0].mxu0
        %6799 = vmatprep.mubr.f32.mxu0 %v6385
        %6800 = vmatmul.mubr.f32.gmra.mrb[0].mxu0 %v6265
        %v6801 = vpop.f32.mrb[0].mxu0
        %v6802 = vadd.f32 %v6572, %v6801
        %v6803 = vpop.f32.mrb[0].mxu0
        %6804 = vmatprep.mubr.f32.mxu0 %v6388
        %6805 = vmatmul.mubr.f32.gmra.mrb[0].mxu0 %v6269
        %v6806 = vpop.f32.mrb[0].mxu0
        %v6807 = vadd.f32 %v6577, %v6806
        %v6808 = vpop.f32.mrb[0].mxu0
        %6809 = vmatprep.mubr.f32.mxu0 %v6391
        %6810 = vmatmul.mubr.f32.gmra.mrb[0].mxu0 %v6273
        %v6811 = vpop.f32.mrb[0].mxu0
        %v6812 = vadd.f32 %v6582, %v6811
        %v6813 = vpop.f32.mrb[0].mxu0
        %6814 = vmatprep.mubr.f32.mxu0 %v6394
        %6815 = vmatmul.mubr.f32.gmra.mrb[0].mxu0 %v6277
        %v6816 = vpop.f32.mrb[0].mxu0
        %v6817 = vadd.f32 %v6587, %v6816
        %v6818 = vpop.f32.mrb[0].mxu0
        %6819 = vmatprep.mubr.f32.mxu0 %v6397
        %6820 = vmatmul.mubr.f32.gmra.mrb[0].mxu0 %v6281
        %v6821 = vpop.f32.mrb[0].mxu0
        %v6822 = vadd.f32 %v6592, %v6821
        %v6823 = vpop.f32.mrb[0].mxu0
        %6824 = vmatprep.mubr.f32.mxu0 %v6400
        %6825 = vmatmul.mubr.f32.gmra.mrb[0].mxu0 %v6285
        %v6826 = vpop.f32.mrb[0].mxu0
        %v6827 = vadd.f32 %v6597, %v6826
        %v6828 = vpop.f32.mrb[0].mxu0
        %6829 = vmatprep.mubr.f32.mxu0 %v6403
        %6830 = vmatmul.mubr.f32.gmra.mrb[0].mxu0 %v6289
        %v6831 = vpop.f32.mrb[0].mxu0
        %v6832 = vadd.f32 %v6602, %v6831
        %v6833 = vpop.f32.mrb[0].mxu0
        %6834 = vmatprep.mubr.f32.mxu0 %v6406
        %6835 = vmatmul.mubr.f32.gmra.mrb[0].mxu0 %v6293
        %v6836 = vpop.f32.mrb[0].mxu0
        %v6837 = vadd.f32 %v6607, %v6836
        %v6838 = vpop.f32.mrb[0].mxu0
        %6839 = vmatprep.mubr.f32.mxu0 %v6409
        %6840 = vmatmul.mubr.f32.gmra.mrb[0].mxu0 %v6297
        %v6841 = vpop.f32.mrb[0].mxu0
        %v6842 = vadd.f32 %v6612, %v6841
        %v6843 = vpop.f32.mrb[0].mxu0
        %6844 = vmatprep.mubr.f32.mxu0 %v6412
        %6845 = vmatmul.mubr.f32.gmra.mrb[0].mxu0 %v6301
        %v6846 = vpop.f32.mrb[0].mxu0
        %v6847 = vadd.f32 %v6617, %v6846
        %v6848 = vpop.f32.mrb[0].mxu0
        %6849 = vmatprep.mubr.f32.mxu0 %v6415
        %6850 = vmatmul.mubr.f32.gmra.mrb[0].mxu0 %v6305
        %v6851 = vpop.f32.mrb[0].mxu0
        %v6852 = vadd.f32 %v6622, %v6851
        %v6853 = vpop.f32.mrb[0].mxu0
        %6854 = vmatprep.mubr.f32.mxu0 %v6418
        %6855 = vmatmul.mubr.f32.gmra.mrb[0].mxu0 %v6309
        %v6856 = vpop.f32.mrb[0].mxu0
        %v6857 = vadd.f32 %v6627, %v6856
        %v6858 = vpop.f32.mrb[0].mxu0
        %6859 = vmatprep.mubr.f32.mxu0 %v6421
        %6860 = vmatmul.mubr.f32.gmra.mrb[0].mxu0 %v6313
        %v6861 = vpop.f32.mrb[0].mxu0
        %v6862 = vadd.f32 %v6632, %v6861
        %v6863 = vpop.f32.mrb[0].mxu0
        %6864 = vmatprep.mubr.f32.mxu0 %v6424
        %6865 = vmatmul.mubr.f32.gmra.mrb[0].mxu0 %v6317
        %v6866 = vpop.f32.mrb[0].mxu0
        %v6867 = vadd.f32 %v6637, %v6866
        %v6868 = vpop.f32.mrb[0].mxu0
        %6869 = vmatprep.mubr.f32.mxu0 %v6427
        %6870 = vmatmul.mubr.f32.gmra.mrb[0].mxu0 %v6321
        %v6871 = vpop.f32.mrb[0].mxu0
        %v6872 = vadd.f32 %v6642, %v6871
        %v6873 = vpop.f32.mrb[0].mxu0
        %6874 = vmatprep.mubr.f32.mxu0 %v6430
        %6875 = vmatmul.mubr.f32.gmra.mrb[0].mxu0 %v6325
        %v6876 = vpop.f32.mrb[0].mxu0
        %v6877 = vadd.f32 %v6647, %v6876
        %v6878 = vpop.f32.mrb[0].mxu0
        %6879 = vmatprep.mubr.f32.mxu0 %v6433
        %6880 = vmatmul.mubr.f32.gmra.mrb[0].mxu0 %v6329
        %v6881 = vpop.f32.mrb[0].mxu0
        %v6882 = vadd.f32 %v6652, %v6881
        %v6883 = vpop.f32.mrb[0].mxu0
        %6884 = vmatprep.mubr.f32.mxu0 %v6436
        %6885 = vmatmul.mubr.f32.gmra.mrb[0].mxu0 %v6333
        %v6886 = vpop.f32.mrb[0].mxu0
        %v6887 = vadd.f32 %v6657, %v6886
        %v6888 = vpop.f32.mrb[0].mxu0
        %6889 = vmatprep.mubr.f32.mxu0 %v6439
        %6890 = vmatmul.mubr.f32.gmra.mrb[0].mxu0 %v6337
        %v6891 = vpop.f32.mrb[0].mxu0
        %v6892 = vadd.f32 %v6662, %v6891
        %v6893 = vpop.f32.mrb[0].mxu0
        %6894 = vmatprep.mubr.f32.mxu0 %v6442
        %6895 = vmatmul.mubr.f32.gmra.mrb[0].mxu0 %v6341
        %v6896 = vpop.f32.mrb[0].mxu0
        %v6897 = vadd.f32 %v6667, %v6896
        %v6898 = vpop.f32.mrb[0].mxu0
        %6899 = vmatprep.mubr.f32.mxu0 %v6445
        %6900 = vmatmul.mubr.f32.gmra.mrb[0].mxu0 %v6345
        %v6901 = vpop.f32.mrb[0].mxu0
        %v6902 = vadd.f32 %v6672, %v6901
        %v6903 = vpop.f32.mrb[0].mxu0
        %6904 = vmatprep.mubr.f32.mxu0 %v6448
        %6905 = vmatmul.mubr.f32.gmra.mrb[0].mxu0 %v6349
        %v6906 = vpop.f32.mrb[0].mxu0
        %v6907 = vadd.f32 %v6677, %v6906
        %v6908 = vpop.f32.mrb[0].mxu0
        %6909 = vdwg.mxu0
        %v6910 = vmax.f32 %v6747, 0.0
        %v6911 = vmax.f32 %v6752, 0.0
        %v6912 = vmax.f32 %v6757, 0.0
        %v6913 = vmax.f32 %v6762, 0.0
        %v6914 = vmax.f32 %v6767, 0.0
        %v6915 = vmax.f32 %v6772, 0.0
        %v6916 = vmax.f32 %v6777, 0.0
        %v6917 = vmax.f32 %v6782, 0.0
        %v6918 = vmax.f32 %v6787, 0.0
        %v6919 = vmax.f32 %v6792, 0.0
        %v6920 = vmax.f32 %v6797, 0.0
        %v6921 = vmax.f32 %v6802, 0.0
        %v6922 = vmax.f32 %v6807, 0.0
        %v6923 = vmax.f32 %v6812, 0.0
        %v6924 = vmax.f32 %v6817, 0.0
        %v6925 = vmax.f32 %v6822, 0.0
        %v6926 = vmax.f32 %v6827, 0.0
        %v6927 = vmax.f32 %v6832, 0.0
        %v6928 = vmax.f32 %v6837, 0.0
        %v6929 = vmax.f32 %v6842, 0.0
        %v6930 = vmax.f32 %v6847, 0.0
        %v6931 = vmax.f32 %v6852, 0.0
        %v6932 = vmax.f32 %v6857, 0.0
        %v6933 = vmax.f32 %v6862, 0.0
        %v6934 = vmax.f32 %v6867, 0.0
        %v6935 = vmax.f32 %v6872, 0.0
        %v6936 = vmax.f32 %v6877, 0.0
        %v6937 = vmax.f32 %v6882, 0.0
        %v6938 = vmax.f32 %v6887, 0.0
        %v6939 = vmax.f32 %v6892, 0.0
        %v6940 = vmax.f32 %v6897, 0.0
        %v6941 = vmax.f32 %v6902, 0.0
        %s6942 = sld [smem:[#allocation19 + $0x100]]
        %v6943 = vstv %s6942
        %v6944 = vmul.f32 %v6943, %v6910
        %v6945 = vmul.f32 %v6943, %v6911
        %v6946 = vmul.f32 %v6943, %v6912
        %v6947 = vmul.f32 %v6943, %v6913
        %s6948 = sld [smem:[#allocation19 + $0x101]]
        %v6949 = vstv %s6948
        %v6950 = vmul.f32 %v6949, %v6914
        %v6951 = vmul.f32 %v6949, %v6915
        %v6952 = vmul.f32 %v6949, %v6916
        %v6953 = vmul.f32 %v6949, %v6917
        %v6954 = vadd.f32 %v6944, %v6950
        %v6955 = vadd.f32 %v6945, %v6951
        %v6956 = vadd.f32 %v6946, %v6952
        %v6957 = vadd.f32 %v6947, %v6953
        %s6958 = sld [smem:[#allocation19 + $0x102]]
        %v6959 = vstv %s6958
        %v6960 = vmul.f32 %v6959, %v6918
        %v6961 = vmul.f32 %v6959, %v6919
        %v6962 = vmul.f32 %v6959, %v6920
        %v6963 = vmul.f32 %v6959, %v6921
        %v6964 = vadd.f32 %v6954, %v6960
        %v6965 = vadd.f32 %v6955, %v6961
        %v6966 = vadd.f32 %v6956, %v6962
        %v6967 = vadd.f32 %v6957, %v6963
        %s6968 = sld [smem:[#allocation19 + $0x103]]
        %v6969 = vstv %s6968
        %v6970 = vmul.f32 %v6969, %v6922
        %v6971 = vmul.f32 %v6969, %v6923
        %v6972 = vmul.f32 %v6969, %v6924
        %v6973 = vmul.f32 %v6969, %v6925
        %v6974 = vadd.f32 %v6964, %v6970
        %v6975 = vadd.f32 %v6965, %v6971
        %v6976 = vadd.f32 %v6966, %v6972
        %v6977 = vadd.f32 %v6967, %v6973
        %s6978 = sld [smem:[#allocation19 + $0x104]]
        %v6979 = vstv %s6978
        %v6980 = vmul.f32 %v6979, %v6926
        %v6981 = vmul.f32 %v6979, %v6927
        %v6982 = vmul.f32 %v6979, %v6928
        %v6983 = vmul.f32 %v6979, %v6929
        %v6984 = vadd.f32 %v6974, %v6980
        %v6985 = vadd.f32 %v6975, %v6981
        %v6986 = vadd.f32 %v6976, %v6982
        %v6987 = vadd.f32 %v6977, %v6983
        %s6988 = sld [smem:[#allocation19 + $0x105]]
        %v6989 = vstv %s6988
        %v6990 = vmul.f32 %v6989, %v6930
        %v6991 = vmul.f32 %v6989, %v6931
        %v6992 = vmul.f32 %v6989, %v6932
        %v6993 = vmul.f32 %v6989, %v6933
        %v6994 = vadd.f32 %v6984, %v6990
        %v6995 = vadd.f32 %v6985, %v6991
        %v6996 = vadd.f32 %v6986, %v6992
        %v6997 = vadd.f32 %v6987, %v6993
        %s6998 = sld [smem:[#allocation19 + $0x106]]
        %v6999 = vstv %s6998
        %v7000 = vmul.f32 %v6999, %v6934
        %v7001 = vmul.f32 %v6999, %v6935
        %v7002 = vmul.f32 %v6999, %v6936
        %v7003 = vmul.f32 %v6999, %v6937
        %v7004 = vadd.f32 %v6994, %v7000
        %v7005 = vadd.f32 %v6995, %v7001
        %v7006 = vadd.f32 %v6996, %v7002
        %v7007 = vadd.f32 %v6997, %v7003
        %s7008 = sld [smem:[#allocation19 + $0x107]]
        %v7009 = vstv %s7008
        %v7010 = vmul.f32 %v7009, %v6938
        %v7011 = vmul.f32 %v7009, %v6939
        %v7012 = vmul.f32 %v7009, %v6940
        %v7013 = vmul.f32 %v7009, %v6941
        %v7014 = vadd.f32 %v7004, %v7010
        %v7015 = vadd.f32 %v7005, %v7011
        %v7016 = vadd.f32 %v7006, %v7012
        %v7017 = vadd.f32 %v7007, %v7013
        %v7018 = vxor.u32 %v6907, 2147483648
        %v7019 = vmul.f32 %v7018, 1.442695
        %v7020 = vpow.pop %v7019
        %v7021 = vadd.f32 %v7020, 1.0
        %v7022 = vrcp.pop %v7021
        %v7023 = vmul.f32 1.0, %v7022
        %s7024 = sld [smem:[#allocation19 + $0x200]]
        %v7025 = vstv %s7024
        %v7026 = vmul.f32 %v7025, %v7023
        %s7027 = sld [smem:[#allocation19 + $0x201]]
        %v7028 = vstv %s7027
        %v7029 = vmul.f32 %v7028, %v7023
        %v7031 = vrot.slane %v7029, 1
        %v7033 = vadd.f32 %v7026, %v7031
        %s7034 = sld [smem:[#allocation19 + $0x202]]
        %v7035 = vstv %s7034
        %v7036 = vmul.f32 %v7035, %v7023
        %v7038 = vrot.slane %v7036, 2
        %v7040 = vadd.f32 %v7033, %v7038
        %s7041 = sld [smem:[#allocation19 + $0x203]]
        %v7042 = vstv %s7041
        %v7043 = vmul.f32 %v7042, %v7023
        %v7045 = vrot.slane %v7043, 3
        %v7047 = vadd.f32 %v7040, %v7045
        %s7048 = sld [smem:[#allocation19 + $0x204]]
        %v7049 = vstv %s7048
        %v7050 = vmul.f32 %v7049, %v7023
        %v7052 = vrot.slane %v7050, 4
        %v7054 = vadd.f32 %v7047, %v7052
        %s7055 = sld [smem:[#allocation19 + $0x205]]
        %v7056 = vstv %s7055
        %v7057 = vmul.f32 %v7056, %v7023
        %v7059 = vrot.slane %v7057, 5
        %v7061 = vadd.f32 %v7054, %v7059
        %s7062 = sld [smem:[#allocation19 + $0x206]]
        %v7063 = vstv %s7062
        %v7064 = vmul.f32 %v7063, %v7023
        %v7066 = vrot.slane %v7064, 6
        %v7068 = vadd.f32 %v7061, %v7066
        %s7069 = sld [smem:[#allocation19 + $0x207]]
        %v7070 = vstv %s7069
        %v7071 = vmul.f32 %v7070, %v7023
        %v7073 = vrot.slane %v7071, 7
        %v7075 = vadd.f32 %v7068, %v7073
        %v7076 = vadd.f32 %v5727, %v7014
        %v7077 = vadd.f32 %v5728, %v7015
        %v7078 = vadd.f32 %v5729, %v7016
        %v7079 = vadd.f32 %v5730, %v7017
        %7080 = vst.msk [vmem:[#allocation2] sm:$0xff] %vm462, 0.0
        %7081 = vst.msk [vmem:[#allocation2 + $0x8] sm:$0xff] %vm462, 0.0
        %7082 = vst.msk [vmem:[#allocation2 + $0x10] sm:$0xff] %vm462, 0.0
        %7083 = vst.msk [vmem:[#allocation2 + $0x18] sm:$0xff] %vm462, 0.0
        %7088 = vrot.lane.b32.xlu0 %v7076, 7
        %v7089 = vpop.permute.xlu0 %7088
        %7090 = vrot.lane.b32.xlu0 %v7077, 7
        %v7091 = vpop.permute.xlu0 %7090
        %7092 = vrot.lane.b32.xlu0 %v7078, 7
        %v7093 = vpop.permute.xlu0 %7092
        %7094 = vrot.lane.b32.xlu0 %v7079, 7
        %v7095 = vpop.permute.xlu0 %7094
        %7100 = vst.msk [vmem:[#allocation2] sm:$0xff] %vm5809, %v7089
        %7101 = vst.msk [vmem:[#allocation2 + $0x8] sm:$0xff] %vm5809, %v7091
        %7102 = vst.msk [vmem:[#allocation2 + $0x10] sm:$0xff] %vm5809, %v7093
        %7103 = vst.msk [vmem:[#allocation2 + $0x18] sm:$0xff] %vm5809, %v7095
        %v7104 = vld [vmem:[#allocation2] sm:$0xff]
        %v7105 = vld [vmem:[#allocation2 + $0x8] sm:$0xff]
        %v7106 = vld [vmem:[#allocation2 + $0x10] sm:$0xff]
        %v7107 = vld [vmem:[#allocation2 + $0x18] sm:$0xff]
        %7108 = vst.msk [vmem:[#allocation3] sm:$0xff] %vm3878, %v7104
        %7109 = vst.msk [vmem:[#allocation3 + $0x8] sm:$0xff] %vm3878, %v7105
        %7110 = vst.msk [vmem:[#allocation3 + $0x10] sm:$0xff] %vm3878, %v7106
        %7111 = vst.msk [vmem:[#allocation3 + $0x18] sm:$0xff] %vm3878, %v7107
        %v7112 = vld [vmem:[#allocation2] sm:$0xff]
        %v7113 = vld [vmem:[#allocation2 + $0x8] sm:$0xff]
        %v7114 = vld [vmem:[#allocation2 + $0x10] sm:$0xff]
        %v7115 = vld [vmem:[#allocation2 + $0x18] sm:$0xff]
        %7120 = vrot.lane.b32.xlu0 %v7112, 127
        %v7121 = vpop.permute.xlu0 %7120
        %7122 = vrot.lane.b32.xlu0 %v7113, 127
        %v7123 = vpop.permute.xlu0 %7122
        %7124 = vrot.lane.b32.xlu0 %v7114, 127
        %v7125 = vpop.permute.xlu0 %7124
        %7126 = vrot.lane.b32.xlu0 %v7115, 127
        %v7127 = vpop.permute.xlu0 %7126
        %7132 = vst.msk [vmem:[#allocation3 + $0x20] sm:$0xff] %vm3878, %v7121
        %7133 = vst.msk [vmem:[#allocation3 + $0x28] sm:$0xff] %vm3878, %v7123
        %7134 = vst.msk [vmem:[#allocation3 + $0x30] sm:$0xff] %vm3878, %v7125
        %7135 = vst.msk [vmem:[#allocation3 + $0x38] sm:$0xff] %vm3878, %v7127
        %v7136 = vld [vmem:[#allocation2] sm:$0xff]
        %v7137 = vld [vmem:[#allocation2 + $0x8] sm:$0xff]
        %v7138 = vld [vmem:[#allocation2 + $0x10] sm:$0xff]
        %v7139 = vld [vmem:[#allocation2 + $0x18] sm:$0xff]
        %7144 = vrot.lane.b32.xlu0 %v7136, 126
        %v7145 = vpop.permute.xlu0 %7144
        %7146 = vrot.lane.b32.xlu0 %v7137, 126
        %v7147 = vpop.permute.xlu0 %7146
        %7148 = vrot.lane.b32.xlu0 %v7138, 126
        %v7149 = vpop.permute.xlu0 %7148
        %7150 = vrot.lane.b32.xlu0 %v7139, 126
        %v7151 = vpop.permute.xlu0 %7150
        %7156 = vst.msk [vmem:[#allocation3 + $0x40] sm:$0xff] %vm3878, %v7145
        %7157 = vst.msk [vmem:[#allocation3 + $0x48] sm:$0xff] %vm3878, %v7147
        %7158 = vst.msk [vmem:[#allocation3 + $0x50] sm:$0xff] %vm3878, %v7149
        %7159 = vst.msk [vmem:[#allocation3 + $0x58] sm:$0xff] %vm3878, %v7151
        %v7160 = vld [vmem:[#allocation2] sm:$0xff]
        %v7161 = vld [vmem:[#allocation2 + $0x8] sm:$0xff]
        %v7162 = vld [vmem:[#allocation2 + $0x10] sm:$0xff]
        %v7163 = vld [vmem:[#allocation2 + $0x18] sm:$0xff]
        %7168 = vrot.lane.b32.xlu0 %v7160, 125
        %v7169 = vpop.permute.xlu0 %7168
        %7170 = vrot.lane.b32.xlu0 %v7161, 125
        %v7171 = vpop.permute.xlu0 %7170
        %7172 = vrot.lane.b32.xlu0 %v7162, 125
        %v7173 = vpop.permute.xlu0 %7172
        %7174 = vrot.lane.b32.xlu0 %v7163, 125
        %v7175 = vpop.permute.xlu0 %7174
        %7180 = vst.msk [vmem:[#allocation3 + $0x60] sm:$0xff] %vm3878, %v7169
        %7181 = vst.msk [vmem:[#allocation3 + $0x68] sm:$0xff] %vm3878, %v7171
        %7182 = vst.msk [vmem:[#allocation3 + $0x70] sm:$0xff] %vm3878, %v7173
        %7183 = vst.msk [vmem:[#allocation3 + $0x78] sm:$0xff] %vm3878, %v7175
        %v7184 = vld [vmem:[#allocation2] sm:$0xff]
        %v7185 = vld [vmem:[#allocation2 + $0x8] sm:$0xff]
        %v7186 = vld [vmem:[#allocation2 + $0x10] sm:$0xff]
        %v7187 = vld [vmem:[#allocation2 + $0x18] sm:$0xff]
        %7192 = vrot.lane.b32.xlu0 %v7184, 124
        %v7193 = vpop.permute.xlu0 %7192
        %7194 = vrot.lane.b32.xlu0 %v7185, 124
        %v7195 = vpop.permute.xlu0 %7194
        %7196 = vrot.lane.b32.xlu0 %v7186, 124
        %v7197 = vpop.permute.xlu0 %7196
        %7198 = vrot.lane.b32.xlu0 %v7187, 124
        %v7199 = vpop.permute.xlu0 %7198
        %7204 = vst.msk [vmem:[#allocation3 + $0x80] sm:$0xff] %vm3878, %v7193
        %7205 = vst.msk [vmem:[#allocation3 + $0x88] sm:$0xff] %vm3878, %v7195
        %7206 = vst.msk [vmem:[#allocation3 + $0x90] sm:$0xff] %vm3878, %v7197
        %7207 = vst.msk [vmem:[#allocation3 + $0x98] sm:$0xff] %vm3878, %v7199
        %v7208 = vld [vmem:[#allocation2] sm:$0xff]
        %v7209 = vld [vmem:[#allocation2 + $0x8] sm:$0xff]
        %v7210 = vld [vmem:[#allocation2 + $0x10] sm:$0xff]
        %v7211 = vld [vmem:[#allocation2 + $0x18] sm:$0xff]
        %7216 = vrot.lane.b32.xlu0 %v7208, 123
        %v7217 = vpop.permute.xlu0 %7216
        %7218 = vrot.lane.b32.xlu0 %v7209, 123
        %v7219 = vpop.permute.xlu0 %7218
        %7220 = vrot.lane.b32.xlu0 %v7210, 123
        %v7221 = vpop.permute.xlu0 %7220
        %7222 = vrot.lane.b32.xlu0 %v7211, 123
        %v7223 = vpop.permute.xlu0 %7222
        %7228 = vst.msk [vmem:[#allocation3 + $0xa0] sm:$0xff] %vm3878, %v7217
        %7229 = vst.msk [vmem:[#allocation3 + $0xa8] sm:$0xff] %vm3878, %v7219
        %7230 = vst.msk [vmem:[#allocation3 + $0xb0] sm:$0xff] %vm3878, %v7221
        %7231 = vst.msk [vmem:[#allocation3 + $0xb8] sm:$0xff] %vm3878, %v7223
        %v7232 = vld [vmem:[#allocation2] sm:$0xff]
        %v7233 = vld [vmem:[#allocation2 + $0x8] sm:$0xff]
        %v7234 = vld [vmem:[#allocation2 + $0x10] sm:$0xff]
        %v7235 = vld [vmem:[#allocation2 + $0x18] sm:$0xff]
        %7240 = vrot.lane.b32.xlu0 %v7232, 122
        %v7241 = vpop.permute.xlu0 %7240
        %7242 = vrot.lane.b32.xlu0 %v7233, 122
        %v7243 = vpop.permute.xlu0 %7242
        %7244 = vrot.lane.b32.xlu0 %v7234, 122
        %v7245 = vpop.permute.xlu0 %7244
        %7246 = vrot.lane.b32.xlu0 %v7235, 122
        %v7247 = vpop.permute.xlu0 %7246
        %7252 = vst.msk [vmem:[#allocation3 + $0xc0] sm:$0xff] %vm3878, %v7241
        %7253 = vst.msk [vmem:[#allocation3 + $0xc8] sm:$0xff] %vm3878, %v7243
        %7254 = vst.msk [vmem:[#allocation3 + $0xd0] sm:$0xff] %vm3878, %v7245
        %7255 = vst.msk [vmem:[#allocation3 + $0xd8] sm:$0xff] %vm3878, %v7247
        %v7256 = vld [vmem:[#allocation2] sm:$0xff]
        %v7257 = vld [vmem:[#allocation2 + $0x8] sm:$0xff]
        %v7258 = vld [vmem:[#allocation2 + $0x10] sm:$0xff]
        %v7259 = vld [vmem:[#allocation2 + $0x18] sm:$0xff]
        %7264 = vrot.lane.b32.xlu0 %v7256, 121
        %v7265 = vpop.permute.xlu0 %7264
        %7266 = vrot.lane.b32.xlu0 %v7257, 121
        %v7267 = vpop.permute.xlu0 %7266
        %7268 = vrot.lane.b32.xlu0 %v7258, 121
        %v7269 = vpop.permute.xlu0 %7268
        %7270 = vrot.lane.b32.xlu0 %v7259, 121
        %v7271 = vpop.permute.xlu0 %7270
        %7276 = vst.msk [vmem:[#allocation3 + $0xe0] sm:$0xff] %vm3878, %v7265
        %7277 = vst.msk [vmem:[#allocation3 + $0xe8] sm:$0xff] %vm3878, %v7267
        %7278 = vst.msk [vmem:[#allocation3 + $0xf0] sm:$0xff] %vm3878, %v7269
        %7279 = vst.msk [vmem:[#allocation3 + $0xf8] sm:$0xff] %vm3878, %v7271
        %v7280 = vld [vmem:[#allocation2] sm:$0xff]
        %v7281 = vld [vmem:[#allocation2 + $0x8] sm:$0xff]
        %v7282 = vld [vmem:[#allocation2 + $0x10] sm:$0xff]
        %v7283 = vld [vmem:[#allocation2 + $0x18] sm:$0xff]
        %7288 = vrot.lane.b32.xlu0 %v7280, 120
        %v7289 = vpop.permute.xlu0 %7288
        %7290 = vrot.lane.b32.xlu0 %v7281, 120
        %v7291 = vpop.permute.xlu0 %7290
        %7292 = vrot.lane.b32.xlu0 %v7282, 120
        %v7293 = vpop.permute.xlu0 %7292
        %7294 = vrot.lane.b32.xlu0 %v7283, 120
        %v7295 = vpop.permute.xlu0 %7294
        %7300 = vst.msk [vmem:[#allocation3 + $0x100] sm:$0xff] %vm3878, %v7289
        %7301 = vst.msk [vmem:[#allocation3 + $0x108] sm:$0xff] %vm3878, %v7291
        %7302 = vst.msk [vmem:[#allocation3 + $0x110] sm:$0xff] %vm3878, %v7293
        %7303 = vst.msk [vmem:[#allocation3 + $0x118] sm:$0xff] %vm3878, %v7295
        %v7304 = vld [vmem:[#allocation2] sm:$0xff]
        %v7305 = vld [vmem:[#allocation2 + $0x8] sm:$0xff]
        %v7306 = vld [vmem:[#allocation2 + $0x10] sm:$0xff]
        %v7307 = vld [vmem:[#allocation2 + $0x18] sm:$0xff]
        %7312 = vrot.lane.b32.xlu0 %v7304, 119
        %v7313 = vpop.permute.xlu0 %7312
        %7314 = vrot.lane.b32.xlu0 %v7305, 119
        %v7315 = vpop.permute.xlu0 %7314
        %7316 = vrot.lane.b32.xlu0 %v7306, 119
        %v7317 = vpop.permute.xlu0 %7316
        %7318 = vrot.lane.b32.xlu0 %v7307, 119
        %v7319 = vpop.permute.xlu0 %7318
        %7324 = vst.msk [vmem:[#allocation3 + $0x120] sm:$0xff] %vm3878, %v7313
        %7325 = vst.msk [vmem:[#allocation3 + $0x128] sm:$0xff] %vm3878, %v7315
        %7326 = vst.msk [vmem:[#allocation3 + $0x130] sm:$0xff] %vm3878, %v7317
        %7327 = vst.msk [vmem:[#allocation3 + $0x138] sm:$0xff] %vm3878, %v7319
        %v7328 = vld [vmem:[#allocation2] sm:$0xff]
        %v7329 = vld [vmem:[#allocation2 + $0x8] sm:$0xff]
        %v7330 = vld [vmem:[#allocation2 + $0x10] sm:$0xff]
        %v7331 = vld [vmem:[#allocation2 + $0x18] sm:$0xff]
        %7336 = vrot.lane.b32.xlu0 %v7328, 118
        %v7337 = vpop.permute.xlu0 %7336
        %7338 = vrot.lane.b32.xlu0 %v7329, 118
        %v7339 = vpop.permute.xlu0 %7338
        %7340 = vrot.lane.b32.xlu0 %v7330, 118
        %v7341 = vpop.permute.xlu0 %7340
        %7342 = vrot.lane.b32.xlu0 %v7331, 118
        %v7343 = vpop.permute.xlu0 %7342
        %7348 = vst.msk [vmem:[#allocation3 + $0x140] sm:$0xff] %vm3878, %v7337
        %7349 = vst.msk [vmem:[#allocation3 + $0x148] sm:$0xff] %vm3878, %v7339
        %7350 = vst.msk [vmem:[#allocation3 + $0x150] sm:$0xff] %vm3878, %v7341
        %7351 = vst.msk [vmem:[#allocation3 + $0x158] sm:$0xff] %vm3878, %v7343
        %v7352 = vld [vmem:[#allocation2] sm:$0xff]
        %v7353 = vld [vmem:[#allocation2 + $0x8] sm:$0xff]
        %v7354 = vld [vmem:[#allocation2 + $0x10] sm:$0xff]
        %v7355 = vld [vmem:[#allocation2 + $0x18] sm:$0xff]
        %7360 = vrot.lane.b32.xlu0 %v7352, 117
        %v7361 = vpop.permute.xlu0 %7360
        %7362 = vrot.lane.b32.xlu0 %v7353, 117
        %v7363 = vpop.permute.xlu0 %7362
        %7364 = vrot.lane.b32.xlu0 %v7354, 117
        %v7365 = vpop.permute.xlu0 %7364
        %7366 = vrot.lane.b32.xlu0 %v7355, 117
        %v7367 = vpop.permute.xlu0 %7366
        %7372 = vst.msk [vmem:[#allocation3 + $0x160] sm:$0xff] %vm3878, %v7361
        %7373 = vst.msk [vmem:[#allocation3 + $0x168] sm:$0xff] %vm3878, %v7363
        %7374 = vst.msk [vmem:[#allocation3 + $0x170] sm:$0xff] %vm3878, %v7365
        %7375 = vst.msk [vmem:[#allocation3 + $0x178] sm:$0xff] %vm3878, %v7367
        %v7376 = vld [vmem:[#allocation2] sm:$0xff]
        %v7377 = vld [vmem:[#allocation2 + $0x8] sm:$0xff]
        %v7378 = vld [vmem:[#allocation2 + $0x10] sm:$0xff]
        %v7379 = vld [vmem:[#allocation2 + $0x18] sm:$0xff]
        %7384 = vrot.lane.b32.xlu0 %v7376, 116
        %v7385 = vpop.permute.xlu0 %7384
        %7386 = vrot.lane.b32.xlu0 %v7377, 116
        %v7387 = vpop.permute.xlu0 %7386
        %7388 = vrot.lane.b32.xlu0 %v7378, 116
        %v7389 = vpop.permute.xlu0 %7388
        %7390 = vrot.lane.b32.xlu0 %v7379, 116
        %v7391 = vpop.permute.xlu0 %7390
        %7396 = vst.msk [vmem:[#allocation3 + $0x180] sm:$0xff] %vm3878, %v7385
        %7397 = vst.msk [vmem:[#allocation3 + $0x188] sm:$0xff] %vm3878, %v7387
        %7398 = vst.msk [vmem:[#allocation3 + $0x190] sm:$0xff] %vm3878, %v7389
        %7399 = vst.msk [vmem:[#allocation3 + $0x198] sm:$0xff] %vm3878, %v7391
        %v7400 = vld [vmem:[#allocation2] sm:$0xff]
        %v7401 = vld [vmem:[#allocation2 + $0x8] sm:$0xff]
        %v7402 = vld [vmem:[#allocation2 + $0x10] sm:$0xff]
        %v7403 = vld [vmem:[#allocation2 + $0x18] sm:$0xff]
        %7408 = vrot.lane.b32.xlu0 %v7400, 115
        %v7409 = vpop.permute.xlu0 %7408
        %7410 = vrot.lane.b32.xlu0 %v7401, 115
        %v7411 = vpop.permute.xlu0 %7410
        %7412 = vrot.lane.b32.xlu0 %v7402, 115
        %v7413 = vpop.permute.xlu0 %7412
        %7414 = vrot.lane.b32.xlu0 %v7403, 115
        %v7415 = vpop.permute.xlu0 %7414
        %7420 = vst.msk [vmem:[#allocation3 + $0x1a0] sm:$0xff] %vm3878, %v7409
        %7421 = vst.msk [vmem:[#allocation3 + $0x1a8] sm:$0xff] %vm3878, %v7411
        %7422 = vst.msk [vmem:[#allocation3 + $0x1b0] sm:$0xff] %vm3878, %v7413
        %7423 = vst.msk [vmem:[#allocation3 + $0x1b8] sm:$0xff] %vm3878, %v7415
        %v7424 = vld [vmem:[#allocation2] sm:$0xff]
        %v7425 = vld [vmem:[#allocation2 + $0x8] sm:$0xff]
        %v7426 = vld [vmem:[#allocation2 + $0x10] sm:$0xff]
        %v7427 = vld [vmem:[#allocation2 + $0x18] sm:$0xff]
        %7432 = vrot.lane.b32.xlu0 %v7424, 114
        %v7433 = vpop.permute.xlu0 %7432
        %7434 = vrot.lane.b32.xlu0 %v7425, 114
        %v7435 = vpop.permute.xlu0 %7434
        %7436 = vrot.lane.b32.xlu0 %v7426, 114
        %v7437 = vpop.permute.xlu0 %7436
        %7438 = vrot.lane.b32.xlu0 %v7427, 114
        %v7439 = vpop.permute.xlu0 %7438
        %7444 = vst.msk [vmem:[#allocation3 + $0x1c0] sm:$0xff] %vm3878, %v7433
        %7445 = vst.msk [vmem:[#allocation3 + $0x1c8] sm:$0xff] %vm3878, %v7435
        %7446 = vst.msk [vmem:[#allocation3 + $0x1d0] sm:$0xff] %vm3878, %v7437
        %7447 = vst.msk [vmem:[#allocation3 + $0x1d8] sm:$0xff] %vm3878, %v7439
        %v7448 = vld [vmem:[#allocation3] sm:$0xff]
        %v7449 = vld [vmem:[#allocation3 + $0x8] sm:$0xff]
        %v7450 = vld [vmem:[#allocation3 + $0x10] sm:$0xff]
        %v7451 = vld [vmem:[#allocation3 + $0x18] sm:$0xff]
        %v7452 = vld [vmem:[#allocation3 + $0x20] sm:$0xff]
        %v7453 = vld [vmem:[#allocation3 + $0x28] sm:$0xff]
        %v7454 = vld [vmem:[#allocation3 + $0x30] sm:$0xff]
        %v7455 = vld [vmem:[#allocation3 + $0x38] sm:$0xff]
        %v7456 = vld [vmem:[#allocation3 + $0x40] sm:$0xff]
        %v7457 = vld [vmem:[#allocation3 + $0x48] sm:$0xff]
        %v7458 = vld [vmem:[#allocation3 + $0x50] sm:$0xff]
        %v7459 = vld [vmem:[#allocation3 + $0x58] sm:$0xff]
        %v7460 = vld [vmem:[#allocation3 + $0x60] sm:$0xff]
        %v7461 = vld [vmem:[#allocation3 + $0x68] sm:$0xff]
        %v7462 = vld [vmem:[#allocation3 + $0x70] sm:$0xff]
        %v7463 = vld [vmem:[#allocation3 + $0x78] sm:$0xff]
        %v7464 = vld [vmem:[#allocation3 + $0x80] sm:$0xff]
        %v7465 = vld [vmem:[#allocation3 + $0x88] sm:$0xff]
        %v7466 = vld [vmem:[#allocation3 + $0x90] sm:$0xff]
        %v7467 = vld [vmem:[#allocation3 + $0x98] sm:$0xff]
        %v7468 = vld [vmem:[#allocation3 + $0xa0] sm:$0xff]
        %v7469 = vld [vmem:[#allocation3 + $0xa8] sm:$0xff]
        %v7470 = vld [vmem:[#allocation3 + $0xb0] sm:$0xff]
        %v7471 = vld [vmem:[#allocation3 + $0xb8] sm:$0xff]
        %v7472 = vld [vmem:[#allocation3 + $0xc0] sm:$0xff]
        %v7473 = vld [vmem:[#allocation3 + $0xc8] sm:$0xff]
        %v7474 = vld [vmem:[#allocation3 + $0xd0] sm:$0xff]
        %v7475 = vld [vmem:[#allocation3 + $0xd8] sm:$0xff]
        %v7476 = vld [vmem:[#allocation3 + $0xe0] sm:$0xff]
        %v7477 = vld [vmem:[#allocation3 + $0xe8] sm:$0xff]
        %v7478 = vld [vmem:[#allocation3 + $0xf0] sm:$0xff]
        %v7479 = vld [vmem:[#allocation3 + $0xf8] sm:$0xff]
        %v7480 = vld [vmem:[#allocation3 + $0x100] sm:$0xff]
        %v7481 = vld [vmem:[#allocation3 + $0x108] sm:$0xff]
        %v7482 = vld [vmem:[#allocation3 + $0x110] sm:$0xff]
        %v7483 = vld [vmem:[#allocation3 + $0x118] sm:$0xff]
        %v7484 = vld [vmem:[#allocation3 + $0x120] sm:$0xff]
        %v7485 = vld [vmem:[#allocation3 + $0x128] sm:$0xff]
        %v7486 = vld [vmem:[#allocation3 + $0x130] sm:$0xff]
        %v7487 = vld [vmem:[#allocation3 + $0x138] sm:$0xff]
        %v7488 = vld [vmem:[#allocation3 + $0x140] sm:$0xff]
        %v7489 = vld [vmem:[#allocation3 + $0x148] sm:$0xff]
        %v7490 = vld [vmem:[#allocation3 + $0x150] sm:$0xff]
        %v7491 = vld [vmem:[#allocation3 + $0x158] sm:$0xff]
        %v7492 = vld [vmem:[#allocation3 + $0x160] sm:$0xff]
        %v7493 = vld [vmem:[#allocation3 + $0x168] sm:$0xff]
        %v7494 = vld [vmem:[#allocation3 + $0x170] sm:$0xff]
        %v7495 = vld [vmem:[#allocation3 + $0x178] sm:$0xff]
        %v7496 = vld [vmem:[#allocation3 + $0x180] sm:$0xff]
        %v7497 = vld [vmem:[#allocation3 + $0x188] sm:$0xff]
        %v7498 = vld [vmem:[#allocation3 + $0x190] sm:$0xff]
        %v7499 = vld [vmem:[#allocation3 + $0x198] sm:$0xff]
        %v7500 = vld [vmem:[#allocation3 + $0x1a0] sm:$0xff]
        %v7501 = vld [vmem:[#allocation3 + $0x1a8] sm:$0xff]
        %v7502 = vld [vmem:[#allocation3 + $0x1b0] sm:$0xff]
        %v7503 = vld [vmem:[#allocation3 + $0x1b8] sm:$0xff]
        %v7504 = vld [vmem:[#allocation3 + $0x1c0] sm:$0xff]
        %v7505 = vld [vmem:[#allocation3 + $0x1c8] sm:$0xff]
        %v7506 = vld [vmem:[#allocation3 + $0x1d0] sm:$0xff]
        %v7507 = vld [vmem:[#allocation3 + $0x1d8] sm:$0xff]
        %v7508 = vld [vmem:[#allocation3 + $0x1e0] sm:$0xff]
        %v7509 = vld [vmem:[#allocation17] sm:$0xff]
        %v7510 = vld [vmem:[#allocation17 + $0x8] sm:$0xff]
        %v7511 = vld [vmem:[#allocation17 + $0x10] sm:$0xff]
        %v7512 = vld [vmem:[#allocation17 + $0x18] sm:$0xff]
        %v7514 = vsel %vm1074, %v7512, 0
        %7516 = vmatprep.subr.mxu0 0.0
        %7517 = vmatpush1.msra.mxu0 %v7448
        %7518 = vmatprep.subr.mxu0 0.0
        %7519 = vmatpush1.msra.mxu0 %v7449
        %7520 = vmatprep.subr.mxu0 0.0
        %7521 = vmatpush1.msra.mxu0 %v7450
        %7522 = vmatprep.subr.mxu0 0.0
        %7523 = vmatpush1.msra.mxu0 %v7451
        %7524 = vmatprep.subr.mxu0 0.0
        %7525 = vmatpush1.msra.mxu0 %v7452
        %7526 = vmatprep.subr.mxu0 0.0
        %7527 = vmatpush1.msra.mxu0 %v7453
        %7528 = vmatprep.subr.mxu0 0.0
        %7529 = vmatpush1.msra.mxu0 %v7454
        %7530 = vmatprep.subr.mxu0 0.0
        %7531 = vmatpush1.msra.mxu0 %v7455
        %7532 = vmatprep.subr.mxu0 0.0
        %7533 = vmatpush1.msra.mxu0 %v7456
        %7534 = vmatprep.subr.mxu0 0.0
        %7535 = vmatpush1.msra.mxu0 %v7457
        %7536 = vmatprep.subr.mxu0 0.0
        %7537 = vmatpush1.msra.mxu0 %v7458
        %7538 = vmatprep.subr.mxu0 0.0
        %7539 = vmatpush1.msra.mxu0 %v7459
        %7540 = vmatprep.subr.mxu0 0.0
        %7541 = vmatpush1.msra.mxu0 %v7460
        %7542 = vmatprep.subr.mxu0 0.0
        %7543 = vmatpush1.msra.mxu0 %v7461
        %7544 = vmatprep.subr.mxu0 0.0
        %7545 = vmatpush1.msra.mxu0 %v7462
        %7546 = vmatprep.subr.mxu0 0.0
        %7547 = vmatpush1.msra.mxu0 %v7463
        %7548 = vmatprep.subr.mxu0 0.0
        %7549 = vmatpush1.msra.mxu0 %v7464
        %7550 = vmatprep.subr.mxu0 0.0
        %7551 = vmatpush1.msra.mxu0 %v7465
        %7552 = vmatprep.subr.mxu0 0.0
        %7553 = vmatpush1.msra.mxu0 %v7466
        %7554 = vmatprep.subr.mxu0 0.0
        %7555 = vmatpush1.msra.mxu0 %v7467
        %7556 = vmatprep.subr.mxu0 0.0
        %7557 = vmatpush1.msra.mxu0 %v7468
        %7558 = vmatprep.subr.mxu0 0.0
        %7559 = vmatpush1.msra.mxu0 %v7469
        %7560 = vmatprep.subr.mxu0 0.0
        %7561 = vmatpush1.msra.mxu0 %v7470
        %7562 = vmatprep.subr.mxu0 0.0
        %7563 = vmatpush1.msra.mxu0 %v7471
        %7564 = vmatprep.subr.mxu0 0.0
        %7565 = vmatpush1.msra.mxu0 %v7472
        %7566 = vmatprep.subr.mxu0 0.0
        %7567 = vmatpush1.msra.mxu0 %v7473
        %7568 = vmatprep.subr.mxu0 0.0
        %7569 = vmatpush1.msra.mxu0 %v7474
        %7570 = vmatprep.subr.mxu0 0.0
        %7571 = vmatpush1.msra.mxu0 %v7475
        %7572 = vmatprep.subr.mxu0 0.0
        %7573 = vmatpush1.msra.mxu0 %v7476
        %7574 = vmatprep.subr.mxu0 0.0
        %7575 = vmatpush1.msra.mxu0 %v7477
        %7576 = vmatprep.subr.mxu0 0.0
        %7577 = vmatpush1.msra.mxu0 %v7478
        %7578 = vmatprep.subr.mxu0 0.0
        %7579 = vmatpush1.msra.mxu0 %v7479
        %7580 = vmatprep.mubr.f32.mxu0 %v7510
        %7581 = vmatmul.mubr.f32.gmra.mrb[0].mxu0 %v7509
        %v7582 = vpop.f32.mrb[0].mxu0
        %v7583 = vadd.f32 0.0, %v7582
        %v7584 = vpop.f32.mrb[0].mxu0
        %7585 = vdwg.mxu0
        %7586 = vmatprep.subr.mxu0 0.0
        %7587 = vmatpush1.msra.mxu0 %v7480
        %7588 = vmatprep.subr.mxu0 0.0
        %7589 = vmatpush1.msra.mxu0 %v7481
        %7590 = vmatprep.subr.mxu0 0.0
        %7591 = vmatpush1.msra.mxu0 %v7482
        %7592 = vmatprep.subr.mxu0 0.0
        %7593 = vmatpush1.msra.mxu0 %v7483
        %7594 = vmatprep.subr.mxu0 0.0
        %7595 = vmatpush1.msra.mxu0 %v7484
        %7596 = vmatprep.subr.mxu0 0.0
        %7597 = vmatpush1.msra.mxu0 %v7485
        %7598 = vmatprep.subr.mxu0 0.0
        %7599 = vmatpush1.msra.mxu0 %v7486
        %7600 = vmatprep.subr.mxu0 0.0
        %7601 = vmatpush1.msra.mxu0 %v7487
        %7602 = vmatprep.subr.mxu0 0.0
        %7603 = vmatpush1.msra.mxu0 %v7488
        %7604 = vmatprep.subr.mxu0 0.0
        %7605 = vmatpush1.msra.mxu0 %v7489
        %7606 = vmatprep.subr.mxu0 0.0
        %7607 = vmatpush1.msra.mxu0 %v7490
        %7608 = vmatprep.subr.mxu0 0.0
        %7609 = vmatpush1.msra.mxu0 %v7491
        %7610 = vmatprep.subr.mxu0 0.0
        %7611 = vmatpush1.msra.mxu0 %v7492
        %7612 = vmatprep.subr.mxu0 0.0
        %7613 = vmatpush1.msra.mxu0 %v7493
        %7614 = vmatprep.subr.mxu0 0.0
        %7615 = vmatpush1.msra.mxu0 %v7494
        %7616 = vmatprep.subr.mxu0 0.0
        %7617 = vmatpush1.msra.mxu0 %v7495
        %7618 = vmatprep.subr.mxu0 0.0
        %7619 = vmatpush1.msra.mxu0 %v7496
        %7620 = vmatprep.subr.mxu0 0.0
        %7621 = vmatpush1.msra.mxu0 %v7497
        %7622 = vmatprep.subr.mxu0 0.0
        %7623 = vmatpush1.msra.mxu0 %v7498
        %7624 = vmatprep.subr.mxu0 0.0
        %7625 = vmatpush1.msra.mxu0 %v7499
        %7626 = vmatprep.subr.mxu0 0.0
        %7627 = vmatpush1.msra.mxu0 %v7500
        %7628 = vmatprep.subr.mxu0 0.0
        %7629 = vmatpush1.msra.mxu0 %v7501
        %7630 = vmatprep.subr.mxu0 0.0
        %7631 = vmatpush1.msra.mxu0 %v7502
        %7632 = vmatprep.subr.mxu0 0.0
        %7633 = vmatpush1.msra.mxu0 %v7503
        %7634 = vmatprep.subr.mxu0 0.0
        %7635 = vmatpush1.msra.mxu0 %v7504
        %7636 = vmatprep.subr.mxu0 0.0
        %7637 = vmatpush1.msra.mxu0 %v7505
        %7638 = vmatprep.subr.mxu0 0.0
        %7639 = vmatpush1.msra.mxu0 %v7506
        %7640 = vmatprep.subr.mxu0 0.0
        %7641 = vmatpush1.msra.mxu0 %v7507
        %7642 = vmatprep.subr.mxu0 0.0
        %7643 = vmatpush1.msra.mxu0 %v7508
        %7644 = vmatprep.subr.mxu0 0.0
        %7645 = vmatpush1.msra.mxu0 0.0
        %7646 = vmatprep.subr.mxu0 0.0
        %7647 = vmatpush1.msra.mxu0 0.0
        %7648 = vmatprep.subr.mxu0 0.0
        %7649 = vmatpush1.msra.mxu0 0.0
        %7650 = vmatprep.mubr.f32.mxu0 %v7514
        %7651 = vmatmul.mubr.f32.gmra.mrb[0].mxu0 %v7511
        %v7652 = vpop.f32.mrb[0].mxu0
        %v7653 = vadd.f32 %v7583, %v7652
        %v7654 = vpop.f32.mrb[0].mxu0
        %7655 = vdwg.mxu0
        %v7656 = vxor.u32 %v7653, 2147483648
        %v7657 = vmul.f32 %v7656, 1.442695
        %v7658 = vpow.pop %v7657
        %v7659 = vadd.f32 %v7658, 1.0
        %v7660 = vrcp.pop %v7659
        %v7661 = vmul.f32 1.0, %v7660
        %s7662 = sld [smem:[#allocation19 + $0x280]]
        %v7663 = vstv %s7662
        %v7664 = vmul.f32 %v7663, %v7661
        %s7665 = sld [smem:[#allocation19 + $0x281]]
        %v7666 = vstv %s7665
        %v7667 = vmul.f32 %v7666, %v7661
        %v7669 = vrot.slane %v7667, 1
        %v7671 = vadd.f32 %v7664, %v7669
        %s7672 = sld [smem:[#allocation19 + $0x282]]
        %v7673 = vstv %s7672
        %v7674 = vmul.f32 %v7673, %v7661
        %v7676 = vrot.slane %v7674, 2
        %v7678 = vadd.f32 %v7671, %v7676
        %s7679 = sld [smem:[#allocation19 + $0x283]]
        %v7680 = vstv %s7679
        %v7681 = vmul.f32 %v7680, %v7661
        %v7683 = vrot.slane %v7681, 3
        %v7685 = vadd.f32 %v7678, %v7683
        %s7686 = sld [smem:[#allocation19 + $0x284]]
        %v7687 = vstv %s7686
        %v7688 = vmul.f32 %v7687, %v7661
        %v7690 = vrot.slane %v7688, 4
        %v7692 = vadd.f32 %v7685, %v7690
        %s7693 = sld [smem:[#allocation19 + $0x285]]
        %v7694 = vstv %s7693
        %v7695 = vmul.f32 %v7694, %v7661
        %v7697 = vrot.slane %v7695, 5
        %v7699 = vadd.f32 %v7692, %v7697
        %s7700 = sld [smem:[#allocation19 + $0x286]]
        %v7701 = vstv %s7700
        %v7702 = vmul.f32 %v7701, %v7661
        %v7704 = vrot.slane %v7702, 6
        %v7706 = vadd.f32 %v7699, %v7704
        %s7707 = sld [smem:[#allocation19 + $0x287]]
        %v7708 = vstv %s7707
        %v7709 = vmul.f32 %v7708, %v7661
        %v7711 = vrot.slane %v7709, 7
        %v7713 = vadd.f32 %v7706, %v7711
        %v7714 = vadd.f32 %v5788, %v7075
        %v7715 = vadd.f32 %v7714, %v7713
        %v7716 = vmul.f32 %v7715, 0.33333334
        %v7717 = vlaneseq
        %v7718 = vand.u32 %v7717, 127
        %vm7719 = vcmp.eq.s32.totalorder %v455, %v7718
        %v7720 = vsel %vm7719, 1.0, 0.0
        %v7721 = vlaneseq
        %v7722 = vshrl.u32 %v7721, 7
        %v7723 = vsub.s32 0, %v7722
        %v7724 = vrot.slane %v7716, %v7723
        %v7725 = vmul.f32 %v7720, %v7724
        %vm7726 = vcmask 27648
        %v7727 = vsel %vm7726, %v7725, 0.0
        %7728 = vadd.xlane.f32.xlu0 %v7727
        %v7729 = vpop.xlane.xlu0 %7728
        %v7730 = vmul.f32 %v3786, %v7729
        %vm7731 = vcmask 125952
        %7732 = vst.msk [vmem:[%s453] sm:$0xf] %vm7731, %v7730
        %s7733 = sand.u32 %s233, 1
        %s7734 = scalar_lea.sflag [#allocation7], %s7733
        %s7735 = sand.u32 %s233, 1
        %s7736 = smul.addr %s7735, 4
        %s7737 = scalar_lea.vmem [#allocation21], %s7736
        // Predicated region
        $region93: #{tpu_custom_call.1} parent=55 // pred_check
          %p7738 = pneg %p243
        $region94: #{tpu_custom_call.1} parent=55 // pred_check_branch
          %7740 = sbr.rel (%p7738) target = $region96
        $region95: #{tpu_custom_call.1} parent=55 // pred_region
          %s7742 = ssub.s32 64, 64
          %7743 = vsyncadd %s7734, %s7742
          %s7744 = smul.addr %s31, 64
          %s7745 = scalar_lea.hbm %s9, %s7744
          %s7747 = sshll.u32 %s7737, 4
          %s7748 = int_to_ptr.vmem [resolvable:$true] %s7747
          %7750 = dma.vmem_to_hbm [thread:$0]  %s7748, 64, %s7745, %s7734
        $region96: #{tpu_custom_call.1} parent=55 // pred_fallthru
          _
      $region56: #{tpu_custom_call.1} parent=5 // pred_fallthru
        _
      %p7751 = scmp.le.s32.totalorder 2, %s26
      // Predicated region
      $region97: #{tpu_custom_call.1} parent=5 // pred_check
        %p7752 = pneg %p7751
      $region98: #{tpu_custom_call.1} parent=5 // pred_check_branch
        %7754 = sbr.rel (%p7752) target = $region100
      $region99: #{tpu_custom_call.1} parent=5 // pred_region
        %s7755 = ssub.s32 %s26, 2
        // Predicated region
        $region101: #{tpu_custom_call.1} parent=99 // pred_check
          %p7756 = pneg %p249
        $region102: #{tpu_custom_call.1} parent=99 // pred_check_branch
          %7758 = sbr.rel (%p7756) target = $region104
        $region103: #{tpu_custom_call.1} parent=99 // pred_region
          %s7759 = sand.u32 %s234, 1
          %s7760 = scalar_lea.sflag [#allocation7], %s7759
          %s7761 = sand.u32 %s234, 1
          %s7762 = smul.addr %s7761, 4
          %s7763 = scalar_lea.vmem [#allocation21], %s7762
          %7764 = dma.done %s7760, 64
        $region104: #{tpu_custom_call.1} parent=99 // pred_fallthru
          _
      $region100: #{tpu_custom_call.1} parent=5 // pred_fallthru
        _
    $region6: #{tpu_custom_call.1} parent=1 // loop_footer
      %s30 = sadd.s32 1, %s26
    $region7: #{tpu_custom_call.1} parent=1 // loop_footer_branch
      %25 = sbr.rel target = $region3
    $region8: #{tpu_custom_call.1} parent=1 // loop_exit
      _
    %7765 = vsyncpa [#allocation6], 1
    %s7766 = scalar_lea.sflag [#allocation6], 1
    %7767 = vsyncpa %s7766, 1
    %7768 = vsyncpa [#allocation10], 1
    %7769 = vsyncpa [#allocation13], 1
    %7770 = vsyncpa [#allocation16], 1
    %7771 = vsyncpa [#allocation7], 1
    %s7772 = scalar_lea.sflag [#allocation7], 1
    %7773 = vsyncpa %s7772, 1
    %7774 = vsyncpa [#allocation8], 1
    %s7775 = scalar_lea.sflag [#allocation8], 1
    %7776 = vsyncpa %s7775, 1
    %7777 = vsyncpa [#allocation20], 1

</llo_original>
